<compile_context>
chip_gen: v6e
topology: v6e:2x2x1
jax: 0.10.0
libtpu: 0.0.40
codegen_flags: <defaults>
</compile_context>

<pallas_src>
import numpy as np
import jax
import jax.numpy as jnp
from jax import lax
from jax.experimental import pallas as pl
from jax.experimental.pallas import tpu as pltpu

EPS = 1e-5  # default eps of nn.LayerNorm / layer_norm_eps


def _layernorm(x, gamma, beta):
    mu = jnp.mean(x, axis=-1, keepdims=True)
    var = jnp.mean((x - mu) ** 2, axis=-1, keepdims=True)
    return (x - mu) * lax.rsqrt(var + EPS) * gamma + beta


def _make_kernel(B, M, H):
    """Kernel factory closing over static config (batch, max_jobs, num_heads)."""

    def kernel(jobs_ref, clu_ref, gpu_ref, mask2_ref, gsum_ref,
               wj_ref, bj_ref, gj_ref, betaj_ref,
               wc_ref, bc_ref, gc_ref, betac_ref,
               wg_ref, bg_ref,
               wq_ref, wk_ref, wv_ref, bq_ref, bk_ref, bv_ref,
               wo_ref, bo_ref, ln1g_ref, ln1b_ref,
               wff1_ref, bff1_ref, wff2t_ref, bff2_ref,
               ln2g_ref, ln2b_ref,
               wout_ref, bout_ref,
               out_ref, x_scr, ctx_scr):
        f32 = jnp.float32
        bf16 = jnp.bfloat16
        E = wj_ref.shape[1]
        L = wq_ref.shape[0]
        S = M + 2

        # ---------------- token encoders (fp32) ----------------
        jt = jnp.dot(jobs_ref[...], wj_ref[...], preferred_element_type=f32) + bj_ref[...]
        jt = jnp.maximum(_layernorm(jt, gj_ref[...], betaj_ref[...]), 0.0)      # (B*M, E)

        ct = jnp.dot(clu_ref[...], wc_ref[...], preferred_element_type=f32) + bc_ref[...]
        ct = jnp.maximum(_layernorm(ct, gc_ref[...], betac_ref[...]), 0.0)      # (B, E)

        gt = jnp.dot(gpu_ref[...], wg_ref[...], preferred_element_type=f32) + bg_ref[...]
        gt = jnp.maximum(gt, 0.0)                                               # (B, E)

        # Assemble the flat (B*S, E) token slab in VMEM scratch (no concat).
        for b in range(B):
            x_scr[b * S:b * S + M, :] = jt[b * M:(b + 1) * M, :]
            x_scr[b * S + M:b * S + M + 1, :] = ct[b:b + 1, :]
            x_scr[b * S + M + 1:b * S + M + 2, :] = gt[b:b + 1, :]
        x = x_scr[...]                                                          # (B*S, E)

        mask2 = mask2_ref[...]   # (H*S, E): mask2[h*S+j, e] = 1 iff lane e belongs to head h
        gsum = gsum_ref[...]     # (H*S, H*S): block-diagonal ones (per-head column sums)

        def head_tile(t):
            # (S, E) -> (H*S, E); row (h, j) = t[j] with lanes outside head h zeroed.
            return jnp.concatenate([t] * H, axis=0) * mask2

        # ---- transformer encoder: post-norm, ReLU FFN, no dropout (eval) ----
        for l in range(L):
            xb = x.astype(bf16)
            # Dense lane-aligned QKV projections (scale 1/sqrt(Dh) folded into wq/bq).
            q = jnp.dot(xb, wq_ref[l], preferred_element_type=f32) + bq_ref[l]   # (B*S, E)
            k = jnp.dot(xb, wk_ref[l], preferred_element_type=f32) + bk_ref[l]
            v = jnp.dot(xb, wv_ref[l], preferred_element_type=f32) + bv_ref[l]

            for b in range(B):
                qb = q[b * S:(b + 1) * S, :]
                kb = k[b * S:(b + 1) * S, :]
                vb = v[b * S:(b + 1) * S, :]
                krep = head_tile(kb)                                   # (H*S, E)
                vrep = head_tile(vb)                                   # (H*S, E)
                # All-head scores in one matmul: s[i, h*S+j] = q_h[i] . k_h[j]
                s = lax.dot_general(qb, krep, (((1,), (1,)), ((), ())),
                                    preferred_element_type=f32)        # (S, H*S)
                s = s - jnp.max(s, axis=-1, keepdims=True)             # valid per-head shift
                e = jnp.exp(s)
                den = jnp.dot(e, gsum, preferred_element_type=f32)     # per-head block sums
                p = e * pl.reciprocal(jnp.maximum(den, 1e-30), approx=True)
                # Context lands directly in concatenated-head (S, E) layout.
                ctx_scr[b * S:(b + 1) * S, :] = jnp.dot(p, vrep,
                                                        preferred_element_type=f32)

            # Single fused output projection over all heads / all batch rows.
            attn = jnp.dot(ctx_scr[...].astype(bf16), wo_ref[l],
                           preferred_element_type=f32) + bo_ref[l]               # (B*S, E)
            x = _layernorm(x + attn, ln1g_ref[l], ln1b_ref[l])

            ff = jnp.dot(x.astype(bf16), wff1_ref[l],
                         preferred_element_type=f32) + bff1_ref[l]               # (B*S, F)
            ff = jnp.maximum(ff, 0.0)
            # wff2 is stored lane-dense as (E, F); contract F against F (trans-B).
            ff = lax.dot_general(ff.astype(bf16), wff2t_ref[l],
                                 (((1,), (1,)), ((), ())),
                                 preferred_element_type=f32) + bff2_ref[l]        # (B*S, E)
            x = _layernorm(x + ff, ln2g_ref[l], ln2b_ref[l])

        # ---------------- output head over job tokens (lane-dense (B, M)) ----------------
        wrow = wout_ref[...]                                            # (1, E)
        for b in range(B):
            xj = x[b * S:b * S + M, :]                                  # (M, E)
            row = lax.dot_general(wrow, xj, (((1,), (1,)), ((), ())),
                                  preferred_element_type=f32) + bout_ref[...]    # (1, M)
            out_ref[b:b + 1, :] = row

    return kernel


def make_params(key, num_nodes, num_gpus, max_jobs, embed_dim=32, num_heads=8,
                num_layers=4, ffn_dim=2048):
    """Deterministic synthetic parameters (canonical math layout, fp32).

    Linear weights are stored pre-transposed as (in, out); attention weights as
    (L, E, E) with head h occupying output columns [h*Dh, (h+1)*Dh); wff2 as
    (L, F, E) (canonical) -- the wrapper re-lays it out for the kernel.
    """
    ks = iter(jax.random.split(key, 64))

    def w(shape, scale=0.1):
        return jax.random.normal(next(ks), shape, jnp.float32) * scale

    NG = num_nodes * num_gpus
    E, L, F = embed_dim, num_layers, ffn_dim
    params = dict(
        wj=w((3, E)), bj=w((1, E)),
        gj=jnp.ones((1, E), jnp.float32) + w((1, E), 0.05), betaj=w((1, E)),
        wc=w((num_nodes, E)), bc=w((1, E)),
        gc=jnp.ones((1, E), jnp.float32) + w((1, E), 0.05), betac=w((1, E)),
        wg=w((NG, E)), bg=w((1, E)),
        wq=w((L, E, E)), wk=w((L, E, E)), wv=w((L, E, E)),
        bq=w((L, 1, E)), bk=w((L, 1, E)), bv=w((L, 1, E)),
        wo=w((L, E, E)), bo=w((L, 1, E)),
        ln1g=jnp.ones((L, 1, E), jnp.float32) + w((L, 1, E), 0.05), ln1b=w((L, 1, E)),
        wff1=w((L, E, F)), bff1=w((L, 1, F)),
        wff2=w((L, F, E)), bff2=w((L, 1, E)),
        ln2g=jnp.ones((L, 1, E), jnp.float32) + w((L, 1, E), 0.05), ln2b=w((L, 1, E)),
        wout=w((E, 1)), bout=w((1, 1)),
    )
    return params


def actor_forward(params, jobs, cluster, gpu_left, num_heads=8):
    B, M, _ = jobs.shape
    num_nodes = cluster.shape[-1]
    NG = int(np.prod(gpu_left.shape[1:]))
    E = params["wj"].shape[1]
    H = num_heads
    Dh = E // H
    S = M + 2
    HS = H * S
    f32, bf16 = jnp.float32, jnp.bfloat16
    inv_scale = 1.0 / float(np.sqrt(Dh))

    jobs2 = jobs.astype(f32).reshape(B * M, 3)
    clu2 = cluster.astype(f32).reshape(B, num_nodes)
    gpu2 = gpu_left.astype(f32).reshape(B, NG)

    # Constant head-block masks (built host-side; tiny, fp32).
    rows = np.arange(HS) // S          # head index of each tiled row
    cols = np.arange(E) // Dh          # head index of each lane
    mask2 = jnp.asarray((rows[:, None] == cols[None, :]).astype(np.float32))   # (HS, E)
    blk = np.arange(HS) // S
    gsum = jnp.asarray((blk[:, None] == blk[None, :]).astype(np.float32))      # (HS, HS)

    args = [
        jobs2, clu2, gpu2, mask2, gsum,
        params["wj"], params["bj"], params["gj"], params["betaj"],
        params["wc"], params["bc"], params["gc"], params["betac"],
        params["wg"], params["bg"],
        (params["wq"] * inv_scale).astype(bf16),        # scale folded into Wq
        params["wk"].astype(bf16),
        params["wv"].astype(bf16),
        params["bq"] * inv_scale, params["bk"], params["bv"],
        params["wo"].astype(bf16), params["bo"],
        params["ln1g"], params["ln1b"],
        params["wff1"].astype(bf16), params["bff1"],
        jnp.swapaxes(params["wff2"], 1, 2).astype(bf16),  # (L, E, F): lane-dense
        params["bff2"],
        params["ln2g"], params["ln2b"],
        params["wout"].reshape(1, E), params["bout"],
    ]

    out = pl.pallas_call(
        _make_kernel(B, M, H),
        out_shape=jax.ShapeDtypeStruct((B, M), f32),
        scratch_shapes=[pltpu.VMEM((B * S, E), f32),     # token slab
                        pltpu.VMEM((B * S, E), f32)],    # attention context
    )(*args)
    return out


def reference_forward(params, jobs, cluster, gpu_left, num_heads=8):
    """float64 numpy reference, identical math to the PyTorch forward."""
    p = {k: np.asarray(v, np.float64) for k, v in params.items()}
    jobs = np.asarray(jobs, np.float64)
    cluster = np.asarray(cluster, np.float64)
    B, M, _ = jobs.shape
    gpu = np.asarray(gpu_left, np.float64).reshape(B, -1)
    E = p["wj"].shape[1]
    L = p["wq"].shape[0]
    H = num_heads
    Dh = E // H
    S = M + 2

    def ln(x, g, b):
        mu = x.mean(-1, keepdims=True)
        var = ((x - mu) ** 2).mean(-1, keepdims=True)
        return (x - mu) / np.sqrt(var + EPS) * g + b

    def softmax(x):
        x = x - x.max(-1, keepdims=True)
        e = np.exp(x)
        return e / e.sum(-1, keepdims=True)

    jt = np.maximum(ln(jobs.reshape(-1, 3) @ p["wj"] + p["bj"], p["gj"], p["betaj"]), 0)
    jt = jt.reshape(B, M, E)
    clu = np.maximum(ln(cluster @ p["wc"] + p["bc"], p["gc"], p["betac"]), 0)[:, None, :]
    gp = np.maximum(gpu @ p["wg"] + p["bg"], 0)[:, None, :]
    x = np.concatenate([jt, clu, gp], axis=1)               # (B, S, E)

    def split_heads(t):
        return t.reshape(B, S, H, Dh).transpose(0, 2, 1, 3)

    for l in range(L):
        q = split_heads(x @ p["wq"][l] + p["bq"][l])
        k = split_heads(x @ p["wk"][l] + p["bk"][l])
        v = split_heads(x @ p["wv"][l] + p["bv"][l])
        s = np.einsum('bhqd,bhkd->bhqk', q, k) / np.sqrt(Dh)
        ctx = np.einsum('bhqk,bhkd->bhqd', softmax(s), v)
        ctx = ctx.transpose(0, 2, 1, 3).reshape(B, S, E)
        attn = ctx @ p["wo"][l] + p["bo"][l]
        x = ln(x + attn, p["ln1g"][l], p["ln1b"][l])
        ff = np.maximum(x @ p["wff1"][l] + p["bff1"][l], 0) @ p["wff2"][l] + p["bff2"][l]
        x = ln(x + ff, p["ln2g"][l], p["ln2b"][l])

    logits = (x[:, :M, :] @ p["wout"] + p["bout"]).reshape(B, M)
    return logits


if __name__ == "__main__":
    # Small shapes consistent with the module's forward.
    num_nodes, num_gpus, max_jobs = 4, 4, 8
    embed_dim, num_heads, num_layers = 32, 8, 4
    B = 2

    key = jax.random.PRNGKey(0)
    kp, kj, kc, kg = jax.random.split(key, 4)
    params = make_params(kp, num_nodes, num_gpus, max_jobs,
                         embed_dim, num_heads, num_layers)

    jobs = jax.random.normal(kj, (B, max_jobs, 3), jnp.float32)
    cluster = jax.random.normal(kc, (B, num_nodes), jnp.float32)
    gpu_left = jax.random.normal(kg, (B, num_nodes, num_gpus), jnp.float32)

    logits = actor_forward(params, jobs, cluster, gpu_left, num_heads=num_heads)
    logits = jax.block_until_ready(logits)

    ref = reference_forward(params, jobs, cluster, gpu_left, num_heads=num_heads)
    assert logits.shape == (B, max_jobs), logits.shape
    # bf16 dot operands + approx-reciprocal softmax vs a float64 reference.
    np.testing.assert_allclose(np.asarray(logits), ref, rtol=5e-2, atol=5e-2)

    print("KERNEL_OK")
</pallas_src>

<mosaic_0001>
module attributes {stable_mosaic.version = 11 : i64} {
  func.func @kernel(%arg0: memref<16x3xf32, #tpu.memory_space<vmem>>, %arg1: memref<2x4xf32, #tpu.memory_space<vmem>>, %arg2: memref<2x16xf32, #tpu.memory_space<vmem>>, %arg3: memref<80x32xf32, #tpu.memory_space<vmem>>, %arg4: memref<80x80xf32, #tpu.memory_space<vmem>>, %arg5: memref<3x32xf32, #tpu.memory_space<vmem>>, %arg6: memref<1x32xf32, #tpu.memory_space<vmem>>, %arg7: memref<1x32xf32, #tpu.memory_space<vmem>>, %arg8: memref<1x32xf32, #tpu.memory_space<vmem>>, %arg9: memref<4x32xf32, #tpu.memory_space<vmem>>, %arg10: memref<1x32xf32, #tpu.memory_space<vmem>>, %arg11: memref<1x32xf32, #tpu.memory_space<vmem>>, %arg12: memref<1x32xf32, #tpu.memory_space<vmem>>, %arg13: memref<16x32xf32, #tpu.memory_space<vmem>>, %arg14: memref<1x32xf32, #tpu.memory_space<vmem>>, %arg15: memref<4x32x32xbf16, #tpu.memory_space<vmem>>, %arg16: memref<4x32x32xbf16, #tpu.memory_space<vmem>>, %arg17: memref<4x32x32xbf16, #tpu.memory_space<vmem>>, %arg18: memref<4x1x32xf32, #tpu.memory_space<vmem>>, %arg19: memref<4x1x32xf32, #tpu.memory_space<vmem>>, %arg20: memref<4x1x32xf32, #tpu.memory_space<vmem>>, %arg21: memref<4x32x32xbf16, #tpu.memory_space<vmem>>, %arg22: memref<4x1x32xf32, #tpu.memory_space<vmem>>, %arg23: memref<4x1x32xf32, #tpu.memory_space<vmem>>, %arg24: memref<4x1x32xf32, #tpu.memory_space<vmem>>, %arg25: memref<4x32x2048xbf16, #tpu.memory_space<vmem>>, %arg26: memref<4x1x2048xf32, #tpu.memory_space<vmem>>, %arg27: memref<4x32x2048xbf16, #tpu.memory_space<vmem>>, %arg28: memref<4x1x32xf32, #tpu.memory_space<vmem>>, %arg29: memref<4x1x32xf32, #tpu.memory_space<vmem>>, %arg30: memref<4x1x32xf32, #tpu.memory_space<vmem>>, %arg31: memref<1x32xf32, #tpu.memory_space<vmem>>, %arg32: memref<1x1xf32, #tpu.memory_space<vmem>>, %arg33: memref<2x8xf32, #tpu.memory_space<vmem>>, %arg34: memref<20x32xf32, #tpu.memory_space<vmem>>, %arg35: memref<20x32xf32, #tpu.memory_space<vmem>>) attributes {dimension_semantics = [], scalar_prefetch = 0 : i64, scratch_operands = 2 : i64, tpu.core_type = #tpu.core_type<tc>} {
    %c0 = arith.constant 0 : index
    %c0_0 = arith.constant 0 : index
    %0 = vector.load %arg0[%c0, %c0_0] : memref<16x3xf32, #tpu.memory_space<vmem>>, vector<16x3xf32>
    %c0_1 = arith.constant 0 : index
    %c0_2 = arith.constant 0 : index
    %1 = vector.load %arg5[%c0_1, %c0_2] : memref<3x32xf32, #tpu.memory_space<vmem>>, vector<3x32xf32>
    %cst = arith.constant dense<0.000000e+00> : vector<16x32xf32>
    %2 = tpu.matmul %0, %1, %cst {dimension_numbers = #tpu.dot_dimension_numbers<[1], [0], [0], [1], [0, 0, 1, 1], [], []>} : vector<16x3xf32>, vector<3x32xf32>, vector<16x32xf32> -> vector<16x32xf32>
    %c0_3 = arith.constant 0 : index
    %c0_4 = arith.constant 0 : index
    %3 = vector.load %arg6[%c0_3, %c0_4] : memref<1x32xf32, #tpu.memory_space<vmem>>, vector<1x32xf32>
    %4 = vector.broadcast %3 : vector<1x32xf32> to vector<16x32xf32>
    %5 = arith.addf %2, %4 : vector<16x32xf32>
    %c0_5 = arith.constant 0 : index
    %c0_6 = arith.constant 0 : index
    %6 = vector.load %arg7[%c0_5, %c0_6] : memref<1x32xf32, #tpu.memory_space<vmem>>, vector<1x32xf32>
    %c0_7 = arith.constant 0 : index
    %c0_8 = arith.constant 0 : index
    %7 = vector.load %arg8[%c0_7, %c0_8] : memref<1x32xf32, #tpu.memory_space<vmem>>, vector<1x32xf32>
    %cst_9 = arith.constant dense<0.000000e+00> : vector<16xf32>
    %8 = vector.multi_reduction <add>, %5, %cst_9 [1] : vector<16x32xf32> to vector<16xf32>
    %9 = vector.shape_cast %8 : vector<16xf32> to vector<16x1xf32>
    %cst_10 = arith.constant 3.200000e+01 : f32
    %10 = vector.broadcast %cst_10 : f32 to vector<16x1xf32>
    %11 = arith.divf %9, %10 : vector<16x1xf32>
    %12 = vector.broadcast %11 : vector<16x1xf32> to vector<16x32xf32>
    %13 = arith.subf %5, %12 : vector<16x32xf32>
    %14 = arith.mulf %13, %13 : vector<16x32xf32>
    %cst_11 = arith.constant dense<0.000000e+00> : vector<16xf32>
    %15 = vector.multi_reduction <add>, %14, %cst_11 [1] : vector<16x32xf32> to vector<16xf32>
    %16 = vector.shape_cast %15 : vector<16xf32> to vector<16x1xf32>
    %cst_12 = arith.constant 3.200000e+01 : f32
    %17 = vector.broadcast %cst_12 : f32 to vector<16x1xf32>
    %18 = arith.divf %16, %17 : vector<16x1xf32>
    %19 = vector.broadcast %11 : vector<16x1xf32> to vector<16x32xf32>
    %20 = arith.subf %5, %19 : vector<16x32xf32>
    %cst_13 = arith.constant 9.99999974E-6 : f32
    %21 = vector.broadcast %cst_13 : f32 to vector<16x1xf32>
    %22 = arith.addf %18, %21 : vector<16x1xf32>
    %23 = math.rsqrt %22 : vector<16x1xf32>
    %24 = vector.broadcast %23 : vector<16x1xf32> to vector<16x32xf32>
    %25 = arith.mulf %20, %24 : vector<16x32xf32>
    %26 = vector.broadcast %6 : vector<1x32xf32> to vector<16x32xf32>
    %27 = arith.mulf %25, %26 : vector<16x32xf32>
    %28 = vector.broadcast %7 : vector<1x32xf32> to vector<16x32xf32>
    %29 = arith.addf %27, %28 : vector<16x32xf32>
    %cst_14 = arith.constant 0.000000e+00 : f32
    %30 = vector.broadcast %cst_14 : f32 to vector<16x32xf32>
    %31 = arith.maximumf %29, %30 : vector<16x32xf32>
    %c0_15 = arith.constant 0 : index
    %c0_16 = arith.constant 0 : index
    %32 = vector.load %arg1[%c0_15, %c0_16] : memref<2x4xf32, #tpu.memory_space<vmem>>, vector<2x4xf32>
    %c0_17 = arith.constant 0 : index
    %c0_18 = arith.constant 0 : index
    %33 = vector.load %arg9[%c0_17, %c0_18] : memref<4x32xf32, #tpu.memory_space<vmem>>, vector<4x32xf32>
    %cst_19 = arith.constant dense<0.000000e+00> : vector<2x32xf32>
    %34 = tpu.matmul %32, %33, %cst_19 {dimension_numbers = #tpu.dot_dimension_numbers<[1], [0], [0], [1], [0, 0, 1, 1], [], []>} : vector<2x4xf32>, vector<4x32xf32>, vector<2x32xf32> -> vector<2x32xf32>
    %c0_20 = arith.constant 0 : index
    %c0_21 = arith.constant 0 : index
    %35 = vector.load %arg10[%c0_20, %c0_21] : memref<1x32xf32, #tpu.memory_space<vmem>>, vector<1x32xf32>
    %36 = vector.broadcast %35 : vector<1x32xf32> to vector<2x32xf32>
    %37 = arith.addf %34, %36 : vector<2x32xf32>
    %c0_22 = arith.constant 0 : index
    %c0_23 = arith.constant 0 : index
    %38 = vector.load %arg11[%c0_22, %c0_23] : memref<1x32xf32, #tpu.memory_space<vmem>>, vector<1x32xf32>
    %c0_24 = arith.constant 0 : index
    %c0_25 = arith.constant 0 : index
    %39 = vector.load %arg12[%c0_24, %c0_25] : memref<1x32xf32, #tpu.memory_space<vmem>>, vector<1x32xf32>
    %cst_26 = arith.constant dense<0.000000e+00> : vector<2xf32>
    %40 = vector.multi_reduction <add>, %37, %cst_26 [1] : vector<2x32xf32> to vector<2xf32>
    %41 = vector.shape_cast %40 : vector<2xf32> to vector<2x1xf32>
    %cst_27 = arith.constant 3.200000e+01 : f32
    %42 = vector.broadcast %cst_27 : f32 to vector<2x1xf32>
    %43 = arith.divf %41, %42 : vector<2x1xf32>
    %44 = vector.broadcast %43 : vector<2x1xf32> to vector<2x32xf32>
    %45 = arith.subf %37, %44 : vector<2x32xf32>
    %46 = arith.mulf %45, %45 : vector<2x32xf32>
    %cst_28 = arith.constant dense<0.000000e+00> : vector<2xf32>
    %47 = vector.multi_reduction <add>, %46, %cst_28 [1] : vector<2x32xf32> to vector<2xf32>
    %48 = vector.shape_cast %47 : vector<2xf32> to vector<2x1xf32>
    %cst_29 = arith.constant 3.200000e+01 : f32
    %49 = vector.broadcast %cst_29 : f32 to vector<2x1xf32>
    %50 = arith.divf %48, %49 : vector<2x1xf32>
    %51 = vector.broadcast %43 : vector<2x1xf32> to vector<2x32xf32>
    %52 = arith.subf %37, %51 : vector<2x32xf32>
    %cst_30 = arith.constant 9.99999974E-6 : f32
    %53 = vector.broadcast %cst_30 : f32 to vector<2x1xf32>
    %54 = arith.addf %50, %53 : vector<2x1xf32>
    %55 = math.rsqrt %54 : vector<2x1xf32>
    %56 = vector.broadcast %55 : vector<2x1xf32> to vector<2x32xf32>
    %57 = arith.mulf %52, %56 : vector<2x32xf32>
    %58 = vector.broadcast %38 : vector<1x32xf32> to vector<2x32xf32>
    %59 = arith.mulf %57, %58 : vector<2x32xf32>
    %60 = vector.broadcast %39 : vector<1x32xf32> to vector<2x32xf32>
    %61 = arith.addf %59, %60 : vector<2x32xf32>
    %cst_31 = arith.constant 0.000000e+00 : f32
    %62 = vector.broadcast %cst_31 : f32 to vector<2x32xf32>
    %63 = arith.maximumf %61, %62 : vector<2x32xf32>
    %c0_32 = arith.constant 0 : index
    %c0_33 = arith.constant 0 : index
    %64 = vector.load %arg2[%c0_32, %c0_33] : memref<2x16xf32, #tpu.memory_space<vmem>>, vector<2x16xf32>
    %c0_34 = arith.constant 0 : index
    %c0_35 = arith.constant 0 : index
    %65 = vector.load %arg13[%c0_34, %c0_35] : memref<16x32xf32, #tpu.memory_space<vmem>>, vector<16x32xf32>
    %cst_36 = arith.constant dense<0.000000e+00> : vector<2x32xf32>
    %66 = tpu.matmul %64, %65, %cst_36 {dimension_numbers = #tpu.dot_dimension_numbers<[1], [0], [0], [1], [0, 0, 1, 1], [], []>} : vector<2x16xf32>, vector<16x32xf32>, vector<2x32xf32> -> vector<2x32xf32>
    %c0_37 = arith.constant 0 : index
    %c0_38 = arith.constant 0 : index
    %67 = vector.load %arg14[%c0_37, %c0_38] : memref<1x32xf32, #tpu.memory_space<vmem>>, vector<1x32xf32>
    %68 = vector.broadcast %67 : vector<1x32xf32> to vector<2x32xf32>
    %69 = arith.addf %66, %68 : vector<2x32xf32>
    %cst_39 = arith.constant 0.000000e+00 : f32
    %70 = vector.broadcast %cst_39 : f32 to vector<2x32xf32>
    %71 = arith.maximumf %69, %70 : vector<2x32xf32>
    %72 = vector.extract_strided_slice %31 {offsets = [0, 0], sizes = [8, 32], strides = [1, 1]} : vector<16x32xf32> to vector<8x32xf32>
    %c0_40 = arith.constant 0 : index
    %c0_41 = arith.constant 0 : index
    %73 = vector.load %arg34[%c0_40, %c0_41] : memref<20x32xf32, #tpu.memory_space<vmem>>, vector<8x32xf32>
    tpu.vector_store %arg34[%c0_40, %c0_41], %72 {strides = array<i32>} : memref<20x32xf32, #tpu.memory_space<vmem>>, vector<8x32xf32>,
    %74 = vector.extract_strided_slice %63 {offsets = [0, 0], sizes = [1, 32], strides = [1, 1]} : vector<2x32xf32> to vector<1x32xf32>
    %c8 = arith.constant 8 : index
    %c0_42 = arith.constant 0 : index
    %75 = vector.load %arg34[%c8, %c0_42] : memref<20x32xf32, #tpu.memory_space<vmem>>, vector<1x32xf32>
    tpu.vector_store %arg34[%c8, %c0_42], %74 {strides = array<i32>} : memref<20x32xf32, #tpu.memory_space<vmem>>, vector<1x32xf32>,
    %76 = vector.extract_strided_slice %71 {offsets = [0, 0], sizes = [1, 32], strides = [1, 1]} : vector<2x32xf32> to vector<1x32xf32>
    %c9 = arith.constant 9 : index
    %c0_43 = arith.constant 0 : index
    %77 = vector.load %arg34[%c9, %c0_43] : memref<20x32xf32, #tpu.memory_space<vmem>>, vector<1x32xf32>
    tpu.vector_store %arg34[%c9, %c0_43], %76 {strides = array<i32>} : memref<20x32xf32, #tpu.memory_space<vmem>>, vector<1x32xf32>,
    %78 = vector.extract_strided_slice %31 {offsets = [8, 0], sizes = [8, 32], strides = [1, 1]} : vector<16x32xf32> to vector<8x32xf32>
    %c10 = arith.constant 10 : index
    %c0_44 = arith.constant 0 : index
    %79 = vector.load %arg34[%c10, %c0_44] : memref<20x32xf32, #tpu.memory_space<vmem>>, vector<8x32xf32>
    tpu.vector_store %arg34[%c10, %c0_44], %78 {strides = array<i32>} : memref<20x32xf32, #tpu.memory_space<vmem>>, vector<8x32xf32>,
    %80 = vector.extract_strided_slice %63 {offsets = [1, 0], sizes = [1, 32], strides = [1, 1]} : vector<2x32xf32> to vector<1x32xf32>
    %c18 = arith.constant 18 : index
    %c0_45 = arith.constant 0 : index
    %81 = vector.load %arg34[%c18, %c0_45] : memref<20x32xf32, #tpu.memory_space<vmem>>, vector<1x32xf32>
    tpu.vector_store %arg34[%c18, %c0_45], %80 {strides = array<i32>} : memref<20x32xf32, #tpu.memory_space<vmem>>, vector<1x32xf32>,
    %82 = vector.extract_strided_slice %71 {offsets = [1, 0], sizes = [1, 32], strides = [1, 1]} : vector<2x32xf32> to vector<1x32xf32>
    %c19 = arith.constant 19 : index
    %c0_46 = arith.constant 0 : index
    %83 = vector.load %arg34[%c19, %c0_46] : memref<20x32xf32, #tpu.memory_space<vmem>>, vector<1x32xf32>
    tpu.vector_store %arg34[%c19, %c0_46], %82 {strides = array<i32>} : memref<20x32xf32, #tpu.memory_space<vmem>>, vector<1x32xf32>,
    %c0_47 = arith.constant 0 : index
    %c0_48 = arith.constant 0 : index
    %84 = vector.load %arg34[%c0_47, %c0_48] : memref<20x32xf32, #tpu.memory_space<vmem>>, vector<20x32xf32>
    %c0_49 = arith.constant 0 : index
    %c0_50 = arith.constant 0 : index
    %85 = vector.load %arg3[%c0_49, %c0_50] : memref<80x32xf32, #tpu.memory_space<vmem>>, vector<80x32xf32>
    %c0_51 = arith.constant 0 : index
    %c0_52 = arith.constant 0 : index
    %86 = vector.load %arg4[%c0_51, %c0_52] : memref<80x80xf32, #tpu.memory_space<vmem>>, vector<80x80xf32>
    %87 = arith.truncf %84 : vector<20x32xf32> to vector<20x32xbf16>
    %c0_53 = arith.constant 0 : index
    %c0_54 = arith.constant 0 : index
    %c0_55 = arith.constant 0 : index
    %88 = vector.load %arg15[%c0_53, %c0_54, %c0_55] : memref<4x32x32xbf16, #tpu.memory_space<vmem>>, vector<1x32x32xbf16>
    %89 = vector.shape_cast %88 : vector<1x32x32xbf16> to vector<32x32xbf16>
    %cst_56 = arith.constant dense<0.000000e+00> : vector<20x32xf32>
    %90 = tpu.matmul %87, %89, %cst_56 {dimension_numbers = #tpu.dot_dimension_numbers<[1], [0], [0], [1], [0, 0, 1, 1], [], []>} : vector<20x32xbf16>, vector<32x32xbf16>, vector<20x32xf32> -> vector<20x32xf32>
    %c0_57 = arith.constant 0 : index
    %c0_58 = arith.constant 0 : index
    %c0_59 = arith.constant 0 : index
    %91 = vector.load %arg18[%c0_57, %c0_58, %c0_59] : memref<4x1x32xf32, #tpu.memory_space<vmem>>, vector<1x1x32xf32>
    %92 = vector.shape_cast %91 : vector<1x1x32xf32> to vector<1x32xf32>
    %93 = vector.broadcast %92 : vector<1x32xf32> to vector<20x32xf32>
    %94 = arith.addf %90, %93 : vector<20x32xf32>
    %c0_60 = arith.constant 0 : index
    %c0_61 = arith.constant 0 : index
    %c0_62 = arith.constant 0 : index
    %95 = vector.load %arg16[%c0_60, %c0_61, %c0_62] : memref<4x32x32xbf16, #tpu.memory_space<vmem>>, vector<1x32x32xbf16>
    %96 = vector.shape_cast %95 : vector<1x32x32xbf16> to vector<32x32xbf16>
    %cst_63 = arith.constant dense<0.000000e+00> : vector<20x32xf32>
    %97 = tpu.matmul %87, %96, %cst_63 {dimension_numbers = #tpu.dot_dimension_numbers<[1], [0], [0], [1], [0, 0, 1, 1], [], []>} : vector<20x32xbf16>, vector<32x32xbf16>, vector<20x32xf32> -> vector<20x32xf32>
    %c0_64 = arith.constant 0 : index
    %c0_65 = arith.constant 0 : index
    %c0_66 = arith.constant 0 : index
    %98 = vector.load %arg19[%c0_64, %c0_65, %c0_66] : memref<4x1x32xf32, #tpu.memory_space<vmem>>, vector<1x1x32xf32>
    %99 = vector.shape_cast %98 : vector<1x1x32xf32> to vector<1x32xf32>
    %100 = vector.broadcast %99 : vector<1x32xf32> to vector<20x32xf32>
    %101 = arith.addf %97, %100 : vector<20x32xf32>
    %c0_67 = arith.constant 0 : index
    %c0_68 = arith.constant 0 : index
    %c0_69 = arith.constant 0 : index
    %102 = vector.load %arg17[%c0_67, %c0_68, %c0_69] : memref<4x32x32xbf16, #tpu.memory_space<vmem>>, vector<1x32x32xbf16>
    %103 = vector.shape_cast %102 : vector<1x32x32xbf16> to vector<32x32xbf16>
    %cst_70 = arith.constant dense<0.000000e+00> : vector<20x32xf32>
    %104 = tpu.matmul %87, %103, %cst_70 {dimension_numbers = #tpu.dot_dimension_numbers<[1], [0], [0], [1], [0, 0, 1, 1], [], []>} : vector<20x32xbf16>, vector<32x32xbf16>, vector<20x32xf32> -> vector<20x32xf32>
    %c0_71 = arith.constant 0 : index
    %c0_72 = arith.constant 0 : index
    %c0_73 = arith.constant 0 : index
    %105 = vector.load %arg20[%c0_71, %c0_72, %c0_73] : memref<4x1x32xf32, #tpu.memory_space<vmem>>, vector<1x1x32xf32>
    %106 = vector.shape_cast %105 : vector<1x1x32xf32> to vector<1x32xf32>
    %107 = vector.broadcast %106 : vector<1x32xf32> to vector<20x32xf32>
    %108 = arith.addf %104, %107 : vector<20x32xf32>
    %109 = vector.extract_strided_slice %94 {offsets = [0, 0], sizes = [10, 32], strides = [1, 1]} : vector<20x32xf32> to vector<10x32xf32>
    %110 = vector.extract_strided_slice %101 {offsets = [0, 0], sizes = [10, 32], strides = [1, 1]} : vector<20x32xf32> to vector<10x32xf32>
    %111 = vector.extract_strided_slice %108 {offsets = [0, 0], sizes = [10, 32], strides = [1, 1]} : vector<20x32xf32> to vector<10x32xf32>
    %112 = tpu.concatenate %110, %110, %110, %110, %110, %110, %110, %110 in 0 : vector<10x32xf32>, vector<10x32xf32>, vector<10x32xf32>, vector<10x32xf32>, vector<10x32xf32>, vector<10x32xf32>, vector<10x32xf32>, vector<10x32xf32> -> vector<80x32xf32>
    %113 = arith.mulf %112, %85 : vector<80x32xf32>
    %114 = tpu.concatenate %111, %111, %111, %111, %111, %111, %111, %111 in 0 : vector<10x32xf32>, vector<10x32xf32>, vector<10x32xf32>, vector<10x32xf32>, vector<10x32xf32>, vector<10x32xf32>, vector<10x32xf32>, vector<10x32xf32> -> vector<80x32xf32>
    %115 = arith.mulf %114, %85 : vector<80x32xf32>
    %cst_74 = arith.constant dense<0.000000e+00> : vector<10x80xf32>
    %116 = tpu.matmul %109, %113, %cst_74 {dimension_numbers = #tpu.dot_dimension_numbers<[1], [1], [0], [0], [0, 0, 1, 0], [], []>} : vector<10x32xf32>, vector<80x32xf32>, vector<10x80xf32> -> vector<10x80xf32>
    %cst_75 = arith.constant dense<0xFF800000> : vector<10xf32>
    %117 = vector.multi_reduction <maximumf>, %116, %cst_75 [1] : vector<10x80xf32> to vector<10xf32>
    %118 = vector.shape_cast %117 : vector<10xf32> to vector<10x1xf32>
    %119 = vector.broadcast %118 : vector<10x1xf32> to vector<10x80xf32>
    %120 = arith.subf %116, %119 : vector<10x80xf32>
    %121 = math.exp %120 : vector<10x80xf32>
    %cst_76 = arith.constant dense<0.000000e+00> : vector<10x80xf32>
    %122 = tpu.matmul %121, %86, %cst_76 {dimension_numbers = #tpu.dot_dimension_numbers<[1], [0], [0], [1], [0, 0, 1, 1], [], []>} : vector<10x80xf32>, vector<80x80xf32>, vector<10x80xf32> -> vector<10x80xf32>
    %cst_77 = arith.constant 1.000000e-30 : f32
    %123 = vector.broadcast %cst_77 : f32 to vector<10x80xf32>
    %124 = arith.maximumf %122, %123 : vector<10x80xf32>
    %125 = tpu.reciprocal %124 {approx = true} : vector<10x80xf32> -> vector<10x80xf32>
    %126 = arith.mulf %121, %125 : vector<10x80xf32>
    %cst_78 = arith.constant dense<0.000000e+00> : vector<10x32xf32>
    %127 = tpu.matmul %126, %115, %cst_78 {dimension_numbers = #tpu.dot_dimension_numbers<[1], [0], [0], [1], [0, 0, 1, 1], [], []>} : vector<10x80xf32>, vector<80x32xf32>, vector<10x32xf32> -> vector<10x32xf32>
    %c0_79 = arith.constant 0 : index
    %c0_80 = arith.constant 0 : index
    %128 = vector.load %arg35[%c0_79, %c0_80] : memref<20x32xf32, #tpu.memory_space<vmem>>, vector<10x32xf32>
    tpu.vector_store %arg35[%c0_79, %c0_80], %127 {strides = array<i32>} : memref<20x32xf32, #tpu.memory_space<vmem>>, vector<10x32xf32>,
    %129 = vector.extract_strided_slice %94 {offsets = [10, 0], sizes = [10, 32], strides = [1, 1]} : vector<20x32xf32> to vector<10x32xf32>
    %130 = vector.extract_strided_slice %101 {offsets = [10, 0], sizes = [10, 32], strides = [1, 1]} : vector<20x32xf32> to vector<10x32xf32>
    %131 = vector.extract_strided_slice %108 {offsets = [10, 0], sizes = [10, 32], strides = [1, 1]} : vector<20x32xf32> to vector<10x32xf32>
    %132 = tpu.concatenate %130, %130, %130, %130, %130, %130, %130, %130 in 0 : vector<10x32xf32>, vector<10x32xf32>, vector<10x32xf32>, vector<10x32xf32>, vector<10x32xf32>, vector<10x32xf32>, vector<10x32xf32>, vector<10x32xf32> -> vector<80x32xf32>
    %133 = arith.mulf %132, %85 : vector<80x32xf32>
    %134 = tpu.concatenate %131, %131, %131, %131, %131, %131, %131, %131 in 0 : vector<10x32xf32>, vector<10x32xf32>, vector<10x32xf32>, vector<10x32xf32>, vector<10x32xf32>, vector<10x32xf32>, vector<10x32xf32>, vector<10x32xf32> -> vector<80x32xf32>
    %135 = arith.mulf %134, %85 : vector<80x32xf32>
    %cst_81 = arith.constant dense<0.000000e+00> : vector<10x80xf32>
    %136 = tpu.matmul %129, %133, %cst_81 {dimension_numbers = #tpu.dot_dimension_numbers<[1], [1], [0], [0], [0, 0, 1, 0], [], []>} : vector<10x32xf32>, vector<80x32xf32>, vector<10x80xf32> -> vector<10x80xf32>
    %cst_82 = arith.constant dense<0xFF800000> : vector<10xf32>
    %137 = vector.multi_reduction <maximumf>, %136, %cst_82 [1] : vector<10x80xf32> to vector<10xf32>
    %138 = vector.shape_cast %137 : vector<10xf32> to vector<10x1xf32>
    %139 = vector.broadcast %138 : vector<10x1xf32> to vector<10x80xf32>
    %140 = arith.subf %136, %139 : vector<10x80xf32>
    %141 = math.exp %140 : vector<10x80xf32>
    %cst_83 = arith.constant dense<0.000000e+00> : vector<10x80xf32>
    %142 = tpu.matmul %141, %86, %cst_83 {dimension_numbers = #tpu.dot_dimension_numbers<[1], [0], [0], [1], [0, 0, 1, 1], [], []>} : vector<10x80xf32>, vector<80x80xf32>, vector<10x80xf32> -> vector<10x80xf32>
    %cst_84 = arith.constant 1.000000e-30 : f32
    %143 = vector.broadcast %cst_84 : f32 to vector<10x80xf32>
    %144 = arith.maximumf %142, %143 : vector<10x80xf32>
    %145 = tpu.reciprocal %144 {approx = true} : vector<10x80xf32> -> vector<10x80xf32>
    %146 = arith.mulf %141, %145 : vector<10x80xf32>
    %cst_85 = arith.constant dense<0.000000e+00> : vector<10x32xf32>
    %147 = tpu.matmul %146, %135, %cst_85 {dimension_numbers = #tpu.dot_dimension_numbers<[1], [0], [0], [1], [0, 0, 1, 1], [], []>} : vector<10x80xf32>, vector<80x32xf32>, vector<10x32xf32> -> vector<10x32xf32>
    %c10_86 = arith.constant 10 : index
    %c0_87 = arith.constant 0 : index
    %148 = vector.load %arg35[%c10_86, %c0_87] : memref<20x32xf32, #tpu.memory_space<vmem>>, vector<10x32xf32>
    tpu.vector_store %arg35[%c10_86, %c0_87], %147 {strides = array<i32>} : memref<20x32xf32, #tpu.memory_space<vmem>>, vector<10x32xf32>,
    %c0_88 = arith.constant 0 : index
    %c0_89 = arith.constant 0 : index
    %149 = vector.load %arg35[%c0_88, %c0_89] : memref<20x32xf32, #tpu.memory_space<vmem>>, vector<20x32xf32>
    %150 = arith.truncf %149 : vector<20x32xf32> to vector<20x32xbf16>
    %c0_90 = arith.constant 0 : index
    %c0_91 = arith.constant 0 : index
    %c0_92 = arith.constant 0 : index
    %151 = vector.load %arg21[%c0_90, %c0_91, %c0_92] : memref<4x32x32xbf16, #tpu.memory_space<vmem>>, vector<1x32x32xbf16>
    %152 = vector.shape_cast %151 : vector<1x32x32xbf16> to vector<32x32xbf16>
    %cst_93 = arith.constant dense<0.000000e+00> : vector<20x32xf32>
    %153 = tpu.matmul %150, %152, %cst_93 {dimension_numbers = #tpu.dot_dimension_numbers<[1], [0], [0], [1], [0, 0, 1, 1], [], []>} : vector<20x32xbf16>, vector<32x32xbf16>, vector<20x32xf32> -> vector<20x32xf32>
    %c0_94 = arith.constant 0 : index
    %c0_95 = arith.constant 0 : index
    %c0_96 = arith.constant 0 : index
    %154 = vector.load %arg22[%c0_94, %c0_95, %c0_96] : memref<4x1x32xf32, #tpu.memory_space<vmem>>, vector<1x1x32xf32>
    %155 = vector.shape_cast %154 : vector<1x1x32xf32> to vector<1x32xf32>
    %156 = vector.broadcast %155 : vector<1x32xf32> to vector<20x32xf32>
    %157 = arith.addf %153, %156 : vector<20x32xf32>
    %158 = arith.addf %84, %157 : vector<20x32xf32>
    %c0_97 = arith.constant 0 : index
    %c0_98 = arith.constant 0 : index
    %c0_99 = arith.constant 0 : index
    %159 = vector.load %arg23[%c0_97, %c0_98, %c0_99] : memref<4x1x32xf32, #tpu.memory_space<vmem>>, vector<1x1x32xf32>
    %160 = vector.shape_cast %159 : vector<1x1x32xf32> to vector<1x32xf32>
    %c0_100 = arith.constant 0 : index
    %c0_101 = arith.constant 0 : index
    %c0_102 = arith.constant 0 : index
    %161 = vector.load %arg24[%c0_100, %c0_101, %c0_102] : memref<4x1x32xf32, #tpu.memory_space<vmem>>, vector<1x1x32xf32>
    %162 = vector.shape_cast %161 : vector<1x1x32xf32> to vector<1x32xf32>
    %cst_103 = arith.constant dense<0.000000e+00> : vector<20xf32>
    %163 = vector.multi_reduction <add>, %158, %cst_103 [1] : vector<20x32xf32> to vector<20xf32>
    %164 = vector.shape_cast %163 : vector<20xf32> to vector<20x1xf32>
    %cst_104 = arith.constant 3.200000e+01 : f32
    %165 = vector.broadcast %cst_104 : f32 to vector<20x1xf32>
    %166 = arith.divf %164, %165 : vector<20x1xf32>
    %167 = vector.broadcast %166 : vector<20x1xf32> to vector<20x32xf32>
    %168 = arith.subf %158, %167 : vector<20x32xf32>
    %169 = arith.mulf %168, %168 : vector<20x32xf32>
    %cst_105 = arith.constant dense<0.000000e+00> : vector<20xf32>
    %170 = vector.multi_reduction <add>, %169, %cst_105 [1] : vector<20x32xf32> to vector<20xf32>
    %171 = vector.shape_cast %170 : vector<20xf32> to vector<20x1xf32>
    %cst_106 = arith.constant 3.200000e+01 : f32
    %172 = vector.broadcast %cst_106 : f32 to vector<20x1xf32>
    %173 = arith.divf %171, %172 : vector<20x1xf32>
    %174 = vector.broadcast %166 : vector<20x1xf32> to vector<20x32xf32>
    %175 = arith.subf %158, %174 : vector<20x32xf32>
    %cst_107 = arith.constant 9.99999974E-6 : f32
    %176 = vector.broadcast %cst_107 : f32 to vector<20x1xf32>
    %177 = arith.addf %173, %176 : vector<20x1xf32>
    %178 = math.rsqrt %177 : vector<20x1xf32>
    %179 = vector.broadcast %178 : vector<20x1xf32> to vector<20x32xf32>
    %180 = arith.mulf %175, %179 : vector<20x32xf32>
    %181 = vector.broadcast %160 : vector<1x32xf32> to vector<20x32xf32>
    %182 = arith.mulf %180, %181 : vector<20x32xf32>
    %183 = vector.broadcast %162 : vector<1x32xf32> to vector<20x32xf32>
    %184 = arith.addf %182, %183 : vector<20x32xf32>
    %185 = arith.truncf %184 : vector<20x32xf32> to vector<20x32xbf16>
    %c0_108 = arith.constant 0 : index
    %c0_109 = arith.constant 0 : index
    %c0_110 = arith.constant 0 : index
    %186 = vector.load %arg25[%c0_108, %c0_109, %c0_110] : memref<4x32x2048xbf16, #tpu.memory_space<vmem>>, vector<1x32x2048xbf16>
    %187 = vector.shape_cast %186 : vector<1x32x2048xbf16> to vector<32x2048xbf16>
    %cst_111 = arith.constant dense<0.000000e+00> : vector<20x2048xf32>
    %188 = tpu.matmul %185, %187, %cst_111 {dimension_numbers = #tpu.dot_dimension_numbers<[1], [0], [0], [1], [0, 0, 1, 1], [], []>} : vector<20x32xbf16>, vector<32x2048xbf16>, vector<20x2048xf32> -> vector<20x2048xf32>
    %c0_112 = arith.constant 0 : index
    %c0_113 = arith.constant 0 : index
    %c0_114 = arith.constant 0 : index
    %189 = vector.load %arg26[%c0_112, %c0_113, %c0_114] : memref<4x1x2048xf32, #tpu.memory_space<vmem>>, vector<1x1x2048xf32>
    %190 = vector.shape_cast %189 : vector<1x1x2048xf32> to vector<1x2048xf32>
    %191 = vector.broadcast %190 : vector<1x2048xf32> to vector<20x2048xf32>
    %192 = arith.addf %188, %191 : vector<20x2048xf32>
    %cst_115 = arith.constant 0.000000e+00 : f32
    %193 = vector.broadcast %cst_115 : f32 to vector<20x2048xf32>
    %194 = arith.maximumf %192, %193 : vector<20x2048xf32>
    %195 = arith.truncf %194 : vector<20x2048xf32> to vector<20x2048xbf16>
    %c0_116 = arith.constant 0 : index
    %c0_117 = arith.constant 0 : index
    %c0_118 = arith.constant 0 : index
    %196 = vector.load %arg27[%c0_116, %c0_117, %c0_118] : memref<4x32x2048xbf16, #tpu.memory_space<vmem>>, vector<1x32x2048xbf16>
    %197 = vector.shape_cast %196 : vector<1x32x2048xbf16> to vector<32x2048xbf16>
    %cst_119 = arith.constant dense<0.000000e+00> : vector<20x32xf32>
    %198 = tpu.matmul %195, %197, %cst_119 {dimension_numbers = #tpu.dot_dimension_numbers<[1], [1], [0], [0], [0, 0, 1, 0], [], []>} : vector<20x2048xbf16>, vector<32x2048xbf16>, vector<20x32xf32> -> vector<20x32xf32>
    %c0_120 = arith.constant 0 : index
    %c0_121 = arith.constant 0 : index
    %c0_122 = arith.constant 0 : index
    %199 = vector.load %arg28[%c0_120, %c0_121, %c0_122] : memref<4x1x32xf32, #tpu.memory_space<vmem>>, vector<1x1x32xf32>
    %200 = vector.shape_cast %199 : vector<1x1x32xf32> to vector<1x32xf32>
    %201 = vector.broadcast %200 : vector<1x32xf32> to vector<20x32xf32>
    %202 = arith.addf %198, %201 : vector<20x32xf32>
    %203 = arith.addf %184, %202 : vector<20x32xf32>
    %c0_123 = arith.constant 0 : index
    %c0_124 = arith.constant 0 : index
    %c0_125 = arith.constant 0 : index
    %204 = vector.load %arg29[%c0_123, %c0_124, %c0_125] : memref<4x1x32xf32, #tpu.memory_space<vmem>>, vector<1x1x32xf32>
    %205 = vector.shape_cast %204 : vector<1x1x32xf32> to vector<1x32xf32>
    %c0_126 = arith.constant 0 : index
    %c0_127 = arith.constant 0 : index
    %c0_128 = arith.constant 0 : index
    %206 = vector.load %arg30[%c0_126, %c0_127, %c0_128] : memref<4x1x32xf32, #tpu.memory_space<vmem>>, vector<1x1x32xf32>
    %207 = vector.shape_cast %206 : vector<1x1x32xf32> to vector<1x32xf32>
    %cst_129 = arith.constant dense<0.000000e+00> : vector<20xf32>
    %208 = vector.multi_reduction <add>, %203, %cst_129 [1] : vector<20x32xf32> to vector<20xf32>
    %209 = vector.shape_cast %208 : vector<20xf32> to vector<20x1xf32>
    %cst_130 = arith.constant 3.200000e+01 : f32
    %210 = vector.broadcast %cst_130 : f32 to vector<20x1xf32>
    %211 = arith.divf %209, %210 : vector<20x1xf32>
    %212 = vector.broadcast %211 : vector<20x1xf32> to vector<20x32xf32>
    %213 = arith.subf %203, %212 : vector<20x32xf32>
    %214 = arith.mulf %213, %213 : vector<20x32xf32>
    %cst_131 = arith.constant dense<0.000000e+00> : vector<20xf32>
    %215 = vector.multi_reduction <add>, %214, %cst_131 [1] : vector<20x32xf32> to vector<20xf32>
    %216 = vector.shape_cast %215 : vector<20xf32> to vector<20x1xf32>
    %cst_132 = arith.constant 3.200000e+01 : f32
    %217 = vector.broadcast %cst_132 : f32 to vector<20x1xf32>
    %218 = arith.divf %216, %217 : vector<20x1xf32>
    %219 = vector.broadcast %211 : vector<20x1xf32> to vector<20x32xf32>
    %220 = arith.subf %203, %219 : vector<20x32xf32>
    %cst_133 = arith.constant 9.99999974E-6 : f32
    %221 = vector.broadcast %cst_133 : f32 to vector<20x1xf32>
    %222 = arith.addf %218, %221 : vector<20x1xf32>
    %223 = math.rsqrt %222 : vector<20x1xf32>
    %224 = vector.broadcast %223 : vector<20x1xf32> to vector<20x32xf32>
    %225 = arith.mulf %220, %224 : vector<20x32xf32>
    %226 = vector.broadcast %205 : vector<1x32xf32> to vector<20x32xf32>
    %227 = arith.mulf %225, %226 : vector<20x32xf32>
    %228 = vector.broadcast %207 : vector<1x32xf32> to vector<20x32xf32>
    %229 = arith.addf %227, %228 : vector<20x32xf32>
    %230 = arith.truncf %229 : vector<20x32xf32> to vector<20x32xbf16>
    %c1 = arith.constant 1 : index
    %c0_134 = arith.constant 0 : index
    %c0_135 = arith.constant 0 : index
    %231 = vector.load %arg15[%c1, %c0_134, %c0_135] : memref<4x32x32xbf16, #tpu.memory_space<vmem>>, vector<1x32x32xbf16>
    %232 = vector.shape_cast %231 : vector<1x32x32xbf16> to vector<32x32xbf16>
    %cst_136 = arith.constant dense<0.000000e+00> : vector<20x32xf32>
    %233 = tpu.matmul %230, %232, %cst_136 {dimension_numbers = #tpu.dot_dimension_numbers<[1], [0], [0], [1], [0, 0, 1, 1], [], []>} : vector<20x32xbf16>, vector<32x32xbf16>, vector<20x32xf32> -> vector<20x32xf32>
    %c1_137 = arith.constant 1 : index
    %c0_138 = arith.constant 0 : index
    %c0_139 = arith.constant 0 : index
    %234 = vector.load %arg18[%c1_137, %c0_138, %c0_139] : memref<4x1x32xf32, #tpu.memory_space<vmem>>, vector<1x1x32xf32>
    %235 = vector.shape_cast %234 : vector<1x1x32xf32> to vector<1x32xf32>
    %236 = vector.broadcast %235 : vector<1x32xf32> to vector<20x32xf32>
    %237 = arith.addf %233, %236 : vector<20x32xf32>
    %c1_140 = arith.constant 1 : index
    %c0_141 = arith.constant 0 : index
    %c0_142 = arith.constant 0 : index
    %238 = vector.load %arg16[%c1_140, %c0_141, %c0_142] : memref<4x32x32xbf16, #tpu.memory_space<vmem>>, vector<1x32x32xbf16>
    %239 = vector.shape_cast %238 : vector<1x32x32xbf16> to vector<32x32xbf16>
    %cst_143 = arith.constant dense<0.000000e+00> : vector<20x32xf32>
    %240 = tpu.matmul %230, %239, %cst_143 {dimension_numbers = #tpu.dot_dimension_numbers<[1], [0], [0], [1], [0, 0, 1, 1], [], []>} : vector<20x32xbf16>, vector<32x32xbf16>, vector<20x32xf32> -> vector<20x32xf32>
    %c1_144 = arith.constant 1 : index
    %c0_145 = arith.constant 0 : index
    %c0_146 = arith.constant 0 : index
    %241 = vector.load %arg19[%c1_144, %c0_145, %c0_146] : memref<4x1x32xf32, #tpu.memory_space<vmem>>, vector<1x1x32xf32>
    %242 = vector.shape_cast %241 : vector<1x1x32xf32> to vector<1x32xf32>
    %243 = vector.broadcast %242 : vector<1x32xf32> to vector<20x32xf32>
    %244 = arith.addf %240, %243 : vector<20x32xf32>
    %c1_147 = arith.constant 1 : index
    %c0_148 = arith.constant 0 : index
    %c0_149 = arith.constant 0 : index
    %245 = vector.load %arg17[%c1_147, %c0_148, %c0_149] : memref<4x32x32xbf16, #tpu.memory_space<vmem>>, vector<1x32x32xbf16>
    %246 = vector.shape_cast %245 : vector<1x32x32xbf16> to vector<32x32xbf16>
    %cst_150 = arith.constant dense<0.000000e+00> : vector<20x32xf32>
    %247 = tpu.matmul %230, %246, %cst_150 {dimension_numbers = #tpu.dot_dimension_numbers<[1], [0], [0], [1], [0, 0, 1, 1], [], []>} : vector<20x32xbf16>, vector<32x32xbf16>, vector<20x32xf32> -> vector<20x32xf32>
    %c1_151 = arith.constant 1 : index
    %c0_152 = arith.constant 0 : index
    %c0_153 = arith.constant 0 : index
    %248 = vector.load %arg20[%c1_151, %c0_152, %c0_153] : memref<4x1x32xf32, #tpu.memory_space<vmem>>, vector<1x1x32xf32>
    %249 = vector.shape_cast %248 : vector<1x1x32xf32> to vector<1x32xf32>
    %250 = vector.broadcast %249 : vector<1x32xf32> to vector<20x32xf32>
    %251 = arith.addf %247, %250 : vector<20x32xf32>
    %252 = vector.extract_strided_slice %237 {offsets = [0, 0], sizes = [10, 32], strides = [1, 1]} : vector<20x32xf32> to vector<10x32xf32>
    %253 = vector.extract_strided_slice %244 {offsets = [0, 0], sizes = [10, 32], strides = [1, 1]} : vector<20x32xf32> to vector<10x32xf32>
    %254 = vector.extract_strided_slice %251 {offsets = [0, 0], sizes = [10, 32], strides = [1, 1]} : vector<20x32xf32> to vector<10x32xf32>
    %255 = tpu.concatenate %253, %253, %253, %253, %253, %253, %253, %253 in 0 : vector<10x32xf32>, vector<10x32xf32>, vector<10x32xf32>, vector<10x32xf32>, vector<10x32xf32>, vector<10x32xf32>, vector<10x32xf32>, vector<10x32xf32> -> vector<80x32xf32>
    %256 = arith.mulf %255, %85 : vector<80x32xf32>
    %257 = tpu.concatenate %254, %254, %254, %254, %254, %254, %254, %254 in 0 : vector<10x32xf32>, vector<10x32xf32>, vector<10x32xf32>, vector<10x32xf32>, vector<10x32xf32>, vector<10x32xf32>, vector<10x32xf32>, vector<10x32xf32> -> vector<80x32xf32>
    %258 = arith.mulf %257, %85 : vector<80x32xf32>
    %cst_154 = arith.constant dense<0.000000e+00> : vector<10x80xf32>
    %259 = tpu.matmul %252, %256, %cst_154 {dimension_numbers = #tpu.dot_dimension_numbers<[1], [1], [0], [0], [0, 0, 1, 0], [], []>} : vector<10x32xf32>, vector<80x32xf32>, vector<10x80xf32> -> vector<10x80xf32>
    %cst_155 = arith.constant dense<0xFF800000> : vector<10xf32>
    %260 = vector.multi_reduction <maximumf>, %259, %cst_155 [1] : vector<10x80xf32> to vector<10xf32>
    %261 = vector.shape_cast %260 : vector<10xf32> to vector<10x1xf32>
    %262 = vector.broadcast %261 : vector<10x1xf32> to vector<10x80xf32>
    %263 = arith.subf %259, %262 : vector<10x80xf32>
    %264 = math.exp %263 : vector<10x80xf32>
    %cst_156 = arith.constant dense<0.000000e+00> : vector<10x80xf32>
    %265 = tpu.matmul %264, %86, %cst_156 {dimension_numbers = #tpu.dot_dimension_numbers<[1], [0], [0], [1], [0, 0, 1, 1], [], []>} : vector<10x80xf32>, vector<80x80xf32>, vector<10x80xf32> -> vector<10x80xf32>
    %cst_157 = arith.constant 1.000000e-30 : f32
    %266 = vector.broadcast %cst_157 : f32 to vector<10x80xf32>
    %267 = arith.maximumf %265, %266 : vector<10x80xf32>
    %268 = tpu.reciprocal %267 {approx = true} : vector<10x80xf32> -> vector<10x80xf32>
    %269 = arith.mulf %264, %268 : vector<10x80xf32>
    %cst_158 = arith.constant dense<0.000000e+00> : vector<10x32xf32>
    %270 = tpu.matmul %269, %258, %cst_158 {dimension_numbers = #tpu.dot_dimension_numbers<[1], [0], [0], [1], [0, 0, 1, 1], [], []>} : vector<10x80xf32>, vector<80x32xf32>, vector<10x32xf32> -> vector<10x32xf32>
    %c0_159 = arith.constant 0 : index
    %c0_160 = arith.constant 0 : index
    %271 = vector.load %arg35[%c0_159, %c0_160] : memref<20x32xf32, #tpu.memory_space<vmem>>, vector<10x32xf32>
    tpu.vector_store %arg35[%c0_159, %c0_160], %270 {strides = array<i32>} : memref<20x32xf32, #tpu.memory_space<vmem>>, vector<10x32xf32>,
    %272 = vector.extract_strided_slice %237 {offsets = [10, 0], sizes = [10, 32], strides = [1, 1]} : vector<20x32xf32> to vector<10x32xf32>
    %273 = vector.extract_strided_slice %244 {offsets = [10, 0], sizes = [10, 32], strides = [1, 1]} : vector<20x32xf32> to vector<10x32xf32>
    %274 = vector.extract_strided_slice %251 {offsets = [10, 0], sizes = [10, 32], strides = [1, 1]} : vector<20x32xf32> to vector<10x32xf32>
    %275 = tpu.concatenate %273, %273, %273, %273, %273, %273, %273, %273 in 0 : vector<10x32xf32>, vector<10x32xf32>, vector<10x32xf32>, vector<10x32xf32>, vector<10x32xf32>, vector<10x32xf32>, vector<10x32xf32>, vector<10x32xf32> -> vector<80x32xf32>
    %276 = arith.mulf %275, %85 : vector<80x32xf32>
    %277 = tpu.concatenate %274, %274, %274, %274, %274, %274, %274, %274 in 0 : vector<10x32xf32>, vector<10x32xf32>, vector<10x32xf32>, vector<10x32xf32>, vector<10x32xf32>, vector<10x32xf32>, vector<10x32xf32>, vector<10x32xf32> -> vector<80x32xf32>
    %278 = arith.mulf %277, %85 : vector<80x32xf32>
    %cst_161 = arith.constant dense<0.000000e+00> : vector<10x80xf32>
    %279 = tpu.matmul %272, %276, %cst_161 {dimension_numbers = #tpu.dot_dimension_numbers<[1], [1], [0], [0], [0, 0, 1, 0], [], []>} : vector<10x32xf32>, vector<80x32xf32>, vector<10x80xf32> -> vector<10x80xf32>
    %cst_162 = arith.constant dense<0xFF800000> : vector<10xf32>
    %280 = vector.multi_reduction <maximumf>, %279, %cst_162 [1] : vector<10x80xf32> to vector<10xf32>
    %281 = vector.shape_cast %280 : vector<10xf32> to vector<10x1xf32>
    %282 = vector.broadcast %281 : vector<10x1xf32> to vector<10x80xf32>
    %283 = arith.subf %279, %282 : vector<10x80xf32>
    %284 = math.exp %283 : vector<10x80xf32>
    %cst_163 = arith.constant dense<0.000000e+00> : vector<10x80xf32>
    %285 = tpu.matmul %284, %86, %cst_163 {dimension_numbers = #tpu.dot_dimension_numbers<[1], [0], [0], [1], [0, 0, 1, 1], [], []>} : vector<10x80xf32>, vector<80x80xf32>, vector<10x80xf32> -> vector<10x80xf32>
    %cst_164 = arith.constant 1.000000e-30 : f32
    %286 = vector.broadcast %cst_164 : f32 to vector<10x80xf32>
    %287 = arith.maximumf %285, %286 : vector<10x80xf32>
    %288 = tpu.reciprocal %287 {approx = true} : vector<10x80xf32> -> vector<10x80xf32>
    %289 = arith.mulf %284, %288 : vector<10x80xf32>
    %cst_165 = arith.constant dense<0.000000e+00> : vector<10x32xf32>
    %290 = tpu.matmul %289, %278, %cst_165 {dimension_numbers = #tpu.dot_dimension_numbers<[1], [0], [0], [1], [0, 0, 1, 1], [], []>} : vector<10x80xf32>, vector<80x32xf32>, vector<10x32xf32> -> vector<10x32xf32>
    %c10_166 = arith.constant 10 : index
    %c0_167 = arith.constant 0 : index
    %291 = vector.load %arg35[%c10_166, %c0_167] : memref<20x32xf32, #tpu.memory_space<vmem>>, vector<10x32xf32>
    tpu.vector_store %arg35[%c10_166, %c0_167], %290 {strides = array<i32>} : memref<20x32xf32, #tpu.memory_space<vmem>>, vector<10x32xf32>,
    %c0_168 = arith.constant 0 : index
    %c0_169 = arith.constant 0 : index
    %292 = vector.load %arg35[%c0_168, %c0_169] : memref<20x32xf32, #tpu.memory_space<vmem>>, vector<20x32xf32>
    %293 = arith.truncf %292 : vector<20x32xf32> to vector<20x32xbf16>
    %c1_170 = arith.constant 1 : index
    %c0_171 = arith.constant 0 : index
    %c0_172 = arith.constant 0 : index
    %294 = vector.load %arg21[%c1_170, %c0_171, %c0_172] : memref<4x32x32xbf16, #tpu.memory_space<vmem>>, vector<1x32x32xbf16>
    %295 = vector.shape_cast %294 : vector<1x32x32xbf16> to vector<32x32xbf16>
    %cst_173 = arith.constant dense<0.000000e+00> : vector<20x32xf32>
    %296 = tpu.matmul %293, %295, %cst_173 {dimension_numbers = #tpu.dot_dimension_numbers<[1], [0], [0], [1], [0, 0, 1, 1], [], []>} : vector<20x32xbf16>, vector<32x32xbf16>, vector<20x32xf32> -> vector<20x32xf32>
    %c1_174 = arith.constant 1 : index
    %c0_175 = arith.constant 0 : index
    %c0_176 = arith.constant 0 : index
    %297 = vector.load %arg22[%c1_174, %c0_175, %c0_176] : memref<4x1x32xf32, #tpu.memory_space<vmem>>, vector<1x1x32xf32>
    %298 = vector.shape_cast %297 : vector<1x1x32xf32> to vector<1x32xf32>
    %299 = vector.broadcast %298 : vector<1x32xf32> to vector<20x32xf32>
    %300 = arith.addf %296, %299 : vector<20x32xf32>
    %301 = arith.addf %229, %300 : vector<20x32xf32>
    %c1_177 = arith.constant 1 : index
    %c0_178 = arith.constant 0 : index
    %c0_179 = arith.constant 0 : index
    %302 = vector.load %arg23[%c1_177, %c0_178, %c0_179] : memref<4x1x32xf32, #tpu.memory_space<vmem>>, vector<1x1x32xf32>
    %303 = vector.shape_cast %302 : vector<1x1x32xf32> to vector<1x32xf32>
    %c1_180 = arith.constant 1 : index
    %c0_181 = arith.constant 0 : index
    %c0_182 = arith.constant 0 : index
    %304 = vector.load %arg24[%c1_180, %c0_181, %c0_182] : memref<4x1x32xf32, #tpu.memory_space<vmem>>, vector<1x1x32xf32>
    %305 = vector.shape_cast %304 : vector<1x1x32xf32> to vector<1x32xf32>
    %cst_183 = arith.constant dense<0.000000e+00> : vector<20xf32>
    %306 = vector.multi_reduction <add>, %301, %cst_183 [1] : vector<20x32xf32> to vector<20xf32>
    %307 = vector.shape_cast %306 : vector<20xf32> to vector<20x1xf32>
    %cst_184 = arith.constant 3.200000e+01 : f32
    %308 = vector.broadcast %cst_184 : f32 to vector<20x1xf32>
    %309 = arith.divf %307, %308 : vector<20x1xf32>
    %310 = vector.broadcast %309 : vector<20x1xf32> to vector<20x32xf32>
    %311 = arith.subf %301, %310 : vector<20x32xf32>
    %312 = arith.mulf %311, %311 : vector<20x32xf32>
    %cst_185 = arith.constant dense<0.000000e+00> : vector<20xf32>
    %313 = vector.multi_reduction <add>, %312, %cst_185 [1] : vector<20x32xf32> to vector<20xf32>
    %314 = vector.shape_cast %313 : vector<20xf32> to vector<20x1xf32>
    %cst_186 = arith.constant 3.200000e+01 : f32
    %315 = vector.broadcast %cst_186 : f32 to vector<20x1xf32>
    %316 = arith.divf %314, %315 : vector<20x1xf32>
    %317 = vector.broadcast %309 : vector<20x1xf32> to vector<20x32xf32>
    %318 = arith.subf %301, %317 : vector<20x32xf32>
    %cst_187 = arith.constant 9.99999974E-6 : f32
    %319 = vector.broadcast %cst_187 : f32 to vector<20x1xf32>
    %320 = arith.addf %316, %319 : vector<20x1xf32>
    %321 = math.rsqrt %320 : vector<20x1xf32>
    %322 = vector.broadcast %321 : vector<20x1xf32> to vector<20x32xf32>
    %323 = arith.mulf %318, %322 : vector<20x32xf32>
    %324 = vector.broadcast %303 : vector<1x32xf32> to vector<20x32xf32>
    %325 = arith.mulf %323, %324 : vector<20x32xf32>
    %326 = vector.broadcast %305 : vector<1x32xf32> to vector<20x32xf32>
    %327 = arith.addf %325, %326 : vector<20x32xf32>
    %328 = arith.truncf %327 : vector<20x32xf32> to vector<20x32xbf16>
    %c1_188 = arith.constant 1 : index
    %c0_189 = arith.constant 0 : index
    %c0_190 = arith.constant 0 : index
    %329 = vector.load %arg25[%c1_188, %c0_189, %c0_190] : memref<4x32x2048xbf16, #tpu.memory_space<vmem>>, vector<1x32x2048xbf16>
    %330 = vector.shape_cast %329 : vector<1x32x2048xbf16> to vector<32x2048xbf16>
    %cst_191 = arith.constant dense<0.000000e+00> : vector<20x2048xf32>
    %331 = tpu.matmul %328, %330, %cst_191 {dimension_numbers = #tpu.dot_dimension_numbers<[1], [0], [0], [1], [0, 0, 1, 1], [], []>} : vector<20x32xbf16>, vector<32x2048xbf16>, vector<20x2048xf32> -> vector<20x2048xf32>
    %c1_192 = arith.constant 1 : index
    %c0_193 = arith.constant 0 : index
    %c0_194 = arith.constant 0 : index
    %332 = vector.load %arg26[%c1_192, %c0_193, %c0_194] : memref<4x1x2048xf32, #tpu.memory_space<vmem>>, vector<1x1x2048xf32>
    %333 = vector.shape_cast %332 : vector<1x1x2048xf32> to vector<1x2048xf32>
    %334 = vector.broadcast %333 : vector<1x2048xf32> to vector<20x2048xf32>
    %335 = arith.addf %331, %334 : vector<20x2048xf32>
    %cst_195 = arith.constant 0.000000e+00 : f32
    %336 = vector.broadcast %cst_195 : f32 to vector<20x2048xf32>
    %337 = arith.maximumf %335, %336 : vector<20x2048xf32>
    %338 = arith.truncf %337 : vector<20x2048xf32> to vector<20x2048xbf16>
    %c1_196 = arith.constant 1 : index
    %c0_197 = arith.constant 0 : index
    %c0_198 = arith.constant 0 : index
    %339 = vector.load %arg27[%c1_196, %c0_197, %c0_198] : memref<4x32x2048xbf16, #tpu.memory_space<vmem>>, vector<1x32x2048xbf16>
    %340 = vector.shape_cast %339 : vector<1x32x2048xbf16> to vector<32x2048xbf16>
    %cst_199 = arith.constant dense<0.000000e+00> : vector<20x32xf32>
    %341 = tpu.matmul %338, %340, %cst_199 {dimension_numbers = #tpu.dot_dimension_numbers<[1], [1], [0], [0], [0, 0, 1, 0], [], []>} : vector<20x2048xbf16>, vector<32x2048xbf16>, vector<20x32xf32> -> vector<20x32xf32>
    %c1_200 = arith.constant 1 : index
    %c0_201 = arith.constant 0 : index
    %c0_202 = arith.constant 0 : index
    %342 = vector.load %arg28[%c1_200, %c0_201, %c0_202] : memref<4x1x32xf32, #tpu.memory_space<vmem>>, vector<1x1x32xf32>
    %343 = vector.shape_cast %342 : vector<1x1x32xf32> to vector<1x32xf32>
    %344 = vector.broadcast %343 : vector<1x32xf32> to vector<20x32xf32>
    %345 = arith.addf %341, %344 : vector<20x32xf32>
    %346 = arith.addf %327, %345 : vector<20x32xf32>
    %c1_203 = arith.constant 1 : index
    %c0_204 = arith.constant 0 : index
    %c0_205 = arith.constant 0 : index
    %347 = vector.load %arg29[%c1_203, %c0_204, %c0_205] : memref<4x1x32xf32, #tpu.memory_space<vmem>>, vector<1x1x32xf32>
    %348 = vector.shape_cast %347 : vector<1x1x32xf32> to vector<1x32xf32>
    %c1_206 = arith.constant 1 : index
    %c0_207 = arith.constant 0 : index
    %c0_208 = arith.constant 0 : index
    %349 = vector.load %arg30[%c1_206, %c0_207, %c0_208] : memref<4x1x32xf32, #tpu.memory_space<vmem>>, vector<1x1x32xf32>
    %350 = vector.shape_cast %349 : vector<1x1x32xf32> to vector<1x32xf32>
    %cst_209 = arith.constant dense<0.000000e+00> : vector<20xf32>
    %351 = vector.multi_reduction <add>, %346, %cst_209 [1] : vector<20x32xf32> to vector<20xf32>
    %352 = vector.shape_cast %351 : vector<20xf32> to vector<20x1xf32>
    %cst_210 = arith.constant 3.200000e+01 : f32
    %353 = vector.broadcast %cst_210 : f32 to vector<20x1xf32>
    %354 = arith.divf %352, %353 : vector<20x1xf32>
    %355 = vector.broadcast %354 : vector<20x1xf32> to vector<20x32xf32>
    %356 = arith.subf %346, %355 : vector<20x32xf32>
    %357 = arith.mulf %356, %356 : vector<20x32xf32>
    %cst_211 = arith.constant dense<0.000000e+00> : vector<20xf32>
    %358 = vector.multi_reduction <add>, %357, %cst_211 [1] : vector<20x32xf32> to vector<20xf32>
    %359 = vector.shape_cast %358 : vector<20xf32> to vector<20x1xf32>
    %cst_212 = arith.constant 3.200000e+01 : f32
    %360 = vector.broadcast %cst_212 : f32 to vector<20x1xf32>
    %361 = arith.divf %359, %360 : vector<20x1xf32>
    %362 = vector.broadcast %354 : vector<20x1xf32> to vector<20x32xf32>
    %363 = arith.subf %346, %362 : vector<20x32xf32>
    %cst_213 = arith.constant 9.99999974E-6 : f32
    %364 = vector.broadcast %cst_213 : f32 to vector<20x1xf32>
    %365 = arith.addf %361, %364 : vector<20x1xf32>
    %366 = math.rsqrt %365 : vector<20x1xf32>
    %367 = vector.broadcast %366 : vector<20x1xf32> to vector<20x32xf32>
    %368 = arith.mulf %363, %367 : vector<20x32xf32>
    %369 = vector.broadcast %348 : vector<1x32xf32> to vector<20x32xf32>
    %370 = arith.mulf %368, %369 : vector<20x32xf32>
    %371 = vector.broadcast %350 : vector<1x32xf32> to vector<20x32xf32>
    %372 = arith.addf %370, %371 : vector<20x32xf32>
    %373 = arith.truncf %372 : vector<20x32xf32> to vector<20x32xbf16>
    %c2 = arith.constant 2 : index
    %c0_214 = arith.constant 0 : index
    %c0_215 = arith.constant 0 : index
    %374 = vector.load %arg15[%c2, %c0_214, %c0_215] : memref<4x32x32xbf16, #tpu.memory_space<vmem>>, vector<1x32x32xbf16>
    %375 = vector.shape_cast %374 : vector<1x32x32xbf16> to vector<32x32xbf16>
    %cst_216 = arith.constant dense<0.000000e+00> : vector<20x32xf32>
    %376 = tpu.matmul %373, %375, %cst_216 {dimension_numbers = #tpu.dot_dimension_numbers<[1], [0], [0], [1], [0, 0, 1, 1], [], []>} : vector<20x32xbf16>, vector<32x32xbf16>, vector<20x32xf32> -> vector<20x32xf32>
    %c2_217 = arith.constant 2 : index
    %c0_218 = arith.constant 0 : index
    %c0_219 = arith.constant 0 : index
    %377 = vector.load %arg18[%c2_217, %c0_218, %c0_219] : memref<4x1x32xf32, #tpu.memory_space<vmem>>, vector<1x1x32xf32>
    %378 = vector.shape_cast %377 : vector<1x1x32xf32> to vector<1x32xf32>
    %379 = vector.broadcast %378 : vector<1x32xf32> to vector<20x32xf32>
    %380 = arith.addf %376, %379 : vector<20x32xf32>
    %c2_220 = arith.constant 2 : index
    %c0_221 = arith.constant 0 : index
    %c0_222 = arith.constant 0 : index
    %381 = vector.load %arg16[%c2_220, %c0_221, %c0_222] : memref<4x32x32xbf16, #tpu.memory_space<vmem>>, vector<1x32x32xbf16>
    %382 = vector.shape_cast %381 : vector<1x32x32xbf16> to vector<32x32xbf16>
    %cst_223 = arith.constant dense<0.000000e+00> : vector<20x32xf32>
    %383 = tpu.matmul %373, %382, %cst_223 {dimension_numbers = #tpu.dot_dimension_numbers<[1], [0], [0], [1], [0, 0, 1, 1], [], []>} : vector<20x32xbf16>, vector<32x32xbf16>, vector<20x32xf32> -> vector<20x32xf32>
    %c2_224 = arith.constant 2 : index
    %c0_225 = arith.constant 0 : index
    %c0_226 = arith.constant 0 : index
    %384 = vector.load %arg19[%c2_224, %c0_225, %c0_226] : memref<4x1x32xf32, #tpu.memory_space<vmem>>, vector<1x1x32xf32>
    %385 = vector.shape_cast %384 : vector<1x1x32xf32> to vector<1x32xf32>
    %386 = vector.broadcast %385 : vector<1x32xf32> to vector<20x32xf32>
    %387 = arith.addf %383, %386 : vector<20x32xf32>
    %c2_227 = arith.constant 2 : index
    %c0_228 = arith.constant 0 : index
    %c0_229 = arith.constant 0 : index
    %388 = vector.load %arg17[%c2_227, %c0_228, %c0_229] : memref<4x32x32xbf16, #tpu.memory_space<vmem>>, vector<1x32x32xbf16>
    %389 = vector.shape_cast %388 : vector<1x32x32xbf16> to vector<32x32xbf16>
    %cst_230 = arith.constant dense<0.000000e+00> : vector<20x32xf32>
    %390 = tpu.matmul %373, %389, %cst_230 {dimension_numbers = #tpu.dot_dimension_numbers<[1], [0], [0], [1], [0, 0, 1, 1], [], []>} : vector<20x32xbf16>, vector<32x32xbf16>, vector<20x32xf32> -> vector<20x32xf32>
    %c2_231 = arith.constant 2 : index
    %c0_232 = arith.constant 0 : index
    %c0_233 = arith.constant 0 : index
    %391 = vector.load %arg20[%c2_231, %c0_232, %c0_233] : memref<4x1x32xf32, #tpu.memory_space<vmem>>, vector<1x1x32xf32>
    %392 = vector.shape_cast %391 : vector<1x1x32xf32> to vector<1x32xf32>
    %393 = vector.broadcast %392 : vector<1x32xf32> to vector<20x32xf32>
    %394 = arith.addf %390, %393 : vector<20x32xf32>
    %395 = vector.extract_strided_slice %380 {offsets = [0, 0], sizes = [10, 32], strides = [1, 1]} : vector<20x32xf32> to vector<10x32xf32>
    %396 = vector.extract_strided_slice %387 {offsets = [0, 0], sizes = [10, 32], strides = [1, 1]} : vector<20x32xf32> to vector<10x32xf32>
    %397 = vector.extract_strided_slice %394 {offsets = [0, 0], sizes = [10, 32], strides = [1, 1]} : vector<20x32xf32> to vector<10x32xf32>
    %398 = tpu.concatenate %396, %396, %396, %396, %396, %396, %396, %396 in 0 : vector<10x32xf32>, vector<10x32xf32>, vector<10x32xf32>, vector<10x32xf32>, vector<10x32xf32>, vector<10x32xf32>, vector<10x32xf32>, vector<10x32xf32> -> vector<80x32xf32>
    %399 = arith.mulf %398, %85 : vector<80x32xf32>
    %400 = tpu.concatenate %397, %397, %397, %397, %397, %397, %397, %397 in 0 : vector<10x32xf32>, vector<10x32xf32>, vector<10x32xf32>, vector<10x32xf32>, vector<10x32xf32>, vector<10x32xf32>, vector<10x32xf32>, vector<10x32xf32> -> vector<80x32xf32>
    %401 = arith.mulf %400, %85 : vector<80x32xf32>
    %cst_234 = arith.constant dense<0.000000e+00> : vector<10x80xf32>
    %402 = tpu.matmul %395, %399, %cst_234 {dimension_numbers = #tpu.dot_dimension_numbers<[1], [1], [0], [0], [0, 0, 1, 0], [], []>} : vector<10x32xf32>, vector<80x32xf32>, vector<10x80xf32> -> vector<10x80xf32>
    %cst_235 = arith.constant dense<0xFF800000> : vector<10xf32>
    %403 = vector.multi_reduction <maximumf>, %402, %cst_235 [1] : vector<10x80xf32> to vector<10xf32>
    %404 = vector.shape_cast %403 : vector<10xf32> to vector<10x1xf32>
    %405 = vector.broadcast %404 : vector<10x1xf32> to vector<10x80xf32>
    %406 = arith.subf %402, %405 : vector<10x80xf32>
    %407 = math.exp %406 : vector<10x80xf32>
    %cst_236 = arith.constant dense<0.000000e+00> : vector<10x80xf32>
    %408 = tpu.matmul %407, %86, %cst_236 {dimension_numbers = #tpu.dot_dimension_numbers<[1], [0], [0], [1], [0, 0, 1, 1], [], []>} : vector<10x80xf32>, vector<80x80xf32>, vector<10x80xf32> -> vector<10x80xf32>
    %cst_237 = arith.constant 1.000000e-30 : f32
    %409 = vector.broadcast %cst_237 : f32 to vector<10x80xf32>
    %410 = arith.maximumf %408, %409 : vector<10x80xf32>
    %411 = tpu.reciprocal %410 {approx = true} : vector<10x80xf32> -> vector<10x80xf32>
    %412 = arith.mulf %407, %411 : vector<10x80xf32>
    %cst_238 = arith.constant dense<0.000000e+00> : vector<10x32xf32>
    %413 = tpu.matmul %412, %401, %cst_238 {dimension_numbers = #tpu.dot_dimension_numbers<[1], [0], [0], [1], [0, 0, 1, 1], [], []>} : vector<10x80xf32>, vector<80x32xf32>, vector<10x32xf32> -> vector<10x32xf32>
    %c0_239 = arith.constant 0 : index
    %c0_240 = arith.constant 0 : index
    %414 = vector.load %arg35[%c0_239, %c0_240] : memref<20x32xf32, #tpu.memory_space<vmem>>, vector<10x32xf32>
    tpu.vector_store %arg35[%c0_239, %c0_240], %413 {strides = array<i32>} : memref<20x32xf32, #tpu.memory_space<vmem>>, vector<10x32xf32>,
    %415 = vector.extract_strided_slice %380 {offsets = [10, 0], sizes = [10, 32], strides = [1, 1]} : vector<20x32xf32> to vector<10x32xf32>
    %416 = vector.extract_strided_slice %387 {offsets = [10, 0], sizes = [10, 32], strides = [1, 1]} : vector<20x32xf32> to vector<10x32xf32>
    %417 = vector.extract_strided_slice %394 {offsets = [10, 0], sizes = [10, 32], strides = [1, 1]} : vector<20x32xf32> to vector<10x32xf32>
    %418 = tpu.concatenate %416, %416, %416, %416, %416, %416, %416, %416 in 0 : vector<10x32xf32>, vector<10x32xf32>, vector<10x32xf32>, vector<10x32xf32>, vector<10x32xf32>, vector<10x32xf32>, vector<10x32xf32>, vector<10x32xf32> -> vector<80x32xf32>
    %419 = arith.mulf %418, %85 : vector<80x32xf32>
    %420 = tpu.concatenate %417, %417, %417, %417, %417, %417, %417, %417 in 0 : vector<10x32xf32>, vector<10x32xf32>, vector<10x32xf32>, vector<10x32xf32>, vector<10x32xf32>, vector<10x32xf32>, vector<10x32xf32>, vector<10x32xf32> -> vector<80x32xf32>
    %421 = arith.mulf %420, %85 : vector<80x32xf32>
    %cst_241 = arith.constant dense<0.000000e+00> : vector<10x80xf32>
    %422 = tpu.matmul %415, %419, %cst_241 {dimension_numbers = #tpu.dot_dimension_numbers<[1], [1], [0], [0], [0, 0, 1, 0], [], []>} : vector<10x32xf32>, vector<80x32xf32>, vector<10x80xf32> -> vector<10x80xf32>
    %cst_242 = arith.constant dense<0xFF800000> : vector<10xf32>
    %423 = vector.multi_reduction <maximumf>, %422, %cst_242 [1] : vector<10x80xf32> to vector<10xf32>
    %424 = vector.shape_cast %423 : vector<10xf32> to vector<10x1xf32>
    %425 = vector.broadcast %424 : vector<10x1xf32> to vector<10x80xf32>
    %426 = arith.subf %422, %425 : vector<10x80xf32>
    %427 = math.exp %426 : vector<10x80xf32>
    %cst_243 = arith.constant dense<0.000000e+00> : vector<10x80xf32>
    %428 = tpu.matmul %427, %86, %cst_243 {dimension_numbers = #tpu.dot_dimension_numbers<[1], [0], [0], [1], [0, 0, 1, 1], [], []>} : vector<10x80xf32>, vector<80x80xf32>, vector<10x80xf32> -> vector<10x80xf32>
    %cst_244 = arith.constant 1.000000e-30 : f32
    %429 = vector.broadcast %cst_244 : f32 to vector<10x80xf32>
    %430 = arith.maximumf %428, %429 : vector<10x80xf32>
    %431 = tpu.reciprocal %430 {approx = true} : vector<10x80xf32> -> vector<10x80xf32>
    %432 = arith.mulf %427, %431 : vector<10x80xf32>
    %cst_245 = arith.constant dense<0.000000e+00> : vector<10x32xf32>
    %433 = tpu.matmul %432, %421, %cst_245 {dimension_numbers = #tpu.dot_dimension_numbers<[1], [0], [0], [1], [0, 0, 1, 1], [], []>} : vector<10x80xf32>, vector<80x32xf32>, vector<10x32xf32> -> vector<10x32xf32>
    %c10_246 = arith.constant 10 : index
    %c0_247 = arith.constant 0 : index
    %434 = vector.load %arg35[%c10_246, %c0_247] : memref<20x32xf32, #tpu.memory_space<vmem>>, vector<10x32xf32>
    tpu.vector_store %arg35[%c10_246, %c0_247], %433 {strides = array<i32>} : memref<20x32xf32, #tpu.memory_space<vmem>>, vector<10x32xf32>,
    %c0_248 = arith.constant 0 : index
    %c0_249 = arith.constant 0 : index
    %435 = vector.load %arg35[%c0_248, %c0_249] : memref<20x32xf32, #tpu.memory_space<vmem>>, vector<20x32xf32>
    %436 = arith.truncf %435 : vector<20x32xf32> to vector<20x32xbf16>
    %c2_250 = arith.constant 2 : index
    %c0_251 = arith.constant 0 : index
    %c0_252 = arith.constant 0 : index
    %437 = vector.load %arg21[%c2_250, %c0_251, %c0_252] : memref<4x32x32xbf16, #tpu.memory_space<vmem>>, vector<1x32x32xbf16>
    %438 = vector.shape_cast %437 : vector<1x32x32xbf16> to vector<32x32xbf16>
    %cst_253 = arith.constant dense<0.000000e+00> : vector<20x32xf32>
    %439 = tpu.matmul %436, %438, %cst_253 {dimension_numbers = #tpu.dot_dimension_numbers<[1], [0], [0], [1], [0, 0, 1, 1], [], []>} : vector<20x32xbf16>, vector<32x32xbf16>, vector<20x32xf32> -> vector<20x32xf32>
    %c2_254 = arith.constant 2 : index
    %c0_255 = arith.constant 0 : index
    %c0_256 = arith.constant 0 : index
    %440 = vector.load %arg22[%c2_254, %c0_255, %c0_256] : memref<4x1x32xf32, #tpu.memory_space<vmem>>, vector<1x1x32xf32>
    %441 = vector.shape_cast %440 : vector<1x1x32xf32> to vector<1x32xf32>
    %442 = vector.broadcast %441 : vector<1x32xf32> to vector<20x32xf32>
    %443 = arith.addf %439, %442 : vector<20x32xf32>
    %444 = arith.addf %372, %443 : vector<20x32xf32>
    %c2_257 = arith.constant 2 : index
    %c0_258 = arith.constant 0 : index
    %c0_259 = arith.constant 0 : index
    %445 = vector.load %arg23[%c2_257, %c0_258, %c0_259] : memref<4x1x32xf32, #tpu.memory_space<vmem>>, vector<1x1x32xf32>
    %446 = vector.shape_cast %445 : vector<1x1x32xf32> to vector<1x32xf32>
    %c2_260 = arith.constant 2 : index
    %c0_261 = arith.constant 0 : index
    %c0_262 = arith.constant 0 : index
    %447 = vector.load %arg24[%c2_260, %c0_261, %c0_262] : memref<4x1x32xf32, #tpu.memory_space<vmem>>, vector<1x1x32xf32>
    %448 = vector.shape_cast %447 : vector<1x1x32xf32> to vector<1x32xf32>
    %cst_263 = arith.constant dense<0.000000e+00> : vector<20xf32>
    %449 = vector.multi_reduction <add>, %444, %cst_263 [1] : vector<20x32xf32> to vector<20xf32>
    %450 = vector.shape_cast %449 : vector<20xf32> to vector<20x1xf32>
    %cst_264 = arith.constant 3.200000e+01 : f32
    %451 = vector.broadcast %cst_264 : f32 to vector<20x1xf32>
    %452 = arith.divf %450, %451 : vector<20x1xf32>
    %453 = vector.broadcast %452 : vector<20x1xf32> to vector<20x32xf32>
    %454 = arith.subf %444, %453 : vector<20x32xf32>
    %455 = arith.mulf %454, %454 : vector<20x32xf32>
    %cst_265 = arith.constant dense<0.000000e+00> : vector<20xf32>
    %456 = vector.multi_reduction <add>, %455, %cst_265 [1] : vector<20x32xf32> to vector<20xf32>
    %457 = vector.shape_cast %456 : vector<20xf32> to vector<20x1xf32>
    %cst_266 = arith.constant 3.200000e+01 : f32
    %458 = vector.broadcast %cst_266 : f32 to vector<20x1xf32>
    %459 = arith.divf %457, %458 : vector<20x1xf32>
    %460 = vector.broadcast %452 : vector<20x1xf32> to vector<20x32xf32>
    %461 = arith.subf %444, %460 : vector<20x32xf32>
    %cst_267 = arith.constant 9.99999974E-6 : f32
    %462 = vector.broadcast %cst_267 : f32 to vector<20x1xf32>
    %463 = arith.addf %459, %462 : vector<20x1xf32>
    %464 = math.rsqrt %463 : vector<20x1xf32>
    %465 = vector.broadcast %464 : vector<20x1xf32> to vector<20x32xf32>
    %466 = arith.mulf %461, %465 : vector<20x32xf32>
    %467 = vector.broadcast %446 : vector<1x32xf32> to vector<20x32xf32>
    %468 = arith.mulf %466, %467 : vector<20x32xf32>
    %469 = vector.broadcast %448 : vector<1x32xf32> to vector<20x32xf32>
    %470 = arith.addf %468, %469 : vector<20x32xf32>
    %471 = arith.truncf %470 : vector<20x32xf32> to vector<20x32xbf16>
    %c2_268 = arith.constant 2 : index
    %c0_269 = arith.constant 0 : index
    %c0_270 = arith.constant 0 : index
    %472 = vector.load %arg25[%c2_268, %c0_269, %c0_270] : memref<4x32x2048xbf16, #tpu.memory_space<vmem>>, vector<1x32x2048xbf16>
    %473 = vector.shape_cast %472 : vector<1x32x2048xbf16> to vector<32x2048xbf16>
    %cst_271 = arith.constant dense<0.000000e+00> : vector<20x2048xf32>
    %474 = tpu.matmul %471, %473, %cst_271 {dimension_numbers = #tpu.dot_dimension_numbers<[1], [0], [0], [1], [0, 0, 1, 1], [], []>} : vector<20x32xbf16>, vector<32x2048xbf16>, vector<20x2048xf32> -> vector<20x2048xf32>
    %c2_272 = arith.constant 2 : index
    %c0_273 = arith.constant 0 : index
    %c0_274 = arith.constant 0 : index
    %475 = vector.load %arg26[%c2_272, %c0_273, %c0_274] : memref<4x1x2048xf32, #tpu.memory_space<vmem>>, vector<1x1x2048xf32>
    %476 = vector.shape_cast %475 : vector<1x1x2048xf32> to vector<1x2048xf32>
    %477 = vector.broadcast %476 : vector<1x2048xf32> to vector<20x2048xf32>
    %478 = arith.addf %474, %477 : vector<20x2048xf32>
    %cst_275 = arith.constant 0.000000e+00 : f32
    %479 = vector.broadcast %cst_275 : f32 to vector<20x2048xf32>
    %480 = arith.maximumf %478, %479 : vector<20x2048xf32>
    %481 = arith.truncf %480 : vector<20x2048xf32> to vector<20x2048xbf16>
    %c2_276 = arith.constant 2 : index
    %c0_277 = arith.constant 0 : index
    %c0_278 = arith.constant 0 : index
    %482 = vector.load %arg27[%c2_276, %c0_277, %c0_278] : memref<4x32x2048xbf16, #tpu.memory_space<vmem>>, vector<1x32x2048xbf16>
    %483 = vector.shape_cast %482 : vector<1x32x2048xbf16> to vector<32x2048xbf16>
    %cst_279 = arith.constant dense<0.000000e+00> : vector<20x32xf32>
    %484 = tpu.matmul %481, %483, %cst_279 {dimension_numbers = #tpu.dot_dimension_numbers<[1], [1], [0], [0], [0, 0, 1, 0], [], []>} : vector<20x2048xbf16>, vector<32x2048xbf16>, vector<20x32xf32> -> vector<20x32xf32>
    %c2_280 = arith.constant 2 : index
    %c0_281 = arith.constant 0 : index
    %c0_282 = arith.constant 0 : index
    %485 = vector.load %arg28[%c2_280, %c0_281, %c0_282] : memref<4x1x32xf32, #tpu.memory_space<vmem>>, vector<1x1x32xf32>
    %486 = vector.shape_cast %485 : vector<1x1x32xf32> to vector<1x32xf32>
    %487 = vector.broadcast %486 : vector<1x32xf32> to vector<20x32xf32>
    %488 = arith.addf %484, %487 : vector<20x32xf32>
    %489 = arith.addf %470, %488 : vector<20x32xf32>
    %c2_283 = arith.constant 2 : index
    %c0_284 = arith.constant 0 : index
    %c0_285 = arith.constant 0 : index
    %490 = vector.load %arg29[%c2_283, %c0_284, %c0_285] : memref<4x1x32xf32, #tpu.memory_space<vmem>>, vector<1x1x32xf32>
    %491 = vector.shape_cast %490 : vector<1x1x32xf32> to vector<1x32xf32>
    %c2_286 = arith.constant 2 : index
    %c0_287 = arith.constant 0 : index
    %c0_288 = arith.constant 0 : index
    %492 = vector.load %arg30[%c2_286, %c0_287, %c0_288] : memref<4x1x32xf32, #tpu.memory_space<vmem>>, vector<1x1x32xf32>
    %493 = vector.shape_cast %492 : vector<1x1x32xf32> to vector<1x32xf32>
    %cst_289 = arith.constant dense<0.000000e+00> : vector<20xf32>
    %494 = vector.multi_reduction <add>, %489, %cst_289 [1] : vector<20x32xf32> to vector<20xf32>
    %495 = vector.shape_cast %494 : vector<20xf32> to vector<20x1xf32>
    %cst_290 = arith.constant 3.200000e+01 : f32
    %496 = vector.broadcast %cst_290 : f32 to vector<20x1xf32>
    %497 = arith.divf %495, %496 : vector<20x1xf32>
    %498 = vector.broadcast %497 : vector<20x1xf32> to vector<20x32xf32>
    %499 = arith.subf %489, %498 : vector<20x32xf32>
    %500 = arith.mulf %499, %499 : vector<20x32xf32>
    %cst_291 = arith.constant dense<0.000000e+00> : vector<20xf32>
    %501 = vector.multi_reduction <add>, %500, %cst_291 [1] : vector<20x32xf32> to vector<20xf32>
    %502 = vector.shape_cast %501 : vector<20xf32> to vector<20x1xf32>
    %cst_292 = arith.constant 3.200000e+01 : f32
    %503 = vector.broadcast %cst_292 : f32 to vector<20x1xf32>
    %504 = arith.divf %502, %503 : vector<20x1xf32>
    %505 = vector.broadcast %497 : vector<20x1xf32> to vector<20x32xf32>
    %506 = arith.subf %489, %505 : vector<20x32xf32>
    %cst_293 = arith.constant 9.99999974E-6 : f32
    %507 = vector.broadcast %cst_293 : f32 to vector<20x1xf32>
    %508 = arith.addf %504, %507 : vector<20x1xf32>
    %509 = math.rsqrt %508 : vector<20x1xf32>
    %510 = vector.broadcast %509 : vector<20x1xf32> to vector<20x32xf32>
    %511 = arith.mulf %506, %510 : vector<20x32xf32>
    %512 = vector.broadcast %491 : vector<1x32xf32> to vector<20x32xf32>
    %513 = arith.mulf %511, %512 : vector<20x32xf32>
    %514 = vector.broadcast %493 : vector<1x32xf32> to vector<20x32xf32>
    %515 = arith.addf %513, %514 : vector<20x32xf32>
    %516 = arith.truncf %515 : vector<20x32xf32> to vector<20x32xbf16>
    %c3 = arith.constant 3 : index
    %c0_294 = arith.constant 0 : index
    %c0_295 = arith.constant 0 : index
    %517 = vector.load %arg15[%c3, %c0_294, %c0_295] : memref<4x32x32xbf16, #tpu.memory_space<vmem>>, vector<1x32x32xbf16>
    %518 = vector.shape_cast %517 : vector<1x32x32xbf16> to vector<32x32xbf16>
    %cst_296 = arith.constant dense<0.000000e+00> : vector<20x32xf32>
    %519 = tpu.matmul %516, %518, %cst_296 {dimension_numbers = #tpu.dot_dimension_numbers<[1], [0], [0], [1], [0, 0, 1, 1], [], []>} : vector<20x32xbf16>, vector<32x32xbf16>, vector<20x32xf32> -> vector<20x32xf32>
    %c3_297 = arith.constant 3 : index
    %c0_298 = arith.constant 0 : index
    %c0_299 = arith.constant 0 : index
    %520 = vector.load %arg18[%c3_297, %c0_298, %c0_299] : memref<4x1x32xf32, #tpu.memory_space<vmem>>, vector<1x1x32xf32>
    %521 = vector.shape_cast %520 : vector<1x1x32xf32> to vector<1x32xf32>
    %522 = vector.broadcast %521 : vector<1x32xf32> to vector<20x32xf32>
    %523 = arith.addf %519, %522 : vector<20x32xf32>
    %c3_300 = arith.constant 3 : index
    %c0_301 = arith.constant 0 : index
    %c0_302 = arith.constant 0 : index
    %524 = vector.load %arg16[%c3_300, %c0_301, %c0_302] : memref<4x32x32xbf16, #tpu.memory_space<vmem>>, vector<1x32x32xbf16>
    %525 = vector.shape_cast %524 : vector<1x32x32xbf16> to vector<32x32xbf16>
    %cst_303 = arith.constant dense<0.000000e+00> : vector<20x32xf32>
    %526 = tpu.matmul %516, %525, %cst_303 {dimension_numbers = #tpu.dot_dimension_numbers<[1], [0], [0], [1], [0, 0, 1, 1], [], []>} : vector<20x32xbf16>, vector<32x32xbf16>, vector<20x32xf32> -> vector<20x32xf32>
    %c3_304 = arith.constant 3 : index
    %c0_305 = arith.constant 0 : index
    %c0_306 = arith.constant 0 : index
    %527 = vector.load %arg19[%c3_304, %c0_305, %c0_306] : memref<4x1x32xf32, #tpu.memory_space<vmem>>, vector<1x1x32xf32>
    %528 = vector.shape_cast %527 : vector<1x1x32xf32> to vector<1x32xf32>
    %529 = vector.broadcast %528 : vector<1x32xf32> to vector<20x32xf32>
    %530 = arith.addf %526, %529 : vector<20x32xf32>
    %c3_307 = arith.constant 3 : index
    %c0_308 = arith.constant 0 : index
    %c0_309 = arith.constant 0 : index
    %531 = vector.load %arg17[%c3_307, %c0_308, %c0_309] : memref<4x32x32xbf16, #tpu.memory_space<vmem>>, vector<1x32x32xbf16>
    %532 = vector.shape_cast %531 : vector<1x32x32xbf16> to vector<32x32xbf16>
    %cst_310 = arith.constant dense<0.000000e+00> : vector<20x32xf32>
    %533 = tpu.matmul %516, %532, %cst_310 {dimension_numbers = #tpu.dot_dimension_numbers<[1], [0], [0], [1], [0, 0, 1, 1], [], []>} : vector<20x32xbf16>, vector<32x32xbf16>, vector<20x32xf32> -> vector<20x32xf32>
    %c3_311 = arith.constant 3 : index
    %c0_312 = arith.constant 0 : index
    %c0_313 = arith.constant 0 : index
    %534 = vector.load %arg20[%c3_311, %c0_312, %c0_313] : memref<4x1x32xf32, #tpu.memory_space<vmem>>, vector<1x1x32xf32>
    %535 = vector.shape_cast %534 : vector<1x1x32xf32> to vector<1x32xf32>
    %536 = vector.broadcast %535 : vector<1x32xf32> to vector<20x32xf32>
    %537 = arith.addf %533, %536 : vector<20x32xf32>
    %538 = vector.extract_strided_slice %523 {offsets = [0, 0], sizes = [10, 32], strides = [1, 1]} : vector<20x32xf32> to vector<10x32xf32>
    %539 = vector.extract_strided_slice %530 {offsets = [0, 0], sizes = [10, 32], strides = [1, 1]} : vector<20x32xf32> to vector<10x32xf32>
    %540 = vector.extract_strided_slice %537 {offsets = [0, 0], sizes = [10, 32], strides = [1, 1]} : vector<20x32xf32> to vector<10x32xf32>
    %541 = tpu.concatenate %539, %539, %539, %539, %539, %539, %539, %539 in 0 : vector<10x32xf32>, vector<10x32xf32>, vector<10x32xf32>, vector<10x32xf32>, vector<10x32xf32>, vector<10x32xf32>, vector<10x32xf32>, vector<10x32xf32> -> vector<80x32xf32>
    %542 = arith.mulf %541, %85 : vector<80x32xf32>
    %543 = tpu.concatenate %540, %540, %540, %540, %540, %540, %540, %540 in 0 : vector<10x32xf32>, vector<10x32xf32>, vector<10x32xf32>, vector<10x32xf32>, vector<10x32xf32>, vector<10x32xf32>, vector<10x32xf32>, vector<10x32xf32> -> vector<80x32xf32>
    %544 = arith.mulf %543, %85 : vector<80x32xf32>
    %cst_314 = arith.constant dense<0.000000e+00> : vector<10x80xf32>
    %545 = tpu.matmul %538, %542, %cst_314 {dimension_numbers = #tpu.dot_dimension_numbers<[1], [1], [0], [0], [0, 0, 1, 0], [], []>} : vector<10x32xf32>, vector<80x32xf32>, vector<10x80xf32> -> vector<10x80xf32>
    %cst_315 = arith.constant dense<0xFF800000> : vector<10xf32>
    %546 = vector.multi_reduction <maximumf>, %545, %cst_315 [1] : vector<10x80xf32> to vector<10xf32>
    %547 = vector.shape_cast %546 : vector<10xf32> to vector<10x1xf32>
    %548 = vector.broadcast %547 : vector<10x1xf32> to vector<10x80xf32>
    %549 = arith.subf %545, %548 : vector<10x80xf32>
    %550 = math.exp %549 : vector<10x80xf32>
    %cst_316 = arith.constant dense<0.000000e+00> : vector<10x80xf32>
    %551 = tpu.matmul %550, %86, %cst_316 {dimension_numbers = #tpu.dot_dimension_numbers<[1], [0], [0], [1], [0, 0, 1, 1], [], []>} : vector<10x80xf32>, vector<80x80xf32>, vector<10x80xf32> -> vector<10x80xf32>
    %cst_317 = arith.constant 1.000000e-30 : f32
    %552 = vector.broadcast %cst_317 : f32 to vector<10x80xf32>
    %553 = arith.maximumf %551, %552 : vector<10x80xf32>
    %554 = tpu.reciprocal %553 {approx = true} : vector<10x80xf32> -> vector<10x80xf32>
    %555 = arith.mulf %550, %554 : vector<10x80xf32>
    %cst_318 = arith.constant dense<0.000000e+00> : vector<10x32xf32>
    %556 = tpu.matmul %555, %544, %cst_318 {dimension_numbers = #tpu.dot_dimension_numbers<[1], [0], [0], [1], [0, 0, 1, 1], [], []>} : vector<10x80xf32>, vector<80x32xf32>, vector<10x32xf32> -> vector<10x32xf32>
    %c0_319 = arith.constant 0 : index
    %c0_320 = arith.constant 0 : index
    %557 = vector.load %arg35[%c0_319, %c0_320] : memref<20x32xf32, #tpu.memory_space<vmem>>, vector<10x32xf32>
    tpu.vector_store %arg35[%c0_319, %c0_320], %556 {strides = array<i32>} : memref<20x32xf32, #tpu.memory_space<vmem>>, vector<10x32xf32>,
    %558 = vector.extract_strided_slice %523 {offsets = [10, 0], sizes = [10, 32], strides = [1, 1]} : vector<20x32xf32> to vector<10x32xf32>
    %559 = vector.extract_strided_slice %530 {offsets = [10, 0], sizes = [10, 32], strides = [1, 1]} : vector<20x32xf32> to vector<10x32xf32>
    %560 = vector.extract_strided_slice %537 {offsets = [10, 0], sizes = [10, 32], strides = [1, 1]} : vector<20x32xf32> to vector<10x32xf32>
    %561 = tpu.concatenate %559, %559, %559, %559, %559, %559, %559, %559 in 0 : vector<10x32xf32>, vector<10x32xf32>, vector<10x32xf32>, vector<10x32xf32>, vector<10x32xf32>, vector<10x32xf32>, vector<10x32xf32>, vector<10x32xf32> -> vector<80x32xf32>
    %562 = arith.mulf %561, %85 : vector<80x32xf32>
    %563 = tpu.concatenate %560, %560, %560, %560, %560, %560, %560, %560 in 0 : vector<10x32xf32>, vector<10x32xf32>, vector<10x32xf32>, vector<10x32xf32>, vector<10x32xf32>, vector<10x32xf32>, vector<10x32xf32>, vector<10x32xf32> -> vector<80x32xf32>
    %564 = arith.mulf %563, %85 : vector<80x32xf32>
    %cst_321 = arith.constant dense<0.000000e+00> : vector<10x80xf32>
    %565 = tpu.matmul %558, %562, %cst_321 {dimension_numbers = #tpu.dot_dimension_numbers<[1], [1], [0], [0], [0, 0, 1, 0], [], []>} : vector<10x32xf32>, vector<80x32xf32>, vector<10x80xf32> -> vector<10x80xf32>
    %cst_322 = arith.constant dense<0xFF800000> : vector<10xf32>
    %566 = vector.multi_reduction <maximumf>, %565, %cst_322 [1] : vector<10x80xf32> to vector<10xf32>
    %567 = vector.shape_cast %566 : vector<10xf32> to vector<10x1xf32>
    %568 = vector.broadcast %567 : vector<10x1xf32> to vector<10x80xf32>
    %569 = arith.subf %565, %568 : vector<10x80xf32>
    %570 = math.exp %569 : vector<10x80xf32>
    %cst_323 = arith.constant dense<0.000000e+00> : vector<10x80xf32>
    %571 = tpu.matmul %570, %86, %cst_323 {dimension_numbers = #tpu.dot_dimension_numbers<[1], [0], [0], [1], [0, 0, 1, 1], [], []>} : vector<10x80xf32>, vector<80x80xf32>, vector<10x80xf32> -> vector<10x80xf32>
    %cst_324 = arith.constant 1.000000e-30 : f32
    %572 = vector.broadcast %cst_324 : f32 to vector<10x80xf32>
    %573 = arith.maximumf %571, %572 : vector<10x80xf32>
    %574 = tpu.reciprocal %573 {approx = true} : vector<10x80xf32> -> vector<10x80xf32>
    %575 = arith.mulf %570, %574 : vector<10x80xf32>
    %cst_325 = arith.constant dense<0.000000e+00> : vector<10x32xf32>
    %576 = tpu.matmul %575, %564, %cst_325 {dimension_numbers = #tpu.dot_dimension_numbers<[1], [0], [0], [1], [0, 0, 1, 1], [], []>} : vector<10x80xf32>, vector<80x32xf32>, vector<10x32xf32> -> vector<10x32xf32>
    %c10_326 = arith.constant 10 : index
    %c0_327 = arith.constant 0 : index
    %577 = vector.load %arg35[%c10_326, %c0_327] : memref<20x32xf32, #tpu.memory_space<vmem>>, vector<10x32xf32>
    tpu.vector_store %arg35[%c10_326, %c0_327], %576 {strides = array<i32>} : memref<20x32xf32, #tpu.memory_space<vmem>>, vector<10x32xf32>,
    %c0_328 = arith.constant 0 : index
    %c0_329 = arith.constant 0 : index
    %578 = vector.load %arg35[%c0_328, %c0_329] : memref<20x32xf32, #tpu.memory_space<vmem>>, vector<20x32xf32>
    %579 = arith.truncf %578 : vector<20x32xf32> to vector<20x32xbf16>
    %c3_330 = arith.constant 3 : index
    %c0_331 = arith.constant 0 : index
    %c0_332 = arith.constant 0 : index
    %580 = vector.load %arg21[%c3_330, %c0_331, %c0_332] : memref<4x32x32xbf16, #tpu.memory_space<vmem>>, vector<1x32x32xbf16>
    %581 = vector.shape_cast %580 : vector<1x32x32xbf16> to vector<32x32xbf16>
    %cst_333 = arith.constant dense<0.000000e+00> : vector<20x32xf32>
    %582 = tpu.matmul %579, %581, %cst_333 {dimension_numbers = #tpu.dot_dimension_numbers<[1], [0], [0], [1], [0, 0, 1, 1], [], []>} : vector<20x32xbf16>, vector<32x32xbf16>, vector<20x32xf32> -> vector<20x32xf32>
    %c3_334 = arith.constant 3 : index
    %c0_335 = arith.constant 0 : index
    %c0_336 = arith.constant 0 : index
    %583 = vector.load %arg22[%c3_334, %c0_335, %c0_336] : memref<4x1x32xf32, #tpu.memory_space<vmem>>, vector<1x1x32xf32>
    %584 = vector.shape_cast %583 : vector<1x1x32xf32> to vector<1x32xf32>
    %585 = vector.broadcast %584 : vector<1x32xf32> to vector<20x32xf32>
    %586 = arith.addf %582, %585 : vector<20x32xf32>
    %587 = arith.addf %515, %586 : vector<20x32xf32>
    %c3_337 = arith.constant 3 : index
    %c0_338 = arith.constant 0 : index
    %c0_339 = arith.constant 0 : index
    %588 = vector.load %arg23[%c3_337, %c0_338, %c0_339] : memref<4x1x32xf32, #tpu.memory_space<vmem>>, vector<1x1x32xf32>
    %589 = vector.shape_cast %588 : vector<1x1x32xf32> to vector<1x32xf32>
    %c3_340 = arith.constant 3 : index
    %c0_341 = arith.constant 0 : index
    %c0_342 = arith.constant 0 : index
    %590 = vector.load %arg24[%c3_340, %c0_341, %c0_342] : memref<4x1x32xf32, #tpu.memory_space<vmem>>, vector<1x1x32xf32>
    %591 = vector.shape_cast %590 : vector<1x1x32xf32> to vector<1x32xf32>
    %cst_343 = arith.constant dense<0.000000e+00> : vector<20xf32>
    %592 = vector.multi_reduction <add>, %587, %cst_343 [1] : vector<20x32xf32> to vector<20xf32>
    %593 = vector.shape_cast %592 : vector<20xf32> to vector<20x1xf32>
    %cst_344 = arith.constant 3.200000e+01 : f32
    %594 = vector.broadcast %cst_344 : f32 to vector<20x1xf32>
    %595 = arith.divf %593, %594 : vector<20x1xf32>
    %596 = vector.broadcast %595 : vector<20x1xf32> to vector<20x32xf32>
    %597 = arith.subf %587, %596 : vector<20x32xf32>
    %598 = arith.mulf %597, %597 : vector<20x32xf32>
    %cst_345 = arith.constant dense<0.000000e+00> : vector<20xf32>
    %599 = vector.multi_reduction <add>, %598, %cst_345 [1] : vector<20x32xf32> to vector<20xf32>
    %600 = vector.shape_cast %599 : vector<20xf32> to vector<20x1xf32>
    %cst_346 = arith.constant 3.200000e+01 : f32
    %601 = vector.broadcast %cst_346 : f32 to vector<20x1xf32>
    %602 = arith.divf %600, %601 : vector<20x1xf32>
    %603 = vector.broadcast %595 : vector<20x1xf32> to vector<20x32xf32>
    %604 = arith.subf %587, %603 : vector<20x32xf32>
    %cst_347 = arith.constant 9.99999974E-6 : f32
    %605 = vector.broadcast %cst_347 : f32 to vector<20x1xf32>
    %606 = arith.addf %602, %605 : vector<20x1xf32>
    %607 = math.rsqrt %606 : vector<20x1xf32>
    %608 = vector.broadcast %607 : vector<20x1xf32> to vector<20x32xf32>
    %609 = arith.mulf %604, %608 : vector<20x32xf32>
    %610 = vector.broadcast %589 : vector<1x32xf32> to vector<20x32xf32>
    %611 = arith.mulf %609, %610 : vector<20x32xf32>
    %612 = vector.broadcast %591 : vector<1x32xf32> to vector<20x32xf32>
    %613 = arith.addf %611, %612 : vector<20x32xf32>
    %614 = arith.truncf %613 : vector<20x32xf32> to vector<20x32xbf16>
    %c3_348 = arith.constant 3 : index
    %c0_349 = arith.constant 0 : index
    %c0_350 = arith.constant 0 : index
    %615 = vector.load %arg25[%c3_348, %c0_349, %c0_350] : memref<4x32x2048xbf16, #tpu.memory_space<vmem>>, vector<1x32x2048xbf16>
    %616 = vector.shape_cast %615 : vector<1x32x2048xbf16> to vector<32x2048xbf16>
    %cst_351 = arith.constant dense<0.000000e+00> : vector<20x2048xf32>
    %617 = tpu.matmul %614, %616, %cst_351 {dimension_numbers = #tpu.dot_dimension_numbers<[1], [0], [0], [1], [0, 0, 1, 1], [], []>} : vector<20x32xbf16>, vector<32x2048xbf16>, vector<20x2048xf32> -> vector<20x2048xf32>
    %c3_352 = arith.constant 3 : index
    %c0_353 = arith.constant 0 : index
    %c0_354 = arith.constant 0 : index
    %618 = vector.load %arg26[%c3_352, %c0_353, %c0_354] : memref<4x1x2048xf32, #tpu.memory_space<vmem>>, vector<1x1x2048xf32>
    %619 = vector.shape_cast %618 : vector<1x1x2048xf32> to vector<1x2048xf32>
    %620 = vector.broadcast %619 : vector<1x2048xf32> to vector<20x2048xf32>
    %621 = arith.addf %617, %620 : vector<20x2048xf32>
    %cst_355 = arith.constant 0.000000e+00 : f32
    %622 = vector.broadcast %cst_355 : f32 to vector<20x2048xf32>
    %623 = arith.maximumf %621, %622 : vector<20x2048xf32>
    %624 = arith.truncf %623 : vector<20x2048xf32> to vector<20x2048xbf16>
    %c3_356 = arith.constant 3 : index
    %c0_357 = arith.constant 0 : index
    %c0_358 = arith.constant 0 : index
    %625 = vector.load %arg27[%c3_356, %c0_357, %c0_358] : memref<4x32x2048xbf16, #tpu.memory_space<vmem>>, vector<1x32x2048xbf16>
    %626 = vector.shape_cast %625 : vector<1x32x2048xbf16> to vector<32x2048xbf16>
    %cst_359 = arith.constant dense<0.000000e+00> : vector<20x32xf32>
    %627 = tpu.matmul %624, %626, %cst_359 {dimension_numbers = #tpu.dot_dimension_numbers<[1], [1], [0], [0], [0, 0, 1, 0], [], []>} : vector<20x2048xbf16>, vector<32x2048xbf16>, vector<20x32xf32> -> vector<20x32xf32>
    %c3_360 = arith.constant 3 : index
    %c0_361 = arith.constant 0 : index
    %c0_362 = arith.constant 0 : index
    %628 = vector.load %arg28[%c3_360, %c0_361, %c0_362] : memref<4x1x32xf32, #tpu.memory_space<vmem>>, vector<1x1x32xf32>
    %629 = vector.shape_cast %628 : vector<1x1x32xf32> to vector<1x32xf32>
    %630 = vector.broadcast %629 : vector<1x32xf32> to vector<20x32xf32>
    %631 = arith.addf %627, %630 : vector<20x32xf32>
    %632 = arith.addf %613, %631 : vector<20x32xf32>
    %c3_363 = arith.constant 3 : index
    %c0_364 = arith.constant 0 : index
    %c0_365 = arith.constant 0 : index
    %633 = vector.load %arg29[%c3_363, %c0_364, %c0_365] : memref<4x1x32xf32, #tpu.memory_space<vmem>>, vector<1x1x32xf32>
    %634 = vector.shape_cast %633 : vector<1x1x32xf32> to vector<1x32xf32>
    %c3_366 = arith.constant 3 : index
    %c0_367 = arith.constant 0 : index
    %c0_368 = arith.constant 0 : index
    %635 = vector.load %arg30[%c3_366, %c0_367, %c0_368] : memref<4x1x32xf32, #tpu.memory_space<vmem>>, vector<1x1x32xf32>
    %636 = vector.shape_cast %635 : vector<1x1x32xf32> to vector<1x32xf32>
    %cst_369 = arith.constant dense<0.000000e+00> : vector<20xf32>
    %637 = vector.multi_reduction <add>, %632, %cst_369 [1] : vector<20x32xf32> to vector<20xf32>
    %638 = vector.shape_cast %637 : vector<20xf32> to vector<20x1xf32>
    %cst_370 = arith.constant 3.200000e+01 : f32
    %639 = vector.broadcast %cst_370 : f32 to vector<20x1xf32>
    %640 = arith.divf %638, %639 : vector<20x1xf32>
    %641 = vector.broadcast %640 : vector<20x1xf32> to vector<20x32xf32>
    %642 = arith.subf %632, %641 : vector<20x32xf32>
    %643 = arith.mulf %642, %642 : vector<20x32xf32>
    %cst_371 = arith.constant dense<0.000000e+00> : vector<20xf32>
    %644 = vector.multi_reduction <add>, %643, %cst_371 [1] : vector<20x32xf32> to vector<20xf32>
    %645 = vector.shape_cast %644 : vector<20xf32> to vector<20x1xf32>
    %cst_372 = arith.constant 3.200000e+01 : f32
    %646 = vector.broadcast %cst_372 : f32 to vector<20x1xf32>
    %647 = arith.divf %645, %646 : vector<20x1xf32>
    %648 = vector.broadcast %640 : vector<20x1xf32> to vector<20x32xf32>
    %649 = arith.subf %632, %648 : vector<20x32xf32>
    %cst_373 = arith.constant 9.99999974E-6 : f32
    %650 = vector.broadcast %cst_373 : f32 to vector<20x1xf32>
    %651 = arith.addf %647, %650 : vector<20x1xf32>
    %652 = math.rsqrt %651 : vector<20x1xf32>
    %653 = vector.broadcast %652 : vector<20x1xf32> to vector<20x32xf32>
    %654 = arith.mulf %649, %653 : vector<20x32xf32>
    %655 = vector.broadcast %634 : vector<1x32xf32> to vector<20x32xf32>
    %656 = arith.mulf %654, %655 : vector<20x32xf32>
    %657 = vector.broadcast %636 : vector<1x32xf32> to vector<20x32xf32>
    %658 = arith.addf %656, %657 : vector<20x32xf32>
    %c0_374 = arith.constant 0 : index
    %c0_375 = arith.constant 0 : index
    %659 = vector.load %arg31[%c0_374, %c0_375] : memref<1x32xf32, #tpu.memory_space<vmem>>, vector<1x32xf32>
    %660 = vector.extract_strided_slice %658 {offsets = [0, 0], sizes = [8, 32], strides = [1, 1]} : vector<20x32xf32> to vector<8x32xf32>
    %cst_376 = arith.constant dense<0.000000e+00> : vector<1x8xf32>
    %661 = tpu.matmul %659, %660, %cst_376 {dimension_numbers = #tpu.dot_dimension_numbers<[1], [1], [0], [0], [0, 0, 1, 0], [], []>} : vector<1x32xf32>, vector<8x32xf32>, vector<1x8xf32> -> vector<1x8xf32>
    %c0_377 = arith.constant 0 : index
    %c0_378 = arith.constant 0 : index
    %662 = vector.load %arg32[%c0_377, %c0_378] : memref<1x1xf32, #tpu.memory_space<vmem>>, vector<1x1xf32>
    %663 = vector.broadcast %662 : vector<1x1xf32> to vector<1x8xf32>
    %664 = arith.addf %661, %663 : vector<1x8xf32>
    %c0_379 = arith.constant 0 : index
    %c0_380 = arith.constant 0 : index
    %665 = vector.load %arg33[%c0_379, %c0_380] : memref<2x8xf32, #tpu.memory_space<vmem>>, vector<1x8xf32>
    tpu.vector_store %arg33[%c0_379, %c0_380], %664 {strides = array<i32>} : memref<2x8xf32, #tpu.memory_space<vmem>>, vector<1x8xf32>,
    %666 = vector.extract_strided_slice %658 {offsets = [10, 0], sizes = [8, 32], strides = [1, 1]} : vector<20x32xf32> to vector<8x32xf32>
    %cst_381 = arith.constant dense<0.000000e+00> : vector<1x8xf32>
    %667 = tpu.matmul %659, %666, %cst_381 {dimension_numbers = #tpu.dot_dimension_numbers<[1], [1], [0], [0], [0, 0, 1, 0], [], []>} : vector<1x32xf32>, vector<8x32xf32>, vector<1x8xf32> -> vector<1x8xf32>
    %c0_382 = arith.constant 0 : index
    %c0_383 = arith.constant 0 : index
    %668 = vector.load %arg32[%c0_382, %c0_383] : memref<1x1xf32, #tpu.memory_space<vmem>>, vector<1x1xf32>
    %669 = vector.broadcast %668 : vector<1x1xf32> to vector<1x8xf32>
    %670 = arith.addf %667, %669 : vector<1x8xf32>
    %c1_384 = arith.constant 1 : index
    %c0_385 = arith.constant 0 : index
    %671 = vector.load %arg33[%c1_384, %c0_385] : memref<2x8xf32, #tpu.memory_space<vmem>>, vector<1x8xf32>
    tpu.vector_store %arg33[%c1_384, %c0_385], %670 {strides = array<i32>} : memref<2x8xf32, #tpu.memory_space<vmem>>, vector<1x8xf32>,
    return
  }
}

</mosaic_0001>

<llo_original>
// kernel: tpu_custom_call.1
$region0: #{tpu_custom_call.1}
  #allocation0 [shape = 'u32[]', space=smem, size = 0x4, offset = 0x4, fixed_abs, tag = 'smem constant byte address 0x4 - core index']
  #allocation1 [shape = 'u32[144,128]{1,0:T(1,128)}', space=vmem, size = 0x12000, scoped, tag = 'internal scratch']
  #allocation2 [shape = 'f32[20,32]{1,0:T(8,128)}', space=vmem, size = 0x3000, scoped, tag = 'scratch operand']
  #allocation3 [shape = 'f32[20,32]{1,0:T(8,128)}', space=vmem, size = 0x3000, scoped, tag = 'scratch operand']
  #allocation4 [shape = 'f32[1,1]{1,0:T(1,128)S(1)}', space=vmem, size = 0x200, scoped, tag = 'scoped memory for tpu_custom_call.1']
  %s0 = inlined_call_operand.smem [shape: u32[34], index: -1, kind: input, shape index: {}]
  %s1 = sld [smem:[%s0]]
  %s2 = scalar_lea.smem %s0, 1
  %s3 = sld [smem:[%s2]]
  %s4 = scalar_lea.smem %s0, 2
  %s5 = sld [smem:[%s4]]
  %s6 = scalar_lea.smem %s0, 3
  %s7 = sld [smem:[%s6]]
  %s8 = scalar_lea.smem %s0, 4
  %s9 = sld [smem:[%s8]]
  %s10 = scalar_lea.smem %s0, 5
  %s11 = sld [smem:[%s10]]
  %s12 = scalar_lea.smem %s0, 6
  %s13 = sld [smem:[%s12]]
  %s14 = scalar_lea.smem %s0, 7
  %s15 = sld [smem:[%s14]]
  %s16 = scalar_lea.smem %s0, 8
  %s17 = sld [smem:[%s16]]
  %s18 = scalar_lea.smem %s0, 9
  %s19 = sld [smem:[%s18]]
  %s20 = scalar_lea.smem %s0, 10
  %s21 = sld [smem:[%s20]]
  %s22 = scalar_lea.smem %s0, 11
  %s23 = sld [smem:[%s22]]
  %s24 = scalar_lea.smem %s0, 12
  %s25 = sld [smem:[%s24]]
  %s26 = scalar_lea.smem %s0, 13
  %s27 = sld [smem:[%s26]]
  %s28 = scalar_lea.smem %s0, 14
  %s29 = sld [smem:[%s28]]
  %s30 = scalar_lea.smem %s0, 15
  %s31 = sld [smem:[%s30]]
  %s32 = scalar_lea.smem %s0, 16
  %s33 = sld [smem:[%s32]]
  %s34 = scalar_lea.smem %s0, 17
  %s35 = sld [smem:[%s34]]
  %s36 = scalar_lea.smem %s0, 18
  %s37 = sld [smem:[%s36]]
  %s38 = scalar_lea.smem %s0, 19
  %s39 = sld [smem:[%s38]]
  %s40 = scalar_lea.smem %s0, 20
  %s41 = sld [smem:[%s40]]
  %s42 = scalar_lea.smem %s0, 21
  %s43 = sld [smem:[%s42]]
  %s44 = scalar_lea.smem %s0, 22
  %s45 = sld [smem:[%s44]]
  %s46 = scalar_lea.smem %s0, 23
  %s47 = sld [smem:[%s46]]
  %s48 = scalar_lea.smem %s0, 24
  %s49 = sld [smem:[%s48]]
  %s50 = scalar_lea.smem %s0, 25
  %s51 = sld [smem:[%s50]]
  %s52 = scalar_lea.smem %s0, 26
  %s53 = sld [smem:[%s52]]
  %s54 = scalar_lea.smem %s0, 27
  %s55 = sld [smem:[%s54]]
  %s56 = scalar_lea.smem %s0, 28
  %s57 = sld [smem:[%s56]]
  %s58 = scalar_lea.smem %s0, 29
  %s59 = sld [smem:[%s58]]
  %s60 = scalar_lea.smem %s0, 30
  %s61 = sld [smem:[%s60]]
  %s62 = scalar_lea.smem %s0, 31
  %s63 = sld [smem:[%s62]]
  %s64 = scalar_lea.smem %s0, 32
  %s65 = sld [smem:[%s64]]
  %s66 = scalar_lea.smem %s0, 33
  %s67 = sld [smem:[%s66]]
  %s68 = sld [smem:[#allocation0]]
  $region210: #{tpu_custom_call.1} parent=0
    _
  %s70 = ssub.s32 1, %s68
  %s71 = scalar_select 0, %s70, %s68
  %v72 = vstv %s65
  %73 = vst [vmem:[#allocation4] sm:$0x1] %v72
  $region1: #{tpu_custom_call.1} parent=0
    #allocation5 [shape = 'u8[1024]{0}', space=vmem, size = 0x400, scoped, tag = 'input window, operand 1, single buffered']
    #allocation6 [shape = 's32[1]{0}', space=sflag, size = 0x4, scoped, tag = 'scoped memory for tpu_custom_call.1']
    #allocation7 [shape = 's32[1]{0}', space=sflag, size = 0x4, scoped, tag = 'scoped memory for tpu_custom_call.1']
    #allocation8 [shape = 'u8[1024]{0}', space=vmem, size = 0x400, scoped, tag = 'input window, operand 2, single buffered']
    #allocation9 [shape = 's32[1]{0}', space=sflag, size = 0x4, scoped, tag = 'scoped memory for tpu_custom_call.1']
    #allocation10 [shape = 'u8[2048]{0}', space=vmem, size = 0x800, scoped, tag = 'input window, operand 5, single buffered']
    #allocation11 [shape = 'u8[512]{0}', space=vmem, size = 0x400, scoped, tag = 'input window, operand 6, single buffered']
    #allocation12 [shape = 's32[1]{0}', space=sflag, size = 0x4, scoped, tag = 'scoped memory for tpu_custom_call.1']
    #allocation13 [shape = 'u8[512]{0}', space=vmem, size = 0x400, scoped, tag = 'input window, operand 7, single buffered']
    #allocation14 [shape = 'u8[512]{0}', space=vmem, size = 0x400, scoped, tag = 'input window, operand 8, single buffered']
    #allocation15 [shape = 's32[1]{0}', space=sflag, size = 0x4, scoped, tag = 'scoped memory for tpu_custom_call.1']
    #allocation16 [shape = 'u8[512]{0}', space=vmem, size = 0x400, scoped, tag = 'input window, operand 10, single buffered']
    #allocation17 [shape = 'u8[512]{0}', space=vmem, size = 0x400, scoped, tag = 'input window, operand 11, single buffered']
    #allocation18 [shape = 's32[1]{0}', space=sflag, size = 0x4, scoped, tag = 'scoped memory for tpu_custom_call.1']
    #allocation19 [shape = 'u8[512]{0}', space=vmem, size = 0x400, scoped, tag = 'input window, operand 12, single buffered']
    #allocation20 [shape = 'u8[8192]{0}', space=vmem, size = 0x2000, scoped, tag = 'input window, operand 13, single buffered']
    #allocation21 [shape = 's32[1]{0}', space=sflag, size = 0x4, scoped, tag = 'scoped memory for tpu_custom_call.1']
    #allocation22 [shape = 'u8[512]{0}', space=vmem, size = 0x400, scoped, tag = 'input window, operand 14, single buffered']
    #allocation23 [shape = 'u8[32768]{0}', space=vmem, size = 0x8000, scoped, tag = 'input window, operand 16, single buffered']
    #allocation24 [shape = 's32[1]{0}', space=sflag, size = 0x4, scoped, tag = 'scoped memory for tpu_custom_call.1']
    #allocation25 [shape = 'u8[32768]{0}', space=vmem, size = 0x8000, scoped, tag = 'input window, operand 17, single buffered']
    #allocation26 [shape = 'u8[32768]{0}', space=vmem, size = 0x8000, scoped, tag = 'input window, operand 21, single buffered']
    #allocation27 [shape = 's32[1]{0}', space=sflag, size = 0x4, scoped, tag = 'scoped memory for tpu_custom_call.1']
    #allocation28 [shape = 'u8[524288]{0}', space=vmem, size = 0x80000, scoped, tag = 'input window, operand 25, single buffered']
    #allocation29 [shape = 'u8[32768]{0}', space=vmem, size = 0x8000, scoped, tag = 'input window, operand 26, single buffered']
    #allocation30 [shape = 's32[1]{0}', space=sflag, size = 0x4, scoped, tag = 'scoped memory for tpu_custom_call.1']
    #allocation31 [shape = 'u8[524288]{0}', space=vmem, size = 0x80000, scoped, tag = 'input window, operand 27, single buffered']
    #allocation32 [shape = 'u8[1024]{0}', space=vmem, size = 0x400, scoped, tag = 'output window, operand 0, single buffered']
    %74 = vsyncpa [#allocation6], 0
    %75 = vsyncpa [#allocation9], 0
    %76 = vsyncpa [#allocation12], 0
    %77 = vsyncpa [#allocation15], 0
    %78 = vsyncpa [#allocation18], 0
    %79 = vsyncpa [#allocation21], 0
    %80 = vsyncpa [#allocation24], 0
    %81 = vsyncpa [#allocation27], 0
    %82 = vsyncpa [#allocation30], 0
    %83 = vsyncpa [#allocation7], 0
    // Predicated region
    $region2: #{tpu_custom_call.1} parent=1 // pred_check
      _
    $region3: #{tpu_custom_call.1} parent=1 // pred_check_branch
      %85 = sbr.rel (0) target = $region5
    $region4: #{tpu_custom_call.1} parent=1 // pred_region
      _
    $region5: #{tpu_custom_call.1} parent=1 // pred_fallthru
      _
    // Predicated region
    $region6: #{tpu_custom_call.1} parent=1 // pred_check
      _
    $region7: #{tpu_custom_call.1} parent=1 // pred_check_branch
      %87 = sbr.rel (0) target = $region9
    $region8: #{tpu_custom_call.1} parent=1 // pred_region
      %s89 = ssub.s32 32, 32
      %90 = vsyncadd [#allocation6], %s89
      %s92 = sshll.u32 [#allocation5], 4
      %s93 = int_to_ptr.vmem [resolvable:$true] %s92
      %95 = dma.hbm_to_vmem [thread:$0]  %s3, 32, %s93, [#allocation6]
    $region9: #{tpu_custom_call.1} parent=1 // pred_fallthru
      _
    // Predicated region
    $region10: #{tpu_custom_call.1} parent=1 // pred_check
      _
    $region11: #{tpu_custom_call.1} parent=1 // pred_check_branch
      %97 = sbr.rel (0) target = $region13
    $region12: #{tpu_custom_call.1} parent=1 // pred_region
      %s99 = ssub.s32 32, 32
      %100 = vsyncadd [#allocation9], %s99
      %s102 = sshll.u32 [#allocation8], 4
      %s103 = int_to_ptr.vmem [resolvable:$true] %s102
      %105 = dma.hbm_to_vmem [thread:$0]  %s5, 32, %s103, [#allocation9]
    $region13: #{tpu_custom_call.1} parent=1 // pred_fallthru
      _
    // Predicated region
    $region14: #{tpu_custom_call.1} parent=1 // pred_check
      _
    $region15: #{tpu_custom_call.1} parent=1 // pred_check_branch
      %107 = sbr.rel (0) target = $region17
    $region16: #{tpu_custom_call.1} parent=1 // pred_region
      _
    $region17: #{tpu_custom_call.1} parent=1 // pred_fallthru
      _
    // Predicated region
    $region18: #{tpu_custom_call.1} parent=1 // pred_check
      _
    $region19: #{tpu_custom_call.1} parent=1 // pred_check_branch
      %109 = sbr.rel (0) target = $region21
    $region20: #{tpu_custom_call.1} parent=1 // pred_region
      _
    $region21: #{tpu_custom_call.1} parent=1 // pred_fallthru
      _
    // Predicated region
    $region22: #{tpu_custom_call.1} parent=1 // pred_check
      _
    $region23: #{tpu_custom_call.1} parent=1 // pred_check_branch
      %111 = sbr.rel (0) target = $region25
    $region24: #{tpu_custom_call.1} parent=1 // pred_region
      %s113 = ssub.s32 64, 64
      %114 = vsyncadd [#allocation9], %s113
      %s116 = sshll.u32 [#allocation10], 4
      %s117 = int_to_ptr.vmem [resolvable:$true] %s116
      %119 = dma.hbm_to_vmem [thread:$0]  %s11, 64, %s117, [#allocation9]
    $region25: #{tpu_custom_call.1} parent=1 // pred_fallthru
      _
    // Predicated region
    $region26: #{tpu_custom_call.1} parent=1 // pred_check
      _
    $region27: #{tpu_custom_call.1} parent=1 // pred_check_branch
      %121 = sbr.rel (0) target = $region29
    $region28: #{tpu_custom_call.1} parent=1 // pred_region
      %s123 = ssub.s32 16, 16
      %124 = vsyncadd [#allocation12], %s123
      %s126 = sshll.u32 [#allocation11], 4
      %s127 = int_to_ptr.vmem [resolvable:$true] %s126
      %129 = dma.hbm_to_vmem [thread:$0]  %s13, 16, %s127, [#allocation12]
    $region29: #{tpu_custom_call.1} parent=1 // pred_fallthru
      _
    // Predicated region
    $region30: #{tpu_custom_call.1} parent=1 // pred_check
      _
    $region31: #{tpu_custom_call.1} parent=1 // pred_check_branch
      %131 = sbr.rel (0) target = $region33
    $region32: #{tpu_custom_call.1} parent=1 // pred_region
      %s133 = ssub.s32 16, 16
      %134 = vsyncadd [#allocation12], %s133
      %s136 = sshll.u32 [#allocation13], 4
      %s137 = int_to_ptr.vmem [resolvable:$true] %s136
      %139 = dma.hbm_to_vmem [thread:$0]  %s15, 16, %s137, [#allocation12]
    $region33: #{tpu_custom_call.1} parent=1 // pred_fallthru
      _
    // Predicated region
    $region34: #{tpu_custom_call.1} parent=1 // pred_check
      _
    $region35: #{tpu_custom_call.1} parent=1 // pred_check_branch
      %141 = sbr.rel (0) target = $region37
    $region36: #{tpu_custom_call.1} parent=1 // pred_region
      %s143 = ssub.s32 16, 16
      %144 = vsyncadd [#allocation15], %s143
      %s146 = sshll.u32 [#allocation14], 4
      %s147 = int_to_ptr.vmem [resolvable:$true] %s146
      %149 = dma.hbm_to_vmem [thread:$0]  %s17, 16, %s147, [#allocation15]
    $region37: #{tpu_custom_call.1} parent=1 // pred_fallthru
      _
    // Predicated region
    $region38: #{tpu_custom_call.1} parent=1 // pred_check
      _
    $region39: #{tpu_custom_call.1} parent=1 // pred_check_branch
      %151 = sbr.rel (0) target = $region41
    $region40: #{tpu_custom_call.1} parent=1 // pred_region
      _
    $region41: #{tpu_custom_call.1} parent=1 // pred_fallthru
      _
    // Predicated region
    $region42: #{tpu_custom_call.1} parent=1 // pred_check
      _
    $region43: #{tpu_custom_call.1} parent=1 // pred_check_branch
      %153 = sbr.rel (0) target = $region45
    $region44: #{tpu_custom_call.1} parent=1 // pred_region
      %s155 = ssub.s32 16, 16
      %156 = vsyncadd [#allocation15], %s155
      %s158 = sshll.u32 [#allocation16], 4
      %s159 = int_to_ptr.vmem [resolvable:$true] %s158
      %161 = dma.hbm_to_vmem [thread:$0]  %s21, 16, %s159, [#allocation15]
    $region45: #{tpu_custom_call.1} parent=1 // pred_fallthru
      _
    // Predicated region
    $region46: #{tpu_custom_call.1} parent=1 // pred_check
      _
    $region47: #{tpu_custom_call.1} parent=1 // pred_check_branch
      %163 = sbr.rel (0) target = $region49
    $region48: #{tpu_custom_call.1} parent=1 // pred_region
      %s165 = ssub.s32 16, 16
      %166 = vsyncadd [#allocation18], %s165
      %s168 = sshll.u32 [#allocation17], 4
      %s169 = int_to_ptr.vmem [resolvable:$true] %s168
      %171 = dma.hbm_to_vmem [thread:$0]  %s23, 16, %s169, [#allocation18]
    $region49: #{tpu_custom_call.1} parent=1 // pred_fallthru
      _
    // Predicated region
    $region50: #{tpu_custom_call.1} parent=1 // pred_check
      _
    $region51: #{tpu_custom_call.1} parent=1 // pred_check_branch
      %173 = sbr.rel (0) target = $region53
    $region52: #{tpu_custom_call.1} parent=1 // pred_region
      %s175 = ssub.s32 16, 16
      %176 = vsyncadd [#allocation18], %s175
      %s178 = sshll.u32 [#allocation19], 4
      %s179 = int_to_ptr.vmem [resolvable:$true] %s178
      %181 = dma.hbm_to_vmem [thread:$0]  %s25, 16, %s179, [#allocation18]
    $region53: #{tpu_custom_call.1} parent=1 // pred_fallthru
      _
    // Predicated region
    $region54: #{tpu_custom_call.1} parent=1 // pred_check
      _
    $region55: #{tpu_custom_call.1} parent=1 // pred_check_branch
      %183 = sbr.rel (0) target = $region57
    $region56: #{tpu_custom_call.1} parent=1 // pred_region
      %s185 = ssub.s32 256, 256
      %186 = vsyncadd [#allocation21], %s185
      %s187 = sshll.u32 [#allocation20], 4
      %s188 = int_to_ptr.vmem [resolvable:$true] %s187
      %193 = dma.hbm_to_vmem [thread:$0]  %s27, 256, %s188, [#allocation21], 128, 128, 8
    $region57: #{tpu_custom_call.1} parent=1 // pred_fallthru
      _
    // Predicated region
    $region58: #{tpu_custom_call.1} parent=1 // pred_check
      _
    $region59: #{tpu_custom_call.1} parent=1 // pred_check_branch
      %195 = sbr.rel (0) target = $region61
    $region60: #{tpu_custom_call.1} parent=1 // pred_region
      %s197 = ssub.s32 16, 16
      %198 = vsyncadd [#allocation21], %s197
      %s200 = sshll.u32 [#allocation22], 4
      %s201 = int_to_ptr.vmem [resolvable:$true] %s200
      %203 = dma.hbm_to_vmem [thread:$0]  %s29, 16, %s201, [#allocation21]
    $region61: #{tpu_custom_call.1} parent=1 // pred_fallthru
      _
    // Predicated region
    $region62: #{tpu_custom_call.1} parent=1 // pred_check
      _
    $region63: #{tpu_custom_call.1} parent=1 // pred_check_branch
      %205 = sbr.rel (0) target = $region65
    $region64: #{tpu_custom_call.1} parent=1 // pred_region
      _
    $region65: #{tpu_custom_call.1} parent=1 // pred_fallthru
      _
    // Predicated region
    $region66: #{tpu_custom_call.1} parent=1 // pred_check
      _
    $region67: #{tpu_custom_call.1} parent=1 // pred_check_branch
      %207 = sbr.rel (0) target = $region69
    $region68: #{tpu_custom_call.1} parent=1 // pred_region
      %s209 = ssub.s32 1024, 1024
      %210 = vsyncadd [#allocation24], %s209
      %s211 = sshll.u32 [#allocation23], 4
      %s212 = int_to_ptr.vmem [resolvable:$true] %s211
      %217 = dma.hbm_to_vmem [thread:$0]  %s33, 1024, %s212, [#allocation24], 64, 64, 4
    $region69: #{tpu_custom_call.1} parent=1 // pred_fallthru
      _
    // Predicated region
    $region70: #{tpu_custom_call.1} parent=1 // pred_check
      _
    $region71: #{tpu_custom_call.1} parent=1 // pred_check_branch
      %219 = sbr.rel (0) target = $region73
    $region72: #{tpu_custom_call.1} parent=1 // pred_region
      %s221 = ssub.s32 1024, 1024
      %222 = vsyncadd [#allocation24], %s221
      %s223 = sshll.u32 [#allocation25], 4
      %s224 = int_to_ptr.vmem [resolvable:$true] %s223
      %229 = dma.hbm_to_vmem [thread:$0]  %s35, 1024, %s224, [#allocation24], 64, 64, 4
    $region73: #{tpu_custom_call.1} parent=1 // pred_fallthru
      _
    // Predicated region
    $region74: #{tpu_custom_call.1} parent=1 // pred_check
      _
    $region75: #{tpu_custom_call.1} parent=1 // pred_check_branch
      %231 = sbr.rel (0) target = $region77
    $region76: #{tpu_custom_call.1} parent=1 // pred_region
      _
    $region77: #{tpu_custom_call.1} parent=1 // pred_fallthru
      _
    // Predicated region
    $region78: #{tpu_custom_call.1} parent=1 // pred_check
      _
    $region79: #{tpu_custom_call.1} parent=1 // pred_check_branch
      %233 = sbr.rel (0) target = $region81
    $region80: #{tpu_custom_call.1} parent=1 // pred_region
      _
    $region81: #{tpu_custom_call.1} parent=1 // pred_fallthru
      _
    // Predicated region
    $region82: #{tpu_custom_call.1} parent=1 // pred_check
      _
    $region83: #{tpu_custom_call.1} parent=1 // pred_check_branch
      %235 = sbr.rel (0) target = $region85
    $region84: #{tpu_custom_call.1} parent=1 // pred_region
      _
    $region85: #{tpu_custom_call.1} parent=1 // pred_fallthru
      _
    // Predicated region
    $region86: #{tpu_custom_call.1} parent=1 // pred_check
      _
    $region87: #{tpu_custom_call.1} parent=1 // pred_check_branch
      %237 = sbr.rel (0) target = $region89
    $region88: #{tpu_custom_call.1} parent=1 // pred_region
      %s239 = ssub.s32 1024, 1024
      %240 = vsyncadd [#allocation27], %s239
      %s241 = sshll.u32 [#allocation26], 4
      %s242 = int_to_ptr.vmem [resolvable:$true] %s241
      %247 = dma.hbm_to_vmem [thread:$0]  %s43, 1024, %s242, [#allocation27], 64, 64, 4
    $region89: #{tpu_custom_call.1} parent=1 // pred_fallthru
      _
    // Predicated region
    $region90: #{tpu_custom_call.1} parent=1 // pred_check
      _
    $region91: #{tpu_custom_call.1} parent=1 // pred_check_branch
      %249 = sbr.rel (0) target = $region93
    $region92: #{tpu_custom_call.1} parent=1 // pred_region
      _
    $region93: #{tpu_custom_call.1} parent=1 // pred_fallthru
      _
    // Predicated region
    $region94: #{tpu_custom_call.1} parent=1 // pred_check
      _
    $region95: #{tpu_custom_call.1} parent=1 // pred_check_branch
      %251 = sbr.rel (0) target = $region97
    $region96: #{tpu_custom_call.1} parent=1 // pred_region
      _
    $region97: #{tpu_custom_call.1} parent=1 // pred_fallthru
      _
    // Predicated region
    $region98: #{tpu_custom_call.1} parent=1 // pred_check
      _
    $region99: #{tpu_custom_call.1} parent=1 // pred_check_branch
      %253 = sbr.rel (0) target = $region101
    $region100: #{tpu_custom_call.1} parent=1 // pred_region
      _
    $region101: #{tpu_custom_call.1} parent=1 // pred_fallthru
      _
    // Predicated region
    $region102: #{tpu_custom_call.1} parent=1 // pred_check
      _
    $region103: #{tpu_custom_call.1} parent=1 // pred_check_branch
      %255 = sbr.rel (0) target = $region105
    $region104: #{tpu_custom_call.1} parent=1 // pred_region
      %s257 = ssub.s32 16384, 16384
      %258 = vsyncadd [#allocation27], %s257
      %s259 = sshll.u32 [#allocation28], 4
      %s260 = int_to_ptr.vmem [resolvable:$true] %s259
      %265 = dma.hbm_to_vmem [thread:$0]  %s51, 16384, %s260, [#allocation27], 1024, 1024, 64
    $region105: #{tpu_custom_call.1} parent=1 // pred_fallthru
      _
    // Predicated region
    $region106: #{tpu_custom_call.1} parent=1 // pred_check
      _
    $region107: #{tpu_custom_call.1} parent=1 // pred_check_branch
      %267 = sbr.rel (0) target = $region109
    $region108: #{tpu_custom_call.1} parent=1 // pred_region
      %s269 = ssub.s32 1024, 1024
      %270 = vsyncadd [#allocation30], %s269
      %s271 = sshll.u32 [#allocation29], 4
      %s272 = int_to_ptr.vmem [resolvable:$true] %s271
      %277 = dma.hbm_to_vmem [thread:$0]  %s53, 1024, %s272, [#allocation30], 256, 256, 16
    $region109: #{tpu_custom_call.1} parent=1 // pred_fallthru
      _
    // Predicated region
    $region110: #{tpu_custom_call.1} parent=1 // pred_check
      _
    $region111: #{tpu_custom_call.1} parent=1 // pred_check_branch
      %279 = sbr.rel (0) target = $region113
    $region112: #{tpu_custom_call.1} parent=1 // pred_region
      %s281 = ssub.s32 16384, 16384
      %282 = vsyncadd [#allocation30], %s281
      %s283 = sshll.u32 [#allocation31], 4
      %s284 = int_to_ptr.vmem [resolvable:$true] %s283
      %289 = dma.hbm_to_vmem [thread:$0]  %s55, 16384, %s284, [#allocation30], 1024, 1024, 64
    $region113: #{tpu_custom_call.1} parent=1 // pred_fallthru
      _
    // Predicated region
    $region114: #{tpu_custom_call.1} parent=1 // pred_check
      _
    $region115: #{tpu_custom_call.1} parent=1 // pred_check_branch
      %291 = sbr.rel (0) target = $region117
    $region116: #{tpu_custom_call.1} parent=1 // pred_region
      _
    $region117: #{tpu_custom_call.1} parent=1 // pred_fallthru
      _
    // Predicated region
    $region118: #{tpu_custom_call.1} parent=1 // pred_check
      _
    $region119: #{tpu_custom_call.1} parent=1 // pred_check_branch
      %293 = sbr.rel (0) target = $region121
    $region120: #{tpu_custom_call.1} parent=1 // pred_region
      _
    $region121: #{tpu_custom_call.1} parent=1 // pred_fallthru
      _
    // Predicated region
    $region122: #{tpu_custom_call.1} parent=1 // pred_check
      _
    $region123: #{tpu_custom_call.1} parent=1 // pred_check_branch
      %295 = sbr.rel (0) target = $region125
    $region124: #{tpu_custom_call.1} parent=1 // pred_region
      _
    $region125: #{tpu_custom_call.1} parent=1 // pred_fallthru
      _
    // Predicated region
    $region126: #{tpu_custom_call.1} parent=1 // pred_check
      _
    $region127: #{tpu_custom_call.1} parent=1 // pred_check_branch
      %297 = sbr.rel (0) target = $region129
    $region128: #{tpu_custom_call.1} parent=1 // pred_region
      _
    $region129: #{tpu_custom_call.1} parent=1 // pred_fallthru
      _
    // Predicated region
    $region130: #{tpu_custom_call.1} parent=1 // pred_check
      _
    $region131: #{tpu_custom_call.1} parent=1 // pred_check_branch
      %299 = sbr.rel (0) target = $region133
    $region132: #{tpu_custom_call.1} parent=1 // pred_region
      _
    $region133: #{tpu_custom_call.1} parent=1 // pred_fallthru
      _
    // Predicated region
    $region134: #{tpu_custom_call.1} parent=1 // pred_check
      _
    $region135: #{tpu_custom_call.1} parent=1 // pred_check_branch
      %301 = sbr.rel (0) target = $region137
    $region136: #{tpu_custom_call.1} parent=1 // pred_region
      %302 = dma.done [#allocation6], 32
    $region137: #{tpu_custom_call.1} parent=1 // pred_fallthru
      _
    // Predicated region
    $region138: #{tpu_custom_call.1} parent=1 // pred_check
      _
    $region139: #{tpu_custom_call.1} parent=1 // pred_check_branch
      %304 = sbr.rel (0) target = $region141
    $region140: #{tpu_custom_call.1} parent=1 // pred_region
      %305 = dma.done [#allocation9], 32
    $region141: #{tpu_custom_call.1} parent=1 // pred_fallthru
      _
    // Predicated region
    $region142: #{tpu_custom_call.1} parent=1 // pred_check
      _
    $region143: #{tpu_custom_call.1} parent=1 // pred_check_branch
      %307 = sbr.rel (0) target = $region145
    $region144: #{tpu_custom_call.1} parent=1 // pred_region
      %308 = dma.done [#allocation9], 64
    $region145: #{tpu_custom_call.1} parent=1 // pred_fallthru
      _
    // Predicated region
    $region146: #{tpu_custom_call.1} parent=1 // pred_check
      _
    $region147: #{tpu_custom_call.1} parent=1 // pred_check_branch
      %310 = sbr.rel (0) target = $region149
    $region148: #{tpu_custom_call.1} parent=1 // pred_region
      %311 = dma.done [#allocation12], 16
    $region149: #{tpu_custom_call.1} parent=1 // pred_fallthru
      _
    // Predicated region
    $region150: #{tpu_custom_call.1} parent=1 // pred_check
      _
    $region151: #{tpu_custom_call.1} parent=1 // pred_check_branch
      %313 = sbr.rel (0) target = $region153
    $region152: #{tpu_custom_call.1} parent=1 // pred_region
      %314 = dma.done [#allocation12], 16
    $region153: #{tpu_custom_call.1} parent=1 // pred_fallthru
      _
    // Predicated region
    $region154: #{tpu_custom_call.1} parent=1 // pred_check
      _
    $region155: #{tpu_custom_call.1} parent=1 // pred_check_branch
      %316 = sbr.rel (0) target = $region157
    $region156: #{tpu_custom_call.1} parent=1 // pred_region
      %317 = dma.done [#allocation15], 16
    $region157: #{tpu_custom_call.1} parent=1 // pred_fallthru
      _
    // Predicated region
    $region158: #{tpu_custom_call.1} parent=1 // pred_check
      _
    $region159: #{tpu_custom_call.1} parent=1 // pred_check_branch
      %319 = sbr.rel (0) target = $region161
    $region160: #{tpu_custom_call.1} parent=1 // pred_region
      %320 = dma.done [#allocation15], 16
    $region161: #{tpu_custom_call.1} parent=1 // pred_fallthru
      _
    // Predicated region
    $region162: #{tpu_custom_call.1} parent=1 // pred_check
      _
    $region163: #{tpu_custom_call.1} parent=1 // pred_check_branch
      %322 = sbr.rel (0) target = $region165
    $region164: #{tpu_custom_call.1} parent=1 // pred_region
      %323 = dma.done [#allocation18], 16
    $region165: #{tpu_custom_call.1} parent=1 // pred_fallthru
      _
    // Predicated region
    $region166: #{tpu_custom_call.1} parent=1 // pred_check
      _
    $region167: #{tpu_custom_call.1} parent=1 // pred_check_branch
      %325 = sbr.rel (0) target = $region169
    $region168: #{tpu_custom_call.1} parent=1 // pred_region
      %326 = dma.done [#allocation18], 16
    $region169: #{tpu_custom_call.1} parent=1 // pred_fallthru
      _
    // Predicated region
    $region170: #{tpu_custom_call.1} parent=1 // pred_check
      _
    $region171: #{tpu_custom_call.1} parent=1 // pred_check_branch
      %328 = sbr.rel (0) target = $region173
    $region172: #{tpu_custom_call.1} parent=1 // pred_region
      %329 = dma.done [#allocation21], 256
    $region173: #{tpu_custom_call.1} parent=1 // pred_fallthru
      _
    // Predicated region
    $region174: #{tpu_custom_call.1} parent=1 // pred_check
      _
    $region175: #{tpu_custom_call.1} parent=1 // pred_check_branch
      %331 = sbr.rel (0) target = $region177
    $region176: #{tpu_custom_call.1} parent=1 // pred_region
      %332 = dma.done [#allocation21], 16
    $region177: #{tpu_custom_call.1} parent=1 // pred_fallthru
      _
    // Predicated region
    $region178: #{tpu_custom_call.1} parent=1 // pred_check
      _
    $region179: #{tpu_custom_call.1} parent=1 // pred_check_branch
      %334 = sbr.rel (0) target = $region181
    $region180: #{tpu_custom_call.1} parent=1 // pred_region
      %335 = dma.done [#allocation24], 1024
    $region181: #{tpu_custom_call.1} parent=1 // pred_fallthru
      _
    // Predicated region
    $region182: #{tpu_custom_call.1} parent=1 // pred_check
      _
    $region183: #{tpu_custom_call.1} parent=1 // pred_check_branch
      %337 = sbr.rel (0) target = $region185
    $region184: #{tpu_custom_call.1} parent=1 // pred_region
      %338 = dma.done [#allocation24], 1024
    $region185: #{tpu_custom_call.1} parent=1 // pred_fallthru
      _
    // Predicated region
    $region186: #{tpu_custom_call.1} parent=1 // pred_check
      _
    $region187: #{tpu_custom_call.1} parent=1 // pred_check_branch
      %340 = sbr.rel (0) target = $region189
    $region188: #{tpu_custom_call.1} parent=1 // pred_region
      %341 = dma.done [#allocation27], 1024
    $region189: #{tpu_custom_call.1} parent=1 // pred_fallthru
      _
    // Predicated region
    $region190: #{tpu_custom_call.1} parent=1 // pred_check
      _
    $region191: #{tpu_custom_call.1} parent=1 // pred_check_branch
      %343 = sbr.rel (0) target = $region193
    $region192: #{tpu_custom_call.1} parent=1 // pred_region
      %344 = dma.done [#allocation27], 16384
    $region193: #{tpu_custom_call.1} parent=1 // pred_fallthru
      _
    // Predicated region
    $region194: #{tpu_custom_call.1} parent=1 // pred_check
      _
    $region195: #{tpu_custom_call.1} parent=1 // pred_check_branch
      %346 = sbr.rel (0) target = $region197
    $region196: #{tpu_custom_call.1} parent=1 // pred_region
      %347 = dma.done [#allocation30], 1024
    $region197: #{tpu_custom_call.1} parent=1 // pred_fallthru
      _
    // Predicated region
    $region198: #{tpu_custom_call.1} parent=1 // pred_check
      _
    $region199: #{tpu_custom_call.1} parent=1 // pred_check_branch
      %349 = sbr.rel (0) target = $region201
    $region200: #{tpu_custom_call.1} parent=1 // pred_region
      %350 = dma.done [#allocation30], 16384
    $region201: #{tpu_custom_call.1} parent=1 // pred_fallthru
      _
    %v352 = vld [vmem:[%s1] sm:$0xff]
    %v353 = vld [vmem:[%s1 + $0x8] sm:$0xff]
    %v354 = vld [vmem:[#allocation10] sm:$0x7]
    %v355 = vld [vmem:[#allocation11] sm:$0x1]
    %v357 = vlaneseq
    %v358 = vshrl.u32 %v357, 7
    %v359 = vsub.s32 0, %v358
    %v360 = vrot.slane %v355, %v359
    %vm362 = vcmask 23552
    %v364 = vsel %vm362, %v352, 0
    %v367 = vsel %vm362, %v353, 0
    %vm369 = vcmask 1042432
    %v371 = vsel %vm369, %v354, 0
    %373 = vmatprep.subr.mxu0 0.0
    %374 = vmatpush1.msra.mxu0 0.0
    %375 = vmatprep.subr.mxu0 0.0
    %376 = vmatpush1.msra.mxu0 0.0
    %377 = vmatprep.subr.mxu0 0.0
    %378 = vmatpush1.msra.mxu0 0.0
    %379 = vmatprep.subr.mxu0 0.0
    %380 = vmatpush1.msra.mxu0 0.0
    %381 = vmatprep.subr.mxu0 0.0
    %382 = vmatpush1.msra.mxu0 0.0
    %383 = vmatprep.subr.mxu0 0.0
    %384 = vmatpush1.msra.mxu0 0.0
    %385 = vmatprep.subr.mxu0 0.0
    %386 = vmatpush1.msra.mxu0 0.0
    %387 = vmatprep.subr.mxu0 0.0
    %388 = vmatpush1.msra.mxu0 0.0
    %389 = vmatprep.subr.mxu0 0.0
    %390 = vmatpush1.msra.mxu0 0.0
    %391 = vmatprep.subr.mxu0 0.0
    %392 = vmatpush1.msra.mxu0 0.0
    %393 = vmatprep.subr.mxu0 0.0
    %394 = vmatpush1.msra.mxu0 0.0
    %395 = vmatprep.subr.mxu0 0.0
    %396 = vmatpush1.msra.mxu0 0.0
    %397 = vmatprep.subr.mxu0 0.0
    %398 = vmatpush1.msra.mxu0 0.0
    %399 = vmatprep.subr.mxu0 0.0
    %400 = vmatpush1.msra.mxu0 0.0
    %401 = vmatprep.subr.mxu0 0.0
    %402 = vmatpush1.msra.mxu0 0.0
    %403 = vmatprep.subr.mxu0 0.0
    %404 = vmatpush1.msra.mxu0 %v371
    %405 = vmatprep.subr.mxu0 0.0
    %406 = vmatpush2.msra.mxu0 0.0
    %407 = vmatprep.subr.mxu0 0.0
    %408 = vmatpush2.msra.mxu0 0.0
    %409 = vmatprep.subr.mxu0 0.0
    %410 = vmatpush2.msra.mxu0 0.0
    %411 = vmatprep.subr.mxu0 0.0
    %412 = vmatpush2.msra.mxu0 0.0
    %413 = vmatprep.subr.mxu0 0.0
    %414 = vmatpush2.msra.mxu0 0.0
    %415 = vmatprep.subr.mxu0 0.0
    %416 = vmatpush2.msra.mxu0 0.0
    %417 = vmatprep.subr.mxu0 0.0
    %418 = vmatpush2.msra.mxu0 0.0
    %419 = vmatprep.subr.mxu0 0.0
    %420 = vmatpush2.msra.mxu0 0.0
    %421 = vmatprep.subr.mxu0 0.0
    %422 = vmatpush2.msra.mxu0 0.0
    %423 = vmatprep.subr.mxu0 0.0
    %424 = vmatpush2.msra.mxu0 0.0
    %425 = vmatprep.subr.mxu0 0.0
    %426 = vmatpush2.msra.mxu0 0.0
    %427 = vmatprep.subr.mxu0 0.0
    %428 = vmatpush2.msra.mxu0 0.0
    %429 = vmatprep.subr.mxu0 0.0
    %430 = vmatpush2.msra.mxu0 0.0
    %431 = vmatprep.subr.mxu0 0.0
    %432 = vmatpush2.msra.mxu0 0.0
    %433 = vmatprep.subr.mxu0 0.0
    %434 = vmatpush2.msra.mxu0 0.0
    %435 = vmatprep.subr.mxu0 0.0
    %436 = vmatpush2.msra.mxu0 0.0
    %437 = vmatprep.mubr.f32.mxu0 0.0
    %438 = vmatmul.mubr.f32.gmra.mxu0 %v364
    %v439 = vpop.f32.mrf.mxu0
    %v440 = vadd.f32 %v360, %v439
    %v441 = vpop.f32.mrf.mxu0
    %442 = vmatprep.mubr.f32.mxu0 0.0
    %443 = vmatmul.mubr.f32.gmra.mxu0 %v367
    %v444 = vpop.f32.mrf.mxu0
    %v445 = vadd.f32 %v360, %v444
    %v446 = vpop.f32.mrf.mxu0
    %447 = vdwg.mxu0
    %v448 = vld [vmem:[#allocation13] sm:$0x1]
    %v449 = vld [vmem:[#allocation14] sm:$0x1]
    %vm450 = vcmask 261120
    %v451 = vsel %vm450, %v440, 0.0
    %452 = vadd.xlane.f32.xlu0 %v451
    %v453 = vpop.xlane.xlu0 %452
    %v454 = vsel %vm450, %v445, 0.0
    %455 = vadd.xlane.f32.xlu0 %v454
    %v456 = vpop.xlane.xlu0 %455
    %v457 = vrcp.pop 32.0
    %v458 = vmul.f32 %v453, %v457
    %v459 = vmul.f32 %v456, %v457
    %v460 = vsub.f32 %v440, %v458
    %v461 = vsub.f32 %v445, %v459
    %v462 = vmul.f32 %v460, %v460
    %v463 = vmul.f32 %v461, %v461
    %v464 = vsel %vm450, %v462, 0.0
    %465 = vadd.xlane.f32.xlu0 %v464
    %v466 = vpop.xlane.xlu0 %465
    %v467 = vsel %vm450, %v463, 0.0
    %468 = vadd.xlane.f32.xlu0 %v467
    %v469 = vpop.xlane.xlu0 %468
    %v470 = vmul.f32 %v466, %v457
    %v471 = vmul.f32 %v469, %v457
    %v472 = vadd.f32 %v470, 1e-05
    %v473 = vadd.f32 %v471, 1e-05
    %v474 = vrsqrt.pop %v472
    %v475 = vrsqrt.pop %v473
    %v476 = vmul.f32 %v460, %v474
    %v477 = vmul.f32 %v461, %v475
    %v479 = vlaneseq
    %v480 = vshrl.u32 %v479, 7
    %v481 = vsub.s32 0, %v480
    %v482 = vrot.slane %v448, %v481
    %v484 = vmul.f32 %v476, %v482
    %v485 = vmul.f32 %v477, %v482
    %v487 = vlaneseq
    %v488 = vshrl.u32 %v487, 7
    %v489 = vsub.s32 0, %v488
    %v490 = vrot.slane %v449, %v489
    %v492 = vadd.f32 %v484, %v490
    %v493 = vadd.f32 %v485, %v490
    %v494 = vmax.f32 %v492, 0.0
    %v495 = vmax.f32 %v493, 0.0
    %v496 = vld [vmem:[#allocation5] sm:$0x3]
    %v497 = vld [vmem:[%s19] sm:$0xf]
    %v498 = vld [vmem:[#allocation16] sm:$0x1]
    %v500 = vlaneseq
    %v501 = vshrl.u32 %v500, 7
    %v502 = vsub.s32 0, %v501
    %v503 = vrot.slane %v498, %v502
    %vm505 = vcmask 31744
    %v507 = vsel %vm505, %v496, 0
    %vm509 = vcmask 1043456
    %v511 = vsel %vm509, %v497, 0
    %513 = vmatprep.subr.mxu0 0.0
    %514 = vmatpush1.msra.mxu0 0.0
    %515 = vmatprep.subr.mxu0 0.0
    %516 = vmatpush1.msra.mxu0 0.0
    %517 = vmatprep.subr.mxu0 0.0
    %518 = vmatpush1.msra.mxu0 0.0
    %519 = vmatprep.subr.mxu0 0.0
    %520 = vmatpush1.msra.mxu0 0.0
    %521 = vmatprep.subr.mxu0 0.0
    %522 = vmatpush1.msra.mxu0 0.0
    %523 = vmatprep.subr.mxu0 0.0
    %524 = vmatpush1.msra.mxu0 0.0
    %525 = vmatprep.subr.mxu0 0.0
    %526 = vmatpush1.msra.mxu0 0.0
    %527 = vmatprep.subr.mxu0 0.0
    %528 = vmatpush1.msra.mxu0 0.0
    %529 = vmatprep.subr.mxu0 0.0
    %530 = vmatpush1.msra.mxu0 0.0
    %531 = vmatprep.subr.mxu0 0.0
    %532 = vmatpush1.msra.mxu0 0.0
    %533 = vmatprep.subr.mxu0 0.0
    %534 = vmatpush1.msra.mxu0 0.0
    %535 = vmatprep.subr.mxu0 0.0
    %536 = vmatpush1.msra.mxu0 0.0
    %537 = vmatprep.subr.mxu0 0.0
    %538 = vmatpush1.msra.mxu0 0.0
    %539 = vmatprep.subr.mxu0 0.0
    %540 = vmatpush1.msra.mxu0 0.0
    %541 = vmatprep.subr.mxu0 0.0
    %542 = vmatpush1.msra.mxu0 0.0
    %543 = vmatprep.subr.mxu0 0.0
    %544 = vmatpush1.msra.mxu0 %v511
    %545 = vmatprep.subr.mxu0 0.0
    %546 = vmatpush2.msra.mxu0 0.0
    %547 = vmatprep.subr.mxu0 0.0
    %548 = vmatpush2.msra.mxu0 0.0
    %549 = vmatprep.subr.mxu0 0.0
    %550 = vmatpush2.msra.mxu0 0.0
    %551 = vmatprep.subr.mxu0 0.0
    %552 = vmatpush2.msra.mxu0 0.0
    %553 = vmatprep.subr.mxu0 0.0
    %554 = vmatpush2.msra.mxu0 0.0
    %555 = vmatprep.subr.mxu0 0.0
    %556 = vmatpush2.msra.mxu0 0.0
    %557 = vmatprep.subr.mxu0 0.0
    %558 = vmatpush2.msra.mxu0 0.0
    %559 = vmatprep.subr.mxu0 0.0
    %560 = vmatpush2.msra.mxu0 0.0
    %561 = vmatprep.subr.mxu0 0.0
    %562 = vmatpush2.msra.mxu0 0.0
    %563 = vmatprep.subr.mxu0 0.0
    %564 = vmatpush2.msra.mxu0 0.0
    %565 = vmatprep.subr.mxu0 0.0
    %566 = vmatpush2.msra.mxu0 0.0
    %567 = vmatprep.subr.mxu0 0.0
    %568 = vmatpush2.msra.mxu0 0.0
    %569 = vmatprep.subr.mxu0 0.0
    %570 = vmatpush2.msra.mxu0 0.0
    %571 = vmatprep.subr.mxu0 0.0
    %572 = vmatpush2.msra.mxu0 0.0
    %573 = vmatprep.subr.mxu0 0.0
    %574 = vmatpush2.msra.mxu0 0.0
    %575 = vmatprep.subr.mxu0 0.0
    %576 = vmatpush2.msra.mxu0 0.0
    %577 = vmatprep.mubr.f32.mxu0 0.0
    %578 = vmatmul.mubr.f32.gmra.mxu0 %v507
    %v579 = vpop.f32.mrf.mxu0
    %v580 = vadd.f32 %v503, %v579
    %v581 = vpop.f32.mrf.mxu0
    %582 = vdwg.mxu0
    %v583 = vld [vmem:[#allocation17] sm:$0x1]
    %v584 = vld [vmem:[#allocation19] sm:$0x1]
    %vm585 = vcmask 254976
    %v586 = vsel %vm585, %v580, 0.0
    %587 = vadd.xlane.f32.xlu0 %v586
    %v588 = vpop.xlane.xlu0 %587
    %v589 = vmul.f32 %v588, %v457
    %v590 = vsub.f32 %v580, %v589
    %v591 = vmul.f32 %v590, %v590
    %v592 = vsel %vm585, %v591, 0.0
    %593 = vadd.xlane.f32.xlu0 %v592
    %v594 = vpop.xlane.xlu0 %593
    %v595 = vmul.f32 %v594, %v457
    %v596 = vadd.f32 %v595, 1e-05
    %v597 = vrsqrt.pop %v596
    %v598 = vmul.f32 %v590, %v597
    %v600 = vlaneseq
    %v601 = vshrl.u32 %v600, 7
    %v602 = vsub.s32 0, %v601
    %v603 = vrot.slane %v583, %v602
    %v605 = vmul.f32 %v598, %v603
    %v607 = vlaneseq
    %v608 = vshrl.u32 %v607, 7
    %v609 = vsub.s32 0, %v608
    %v610 = vrot.slane %v584, %v609
    %v612 = vadd.f32 %v605, %v610
    %v613 = vmax.f32 %v612, 0.0
    %v614 = vld [vmem:[#allocation8] sm:$0x3]
    %v615 = vld [vmem:[#allocation20] sm:$0xff]
    %v616 = vld [vmem:[#allocation20 + $0x8] sm:$0xff]
    %v617 = vld [vmem:[#allocation22] sm:$0x1]
    %v619 = vlaneseq
    %v620 = vshrl.u32 %v619, 7
    %v621 = vsub.s32 0, %v620
    %v622 = vrot.slane %v617, %v621
    %vm624 = vcmask 130048
    %v626 = vsel %vm624, %v614, 0
    %628 = vmatprep.subr.mxu0 0.0
    %629 = vmatpush1.msra.mxu0 0.0
    %630 = vmatprep.subr.mxu0 0.0
    %631 = vmatpush1.msra.mxu0 0.0
    %632 = vmatprep.subr.mxu0 0.0
    %633 = vmatpush1.msra.mxu0 0.0
    %634 = vmatprep.subr.mxu0 0.0
    %635 = vmatpush1.msra.mxu0 0.0
    %636 = vmatprep.subr.mxu0 0.0
    %637 = vmatpush1.msra.mxu0 0.0
    %638 = vmatprep.subr.mxu0 0.0
    %639 = vmatpush1.msra.mxu0 0.0
    %640 = vmatprep.subr.mxu0 0.0
    %641 = vmatpush1.msra.mxu0 0.0
    %642 = vmatprep.subr.mxu0 0.0
    %643 = vmatpush1.msra.mxu0 0.0
    %644 = vmatprep.subr.mxu0 0.0
    %645 = vmatpush1.msra.mxu0 0.0
    %646 = vmatprep.subr.mxu0 0.0
    %647 = vmatpush1.msra.mxu0 0.0
    %648 = vmatprep.subr.mxu0 0.0
    %649 = vmatpush1.msra.mxu0 0.0
    %650 = vmatprep.subr.mxu0 0.0
    %651 = vmatpush1.msra.mxu0 0.0
    %652 = vmatprep.subr.mxu0 0.0
    %653 = vmatpush1.msra.mxu0 0.0
    %654 = vmatprep.subr.mxu0 0.0
    %655 = vmatpush1.msra.mxu0 0.0
    %656 = vmatprep.subr.mxu0 0.0
    %657 = vmatpush1.msra.mxu0 %v616
    %658 = vmatprep.subr.mxu0 0.0
    %659 = vmatpush1.msra.mxu0 %v615
    %660 = vmatprep.subr.mxu0 0.0
    %661 = vmatpush2.msra.mxu0 0.0
    %662 = vmatprep.subr.mxu0 0.0
    %663 = vmatpush2.msra.mxu0 0.0
    %664 = vmatprep.subr.mxu0 0.0
    %665 = vmatpush2.msra.mxu0 0.0
    %666 = vmatprep.subr.mxu0 0.0
    %667 = vmatpush2.msra.mxu0 0.0
    %668 = vmatprep.subr.mxu0 0.0
    %669 = vmatpush2.msra.mxu0 0.0
    %670 = vmatprep.subr.mxu0 0.0
    %671 = vmatpush2.msra.mxu0 0.0
    %672 = vmatprep.subr.mxu0 0.0
    %673 = vmatpush2.msra.mxu0 0.0
    %674 = vmatprep.subr.mxu0 0.0
    %675 = vmatpush2.msra.mxu0 0.0
    %676 = vmatprep.subr.mxu0 0.0
    %677 = vmatpush2.msra.mxu0 0.0
    %678 = vmatprep.subr.mxu0 0.0
    %679 = vmatpush2.msra.mxu0 0.0
    %680 = vmatprep.subr.mxu0 0.0
    %681 = vmatpush2.msra.mxu0 0.0
    %682 = vmatprep.subr.mxu0 0.0
    %683 = vmatpush2.msra.mxu0 0.0
    %684 = vmatprep.subr.mxu0 0.0
    %685 = vmatpush2.msra.mxu0 0.0
    %686 = vmatprep.subr.mxu0 0.0
    %687 = vmatpush2.msra.mxu0 0.0
    %688 = vmatprep.subr.mxu0 0.0
    %689 = vmatpush2.msra.mxu0 0.0
    %690 = vmatprep.subr.mxu0 0.0
    %691 = vmatpush2.msra.mxu0 0.0
    %692 = vmatprep.mubr.f32.mxu0 0.0
    %693 = vmatmul.mubr.f32.gmra.mxu0 %v626
    %v694 = vpop.f32.mrf.mxu0
    %v695 = vadd.f32 %v622, %v694
    %v696 = vpop.f32.mrf.mxu0
    %697 = vdwg.mxu0
    %v698 = vmax.f32 %v695, 0.0
    %699 = vst.msk [vmem:[#allocation2] sm:$0xff] %vm450, %v494
    %vm700 = vcmask 253952
    %701 = vst.msk [vmem:[#allocation2 + $0x8] sm:$0x1] %vm700, %v613
    %702 = vst.msk [vmem:[#allocation2 + $0x9] sm:$0x1] %vm700, %v698
    %703 = vst.msk [vmem:[#allocation2 + $0xa] sm:$0xff] %vm450, %v495
    %vm704 = vcmask 254977
    %705 = vst.msk [vmem:[#allocation2 + $0x11] sm:$0x2] %vm704, %v613
    %706 = vst.msk [vmem:[#allocation2 + $0x12] sm:$0x2] %vm704, %v698
    %v707 = vld [vmem:[#allocation2] sm:$0xff]
    %v708 = vld [vmem:[#allocation2 + $0x8] sm:$0xff]
    %v709 = vld [vmem:[#allocation2 + $0x10] sm:$0xf]
    %v710 = vld [vmem:[%s7] sm:$0xff]
    %v711 = vld [vmem:[%s7 + $0x8] sm:$0xff]
    %v712 = vld [vmem:[%s7 + $0x10] sm:$0xff]
    %v713 = vld [vmem:[%s7 + $0x18] sm:$0xff]
    %v714 = vld [vmem:[%s7 + $0x20] sm:$0xff]
    %v715 = vld [vmem:[%s7 + $0x28] sm:$0xff]
    %v716 = vld [vmem:[%s7 + $0x30] sm:$0xff]
    %v717 = vld [vmem:[%s7 + $0x38] sm:$0xff]
    %v718 = vld [vmem:[%s7 + $0x40] sm:$0xff]
    %v719 = vld [vmem:[%s7 + $0x48] sm:$0xff]
    %v720 = vld [vmem:[%s9] sm:$0xff]
    %v721 = vld [vmem:[%s9 + $0x8] sm:$0xff]
    %v722 = vld [vmem:[%s9 + $0x10] sm:$0xff]
    %v723 = vld [vmem:[%s9 + $0x18] sm:$0xff]
    %v724 = vld [vmem:[%s9 + $0x20] sm:$0xff]
    %v725 = vld [vmem:[%s9 + $0x28] sm:$0xff]
    %v726 = vld [vmem:[%s9 + $0x30] sm:$0xff]
    %v727 = vld [vmem:[%s9 + $0x38] sm:$0xff]
    %v728 = vld [vmem:[%s9 + $0x40] sm:$0xff]
    %v729 = vld [vmem:[%s9 + $0x48] sm:$0xff]
    %v730 = vpack.c.bf16 %v708, %v707
    %v731 = vpack.c.bf16 %v709, %v709
    %v732 = vld [vmem:[%s31] sm:$0xf]
    %v733 = vld [vmem:[%s31 + $0x4] sm:$0xf]
    %v734 = vld [vmem:[%s31 + $0x8] sm:$0xf]
    %v735 = vld [vmem:[%s31 + $0xc] sm:$0xf]
    %v736 = vld [vmem:[%s37] sm:$0x1]
    %v738 = vlaneseq
    %v739 = vshrl.u32 %v738, 7
    %v740 = vsub.s32 0, %v739
    %v741 = vrot.slane %v736, %v740
    %v747 = vunpack.c.l.b16 %v732
    %v748 = vunpack.c.l.b16 %v733
    %v749 = vunpack.c.l.b16 %v734
    %v750 = vunpack.c.l.b16 %v735
    %v751 = vpack.c.b16 %v748, %v747
    %v752 = vpack.c.b16 %v750, %v749
    %v756 = vsel %vm450, %v730, 0
    %v759 = vsel %vm450, %v731, 0
    %761 = vmatprep.subr.bf16.mxu0 0
    %762 = vmatpush1.bf16.msra.mxu0 0
    %763 = vmatprep.subr.bf16.mxu0 0
    %764 = vmatpush1.bf16.msra.mxu0 0
    %765 = vmatprep.subr.bf16.mxu0 0
    %766 = vmatpush1.bf16.msra.mxu0 0
    %767 = vmatprep.subr.bf16.mxu0 0
    %768 = vmatpush1.bf16.msra.mxu0 0
    %769 = vmatprep.subr.bf16.mxu0 0
    %770 = vmatpush1.bf16.msra.mxu0 0
    %771 = vmatprep.subr.bf16.mxu0 0
    %772 = vmatpush1.bf16.msra.mxu0 0
    %773 = vmatprep.subr.bf16.mxu0 0
    %774 = vmatpush1.bf16.msra.mxu0 %v752
    %775 = vmatprep.subr.bf16.mxu0 0
    %776 = vmatpush1.bf16.msra.mxu0 %v751
    %777 = vmatprep.subr.bf16.mxu0 0
    %778 = vmatpush2.bf16.msra.mxu0 0
    %779 = vmatprep.subr.bf16.mxu0 0
    %780 = vmatpush2.bf16.msra.mxu0 0
    %781 = vmatprep.subr.bf16.mxu0 0
    %782 = vmatpush2.bf16.msra.mxu0 0
    %783 = vmatprep.subr.bf16.mxu0 0
    %784 = vmatpush2.bf16.msra.mxu0 0
    %785 = vmatprep.subr.bf16.mxu0 0
    %786 = vmatpush2.bf16.msra.mxu0 0
    %787 = vmatprep.subr.bf16.mxu0 0
    %788 = vmatpush2.bf16.msra.mxu0 0
    %789 = vmatprep.subr.bf16.mxu0 0
    %790 = vmatpush2.bf16.msra.mxu0 0
    %791 = vmatprep.subr.bf16.mxu0 0
    %792 = vmatpush2.bf16.msra.mxu0 0
    %793 = vmatprep.mubr.bf16.mxu0 0
    %794 = vmatmul.mubr.bf16.gmra.mxu0 %v756
    %v795 = vpop.f32.mrf.mxu0
    %v796 = vadd.f32 %v741, %v795
    %v797 = vpop.f32.mrf.mxu0
    %v798 = vpop.f32.mrf.mxu0
    %v799 = vadd.f32 %v741, %v798
    %v800 = vpop.f32.mrf.mxu0
    %801 = vmatprep.mubr.bf16.mxu0 0
    %802 = vmatmul.mubr.bf16.gmra.mxu0 %v759
    %v803 = vpop.f32.mrf.mxu0
    %v804 = vadd.f32 %v741, %v803
    %v805 = vpop.f32.mrf.mxu0
    %v806 = vpop.f32.mrf.mxu0
    %v807 = vpop.f32.mrf.mxu0
    %808 = vdwg.mxu0
    %v809 = vld [vmem:[#allocation23] sm:$0xf]
    %v810 = vld [vmem:[#allocation23 + $0x4] sm:$0xf]
    %v811 = vld [vmem:[#allocation23 + $0x8] sm:$0xf]
    %v812 = vld [vmem:[#allocation23 + $0xc] sm:$0xf]
    %v813 = vld [vmem:[%s39] sm:$0x1]
    %v815 = vlaneseq
    %v816 = vshrl.u32 %v815, 7
    %v817 = vsub.s32 0, %v816
    %v818 = vrot.slane %v813, %v817
    %v824 = vunpack.c.l.b16 %v809
    %v825 = vunpack.c.l.b16 %v810
    %v826 = vunpack.c.l.b16 %v811
    %v827 = vunpack.c.l.b16 %v812
    %v828 = vpack.c.b16 %v825, %v824
    %v829 = vpack.c.b16 %v827, %v826
    %832 = vmatprep.subr.bf16.mxu0 0
    %833 = vmatpush1.bf16.msra.mxu0 0
    %834 = vmatprep.subr.bf16.mxu0 0
    %835 = vmatpush1.bf16.msra.mxu0 0
    %836 = vmatprep.subr.bf16.mxu0 0
    %837 = vmatpush1.bf16.msra.mxu0 0
    %838 = vmatprep.subr.bf16.mxu0 0
    %839 = vmatpush1.bf16.msra.mxu0 0
    %840 = vmatprep.subr.bf16.mxu0 0
    %841 = vmatpush1.bf16.msra.mxu0 0
    %842 = vmatprep.subr.bf16.mxu0 0
    %843 = vmatpush1.bf16.msra.mxu0 0
    %844 = vmatprep.subr.bf16.mxu0 0
    %845 = vmatpush1.bf16.msra.mxu0 %v829
    %846 = vmatprep.subr.bf16.mxu0 0
    %847 = vmatpush1.bf16.msra.mxu0 %v828
    %848 = vmatprep.subr.bf16.mxu0 0
    %849 = vmatpush2.bf16.msra.mxu0 0
    %850 = vmatprep.subr.bf16.mxu0 0
    %851 = vmatpush2.bf16.msra.mxu0 0
    %852 = vmatprep.subr.bf16.mxu0 0
    %853 = vmatpush2.bf16.msra.mxu0 0
    %854 = vmatprep.subr.bf16.mxu0 0
    %855 = vmatpush2.bf16.msra.mxu0 0
    %856 = vmatprep.subr.bf16.mxu0 0
    %857 = vmatpush2.bf16.msra.mxu0 0
    %858 = vmatprep.subr.bf16.mxu0 0
    %859 = vmatpush2.bf16.msra.mxu0 0
    %860 = vmatprep.subr.bf16.mxu0 0
    %861 = vmatpush2.bf16.msra.mxu0 0
    %862 = vmatprep.subr.bf16.mxu0 0
    %863 = vmatpush2.bf16.msra.mxu0 0
    %864 = vmatprep.mubr.bf16.mxu0 0
    %865 = vmatmul.mubr.bf16.gmra.mxu0 %v756
    %v866 = vpop.f32.mrf.mxu0
    %v867 = vadd.f32 %v818, %v866
    %v868 = vpop.f32.mrf.mxu0
    %v869 = vpop.f32.mrf.mxu0
    %v870 = vadd.f32 %v818, %v869
    %v871 = vpop.f32.mrf.mxu0
    %872 = vmatprep.mubr.bf16.mxu0 0
    %873 = vmatmul.mubr.bf16.gmra.mxu0 %v759
    %v874 = vpop.f32.mrf.mxu0
    %v875 = vadd.f32 %v818, %v874
    %v876 = vpop.f32.mrf.mxu0
    %v877 = vpop.f32.mrf.mxu0
    %v878 = vpop.f32.mrf.mxu0
    %879 = vdwg.mxu0
    %v880 = vld [vmem:[#allocation25] sm:$0xf]
    %v881 = vld [vmem:[#allocation25 + $0x4] sm:$0xf]
    %v882 = vld [vmem:[#allocation25 + $0x8] sm:$0xf]
    %v883 = vld [vmem:[#allocation25 + $0xc] sm:$0xf]
    %v884 = vld [vmem:[%s41] sm:$0x1]
    %v886 = vlaneseq
    %v887 = vshrl.u32 %v886, 7
    %v888 = vsub.s32 0, %v887
    %v889 = vrot.slane %v884, %v888
    %v895 = vunpack.c.l.b16 %v880
    %v896 = vunpack.c.l.b16 %v881
    %v897 = vunpack.c.l.b16 %v882
    %v898 = vunpack.c.l.b16 %v883
    %v899 = vpack.c.b16 %v896, %v895
    %v900 = vpack.c.b16 %v898, %v897
    %903 = vmatprep.subr.bf16.mxu0 0
    %904 = vmatpush1.bf16.msra.mxu0 0
    %905 = vmatprep.subr.bf16.mxu0 0
    %906 = vmatpush1.bf16.msra.mxu0 0
    %907 = vmatprep.subr.bf16.mxu0 0
    %908 = vmatpush1.bf16.msra.mxu0 0
    %909 = vmatprep.subr.bf16.mxu0 0
    %910 = vmatpush1.bf16.msra.mxu0 0
    %911 = vmatprep.subr.bf16.mxu0 0
    %912 = vmatpush1.bf16.msra.mxu0 0
    %913 = vmatprep.subr.bf16.mxu0 0
    %914 = vmatpush1.bf16.msra.mxu0 0
    %915 = vmatprep.subr.bf16.mxu0 0
    %916 = vmatpush1.bf16.msra.mxu0 %v900
    %917 = vmatprep.subr.bf16.mxu0 0
    %918 = vmatpush1.bf16.msra.mxu0 %v899
    %919 = vmatprep.subr.bf16.mxu0 0
    %920 = vmatpush2.bf16.msra.mxu0 0
    %921 = vmatprep.subr.bf16.mxu0 0
    %922 = vmatpush2.bf16.msra.mxu0 0
    %923 = vmatprep.subr.bf16.mxu0 0
    %924 = vmatpush2.bf16.msra.mxu0 0
    %925 = vmatprep.subr.bf16.mxu0 0
    %926 = vmatpush2.bf16.msra.mxu0 0
    %927 = vmatprep.subr.bf16.mxu0 0
    %928 = vmatpush2.bf16.msra.mxu0 0
    %929 = vmatprep.subr.bf16.mxu0 0
    %930 = vmatpush2.bf16.msra.mxu0 0
    %931 = vmatprep.subr.bf16.mxu0 0
    %932 = vmatpush2.bf16.msra.mxu0 0
    %933 = vmatprep.subr.bf16.mxu0 0
    %934 = vmatpush2.bf16.msra.mxu0 0
    %935 = vmatprep.mubr.bf16.mxu0 0
    %936 = vmatmul.mubr.bf16.gmra.mxu0 %v756
    %v937 = vpop.f32.mrf.mxu0
    %v938 = vadd.f32 %v889, %v937
    %v939 = vpop.f32.mrf.mxu0
    %v940 = vpop.f32.mrf.mxu0
    %v941 = vadd.f32 %v889, %v940
    %v942 = vpop.f32.mrf.mxu0
    %943 = vmatprep.mubr.bf16.mxu0 0
    %944 = vmatmul.mubr.bf16.gmra.mxu0 %v759
    %v945 = vpop.f32.mrf.mxu0
    %v946 = vadd.f32 %v889, %v945
    %v947 = vpop.f32.mrf.mxu0
    %v948 = vpop.f32.mrf.mxu0
    %v949 = vpop.f32.mrf.mxu0
    %950 = vdwg.mxu0
    %vm953 = vcmask 1041408
    %v954 = vrot.slane %v867, 6
    %v955 = vrot.slane %v870, 6
    %v956 = vsel %vm953, %v954, %v955
    %v959 = vrot.slane %v867, 4
    %v960 = vrot.slane %v870, 4
    %v961 = vsel %vm509, %v959, %v960
    %vm964 = vcmask 1045504
    %v965 = vrot.slane %v867, 2
    %v966 = vrot.slane %v870, 2
    %v967 = vsel %vm964, %v965, %v966
    %v970 = vsel %vm953, %v870, %v954
    %v971 = vsel %vm509, %v956, %v959
    %v972 = vsel %vm964, %v961, %v965
    %v973 = vmul.f32 %v867, %v710
    %v974 = vmul.f32 %v970, %v711
    %v975 = vmul.f32 %v971, %v712
    %v976 = vmul.f32 %v972, %v713
    %v977 = vmul.f32 %v967, %v714
    %v978 = vmul.f32 %v867, %v715
    %v979 = vmul.f32 %v970, %v716
    %v980 = vmul.f32 %v971, %v717
    %v981 = vmul.f32 %v972, %v718
    %v982 = vmul.f32 %v967, %v719
    %v985 = vrot.slane %v938, 6
    %v986 = vrot.slane %v941, 6
    %v987 = vsel %vm953, %v985, %v986
    %v990 = vrot.slane %v938, 4
    %v991 = vrot.slane %v941, 4
    %v992 = vsel %vm509, %v990, %v991
    %v995 = vrot.slane %v938, 2
    %v996 = vrot.slane %v941, 2
    %v997 = vsel %vm964, %v995, %v996
    %v1000 = vsel %vm953, %v941, %v985
    %v1001 = vsel %vm509, %v987, %v990
    %v1002 = vsel %vm964, %v992, %v995
    %v1003 = vmul.f32 %v938, %v710
    %v1004 = vmul.f32 %v1000, %v711
    %v1005 = vmul.f32 %v1001, %v712
    %v1006 = vmul.f32 %v1002, %v713
    %v1007 = vmul.f32 %v997, %v714
    %v1008 = vmul.f32 %v938, %v715
    %v1009 = vmul.f32 %v1000, %v716
    %v1010 = vmul.f32 %v1001, %v717
    %v1011 = vmul.f32 %v1002, %v718
    %v1012 = vmul.f32 %v997, %v719
    %v1014 = vsel %vm450, %v796, 0
    %v1017 = vsel %vm450, %v799, 0
    %v1020 = vsel %vm450, %v973, 0
    %v1023 = vsel %vm450, %v974, 0
    %v1026 = vsel %vm450, %v975, 0
    %v1029 = vsel %vm450, %v976, 0
    %v1032 = vsel %vm450, %v977, 0
    %v1035 = vsel %vm450, %v978, 0
    %v1038 = vsel %vm450, %v979, 0
    %v1041 = vsel %vm450, %v980, 0
    %v1044 = vsel %vm450, %v981, 0
    %v1047 = vsel %vm450, %v982, 0
    %1049 = vmatprep.subr.mxu0 0.0
    %1050 = vmatpush1.xpose.msra.mxu0 0.0
    %1051 = vmatprep.subr.mxu0 0.0
    %1052 = vmatpush1.xpose.msra.mxu0 0.0
    %1053 = vmatprep.subr.mxu0 0.0
    %1054 = vmatpush1.xpose.msra.mxu0 0.0
    %1055 = vmatprep.subr.mxu0 0.0
    %1056 = vmatpush1.xpose.msra.mxu0 0.0
    %1057 = vmatprep.subr.mxu0 0.0
    %1058 = vmatpush1.xpose.msra.mxu0 0.0
    %1059 = vmatprep.subr.mxu0 0.0
    %1060 = vmatpush1.xpose.msra.mxu0 0.0
    %1061 = vmatprep.subr.mxu0 0.0
    %1062 = vmatpush1.xpose.msra.mxu0 %v1047
    %1063 = vmatprep.subr.mxu0 0.0
    %1064 = vmatpush1.xpose.msra.mxu0 %v1044
    %1065 = vmatprep.subr.mxu0 0.0
    %1066 = vmatpush1.xpose.msra.mxu0 %v1041
    %1067 = vmatprep.subr.mxu0 0.0
    %1068 = vmatpush1.xpose.msra.mxu0 %v1038
    %1069 = vmatprep.subr.mxu0 0.0
    %1070 = vmatpush1.xpose.msra.mxu0 %v1035
    %1071 = vmatprep.subr.mxu0 0.0
    %1072 = vmatpush1.xpose.msra.mxu0 %v1032
    %1073 = vmatprep.subr.mxu0 0.0
    %1074 = vmatpush1.xpose.msra.mxu0 %v1029
    %1075 = vmatprep.subr.mxu0 0.0
    %1076 = vmatpush1.xpose.msra.mxu0 %v1026
    %1077 = vmatprep.subr.mxu0 0.0
    %1078 = vmatpush1.xpose.msra.mxu0 %v1023
    %1079 = vmatprep.subr.mxu0 0.0
    %1080 = vmatpush1.xpose.msra.mxu0 %v1020
    %1081 = vmatprep.subr.mxu0 0.0
    %1082 = vmatpush2.xpose.msra.mxu0 0.0
    %1083 = vmatprep.subr.mxu0 0.0
    %1084 = vmatpush2.xpose.msra.mxu0 0.0
    %1085 = vmatprep.subr.mxu0 0.0
    %1086 = vmatpush2.xpose.msra.mxu0 0.0
    %1087 = vmatprep.subr.mxu0 0.0
    %1088 = vmatpush2.xpose.msra.mxu0 0.0
    %1089 = vmatprep.subr.mxu0 0.0
    %1090 = vmatpush2.xpose.msra.mxu0 0.0
    %1091 = vmatprep.subr.mxu0 0.0
    %1092 = vmatpush2.xpose.msra.mxu0 0.0
    %1093 = vmatprep.subr.mxu0 0.0
    %1094 = vmatpush2.xpose.msra.mxu0 0.0
    %1095 = vmatprep.subr.mxu0 0.0
    %1096 = vmatpush2.xpose.msra.mxu0 0.0
    %1097 = vmatprep.subr.mxu0 0.0
    %1098 = vmatpush2.xpose.msra.mxu0 0.0
    %1099 = vmatprep.subr.mxu0 0.0
    %1100 = vmatpush2.xpose.msra.mxu0 0.0
    %1101 = vmatprep.subr.mxu0 0.0
    %1102 = vmatpush2.xpose.msra.mxu0 0.0
    %1103 = vmatprep.subr.mxu0 0.0
    %1104 = vmatpush2.xpose.msra.mxu0 0.0
    %1105 = vmatprep.subr.mxu0 0.0
    %1106 = vmatpush2.xpose.msra.mxu0 0.0
    %1107 = vmatprep.subr.mxu0 0.0
    %1108 = vmatpush2.xpose.msra.mxu0 0.0
    %1109 = vmatprep.subr.mxu0 0.0
    %1110 = vmatpush2.xpose.msra.mxu0 0.0
    %1111 = vmatprep.subr.mxu0 0.0
    %1112 = vmatpush2.xpose.msra.mxu0 0.0
    %1113 = vmatprep.mubr.f32.mxu0 0.0
    %1114 = vmatmul.mubr.f32.gmra.mxu0 %v1014
    %v1115 = vpop.f32.mrf.mxu0
    %v1116 = vadd.f32 0.0, %v1115
    %v1117 = vpop.f32.mrf.mxu0
    %1118 = vmatprep.mubr.f32.mxu0 0.0
    %1119 = vmatmul.mubr.f32.gmra.mxu0 %v1017
    %v1120 = vpop.f32.mrf.mxu0
    %v1121 = vadd.f32 0.0, %v1120
    %v1122 = vpop.f32.mrf.mxu0
    %1123 = vdwg.mxu0
    %vm1124 = vcmask 654336
    %v1125 = vsel %vm1124, %v1116, -inf
    %1126 = vmax.xlane.f32.xlu0 %v1125
    %v1127 = vpop.xlane.xlu0 %1126
    %vm1128 = vcmask 648192
    %v1129 = vsel %vm1128, %v1121, -inf
    %1130 = vmax.xlane.f32.xlu0 %v1129
    %v1131 = vpop.xlane.xlu0 %1130
    %v1132 = vsub.f32 %v1116, %v1127
    %v1133 = vsub.f32 %v1121, %v1131
    %v1134 = vmul.f32 %v1132, 1.442695
    %v1135 = vpow.pop %v1134
    %v1136 = vmul.f32 %v1133, 1.442695
    %v1137 = vpow.pop %v1136
    %v1139 = vsel %vm1124, %v1135, 0
    %v1142 = vsel %vm1124, %v1137, 0
    %1144 = vmatprep.subr.mxu0 0.0
    %1145 = vmatpush1.msra.mxu0 0.0
    %1146 = vmatprep.subr.mxu0 0.0
    %1147 = vmatpush1.msra.mxu0 0.0
    %1148 = vmatprep.subr.mxu0 0.0
    %1149 = vmatpush1.msra.mxu0 0.0
    %1150 = vmatprep.subr.mxu0 0.0
    %1151 = vmatpush1.msra.mxu0 0.0
    %1152 = vmatprep.subr.mxu0 0.0
    %1153 = vmatpush1.msra.mxu0 0.0
    %1154 = vmatprep.subr.mxu0 0.0
    %1155 = vmatpush1.msra.mxu0 0.0
    %1156 = vmatprep.subr.mxu0 0.0
    %1157 = vmatpush1.msra.mxu0 %v729
    %1158 = vmatprep.subr.mxu0 0.0
    %1159 = vmatpush1.msra.mxu0 %v728
    %1160 = vmatprep.subr.mxu0 0.0
    %1161 = vmatpush1.msra.mxu0 %v727
    %1162 = vmatprep.subr.mxu0 0.0
    %1163 = vmatpush1.msra.mxu0 %v726
    %1164 = vmatprep.subr.mxu0 0.0
    %1165 = vmatpush1.msra.mxu0 %v725
    %1166 = vmatprep.subr.mxu0 0.0
    %1167 = vmatpush1.msra.mxu0 %v724
    %1168 = vmatprep.subr.mxu0 0.0
    %1169 = vmatpush1.msra.mxu0 %v723
    %1170 = vmatprep.subr.mxu0 0.0
    %1171 = vmatpush1.msra.mxu0 %v722
    %1172 = vmatprep.subr.mxu0 0.0
    %1173 = vmatpush1.msra.mxu0 %v721
    %1174 = vmatprep.subr.mxu0 0.0
    %1175 = vmatpush1.msra.mxu0 %v720
    %1176 = vmatprep.subr.mxu0 0.0
    %1177 = vmatpush2.msra.mxu0 0.0
    %1178 = vmatprep.subr.mxu0 0.0
    %1179 = vmatpush2.msra.mxu0 0.0
    %1180 = vmatprep.subr.mxu0 0.0
    %1181 = vmatpush2.msra.mxu0 0.0
    %1182 = vmatprep.subr.mxu0 0.0
    %1183 = vmatpush2.msra.mxu0 0.0
    %1184 = vmatprep.subr.mxu0 0.0
    %1185 = vmatpush2.msra.mxu0 0.0
    %1186 = vmatprep.subr.mxu0 0.0
    %1187 = vmatpush2.msra.mxu0 0.0
    %1188 = vmatprep.subr.mxu0 0.0
    %1189 = vmatpush2.msra.mxu0 0.0
    %1190 = vmatprep.subr.mxu0 0.0
    %1191 = vmatpush2.msra.mxu0 0.0
    %1192 = vmatprep.subr.mxu0 0.0
    %1193 = vmatpush2.msra.mxu0 0.0
    %1194 = vmatprep.subr.mxu0 0.0
    %1195 = vmatpush2.msra.mxu0 0.0
    %1196 = vmatprep.subr.mxu0 0.0
    %1197 = vmatpush2.msra.mxu0 0.0
    %1198 = vmatprep.subr.mxu0 0.0
    %1199 = vmatpush2.msra.mxu0 0.0
    %1200 = vmatprep.subr.mxu0 0.0
    %1201 = vmatpush2.msra.mxu0 0.0
    %1202 = vmatprep.subr.mxu0 0.0
    %1203 = vmatpush2.msra.mxu0 0.0
    %1204 = vmatprep.subr.mxu0 0.0
    %1205 = vmatpush2.msra.mxu0 0.0
    %1206 = vmatprep.subr.mxu0 0.0
    %1207 = vmatpush2.msra.mxu0 0.0
    %1208 = vmatprep.mubr.f32.mxu0 0.0
    %1209 = vmatmul.mubr.f32.gmra.mxu0 %v1139
    %v1210 = vpop.f32.mrf.mxu0
    %v1211 = vadd.f32 0.0, %v1210
    %v1212 = vpop.f32.mrf.mxu0
    %1213 = vmatprep.mubr.f32.mxu0 0.0
    %1214 = vmatmul.mubr.f32.gmra.mxu0 %v1142
    %v1215 = vpop.f32.mrf.mxu0
    %v1216 = vadd.f32 0.0, %v1215
    %v1217 = vpop.f32.mrf.mxu0
    %1218 = vdwg.mxu0
    %v1219 = vmax.f32 %v1211, 1e-30
    %v1220 = vmax.f32 %v1216, 1e-30
    %v1221 = vrcp.pop %v1219
    %v1222 = vrcp.pop %v1220
    %v1223 = vmul.f32 %v1135, %v1221
    %v1224 = vmul.f32 %v1137, %v1222
    %v1226 = vsel %vm1124, %v1223, 0
    %v1229 = vsel %vm1124, %v1224, 0
    %1231 = vmatprep.subr.mxu0 0.0
    %1232 = vmatpush1.msra.mxu0 0.0
    %1233 = vmatprep.subr.mxu0 0.0
    %1234 = vmatpush1.msra.mxu0 0.0
    %1235 = vmatprep.subr.mxu0 0.0
    %1236 = vmatpush1.msra.mxu0 0.0
    %1237 = vmatprep.subr.mxu0 0.0
    %1238 = vmatpush1.msra.mxu0 0.0
    %1239 = vmatprep.subr.mxu0 0.0
    %1240 = vmatpush1.msra.mxu0 0.0
    %1241 = vmatprep.subr.mxu0 0.0
    %1242 = vmatpush1.msra.mxu0 0.0
    %1243 = vmatprep.subr.mxu0 0.0
    %1244 = vmatpush1.msra.mxu0 %v1012
    %1245 = vmatprep.subr.mxu0 0.0
    %1246 = vmatpush1.msra.mxu0 %v1011
    %1247 = vmatprep.subr.mxu0 0.0
    %1248 = vmatpush1.msra.mxu0 %v1010
    %1249 = vmatprep.subr.mxu0 0.0
    %1250 = vmatpush1.msra.mxu0 %v1009
    %1251 = vmatprep.subr.mxu0 0.0
    %1252 = vmatpush1.msra.mxu0 %v1008
    %1253 = vmatprep.subr.mxu0 0.0
    %1254 = vmatpush1.msra.mxu0 %v1007
    %1255 = vmatprep.subr.mxu0 0.0
    %1256 = vmatpush1.msra.mxu0 %v1006
    %1257 = vmatprep.subr.mxu0 0.0
    %1258 = vmatpush1.msra.mxu0 %v1005
    %1259 = vmatprep.subr.mxu0 0.0
    %1260 = vmatpush1.msra.mxu0 %v1004
    %1261 = vmatprep.subr.mxu0 0.0
    %1262 = vmatpush1.msra.mxu0 %v1003
    %1263 = vmatprep.subr.mxu0 0.0
    %1264 = vmatpush2.msra.mxu0 0.0
    %1265 = vmatprep.subr.mxu0 0.0
    %1266 = vmatpush2.msra.mxu0 0.0
    %1267 = vmatprep.subr.mxu0 0.0
    %1268 = vmatpush2.msra.mxu0 0.0
    %1269 = vmatprep.subr.mxu0 0.0
    %1270 = vmatpush2.msra.mxu0 0.0
    %1271 = vmatprep.subr.mxu0 0.0
    %1272 = vmatpush2.msra.mxu0 0.0
    %1273 = vmatprep.subr.mxu0 0.0
    %1274 = vmatpush2.msra.mxu0 0.0
    %1275 = vmatprep.subr.mxu0 0.0
    %1276 = vmatpush2.msra.mxu0 0.0
    %1277 = vmatprep.subr.mxu0 0.0
    %1278 = vmatpush2.msra.mxu0 0.0
    %1279 = vmatprep.subr.mxu0 0.0
    %1280 = vmatpush2.msra.mxu0 0.0
    %1281 = vmatprep.subr.mxu0 0.0
    %1282 = vmatpush2.msra.mxu0 0.0
    %1283 = vmatprep.subr.mxu0 0.0
    %1284 = vmatpush2.msra.mxu0 0.0
    %1285 = vmatprep.subr.mxu0 0.0
    %1286 = vmatpush2.msra.mxu0 0.0
    %1287 = vmatprep.subr.mxu0 0.0
    %1288 = vmatpush2.msra.mxu0 0.0
    %1289 = vmatprep.subr.mxu0 0.0
    %1290 = vmatpush2.msra.mxu0 0.0
    %1291 = vmatprep.subr.mxu0 0.0
    %1292 = vmatpush2.msra.mxu0 0.0
    %1293 = vmatprep.subr.mxu0 0.0
    %1294 = vmatpush2.msra.mxu0 0.0
    %1295 = vmatprep.mubr.f32.mxu0 0.0
    %1296 = vmatmul.mubr.f32.gmra.mxu0 %v1226
    %v1297 = vpop.f32.mrf.mxu0
    %v1298 = vadd.f32 0.0, %v1297
    %v1299 = vpop.f32.mrf.mxu0
    %1300 = vmatprep.mubr.f32.mxu0 0.0
    %1301 = vmatmul.mubr.f32.gmra.mxu0 %v1229
    %v1302 = vpop.f32.mrf.mxu0
    %v1303 = vadd.f32 0.0, %v1302
    %v1304 = vpop.f32.mrf.mxu0
    %1305 = vdwg.mxu0
    %1306 = vst.msk [vmem:[#allocation3] sm:$0xff] %vm450, %v1298
    %1307 = vst.msk [vmem:[#allocation3 + $0x8] sm:$0x3] %vm585, %v1303
    %v1309 = vrot.slane %v875, 2
    %v1310 = vsel %vm964, %v966, %v1309
    %v1313 = vrot.slane %v875, 6
    %v1314 = vsel %vm953, %v955, %v1313
    %v1317 = vrot.slane %v875, 4
    %v1318 = vsel %vm509, %v960, %v1317
    %v1321 = vsel %vm953, %v1309, %v870
    %v1322 = vsel %vm509, %v875, %v955
    %v1323 = vsel %vm964, %v1314, %v960
    %v1324 = vmul.f32 %v1310, %v710
    %v1325 = vmul.f32 %v1321, %v711
    %v1326 = vmul.f32 %v1322, %v712
    %v1327 = vmul.f32 %v1323, %v713
    %v1328 = vmul.f32 %v1318, %v714
    %v1329 = vmul.f32 %v1310, %v715
    %v1330 = vmul.f32 %v1321, %v716
    %v1331 = vmul.f32 %v1322, %v717
    %v1332 = vmul.f32 %v1323, %v718
    %v1333 = vmul.f32 %v1318, %v719
    %v1335 = vrot.slane %v946, 2
    %v1336 = vsel %vm964, %v996, %v1335
    %v1339 = vrot.slane %v946, 6
    %v1340 = vsel %vm953, %v986, %v1339
    %v1343 = vrot.slane %v946, 4
    %v1344 = vsel %vm509, %v991, %v1343
    %v1347 = vsel %vm953, %v1335, %v941
    %v1348 = vsel %vm509, %v946, %v986
    %v1349 = vsel %vm964, %v1340, %v991
    %v1350 = vmul.f32 %v1336, %v710
    %v1351 = vmul.f32 %v1347, %v711
    %v1352 = vmul.f32 %v1348, %v712
    %v1353 = vmul.f32 %v1349, %v713
    %v1354 = vmul.f32 %v1344, %v714
    %v1355 = vmul.f32 %v1336, %v715
    %v1356 = vmul.f32 %v1347, %v716
    %v1357 = vmul.f32 %v1348, %v717
    %v1358 = vmul.f32 %v1349, %v718
    %v1359 = vmul.f32 %v1344, %v719
    %v1361 = vrot.slane %v799, 2
    %v1362 = vrot.slane %v804, 2
    %v1363 = vsel %vm964, %v1361, %v1362
    %v1364 = vsel %vm450, %v1363, 0
    %v1366 = vsel %vm450, %v1362, 0
    %v1369 = vsel %vm450, %v1324, 0
    %v1372 = vsel %vm450, %v1325, 0
    %v1375 = vsel %vm450, %v1326, 0
    %v1378 = vsel %vm450, %v1327, 0
    %v1381 = vsel %vm450, %v1328, 0
    %v1384 = vsel %vm450, %v1329, 0
    %v1387 = vsel %vm450, %v1330, 0
    %v1390 = vsel %vm450, %v1331, 0
    %v1393 = vsel %vm450, %v1332, 0
    %v1396 = vsel %vm450, %v1333, 0
    %1398 = vmatprep.subr.mxu0 0.0
    %1399 = vmatpush1.xpose.msra.mxu0 0.0
    %1400 = vmatprep.subr.mxu0 0.0
    %1401 = vmatpush1.xpose.msra.mxu0 0.0
    %1402 = vmatprep.subr.mxu0 0.0
    %1403 = vmatpush1.xpose.msra.mxu0 0.0
    %1404 = vmatprep.subr.mxu0 0.0
    %1405 = vmatpush1.xpose.msra.mxu0 0.0
    %1406 = vmatprep.subr.mxu0 0.0
    %1407 = vmatpush1.xpose.msra.mxu0 0.0
    %1408 = vmatprep.subr.mxu0 0.0
    %1409 = vmatpush1.xpose.msra.mxu0 0.0
    %1410 = vmatprep.subr.mxu0 0.0
    %1411 = vmatpush1.xpose.msra.mxu0 %v1396
    %1412 = vmatprep.subr.mxu0 0.0
    %1413 = vmatpush1.xpose.msra.mxu0 %v1393
    %1414 = vmatprep.subr.mxu0 0.0
    %1415 = vmatpush1.xpose.msra.mxu0 %v1390
    %1416 = vmatprep.subr.mxu0 0.0
    %1417 = vmatpush1.xpose.msra.mxu0 %v1387
    %1418 = vmatprep.subr.mxu0 0.0
    %1419 = vmatpush1.xpose.msra.mxu0 %v1384
    %1420 = vmatprep.subr.mxu0 0.0
    %1421 = vmatpush1.xpose.msra.mxu0 %v1381
    %1422 = vmatprep.subr.mxu0 0.0
    %1423 = vmatpush1.xpose.msra.mxu0 %v1378
    %1424 = vmatprep.subr.mxu0 0.0
    %1425 = vmatpush1.xpose.msra.mxu0 %v1375
    %1426 = vmatprep.subr.mxu0 0.0
    %1427 = vmatpush1.xpose.msra.mxu0 %v1372
    %1428 = vmatprep.subr.mxu0 0.0
    %1429 = vmatpush1.xpose.msra.mxu0 %v1369
    %1430 = vmatprep.subr.mxu0 0.0
    %1431 = vmatpush2.xpose.msra.mxu0 0.0
    %1432 = vmatprep.subr.mxu0 0.0
    %1433 = vmatpush2.xpose.msra.mxu0 0.0
    %1434 = vmatprep.subr.mxu0 0.0
    %1435 = vmatpush2.xpose.msra.mxu0 0.0
    %1436 = vmatprep.subr.mxu0 0.0
    %1437 = vmatpush2.xpose.msra.mxu0 0.0
    %1438 = vmatprep.subr.mxu0 0.0
    %1439 = vmatpush2.xpose.msra.mxu0 0.0
    %1440 = vmatprep.subr.mxu0 0.0
    %1441 = vmatpush2.xpose.msra.mxu0 0.0
    %1442 = vmatprep.subr.mxu0 0.0
    %1443 = vmatpush2.xpose.msra.mxu0 0.0
    %1444 = vmatprep.subr.mxu0 0.0
    %1445 = vmatpush2.xpose.msra.mxu0 0.0
    %1446 = vmatprep.subr.mxu0 0.0
    %1447 = vmatpush2.xpose.msra.mxu0 0.0
    %1448 = vmatprep.subr.mxu0 0.0
    %1449 = vmatpush2.xpose.msra.mxu0 0.0
    %1450 = vmatprep.subr.mxu0 0.0
    %1451 = vmatpush2.xpose.msra.mxu0 0.0
    %1452 = vmatprep.subr.mxu0 0.0
    %1453 = vmatpush2.xpose.msra.mxu0 0.0
    %1454 = vmatprep.subr.mxu0 0.0
    %1455 = vmatpush2.xpose.msra.mxu0 0.0
    %1456 = vmatprep.subr.mxu0 0.0
    %1457 = vmatpush2.xpose.msra.mxu0 0.0
    %1458 = vmatprep.subr.mxu0 0.0
    %1459 = vmatpush2.xpose.msra.mxu0 0.0
    %1460 = vmatprep.subr.mxu0 0.0
    %1461 = vmatpush2.xpose.msra.mxu0 0.0
    %1462 = vmatprep.mubr.f32.mxu0 0.0
    %1463 = vmatmul.mubr.f32.gmra.mxu0 %v1364
    %v1464 = vpop.f32.mrf.mxu0
    %v1465 = vadd.f32 0.0, %v1464
    %v1466 = vpop.f32.mrf.mxu0
    %1467 = vmatprep.mubr.f32.mxu0 0.0
    %1468 = vmatmul.mubr.f32.gmra.mxu0 %v1366
    %v1469 = vpop.f32.mrf.mxu0
    %v1470 = vadd.f32 0.0, %v1469
    %v1471 = vpop.f32.mrf.mxu0
    %1472 = vdwg.mxu0
    %v1473 = vsel %vm1124, %v1465, -inf
    %1474 = vmax.xlane.f32.xlu0 %v1473
    %v1475 = vpop.xlane.xlu0 %1474
    %v1476 = vsel %vm1128, %v1470, -inf
    %1477 = vmax.xlane.f32.xlu0 %v1476
    %v1478 = vpop.xlane.xlu0 %1477
    %v1479 = vsub.f32 %v1465, %v1475
    %v1480 = vsub.f32 %v1470, %v1478
    %v1481 = vmul.f32 %v1479, 1.442695
    %v1482 = vpow.pop %v1481
    %v1483 = vmul.f32 %v1480, 1.442695
    %v1484 = vpow.pop %v1483
    %v1486 = vsel %vm1124, %v1482, 0
    %v1489 = vsel %vm1124, %v1484, 0
    %1491 = vmatprep.subr.mxu0 0.0
    %1492 = vmatpush1.msra.mxu0 0.0
    %1493 = vmatprep.subr.mxu0 0.0
    %1494 = vmatpush1.msra.mxu0 0.0
    %1495 = vmatprep.subr.mxu0 0.0
    %1496 = vmatpush1.msra.mxu0 0.0
    %1497 = vmatprep.subr.mxu0 0.0
    %1498 = vmatpush1.msra.mxu0 0.0
    %1499 = vmatprep.subr.mxu0 0.0
    %1500 = vmatpush1.msra.mxu0 0.0
    %1501 = vmatprep.subr.mxu0 0.0
    %1502 = vmatpush1.msra.mxu0 0.0
    %1503 = vmatprep.subr.mxu0 0.0
    %1504 = vmatpush1.msra.mxu0 %v729
    %1505 = vmatprep.subr.mxu0 0.0
    %1506 = vmatpush1.msra.mxu0 %v728
    %1507 = vmatprep.subr.mxu0 0.0
    %1508 = vmatpush1.msra.mxu0 %v727
    %1509 = vmatprep.subr.mxu0 0.0
    %1510 = vmatpush1.msra.mxu0 %v726
    %1511 = vmatprep.subr.mxu0 0.0
    %1512 = vmatpush1.msra.mxu0 %v725
    %1513 = vmatprep.subr.mxu0 0.0
    %1514 = vmatpush1.msra.mxu0 %v724
    %1515 = vmatprep.subr.mxu0 0.0
    %1516 = vmatpush1.msra.mxu0 %v723
    %1517 = vmatprep.subr.mxu0 0.0
    %1518 = vmatpush1.msra.mxu0 %v722
    %1519 = vmatprep.subr.mxu0 0.0
    %1520 = vmatpush1.msra.mxu0 %v721
    %1521 = vmatprep.subr.mxu0 0.0
    %1522 = vmatpush1.msra.mxu0 %v720
    %1523 = vmatprep.subr.mxu0 0.0
    %1524 = vmatpush2.msra.mxu0 0.0
    %1525 = vmatprep.subr.mxu0 0.0
    %1526 = vmatpush2.msra.mxu0 0.0
    %1527 = vmatprep.subr.mxu0 0.0
    %1528 = vmatpush2.msra.mxu0 0.0
    %1529 = vmatprep.subr.mxu0 0.0
    %1530 = vmatpush2.msra.mxu0 0.0
    %1531 = vmatprep.subr.mxu0 0.0
    %1532 = vmatpush2.msra.mxu0 0.0
    %1533 = vmatprep.subr.mxu0 0.0
    %1534 = vmatpush2.msra.mxu0 0.0
    %1535 = vmatprep.subr.mxu0 0.0
    %1536 = vmatpush2.msra.mxu0 0.0
    %1537 = vmatprep.subr.mxu0 0.0
    %1538 = vmatpush2.msra.mxu0 0.0
    %1539 = vmatprep.subr.mxu0 0.0
    %1540 = vmatpush2.msra.mxu0 0.0
    %1541 = vmatprep.subr.mxu0 0.0
    %1542 = vmatpush2.msra.mxu0 0.0
    %1543 = vmatprep.subr.mxu0 0.0
    %1544 = vmatpush2.msra.mxu0 0.0
    %1545 = vmatprep.subr.mxu0 0.0
    %1546 = vmatpush2.msra.mxu0 0.0
    %1547 = vmatprep.subr.mxu0 0.0
    %1548 = vmatpush2.msra.mxu0 0.0
    %1549 = vmatprep.subr.mxu0 0.0
    %1550 = vmatpush2.msra.mxu0 0.0
    %1551 = vmatprep.subr.mxu0 0.0
    %1552 = vmatpush2.msra.mxu0 0.0
    %1553 = vmatprep.subr.mxu0 0.0
    %1554 = vmatpush2.msra.mxu0 0.0
    %1555 = vmatprep.mubr.f32.mxu0 0.0
    %1556 = vmatmul.mubr.f32.gmra.mxu0 %v1486
    %v1557 = vpop.f32.mrf.mxu0
    %v1558 = vadd.f32 0.0, %v1557
    %v1559 = vpop.f32.mrf.mxu0
    %1560 = vmatprep.mubr.f32.mxu0 0.0
    %1561 = vmatmul.mubr.f32.gmra.mxu0 %v1489
    %v1562 = vpop.f32.mrf.mxu0
    %v1563 = vadd.f32 0.0, %v1562
    %v1564 = vpop.f32.mrf.mxu0
    %1565 = vdwg.mxu0
    %v1566 = vmax.f32 %v1558, 1e-30
    %v1567 = vmax.f32 %v1563, 1e-30
    %v1568 = vrcp.pop %v1566
    %v1569 = vrcp.pop %v1567
    %v1570 = vmul.f32 %v1482, %v1568
    %v1571 = vmul.f32 %v1484, %v1569
    %v1573 = vsel %vm1124, %v1570, 0
    %v1576 = vsel %vm1124, %v1571, 0
    %1578 = vmatprep.subr.mxu0 0.0
    %1579 = vmatpush1.msra.mxu0 0.0
    %1580 = vmatprep.subr.mxu0 0.0
    %1581 = vmatpush1.msra.mxu0 0.0
    %1582 = vmatprep.subr.mxu0 0.0
    %1583 = vmatpush1.msra.mxu0 0.0
    %1584 = vmatprep.subr.mxu0 0.0
    %1585 = vmatpush1.msra.mxu0 0.0
    %1586 = vmatprep.subr.mxu0 0.0
    %1587 = vmatpush1.msra.mxu0 0.0
    %1588 = vmatprep.subr.mxu0 0.0
    %1589 = vmatpush1.msra.mxu0 0.0
    %1590 = vmatprep.subr.mxu0 0.0
    %1591 = vmatpush1.msra.mxu0 %v1359
    %1592 = vmatprep.subr.mxu0 0.0
    %1593 = vmatpush1.msra.mxu0 %v1358
    %1594 = vmatprep.subr.mxu0 0.0
    %1595 = vmatpush1.msra.mxu0 %v1357
    %1596 = vmatprep.subr.mxu0 0.0
    %1597 = vmatpush1.msra.mxu0 %v1356
    %1598 = vmatprep.subr.mxu0 0.0
    %1599 = vmatpush1.msra.mxu0 %v1355
    %1600 = vmatprep.subr.mxu0 0.0
    %1601 = vmatpush1.msra.mxu0 %v1354
    %1602 = vmatprep.subr.mxu0 0.0
    %1603 = vmatpush1.msra.mxu0 %v1353
    %1604 = vmatprep.subr.mxu0 0.0
    %1605 = vmatpush1.msra.mxu0 %v1352
    %1606 = vmatprep.subr.mxu0 0.0
    %1607 = vmatpush1.msra.mxu0 %v1351
    %1608 = vmatprep.subr.mxu0 0.0
    %1609 = vmatpush1.msra.mxu0 %v1350
    %1610 = vmatprep.subr.mxu0 0.0
    %1611 = vmatpush2.msra.mxu0 0.0
    %1612 = vmatprep.subr.mxu0 0.0
    %1613 = vmatpush2.msra.mxu0 0.0
    %1614 = vmatprep.subr.mxu0 0.0
    %1615 = vmatpush2.msra.mxu0 0.0
    %1616 = vmatprep.subr.mxu0 0.0
    %1617 = vmatpush2.msra.mxu0 0.0
    %1618 = vmatprep.subr.mxu0 0.0
    %1619 = vmatpush2.msra.mxu0 0.0
    %1620 = vmatprep.subr.mxu0 0.0
    %1621 = vmatpush2.msra.mxu0 0.0
    %1622 = vmatprep.subr.mxu0 0.0
    %1623 = vmatpush2.msra.mxu0 0.0
    %1624 = vmatprep.subr.mxu0 0.0
    %1625 = vmatpush2.msra.mxu0 0.0
    %1626 = vmatprep.subr.mxu0 0.0
    %1627 = vmatpush2.msra.mxu0 0.0
    %1628 = vmatprep.subr.mxu0 0.0
    %1629 = vmatpush2.msra.mxu0 0.0
    %1630 = vmatprep.subr.mxu0 0.0
    %1631 = vmatpush2.msra.mxu0 0.0
    %1632 = vmatprep.subr.mxu0 0.0
    %1633 = vmatpush2.msra.mxu0 0.0
    %1634 = vmatprep.subr.mxu0 0.0
    %1635 = vmatpush2.msra.mxu0 0.0
    %1636 = vmatprep.subr.mxu0 0.0
    %1637 = vmatpush2.msra.mxu0 0.0
    %1638 = vmatprep.subr.mxu0 0.0
    %1639 = vmatpush2.msra.mxu0 0.0
    %1640 = vmatprep.subr.mxu0 0.0
    %1641 = vmatpush2.msra.mxu0 0.0
    %1642 = vmatprep.mubr.f32.mxu0 0.0
    %1643 = vmatmul.mubr.f32.gmra.mxu0 %v1573
    %v1644 = vpop.f32.mrf.mxu0
    %v1645 = vadd.f32 0.0, %v1644
    %v1646 = vpop.f32.mrf.mxu0
    %1647 = vmatprep.mubr.f32.mxu0 0.0
    %1648 = vmatmul.mubr.f32.gmra.mxu0 %v1576
    %v1649 = vpop.f32.mrf.mxu0
    %v1650 = vadd.f32 0.0, %v1649
    %v1651 = vpop.f32.mrf.mxu0
    %1652 = vdwg.mxu0
    %1653 = vst.msk [vmem:[#allocation3 + $0xa] sm:$0xff] %vm450, %v1645
    %1654 = vst.msk [vmem:[#allocation3 + $0x12] sm:$0x3] %vm585, %v1650
    %v1655 = vld [vmem:[#allocation3] sm:$0xff]
    %v1656 = vld [vmem:[#allocation3 + $0x8] sm:$0xff]
    %v1657 = vld [vmem:[#allocation3 + $0x10] sm:$0xf]
    %v1658 = vpack.c.bf16 %v1656, %v1655
    %v1659 = vpack.c.bf16 %v1657, %v1657
    %v1660 = vld [vmem:[#allocation26] sm:$0xf]
    %v1661 = vld [vmem:[#allocation26 + $0x4] sm:$0xf]
    %v1662 = vld [vmem:[#allocation26 + $0x8] sm:$0xf]
    %v1663 = vld [vmem:[#allocation26 + $0xc] sm:$0xf]
    %v1664 = vld [vmem:[%s45] sm:$0x1]
    %v1666 = vlaneseq
    %v1667 = vshrl.u32 %v1666, 7
    %v1668 = vsub.s32 0, %v1667
    %v1669 = vrot.slane %v1664, %v1668
    %v1675 = vunpack.c.l.b16 %v1660
    %v1676 = vunpack.c.l.b16 %v1661
    %v1677 = vunpack.c.l.b16 %v1662
    %v1678 = vunpack.c.l.b16 %v1663
    %v1679 = vpack.c.b16 %v1676, %v1675
    %v1680 = vpack.c.b16 %v1678, %v1677
    %v1684 = vsel %vm450, %v1658, 0
    %v1687 = vsel %vm450, %v1659, 0
    %1689 = vmatprep.subr.bf16.mxu0 0
    %1690 = vmatpush1.bf16.msra.mxu0 0
    %1691 = vmatprep.subr.bf16.mxu0 0
    %1692 = vmatpush1.bf16.msra.mxu0 0
    %1693 = vmatprep.subr.bf16.mxu0 0
    %1694 = vmatpush1.bf16.msra.mxu0 0
    %1695 = vmatprep.subr.bf16.mxu0 0
    %1696 = vmatpush1.bf16.msra.mxu0 0
    %1697 = vmatprep.subr.bf16.mxu0 0
    %1698 = vmatpush1.bf16.msra.mxu0 0
    %1699 = vmatprep.subr.bf16.mxu0 0
    %1700 = vmatpush1.bf16.msra.mxu0 0
    %1701 = vmatprep.subr.bf16.mxu0 0
    %1702 = vmatpush1.bf16.msra.mxu0 %v1680
    %1703 = vmatprep.subr.bf16.mxu0 0
    %1704 = vmatpush1.bf16.msra.mxu0 %v1679
    %1705 = vmatprep.subr.bf16.mxu0 0
    %1706 = vmatpush2.bf16.msra.mxu0 0
    %1707 = vmatprep.subr.bf16.mxu0 0
    %1708 = vmatpush2.bf16.msra.mxu0 0
    %1709 = vmatprep.subr.bf16.mxu0 0
    %1710 = vmatpush2.bf16.msra.mxu0 0
    %1711 = vmatprep.subr.bf16.mxu0 0
    %1712 = vmatpush2.bf16.msra.mxu0 0
    %1713 = vmatprep.subr.bf16.mxu0 0
    %1714 = vmatpush2.bf16.msra.mxu0 0
    %1715 = vmatprep.subr.bf16.mxu0 0
    %1716 = vmatpush2.bf16.msra.mxu0 0
    %1717 = vmatprep.subr.bf16.mxu0 0
    %1718 = vmatpush2.bf16.msra.mxu0 0
    %1719 = vmatprep.subr.bf16.mxu0 0
    %1720 = vmatpush2.bf16.msra.mxu0 0
    %1721 = vmatprep.mubr.bf16.mxu0 0
    %1722 = vmatmul.mubr.bf16.gmra.mxu0 %v1684
    %v1723 = vpop.f32.mrf.mxu0
    %v1724 = vadd.f32 %v1669, %v1723
    %v1725 = vpop.f32.mrf.mxu0
    %v1726 = vpop.f32.mrf.mxu0
    %v1727 = vadd.f32 %v1669, %v1726
    %v1728 = vpop.f32.mrf.mxu0
    %1729 = vmatprep.mubr.bf16.mxu0 0
    %1730 = vmatmul.mubr.bf16.gmra.mxu0 %v1687
    %v1731 = vpop.f32.mrf.mxu0
    %v1732 = vadd.f32 %v1669, %v1731
    %v1733 = vpop.f32.mrf.mxu0
    %v1734 = vpop.f32.mrf.mxu0
    %v1735 = vpop.f32.mrf.mxu0
    %1736 = vdwg.mxu0
    %v1737 = vadd.f32 %v707, %v1724
    %v1738 = vadd.f32 %v708, %v1727
    %v1739 = vadd.f32 %v709, %v1732
    %v1740 = vld [vmem:[%s47] sm:$0x1]
    %v1741 = vld [vmem:[%s49] sm:$0x1]
    %v1742 = vsel %vm450, %v1737, 0.0
    %1743 = vadd.xlane.f32.xlu0 %v1742
    %v1744 = vpop.xlane.xlu0 %1743
    %v1745 = vsel %vm450, %v1738, 0.0
    %1746 = vadd.xlane.f32.xlu0 %v1745
    %v1747 = vpop.xlane.xlu0 %1746
    %vm1748 = vcmask 257024
    %v1749 = vsel %vm1748, %v1739, 0.0
    %1750 = vadd.xlane.f32.xlu0 %v1749
    %v1751 = vpop.xlane.xlu0 %1750
    %v1752 = vmul.f32 %v1744, %v457
    %v1753 = vmul.f32 %v1747, %v457
    %v1754 = vmul.f32 %v1751, %v457
    %v1755 = vsub.f32 %v1737, %v1752
    %v1756 = vsub.f32 %v1738, %v1753
    %v1757 = vsub.f32 %v1739, %v1754
    %v1758 = vmul.f32 %v1755, %v1755
    %v1759 = vmul.f32 %v1756, %v1756
    %v1760 = vmul.f32 %v1757, %v1757
    %v1761 = vsel %vm450, %v1758, 0.0
    %1762 = vadd.xlane.f32.xlu0 %v1761
    %v1763 = vpop.xlane.xlu0 %1762
    %v1764 = vsel %vm450, %v1759, 0.0
    %1765 = vadd.xlane.f32.xlu0 %v1764
    %v1766 = vpop.xlane.xlu0 %1765
    %v1767 = vsel %vm1748, %v1760, 0.0
    %1768 = vadd.xlane.f32.xlu0 %v1767
    %v1769 = vpop.xlane.xlu0 %1768
    %v1770 = vmul.f32 %v1763, %v457
    %v1771 = vmul.f32 %v1766, %v457
    %v1772 = vmul.f32 %v1769, %v457
    %v1773 = vadd.f32 %v1770, 1e-05
    %v1774 = vadd.f32 %v1771, 1e-05
    %v1775 = vadd.f32 %v1772, 1e-05
    %v1776 = vrsqrt.pop %v1773
    %v1777 = vrsqrt.pop %v1774
    %v1778 = vrsqrt.pop %v1775
    %v1779 = vmul.f32 %v1755, %v1776
    %v1780 = vmul.f32 %v1756, %v1777
    %v1781 = vmul.f32 %v1757, %v1778
    %v1783 = vlaneseq
    %v1784 = vshrl.u32 %v1783, 7
    %v1785 = vsub.s32 0, %v1784
    %v1786 = vrot.slane %v1740, %v1785
    %v1788 = vmul.f32 %v1779, %v1786
    %v1789 = vmul.f32 %v1780, %v1786
    %v1790 = vmul.f32 %v1781, %v1786
    %v1792 = vlaneseq
    %v1793 = vshrl.u32 %v1792, 7
    %v1794 = vsub.s32 0, %v1793
    %v1795 = vrot.slane %v1741, %v1794
    %v1797 = vadd.f32 %v1788, %v1795
    %v1798 = vadd.f32 %v1789, %v1795
    %v1799 = vadd.f32 %v1790, %v1795
    %v1800 = vpack.c.bf16 %v1798, %v1797
    %v1801 = vpack.c.bf16 %v1799, %v1799
    %v1802 = vld [vmem:[#allocation28] sm:$0xff]
    %v1803 = vld [vmem:[#allocation28 + $0x8] sm:$0xff]
    %v1804 = vld [vmem:[#allocation28 + $0x10] sm:$0xff]
    %v1805 = vld [vmem:[#allocation28 + $0x18] sm:$0xff]
    %v1806 = vld [vmem:[#allocation28 + $0x20] sm:$0xff]
    %v1807 = vld [vmem:[#allocation28 + $0x28] sm:$0xff]
    %v1808 = vld [vmem:[#allocation28 + $0x30] sm:$0xff]
    %v1809 = vld [vmem:[#allocation28 + $0x38] sm:$0xff]
    %v1810 = vld [vmem:[#allocation28 + $0x40] sm:$0xff]
    %v1811 = vld [vmem:[#allocation28 + $0x48] sm:$0xff]
    %v1812 = vld [vmem:[#allocation28 + $0x50] sm:$0xff]
    %v1813 = vld [vmem:[#allocation28 + $0x58] sm:$0xff]
    %v1814 = vld [vmem:[#allocation28 + $0x60] sm:$0xff]
    %v1815 = vld [vmem:[#allocation28 + $0x68] sm:$0xff]
    %v1816 = vld [vmem:[#allocation28 + $0x70] sm:$0xff]
    %v1817 = vld [vmem:[#allocation28 + $0x78] sm:$0xff]
    %v1818 = vld [vmem:[#allocation28 + $0x80] sm:$0xff]
    %v1819 = vld [vmem:[#allocation28 + $0x88] sm:$0xff]
    %v1820 = vld [vmem:[#allocation28 + $0x90] sm:$0xff]
    %v1821 = vld [vmem:[#allocation28 + $0x98] sm:$0xff]
    %v1822 = vld [vmem:[#allocation28 + $0xa0] sm:$0xff]
    %v1823 = vld [vmem:[#allocation28 + $0xa8] sm:$0xff]
    %v1824 = vld [vmem:[#allocation28 + $0xb0] sm:$0xff]
    %v1825 = vld [vmem:[#allocation28 + $0xb8] sm:$0xff]
    %v1826 = vld [vmem:[#allocation28 + $0xc0] sm:$0xff]
    %v1827 = vld [vmem:[#allocation28 + $0xc8] sm:$0xff]
    %v1828 = vld [vmem:[#allocation28 + $0xd0] sm:$0xff]
    %v1829 = vld [vmem:[#allocation28 + $0xd8] sm:$0xff]
    %v1830 = vld [vmem:[#allocation28 + $0xe0] sm:$0xff]
    %v1831 = vld [vmem:[#allocation28 + $0xe8] sm:$0xff]
    %v1832 = vld [vmem:[#allocation28 + $0xf0] sm:$0xff]
    %v1833 = vld [vmem:[#allocation28 + $0xf8] sm:$0xff]
    %v1834 = vld [vmem:[#allocation29] sm:$0xff]
    %v1835 = vld [vmem:[#allocation29 + $0x8] sm:$0xff]
    %v1838 = vlaneseq
    %v1839 = vshrl.u32 %v1838, 7
    %v1840 = vsub.s32 0, %v1839
    %v1841 = vrot.slane %v1834, %v1840
    %v1842 = vlaneseq
    %v1843 = vshrl.u32 %v1842, 7
    %v1844 = vsub.s32 1, %v1843
    %v1845 = vrot.slane %v1834, %v1844
    %v1846 = vlaneseq
    %v1847 = vshrl.u32 %v1846, 7
    %v1848 = vsub.s32 2, %v1847
    %v1849 = vrot.slane %v1834, %v1848
    %v1850 = vlaneseq
    %v1851 = vshrl.u32 %v1850, 7
    %v1852 = vsub.s32 3, %v1851
    %v1853 = vrot.slane %v1834, %v1852
    %v1854 = vlaneseq
    %v1855 = vshrl.u32 %v1854, 7
    %v1856 = vsub.s32 4, %v1855
    %v1857 = vrot.slane %v1834, %v1856
    %v1858 = vlaneseq
    %v1859 = vshrl.u32 %v1858, 7
    %v1860 = vsub.s32 5, %v1859
    %v1861 = vrot.slane %v1834, %v1860
    %v1862 = vlaneseq
    %v1863 = vshrl.u32 %v1862, 7
    %v1864 = vsub.s32 6, %v1863
    %v1865 = vrot.slane %v1834, %v1864
    %v1866 = vlaneseq
    %v1867 = vshrl.u32 %v1866, 7
    %v1868 = vsub.s32 7, %v1867
    %v1869 = vrot.slane %v1834, %v1868
    %v1870 = vlaneseq
    %v1871 = vshrl.u32 %v1870, 7
    %v1872 = vsub.s32 0, %v1871
    %v1873 = vrot.slane %v1835, %v1872
    %v1874 = vlaneseq
    %v1875 = vshrl.u32 %v1874, 7
    %v1876 = vsub.s32 1, %v1875
    %v1877 = vrot.slane %v1835, %v1876
    %v1878 = vlaneseq
    %v1879 = vshrl.u32 %v1878, 7
    %v1880 = vsub.s32 2, %v1879
    %v1881 = vrot.slane %v1835, %v1880
    %v1882 = vlaneseq
    %v1883 = vshrl.u32 %v1882, 7
    %v1884 = vsub.s32 3, %v1883
    %v1885 = vrot.slane %v1835, %v1884
    %v1886 = vlaneseq
    %v1887 = vshrl.u32 %v1886, 7
    %v1888 = vsub.s32 4, %v1887
    %v1889 = vrot.slane %v1835, %v1888
    %v1890 = vlaneseq
    %v1891 = vshrl.u32 %v1890, 7
    %v1892 = vsub.s32 5, %v1891
    %v1893 = vrot.slane %v1835, %v1892
    %v1894 = vlaneseq
    %v1895 = vshrl.u32 %v1894, 7
    %v1896 = vsub.s32 6, %v1895
    %v1897 = vrot.slane %v1835, %v1896
    %v1898 = vlaneseq
    %v1899 = vshrl.u32 %v1898, 7
    %v1900 = vsub.s32 7, %v1899
    %v1901 = vrot.slane %v1835, %v1900
    %v1950 = vunpack.c.l.b16 %v1802
    %v1951 = vunpack.c.h.b16 %v1802
    %v1952 = vunpack.c.l.b16 %v1803
    %v1953 = vunpack.c.h.b16 %v1803
    %v1954 = vunpack.c.l.b16 %v1804
    %v1955 = vunpack.c.h.b16 %v1804
    %v1956 = vunpack.c.l.b16 %v1805
    %v1957 = vunpack.c.h.b16 %v1805
    %v1958 = vunpack.c.l.b16 %v1806
    %v1959 = vunpack.c.h.b16 %v1806
    %v1960 = vunpack.c.l.b16 %v1807
    %v1961 = vunpack.c.h.b16 %v1807
    %v1962 = vunpack.c.l.b16 %v1808
    %v1963 = vunpack.c.h.b16 %v1808
    %v1964 = vunpack.c.l.b16 %v1809
    %v1965 = vunpack.c.h.b16 %v1809
    %v1966 = vunpack.c.l.b16 %v1810
    %v1967 = vunpack.c.h.b16 %v1810
    %v1968 = vunpack.c.l.b16 %v1811
    %v1969 = vunpack.c.h.b16 %v1811
    %v1970 = vunpack.c.l.b16 %v1812
    %v1971 = vunpack.c.h.b16 %v1812
    %v1972 = vunpack.c.l.b16 %v1813
    %v1973 = vunpack.c.h.b16 %v1813
    %v1974 = vunpack.c.l.b16 %v1814
    %v1975 = vunpack.c.h.b16 %v1814
    %v1976 = vunpack.c.l.b16 %v1815
    %v1977 = vunpack.c.h.b16 %v1815
    %v1978 = vunpack.c.l.b16 %v1816
    %v1979 = vunpack.c.h.b16 %v1816
    %v1980 = vunpack.c.l.b16 %v1817
    %v1981 = vunpack.c.h.b16 %v1817
    %v1982 = vunpack.c.l.b16 %v1818
    %v1983 = vunpack.c.h.b16 %v1818
    %v1984 = vunpack.c.l.b16 %v1819
    %v1985 = vunpack.c.h.b16 %v1819
    %v1986 = vunpack.c.l.b16 %v1820
    %v1987 = vunpack.c.h.b16 %v1820
    %v1988 = vunpack.c.l.b16 %v1821
    %v1989 = vunpack.c.h.b16 %v1821
    %v1990 = vunpack.c.l.b16 %v1822
    %v1991 = vunpack.c.h.b16 %v1822
    %v1992 = vunpack.c.l.b16 %v1823
    %v1993 = vunpack.c.h.b16 %v1823
    %v1994 = vunpack.c.l.b16 %v1824
    %v1995 = vunpack.c.h.b16 %v1824
    %v1996 = vunpack.c.l.b16 %v1825
    %v1997 = vunpack.c.h.b16 %v1825
    %v1998 = vunpack.c.l.b16 %v1826
    %v1999 = vunpack.c.h.b16 %v1826
    %v2000 = vunpack.c.l.b16 %v1827
    %v2001 = vunpack.c.h.b16 %v1827
    %v2002 = vunpack.c.l.b16 %v1828
    %v2003 = vunpack.c.h.b16 %v1828
    %v2004 = vunpack.c.l.b16 %v1829
    %v2005 = vunpack.c.h.b16 %v1829
    %v2006 = vunpack.c.l.b16 %v1830
    %v2007 = vunpack.c.h.b16 %v1830
    %v2008 = vunpack.c.l.b16 %v1831
    %v2009 = vunpack.c.h.b16 %v1831
    %v2010 = vunpack.c.l.b16 %v1832
    %v2011 = vunpack.c.h.b16 %v1832
    %v2012 = vunpack.c.l.b16 %v1833
    %v2013 = vunpack.c.h.b16 %v1833
    %v2014 = vpack.c.b16 %v1966, %v1950
    %v2015 = vpack.c.b16 %v1967, %v1951
    %v2016 = vpack.c.b16 %v1968, %v1952
    %v2017 = vpack.c.b16 %v1969, %v1953
    %v2018 = vpack.c.b16 %v1970, %v1954
    %v2019 = vpack.c.b16 %v1971, %v1955
    %v2020 = vpack.c.b16 %v1972, %v1956
    %v2021 = vpack.c.b16 %v1973, %v1957
    %v2022 = vpack.c.b16 %v1974, %v1958
    %v2023 = vpack.c.b16 %v1975, %v1959
    %v2024 = vpack.c.b16 %v1976, %v1960
    %v2025 = vpack.c.b16 %v1977, %v1961
    %v2026 = vpack.c.b16 %v1978, %v1962
    %v2027 = vpack.c.b16 %v1979, %v1963
    %v2028 = vpack.c.b16 %v1980, %v1964
    %v2029 = vpack.c.b16 %v1981, %v1965
    %v2030 = vpack.c.b16 %v1998, %v1982
    %v2031 = vpack.c.b16 %v1999, %v1983
    %v2032 = vpack.c.b16 %v2000, %v1984
    %v2033 = vpack.c.b16 %v2001, %v1985
    %v2034 = vpack.c.b16 %v2002, %v1986
    %v2035 = vpack.c.b16 %v2003, %v1987
    %v2036 = vpack.c.b16 %v2004, %v1988
    %v2037 = vpack.c.b16 %v2005, %v1989
    %v2038 = vpack.c.b16 %v2006, %v1990
    %v2039 = vpack.c.b16 %v2007, %v1991
    %v2040 = vpack.c.b16 %v2008, %v1992
    %v2041 = vpack.c.b16 %v2009, %v1993
    %v2042 = vpack.c.b16 %v2010, %v1994
    %v2043 = vpack.c.b16 %v2011, %v1995
    %v2044 = vpack.c.b16 %v2012, %v1996
    %v2045 = vpack.c.b16 %v2013, %v1997
    %v2079 = vsel %vm450, %v1800, 0
    %v2082 = vsel %vm450, %v1801, 0
    %2084 = vmatprep.subr.bf16.mxu0 0
    %2085 = vmatpush1.bf16.msra.mxu0 0
    %2086 = vmatprep.subr.bf16.mxu0 0
    %2087 = vmatpush1.bf16.msra.mxu0 0
    %2088 = vmatprep.subr.bf16.mxu0 0
    %2089 = vmatpush1.bf16.msra.mxu0 0
    %2090 = vmatprep.subr.bf16.mxu0 0
    %2091 = vmatpush1.bf16.msra.mxu0 0
    %2092 = vmatprep.subr.bf16.mxu0 0
    %2093 = vmatpush1.bf16.msra.mxu0 0
    %2094 = vmatprep.subr.bf16.mxu0 0
    %2095 = vmatpush1.bf16.msra.mxu0 0
    %2096 = vmatprep.subr.bf16.mxu0 %v2031
    %2097 = vmatpush1.bf16.msra.mxu0 %v2030
    %2098 = vmatprep.subr.bf16.mxu0 %v2015
    %2099 = vmatpush1.bf16.msra.mxu0 %v2014
    %2100 = vmatprep.subr.bf16.mxu0 0
    %2101 = vmatpush2.bf16.msra.mxu0 0
    %2102 = vmatprep.subr.bf16.mxu0 0
    %2103 = vmatpush2.bf16.msra.mxu0 0
    %2104 = vmatprep.subr.bf16.mxu0 0
    %2105 = vmatpush2.bf16.msra.mxu0 0
    %2106 = vmatprep.subr.bf16.mxu0 0
    %2107 = vmatpush2.bf16.msra.mxu0 0
    %2108 = vmatprep.subr.bf16.mxu0 0
    %2109 = vmatpush2.bf16.msra.mxu0 0
    %2110 = vmatprep.subr.bf16.mxu0 0
    %2111 = vmatpush2.bf16.msra.mxu0 0
    %2112 = vmatprep.subr.bf16.mxu0 0
    %2113 = vmatpush2.bf16.msra.mxu0 0
    %2114 = vmatprep.subr.bf16.mxu0 0
    %2115 = vmatpush2.bf16.msra.mxu0 0
    %2116 = vmatprep.mubr.bf16.mxu0 0
    %2117 = vmatmul.mubr.bf16.gmra.mxu0 %v2079
    %v2118 = vpop.f32.mrf.mxu0
    %v2119 = vadd.f32 %v1841, %v2118
    %v2120 = vpop.f32.mrf.mxu0
    %v2121 = vadd.f32 %v1845, %v2120
    %v2122 = vpop.f32.mrf.mxu0
    %v2123 = vadd.f32 %v1841, %v2122
    %v2124 = vpop.f32.mrf.mxu0
    %v2125 = vadd.f32 %v1845, %v2124
    %2126 = vmatprep.mubr.bf16.mxu0 0
    %2127 = vmatmul.mubr.bf16.gmra.mxu0 %v2082
    %v2128 = vpop.f32.mrf.mxu0
    %v2129 = vadd.f32 %v1841, %v2128
    %v2130 = vpop.f32.mrf.mxu0
    %v2131 = vadd.f32 %v1845, %v2130
    %v2132 = vpop.f32.mrf.mxu0
    %v2133 = vpop.f32.mrf.mxu0
    %2134 = vdwg.mxu0
    %2135 = vmatprep.subr.bf16.mxu0 0
    %2136 = vmatpush1.bf16.msra.mxu0 0
    %2137 = vmatprep.subr.bf16.mxu0 0
    %2138 = vmatpush1.bf16.msra.mxu0 0
    %2139 = vmatprep.subr.bf16.mxu0 0
    %2140 = vmatpush1.bf16.msra.mxu0 0
    %2141 = vmatprep.subr.bf16.mxu0 0
    %2142 = vmatpush1.bf16.msra.mxu0 0
    %2143 = vmatprep.subr.bf16.mxu0 0
    %2144 = vmatpush1.bf16.msra.mxu0 0
    %2145 = vmatprep.subr.bf16.mxu0 0
    %2146 = vmatpush1.bf16.msra.mxu0 0
    %2147 = vmatprep.subr.bf16.mxu0 %v2033
    %2148 = vmatpush1.bf16.msra.mxu0 %v2032
    %2149 = vmatprep.subr.bf16.mxu0 %v2017
    %2150 = vmatpush1.bf16.msra.mxu0 %v2016
    %2151 = vmatprep.subr.bf16.mxu0 0
    %2152 = vmatpush2.bf16.msra.mxu0 0
    %2153 = vmatprep.subr.bf16.mxu0 0
    %2154 = vmatpush2.bf16.msra.mxu0 0
    %2155 = vmatprep.subr.bf16.mxu0 0
    %2156 = vmatpush2.bf16.msra.mxu0 0
    %2157 = vmatprep.subr.bf16.mxu0 0
    %2158 = vmatpush2.bf16.msra.mxu0 0
    %2159 = vmatprep.subr.bf16.mxu0 0
    %2160 = vmatpush2.bf16.msra.mxu0 0
    %2161 = vmatprep.subr.bf16.mxu0 0
    %2162 = vmatpush2.bf16.msra.mxu0 0
    %2163 = vmatprep.subr.bf16.mxu0 0
    %2164 = vmatpush2.bf16.msra.mxu0 0
    %2165 = vmatprep.subr.bf16.mxu0 0
    %2166 = vmatpush2.bf16.msra.mxu0 0
    %2167 = vmatprep.mubr.bf16.mxu0 0
    %2168 = vmatmul.mubr.bf16.gmra.mxu0 %v2079
    %v2169 = vpop.f32.mrf.mxu0
    %v2170 = vadd.f32 %v1849, %v2169
    %v2171 = vpop.f32.mrf.mxu0
    %v2172 = vadd.f32 %v1853, %v2171
    %v2173 = vpop.f32.mrf.mxu0
    %v2174 = vadd.f32 %v1849, %v2173
    %v2175 = vpop.f32.mrf.mxu0
    %v2176 = vadd.f32 %v1853, %v2175
    %2177 = vmatprep.mubr.bf16.mxu0 0
    %2178 = vmatmul.mubr.bf16.gmra.mxu0 %v2082
    %v2179 = vpop.f32.mrf.mxu0
    %v2180 = vadd.f32 %v1849, %v2179
    %v2181 = vpop.f32.mrf.mxu0
    %v2182 = vadd.f32 %v1853, %v2181
    %v2183 = vpop.f32.mrf.mxu0
    %v2184 = vpop.f32.mrf.mxu0
    %2185 = vdwg.mxu0
    %2186 = vmatprep.subr.bf16.mxu0 0
    %2187 = vmatpush1.bf16.msra.mxu0 0
    %2188 = vmatprep.subr.bf16.mxu0 0
    %2189 = vmatpush1.bf16.msra.mxu0 0
    %2190 = vmatprep.subr.bf16.mxu0 0
    %2191 = vmatpush1.bf16.msra.mxu0 0
    %2192 = vmatprep.subr.bf16.mxu0 0
    %2193 = vmatpush1.bf16.msra.mxu0 0
    %2194 = vmatprep.subr.bf16.mxu0 0
    %2195 = vmatpush1.bf16.msra.mxu0 0
    %2196 = vmatprep.subr.bf16.mxu0 0
    %2197 = vmatpush1.bf16.msra.mxu0 0
    %2198 = vmatprep.subr.bf16.mxu0 %v2035
    %2199 = vmatpush1.bf16.msra.mxu0 %v2034
    %2200 = vmatprep.subr.bf16.mxu0 %v2019
    %2201 = vmatpush1.bf16.msra.mxu0 %v2018
    %2202 = vmatprep.subr.bf16.mxu0 0
    %2203 = vmatpush2.bf16.msra.mxu0 0
    %2204 = vmatprep.subr.bf16.mxu0 0
    %2205 = vmatpush2.bf16.msra.mxu0 0
    %2206 = vmatprep.subr.bf16.mxu0 0
    %2207 = vmatpush2.bf16.msra.mxu0 0
    %2208 = vmatprep.subr.bf16.mxu0 0
    %2209 = vmatpush2.bf16.msra.mxu0 0
    %2210 = vmatprep.subr.bf16.mxu0 0
    %2211 = vmatpush2.bf16.msra.mxu0 0
    %2212 = vmatprep.subr.bf16.mxu0 0
    %2213 = vmatpush2.bf16.msra.mxu0 0
    %2214 = vmatprep.subr.bf16.mxu0 0
    %2215 = vmatpush2.bf16.msra.mxu0 0
    %2216 = vmatprep.subr.bf16.mxu0 0
    %2217 = vmatpush2.bf16.msra.mxu0 0
    %2218 = vmatprep.mubr.bf16.mxu0 0
    %2219 = vmatmul.mubr.bf16.gmra.mxu0 %v2079
    %v2220 = vpop.f32.mrf.mxu0
    %v2221 = vadd.f32 %v1857, %v2220
    %v2222 = vpop.f32.mrf.mxu0
    %v2223 = vadd.f32 %v1861, %v2222
    %v2224 = vpop.f32.mrf.mxu0
    %v2225 = vadd.f32 %v1857, %v2224
    %v2226 = vpop.f32.mrf.mxu0
    %v2227 = vadd.f32 %v1861, %v2226
    %2228 = vmatprep.mubr.bf16.mxu0 0
    %2229 = vmatmul.mubr.bf16.gmra.mxu0 %v2082
    %v2230 = vpop.f32.mrf.mxu0
    %v2231 = vadd.f32 %v1857, %v2230
    %v2232 = vpop.f32.mrf.mxu0
    %v2233 = vadd.f32 %v1861, %v2232
    %v2234 = vpop.f32.mrf.mxu0
    %v2235 = vpop.f32.mrf.mxu0
    %2236 = vdwg.mxu0
    %2237 = vmatprep.subr.bf16.mxu0 0
    %2238 = vmatpush1.bf16.msra.mxu0 0
    %2239 = vmatprep.subr.bf16.mxu0 0
    %2240 = vmatpush1.bf16.msra.mxu0 0
    %2241 = vmatprep.subr.bf16.mxu0 0
    %2242 = vmatpush1.bf16.msra.mxu0 0
    %2243 = vmatprep.subr.bf16.mxu0 0
    %2244 = vmatpush1.bf16.msra.mxu0 0
    %2245 = vmatprep.subr.bf16.mxu0 0
    %2246 = vmatpush1.bf16.msra.mxu0 0
    %2247 = vmatprep.subr.bf16.mxu0 0
    %2248 = vmatpush1.bf16.msra.mxu0 0
    %2249 = vmatprep.subr.bf16.mxu0 %v2037
    %2250 = vmatpush1.bf16.msra.mxu0 %v2036
    %2251 = vmatprep.subr.bf16.mxu0 %v2021
    %2252 = vmatpush1.bf16.msra.mxu0 %v2020
    %2253 = vmatprep.subr.bf16.mxu0 0
    %2254 = vmatpush2.bf16.msra.mxu0 0
    %2255 = vmatprep.subr.bf16.mxu0 0
    %2256 = vmatpush2.bf16.msra.mxu0 0
    %2257 = vmatprep.subr.bf16.mxu0 0
    %2258 = vmatpush2.bf16.msra.mxu0 0
    %2259 = vmatprep.subr.bf16.mxu0 0
    %2260 = vmatpush2.bf16.msra.mxu0 0
    %2261 = vmatprep.subr.bf16.mxu0 0
    %2262 = vmatpush2.bf16.msra.mxu0 0
    %2263 = vmatprep.subr.bf16.mxu0 0
    %2264 = vmatpush2.bf16.msra.mxu0 0
    %2265 = vmatprep.subr.bf16.mxu0 0
    %2266 = vmatpush2.bf16.msra.mxu0 0
    %2267 = vmatprep.subr.bf16.mxu0 0
    %2268 = vmatpush2.bf16.msra.mxu0 0
    %2269 = vmatprep.mubr.bf16.mxu0 0
    %2270 = vmatmul.mubr.bf16.gmra.mxu0 %v2079
    %v2271 = vpop.f32.mrf.mxu0
    %v2272 = vadd.f32 %v1865, %v2271
    %v2273 = vpop.f32.mrf.mxu0
    %v2274 = vadd.f32 %v1869, %v2273
    %v2275 = vpop.f32.mrf.mxu0
    %v2276 = vadd.f32 %v1865, %v2275
    %v2277 = vpop.f32.mrf.mxu0
    %v2278 = vadd.f32 %v1869, %v2277
    %2279 = vmatprep.mubr.bf16.mxu0 0
    %2280 = vmatmul.mubr.bf16.gmra.mxu0 %v2082
    %v2281 = vpop.f32.mrf.mxu0
    %v2282 = vadd.f32 %v1865, %v2281
    %v2283 = vpop.f32.mrf.mxu0
    %v2284 = vadd.f32 %v1869, %v2283
    %v2285 = vpop.f32.mrf.mxu0
    %v2286 = vpop.f32.mrf.mxu0
    %2287 = vdwg.mxu0
    %2288 = vmatprep.subr.bf16.mxu0 0
    %2289 = vmatpush1.bf16.msra.mxu0 0
    %2290 = vmatprep.subr.bf16.mxu0 0
    %2291 = vmatpush1.bf16.msra.mxu0 0
    %2292 = vmatprep.subr.bf16.mxu0 0
    %2293 = vmatpush1.bf16.msra.mxu0 0
    %2294 = vmatprep.subr.bf16.mxu0 0
    %2295 = vmatpush1.bf16.msra.mxu0 0
    %2296 = vmatprep.subr.bf16.mxu0 0
    %2297 = vmatpush1.bf16.msra.mxu0 0
    %2298 = vmatprep.subr.bf16.mxu0 0
    %2299 = vmatpush1.bf16.msra.mxu0 0
    %2300 = vmatprep.subr.bf16.mxu0 %v2039
    %2301 = vmatpush1.bf16.msra.mxu0 %v2038
    %2302 = vmatprep.subr.bf16.mxu0 %v2023
    %2303 = vmatpush1.bf16.msra.mxu0 %v2022
    %2304 = vmatprep.subr.bf16.mxu0 0
    %2305 = vmatpush2.bf16.msra.mxu0 0
    %2306 = vmatprep.subr.bf16.mxu0 0
    %2307 = vmatpush2.bf16.msra.mxu0 0
    %2308 = vmatprep.subr.bf16.mxu0 0
    %2309 = vmatpush2.bf16.msra.mxu0 0
    %2310 = vmatprep.subr.bf16.mxu0 0
    %2311 = vmatpush2.bf16.msra.mxu0 0
    %2312 = vmatprep.subr.bf16.mxu0 0
    %2313 = vmatpush2.bf16.msra.mxu0 0
    %2314 = vmatprep.subr.bf16.mxu0 0
    %2315 = vmatpush2.bf16.msra.mxu0 0
    %2316 = vmatprep.subr.bf16.mxu0 0
    %2317 = vmatpush2.bf16.msra.mxu0 0
    %2318 = vmatprep.subr.bf16.mxu0 0
    %2319 = vmatpush2.bf16.msra.mxu0 0
    %2320 = vmatprep.mubr.bf16.mxu0 0
    %2321 = vmatmul.mubr.bf16.gmra.mxu0 %v2079
    %v2322 = vpop.f32.mrf.mxu0
    %v2323 = vadd.f32 %v1873, %v2322
    %v2324 = vpop.f32.mrf.mxu0
    %v2325 = vadd.f32 %v1877, %v2324
    %v2326 = vpop.f32.mrf.mxu0
    %v2327 = vadd.f32 %v1873, %v2326
    %v2328 = vpop.f32.mrf.mxu0
    %v2329 = vadd.f32 %v1877, %v2328
    %2330 = vmatprep.mubr.bf16.mxu0 0
    %2331 = vmatmul.mubr.bf16.gmra.mxu0 %v2082
    %v2332 = vpop.f32.mrf.mxu0
    %v2333 = vadd.f32 %v1873, %v2332
    %v2334 = vpop.f32.mrf.mxu0
    %v2335 = vadd.f32 %v1877, %v2334
    %v2336 = vpop.f32.mrf.mxu0
    %v2337 = vpop.f32.mrf.mxu0
    %2338 = vdwg.mxu0
    %2339 = vmatprep.subr.bf16.mxu0 0
    %2340 = vmatpush1.bf16.msra.mxu0 0
    %2341 = vmatprep.subr.bf16.mxu0 0
    %2342 = vmatpush1.bf16.msra.mxu0 0
    %2343 = vmatprep.subr.bf16.mxu0 0
    %2344 = vmatpush1.bf16.msra.mxu0 0
    %2345 = vmatprep.subr.bf16.mxu0 0
    %2346 = vmatpush1.bf16.msra.mxu0 0
    %2347 = vmatprep.subr.bf16.mxu0 0
    %2348 = vmatpush1.bf16.msra.mxu0 0
    %2349 = vmatprep.subr.bf16.mxu0 0
    %2350 = vmatpush1.bf16.msra.mxu0 0
    %2351 = vmatprep.subr.bf16.mxu0 %v2041
    %2352 = vmatpush1.bf16.msra.mxu0 %v2040
    %2353 = vmatprep.subr.bf16.mxu0 %v2025
    %2354 = vmatpush1.bf16.msra.mxu0 %v2024
    %2355 = vmatprep.subr.bf16.mxu0 0
    %2356 = vmatpush2.bf16.msra.mxu0 0
    %2357 = vmatprep.subr.bf16.mxu0 0
    %2358 = vmatpush2.bf16.msra.mxu0 0
    %2359 = vmatprep.subr.bf16.mxu0 0
    %2360 = vmatpush2.bf16.msra.mxu0 0
    %2361 = vmatprep.subr.bf16.mxu0 0
    %2362 = vmatpush2.bf16.msra.mxu0 0
    %2363 = vmatprep.subr.bf16.mxu0 0
    %2364 = vmatpush2.bf16.msra.mxu0 0
    %2365 = vmatprep.subr.bf16.mxu0 0
    %2366 = vmatpush2.bf16.msra.mxu0 0
    %2367 = vmatprep.subr.bf16.mxu0 0
    %2368 = vmatpush2.bf16.msra.mxu0 0
    %2369 = vmatprep.subr.bf16.mxu0 0
    %2370 = vmatpush2.bf16.msra.mxu0 0
    %2371 = vmatprep.mubr.bf16.mxu0 0
    %2372 = vmatmul.mubr.bf16.gmra.mxu0 %v2079
    %v2373 = vpop.f32.mrf.mxu0
    %v2374 = vadd.f32 %v1881, %v2373
    %v2375 = vpop.f32.mrf.mxu0
    %v2376 = vadd.f32 %v1885, %v2375
    %v2377 = vpop.f32.mrf.mxu0
    %v2378 = vadd.f32 %v1881, %v2377
    %v2379 = vpop.f32.mrf.mxu0
    %v2380 = vadd.f32 %v1885, %v2379
    %2381 = vmatprep.mubr.bf16.mxu0 0
    %2382 = vmatmul.mubr.bf16.gmra.mxu0 %v2082
    %v2383 = vpop.f32.mrf.mxu0
    %v2384 = vadd.f32 %v1881, %v2383
    %v2385 = vpop.f32.mrf.mxu0
    %v2386 = vadd.f32 %v1885, %v2385
    %v2387 = vpop.f32.mrf.mxu0
    %v2388 = vpop.f32.mrf.mxu0
    %2389 = vdwg.mxu0
    %2390 = vmatprep.subr.bf16.mxu0 0
    %2391 = vmatpush1.bf16.msra.mxu0 0
    %2392 = vmatprep.subr.bf16.mxu0 0
    %2393 = vmatpush1.bf16.msra.mxu0 0
    %2394 = vmatprep.subr.bf16.mxu0 0
    %2395 = vmatpush1.bf16.msra.mxu0 0
    %2396 = vmatprep.subr.bf16.mxu0 0
    %2397 = vmatpush1.bf16.msra.mxu0 0
    %2398 = vmatprep.subr.bf16.mxu0 0
    %2399 = vmatpush1.bf16.msra.mxu0 0
    %2400 = vmatprep.subr.bf16.mxu0 0
    %2401 = vmatpush1.bf16.msra.mxu0 0
    %2402 = vmatprep.subr.bf16.mxu0 %v2043
    %2403 = vmatpush1.bf16.msra.mxu0 %v2042
    %2404 = vmatprep.subr.bf16.mxu0 %v2027
    %2405 = vmatpush1.bf16.msra.mxu0 %v2026
    %2406 = vmatprep.subr.bf16.mxu0 0
    %2407 = vmatpush2.bf16.msra.mxu0 0
    %2408 = vmatprep.subr.bf16.mxu0 0
    %2409 = vmatpush2.bf16.msra.mxu0 0
    %2410 = vmatprep.subr.bf16.mxu0 0
    %2411 = vmatpush2.bf16.msra.mxu0 0
    %2412 = vmatprep.subr.bf16.mxu0 0
    %2413 = vmatpush2.bf16.msra.mxu0 0
    %2414 = vmatprep.subr.bf16.mxu0 0
    %2415 = vmatpush2.bf16.msra.mxu0 0
    %2416 = vmatprep.subr.bf16.mxu0 0
    %2417 = vmatpush2.bf16.msra.mxu0 0
    %2418 = vmatprep.subr.bf16.mxu0 0
    %2419 = vmatpush2.bf16.msra.mxu0 0
    %2420 = vmatprep.subr.bf16.mxu0 0
    %2421 = vmatpush2.bf16.msra.mxu0 0
    %2422 = vmatprep.mubr.bf16.mxu0 0
    %2423 = vmatmul.mubr.bf16.gmra.mxu0 %v2079
    %v2424 = vpop.f32.mrf.mxu0
    %v2425 = vadd.f32 %v1889, %v2424
    %v2426 = vpop.f32.mrf.mxu0
    %v2427 = vadd.f32 %v1893, %v2426
    %v2428 = vpop.f32.mrf.mxu0
    %v2429 = vadd.f32 %v1889, %v2428
    %v2430 = vpop.f32.mrf.mxu0
    %v2431 = vadd.f32 %v1893, %v2430
    %2432 = vmatprep.mubr.bf16.mxu0 0
    %2433 = vmatmul.mubr.bf16.gmra.mxu0 %v2082
    %v2434 = vpop.f32.mrf.mxu0
    %v2435 = vadd.f32 %v1889, %v2434
    %v2436 = vpop.f32.mrf.mxu0
    %v2437 = vadd.f32 %v1893, %v2436
    %v2438 = vpop.f32.mrf.mxu0
    %v2439 = vpop.f32.mrf.mxu0
    %2440 = vdwg.mxu0
    %2441 = vmatprep.subr.bf16.mxu0 0
    %2442 = vmatpush1.bf16.msra.mxu0 0
    %2443 = vmatprep.subr.bf16.mxu0 0
    %2444 = vmatpush1.bf16.msra.mxu0 0
    %2445 = vmatprep.subr.bf16.mxu0 0
    %2446 = vmatpush1.bf16.msra.mxu0 0
    %2447 = vmatprep.subr.bf16.mxu0 0
    %2448 = vmatpush1.bf16.msra.mxu0 0
    %2449 = vmatprep.subr.bf16.mxu0 0
    %2450 = vmatpush1.bf16.msra.mxu0 0
    %2451 = vmatprep.subr.bf16.mxu0 0
    %2452 = vmatpush1.bf16.msra.mxu0 0
    %2453 = vmatprep.subr.bf16.mxu0 %v2045
    %2454 = vmatpush1.bf16.msra.mxu0 %v2044
    %2455 = vmatprep.subr.bf16.mxu0 %v2029
    %2456 = vmatpush1.bf16.msra.mxu0 %v2028
    %2457 = vmatprep.subr.bf16.mxu0 0
    %2458 = vmatpush2.bf16.msra.mxu0 0
    %2459 = vmatprep.subr.bf16.mxu0 0
    %2460 = vmatpush2.bf16.msra.mxu0 0
    %2461 = vmatprep.subr.bf16.mxu0 0
    %2462 = vmatpush2.bf16.msra.mxu0 0
    %2463 = vmatprep.subr.bf16.mxu0 0
    %2464 = vmatpush2.bf16.msra.mxu0 0
    %2465 = vmatprep.subr.bf16.mxu0 0
    %2466 = vmatpush2.bf16.msra.mxu0 0
    %2467 = vmatprep.subr.bf16.mxu0 0
    %2468 = vmatpush2.bf16.msra.mxu0 0
    %2469 = vmatprep.subr.bf16.mxu0 0
    %2470 = vmatpush2.bf16.msra.mxu0 0
    %2471 = vmatprep.subr.bf16.mxu0 0
    %2472 = vmatpush2.bf16.msra.mxu0 0
    %2473 = vmatprep.mubr.bf16.mxu0 0
    %2474 = vmatmul.mubr.bf16.gmra.mxu0 %v2079
    %v2475 = vpop.f32.mrf.mxu0
    %v2476 = vadd.f32 %v1897, %v2475
    %v2477 = vpop.f32.mrf.mxu0
    %v2478 = vadd.f32 %v1901, %v2477
    %v2479 = vpop.f32.mrf.mxu0
    %v2480 = vadd.f32 %v1897, %v2479
    %v2481 = vpop.f32.mrf.mxu0
    %v2482 = vadd.f32 %v1901, %v2481
    %2483 = vmatprep.mubr.bf16.mxu0 0
    %2484 = vmatmul.mubr.bf16.gmra.mxu0 %v2082
    %v2485 = vpop.f32.mrf.mxu0
    %v2486 = vadd.f32 %v1897, %v2485
    %v2487 = vpop.f32.mrf.mxu0
    %v2488 = vadd.f32 %v1901, %v2487
    %v2489 = vpop.f32.mrf.mxu0
    %v2490 = vpop.f32.mrf.mxu0
    %2491 = vdwg.mxu0
    %v2492 = vmax.f32 %v2119, 0.0
    %v2493 = vmax.f32 %v2121, 0.0
    %v2494 = vmax.f32 %v2170, 0.0
    %v2495 = vmax.f32 %v2172, 0.0
    %v2496 = vmax.f32 %v2221, 0.0
    %v2497 = vmax.f32 %v2223, 0.0
    %v2498 = vmax.f32 %v2272, 0.0
    %v2499 = vmax.f32 %v2274, 0.0
    %v2500 = vmax.f32 %v2323, 0.0
    %v2501 = vmax.f32 %v2325, 0.0
    %v2502 = vmax.f32 %v2374, 0.0
    %v2503 = vmax.f32 %v2376, 0.0
    %v2504 = vmax.f32 %v2425, 0.0
    %v2505 = vmax.f32 %v2427, 0.0
    %v2506 = vmax.f32 %v2476, 0.0
    %v2507 = vmax.f32 %v2478, 0.0
    %v2508 = vmax.f32 %v2123, 0.0
    %v2509 = vmax.f32 %v2125, 0.0
    %v2510 = vmax.f32 %v2174, 0.0
    %v2511 = vmax.f32 %v2176, 0.0
    %v2512 = vmax.f32 %v2225, 0.0
    %v2513 = vmax.f32 %v2227, 0.0
    %v2514 = vmax.f32 %v2276, 0.0
    %v2515 = vmax.f32 %v2278, 0.0
    %v2516 = vmax.f32 %v2327, 0.0
    %v2517 = vmax.f32 %v2329, 0.0
    %v2518 = vmax.f32 %v2378, 0.0
    %v2519 = vmax.f32 %v2380, 0.0
    %v2520 = vmax.f32 %v2429, 0.0
    %v2521 = vmax.f32 %v2431, 0.0
    %v2522 = vmax.f32 %v2480, 0.0
    %v2523 = vmax.f32 %v2482, 0.0
    %v2524 = vmax.f32 %v2129, 0.0
    %v2525 = vmax.f32 %v2131, 0.0
    %v2526 = vmax.f32 %v2180, 0.0
    %v2527 = vmax.f32 %v2182, 0.0
    %v2528 = vmax.f32 %v2231, 0.0
    %v2529 = vmax.f32 %v2233, 0.0
    %v2530 = vmax.f32 %v2282, 0.0
    %v2531 = vmax.f32 %v2284, 0.0
    %v2532 = vmax.f32 %v2333, 0.0
    %v2533 = vmax.f32 %v2335, 0.0
    %v2534 = vmax.f32 %v2384, 0.0
    %v2535 = vmax.f32 %v2386, 0.0
    %v2536 = vmax.f32 %v2435, 0.0
    %v2537 = vmax.f32 %v2437, 0.0
    %v2538 = vmax.f32 %v2486, 0.0
    %v2539 = vmax.f32 %v2488, 0.0
    %v2540 = vpack.c.bf16 %v2508, %v2492
    %v2541 = vpack.c.bf16 %v2509, %v2493
    %v2542 = vpack.c.bf16 %v2510, %v2494
    %v2543 = vpack.c.bf16 %v2511, %v2495
    %v2544 = vpack.c.bf16 %v2512, %v2496
    %v2545 = vpack.c.bf16 %v2513, %v2497
    %v2546 = vpack.c.bf16 %v2514, %v2498
    %v2547 = vpack.c.bf16 %v2515, %v2499
    %v2548 = vpack.c.bf16 %v2516, %v2500
    %v2549 = vpack.c.bf16 %v2517, %v2501
    %v2550 = vpack.c.bf16 %v2518, %v2502
    %v2551 = vpack.c.bf16 %v2519, %v2503
    %v2552 = vpack.c.bf16 %v2520, %v2504
    %v2553 = vpack.c.bf16 %v2521, %v2505
    %v2554 = vpack.c.bf16 %v2522, %v2506
    %v2555 = vpack.c.bf16 %v2523, %v2507
    %v2556 = vpack.c.bf16 %v2524, %v2524
    %v2557 = vpack.c.bf16 %v2525, %v2525
    %v2558 = vpack.c.bf16 %v2526, %v2526
    %v2559 = vpack.c.bf16 %v2527, %v2527
    %v2560 = vpack.c.bf16 %v2528, %v2528
    %v2561 = vpack.c.bf16 %v2529, %v2529
    %v2562 = vpack.c.bf16 %v2530, %v2530
    %v2563 = vpack.c.bf16 %v2531, %v2531
    %v2564 = vpack.c.bf16 %v2532, %v2532
    %v2565 = vpack.c.bf16 %v2533, %v2533
    %v2566 = vpack.c.bf16 %v2534, %v2534
    %v2567 = vpack.c.bf16 %v2535, %v2535
    %v2568 = vpack.c.bf16 %v2536, %v2536
    %v2569 = vpack.c.bf16 %v2537, %v2537
    %v2570 = vpack.c.bf16 %v2538, %v2538
    %v2571 = vpack.c.bf16 %v2539, %v2539
    %v2572 = vld [vmem:[#allocation31] sm:$0xff]
    %v2573 = vld [vmem:[#allocation31 + $0x8] sm:$0xff]
    %v2574 = vld [vmem:[#allocation31 + $0x10] sm:$0xff]
    %v2575 = vld [vmem:[#allocation31 + $0x18] sm:$0xff]
    %v2576 = vld [vmem:[#allocation31 + $0x20] sm:$0xff]
    %v2577 = vld [vmem:[#allocation31 + $0x28] sm:$0xff]
    %v2578 = vld [vmem:[#allocation31 + $0x30] sm:$0xff]
    %v2579 = vld [vmem:[#allocation31 + $0x38] sm:$0xff]
    %v2580 = vld [vmem:[#allocation31 + $0x40] sm:$0xff]
    %v2581 = vld [vmem:[#allocation31 + $0x48] sm:$0xff]
    %v2582 = vld [vmem:[#allocation31 + $0x50] sm:$0xff]
    %v2583 = vld [vmem:[#allocation31 + $0x58] sm:$0xff]
    %v2584 = vld [vmem:[#allocation31 + $0x60] sm:$0xff]
    %v2585 = vld [vmem:[#allocation31 + $0x68] sm:$0xff]
    %v2586 = vld [vmem:[#allocation31 + $0x70] sm:$0xff]
    %v2587 = vld [vmem:[#allocation31 + $0x78] sm:$0xff]
    %v2588 = vld [vmem:[#allocation31 + $0x80] sm:$0xff]
    %v2589 = vld [vmem:[#allocation31 + $0x88] sm:$0xff]
    %v2590 = vld [vmem:[#allocation31 + $0x90] sm:$0xff]
    %v2591 = vld [vmem:[#allocation31 + $0x98] sm:$0xff]
    %v2592 = vld [vmem:[#allocation31 + $0xa0] sm:$0xff]
    %v2593 = vld [vmem:[#allocation31 + $0xa8] sm:$0xff]
    %v2594 = vld [vmem:[#allocation31 + $0xb0] sm:$0xff]
    %v2595 = vld [vmem:[#allocation31 + $0xb8] sm:$0xff]
    %v2596 = vld [vmem:[#allocation31 + $0xc0] sm:$0xff]
    %v2597 = vld [vmem:[#allocation31 + $0xc8] sm:$0xff]
    %v2598 = vld [vmem:[#allocation31 + $0xd0] sm:$0xff]
    %v2599 = vld [vmem:[#allocation31 + $0xd8] sm:$0xff]
    %v2600 = vld [vmem:[#allocation31 + $0xe0] sm:$0xff]
    %v2601 = vld [vmem:[#allocation31 + $0xe8] sm:$0xff]
    %v2602 = vld [vmem:[#allocation31 + $0xf0] sm:$0xff]
    %v2603 = vld [vmem:[#allocation31 + $0xf8] sm:$0xff]
    %v2604 = vld [vmem:[%s57] sm:$0x1]
    %v2606 = vlaneseq
    %v2607 = vshrl.u32 %v2606, 7
    %v2608 = vsub.s32 0, %v2607
    %v2609 = vrot.slane %v2604, %v2608
    %v2643 = vunpack.c.l.b16 %v2572
    %v2644 = vunpack.c.h.b16 %v2572
    %v2645 = vunpack.c.l.b16 %v2573
    %v2646 = vunpack.c.h.b16 %v2573
    %v2647 = vunpack.c.l.b16 %v2574
    %v2648 = vunpack.c.h.b16 %v2574
    %v2649 = vunpack.c.l.b16 %v2575
    %v2650 = vunpack.c.h.b16 %v2575
    %v2651 = vunpack.c.l.b16 %v2576
    %v2652 = vunpack.c.h.b16 %v2576
    %v2653 = vunpack.c.l.b16 %v2577
    %v2654 = vunpack.c.h.b16 %v2577
    %v2655 = vunpack.c.l.b16 %v2578
    %v2656 = vunpack.c.h.b16 %v2578
    %v2657 = vunpack.c.l.b16 %v2579
    %v2658 = vunpack.c.h.b16 %v2579
    %v2659 = vunpack.c.l.b16 %v2580
    %v2660 = vunpack.c.h.b16 %v2580
    %v2661 = vunpack.c.l.b16 %v2581
    %v2662 = vunpack.c.h.b16 %v2581
    %v2663 = vunpack.c.l.b16 %v2582
    %v2664 = vunpack.c.h.b16 %v2582
    %v2665 = vunpack.c.l.b16 %v2583
    %v2666 = vunpack.c.h.b16 %v2583
    %v2667 = vunpack.c.l.b16 %v2584
    %v2668 = vunpack.c.h.b16 %v2584
    %v2669 = vunpack.c.l.b16 %v2585
    %v2670 = vunpack.c.h.b16 %v2585
    %v2671 = vunpack.c.l.b16 %v2586
    %v2672 = vunpack.c.h.b16 %v2586
    %v2673 = vunpack.c.l.b16 %v2587
    %v2674 = vunpack.c.h.b16 %v2587
    %v2675 = vunpack.c.l.b16 %v2588
    %v2676 = vunpack.c.h.b16 %v2588
    %v2677 = vunpack.c.l.b16 %v2589
    %v2678 = vunpack.c.h.b16 %v2589
    %v2679 = vunpack.c.l.b16 %v2590
    %v2680 = vunpack.c.h.b16 %v2590
    %v2681 = vunpack.c.l.b16 %v2591
    %v2682 = vunpack.c.h.b16 %v2591
    %v2683 = vunpack.c.l.b16 %v2592
    %v2684 = vunpack.c.h.b16 %v2592
    %v2685 = vunpack.c.l.b16 %v2593
    %v2686 = vunpack.c.h.b16 %v2593
    %v2687 = vunpack.c.l.b16 %v2594
    %v2688 = vunpack.c.h.b16 %v2594
    %v2689 = vunpack.c.l.b16 %v2595
    %v2690 = vunpack.c.h.b16 %v2595
    %v2691 = vunpack.c.l.b16 %v2596
    %v2692 = vunpack.c.h.b16 %v2596
    %v2693 = vunpack.c.l.b16 %v2597
    %v2694 = vunpack.c.h.b16 %v2597
    %v2695 = vunpack.c.l.b16 %v2598
    %v2696 = vunpack.c.h.b16 %v2598
    %v2697 = vunpack.c.l.b16 %v2599
    %v2698 = vunpack.c.h.b16 %v2599
    %v2699 = vunpack.c.l.b16 %v2600
    %v2700 = vunpack.c.h.b16 %v2600
    %v2701 = vunpack.c.l.b16 %v2601
    %v2702 = vunpack.c.h.b16 %v2601
    %v2703 = vunpack.c.l.b16 %v2602
    %v2704 = vunpack.c.h.b16 %v2602
    %v2705 = vunpack.c.l.b16 %v2603
    %v2706 = vunpack.c.h.b16 %v2603
    %v2707 = vpack.c.b16 %v2659, %v2643
    %v2708 = vpack.c.b16 %v2660, %v2644
    %v2709 = vpack.c.b16 %v2661, %v2645
    %v2710 = vpack.c.b16 %v2662, %v2646
    %v2711 = vpack.c.b16 %v2663, %v2647
    %v2712 = vpack.c.b16 %v2664, %v2648
    %v2713 = vpack.c.b16 %v2665, %v2649
    %v2714 = vpack.c.b16 %v2666, %v2650
    %v2715 = vpack.c.b16 %v2667, %v2651
    %v2716 = vpack.c.b16 %v2668, %v2652
    %v2717 = vpack.c.b16 %v2669, %v2653
    %v2718 = vpack.c.b16 %v2670, %v2654
    %v2719 = vpack.c.b16 %v2671, %v2655
    %v2720 = vpack.c.b16 %v2672, %v2656
    %v2721 = vpack.c.b16 %v2673, %v2657
    %v2722 = vpack.c.b16 %v2674, %v2658
    %v2723 = vpack.c.b16 %v2691, %v2675
    %v2724 = vpack.c.b16 %v2692, %v2676
    %v2725 = vpack.c.b16 %v2693, %v2677
    %v2726 = vpack.c.b16 %v2694, %v2678
    %v2727 = vpack.c.b16 %v2695, %v2679
    %v2728 = vpack.c.b16 %v2696, %v2680
    %v2729 = vpack.c.b16 %v2697, %v2681
    %v2730 = vpack.c.b16 %v2698, %v2682
    %v2731 = vpack.c.b16 %v2699, %v2683
    %v2732 = vpack.c.b16 %v2700, %v2684
    %v2733 = vpack.c.b16 %v2701, %v2685
    %v2734 = vpack.c.b16 %v2702, %v2686
    %v2735 = vpack.c.b16 %v2703, %v2687
    %v2736 = vpack.c.b16 %v2704, %v2688
    %v2737 = vpack.c.b16 %v2705, %v2689
    %v2738 = vpack.c.b16 %v2706, %v2690
    %2771 = vmatprep.subr.bf16.mxu0 0
    %2772 = vmatpush1.bf16.xpose.msra.mxu0 0
    %2773 = vmatprep.subr.bf16.mxu0 0
    %2774 = vmatpush1.bf16.xpose.msra.mxu0 0
    %2775 = vmatprep.subr.bf16.mxu0 0
    %2776 = vmatpush1.bf16.xpose.msra.mxu0 0
    %2777 = vmatprep.subr.bf16.mxu0 0
    %2778 = vmatpush1.bf16.xpose.msra.mxu0 0
    %2779 = vmatprep.subr.bf16.mxu0 0
    %2780 = vmatpush1.bf16.xpose.msra.mxu0 0
    %2781 = vmatprep.subr.bf16.mxu0 0
    %2782 = vmatpush1.bf16.xpose.msra.mxu0 0
    %2783 = vmatprep.subr.bf16.mxu0 %v2724
    %2784 = vmatpush1.bf16.xpose.msra.mxu0 %v2723
    %2785 = vmatprep.subr.bf16.mxu0 %v2708
    %2786 = vmatpush1.bf16.xpose.msra.mxu0 %v2707
    %2787 = vmatprep.subr.bf16.mxu0 0
    %2788 = vmatpush2.bf16.xpose.msra.mxu0 0
    %2789 = vmatprep.subr.bf16.mxu0 0
    %2790 = vmatpush2.bf16.xpose.msra.mxu0 0
    %2791 = vmatprep.subr.bf16.mxu0 0
    %2792 = vmatpush2.bf16.xpose.msra.mxu0 0
    %2793 = vmatprep.subr.bf16.mxu0 0
    %2794 = vmatpush2.bf16.xpose.msra.mxu0 0
    %2795 = vmatprep.subr.bf16.mxu0 0
    %2796 = vmatpush2.bf16.xpose.msra.mxu0 0
    %2797 = vmatprep.subr.bf16.mxu0 0
    %2798 = vmatpush2.bf16.xpose.msra.mxu0 0
    %2799 = vmatprep.subr.bf16.mxu0 0
    %2800 = vmatpush2.bf16.xpose.msra.mxu0 0
    %2801 = vmatprep.subr.bf16.mxu0 0
    %2802 = vmatpush2.bf16.xpose.msra.mxu0 0
    %2803 = vmatprep.mubr.bf16.mxu0 %v2541
    %2804 = vmatmul.mubr.bf16.gmra.mxu0 %v2540
    %v2805 = vpop.f32.mrf.mxu0
    %v2806 = vadd.f32 %v2609, %v2805
    %v2807 = vpop.f32.mrf.mxu0
    %v2808 = vpop.f32.mrf.mxu0
    %v2809 = vadd.f32 %v2609, %v2808
    %v2810 = vpop.f32.mrf.mxu0
    %2811 = vmatprep.mubr.bf16.mxu0 %v2557
    %2812 = vmatmul.mubr.bf16.gmra.mxu0 %v2556
    %v2813 = vpop.f32.mrf.mxu0
    %v2814 = vadd.f32 %v2609, %v2813
    %v2815 = vpop.f32.mrf.mxu0
    %v2816 = vpop.f32.mrf.mxu0
    %v2817 = vpop.f32.mrf.mxu0
    %2818 = vdwg.mxu0
    %2819 = vmatprep.subr.bf16.mxu0 0
    %2820 = vmatpush1.bf16.xpose.msra.mxu0 0
    %2821 = vmatprep.subr.bf16.mxu0 0
    %2822 = vmatpush1.bf16.xpose.msra.mxu0 0
    %2823 = vmatprep.subr.bf16.mxu0 0
    %2824 = vmatpush1.bf16.xpose.msra.mxu0 0
    %2825 = vmatprep.subr.bf16.mxu0 0
    %2826 = vmatpush1.bf16.xpose.msra.mxu0 0
    %2827 = vmatprep.subr.bf16.mxu0 0
    %2828 = vmatpush1.bf16.xpose.msra.mxu0 0
    %2829 = vmatprep.subr.bf16.mxu0 0
    %2830 = vmatpush1.bf16.xpose.msra.mxu0 0
    %2831 = vmatprep.subr.bf16.mxu0 %v2726
    %2832 = vmatpush1.bf16.xpose.msra.mxu0 %v2725
    %2833 = vmatprep.subr.bf16.mxu0 %v2710
    %2834 = vmatpush1.bf16.xpose.msra.mxu0 %v2709
    %2835 = vmatprep.subr.bf16.mxu0 0
    %2836 = vmatpush2.bf16.xpose.msra.mxu0 0
    %2837 = vmatprep.subr.bf16.mxu0 0
    %2838 = vmatpush2.bf16.xpose.msra.mxu0 0
    %2839 = vmatprep.subr.bf16.mxu0 0
    %2840 = vmatpush2.bf16.xpose.msra.mxu0 0
    %2841 = vmatprep.subr.bf16.mxu0 0
    %2842 = vmatpush2.bf16.xpose.msra.mxu0 0
    %2843 = vmatprep.subr.bf16.mxu0 0
    %2844 = vmatpush2.bf16.xpose.msra.mxu0 0
    %2845 = vmatprep.subr.bf16.mxu0 0
    %2846 = vmatpush2.bf16.xpose.msra.mxu0 0
    %2847 = vmatprep.subr.bf16.mxu0 0
    %2848 = vmatpush2.bf16.xpose.msra.mxu0 0
    %2849 = vmatprep.subr.bf16.mxu0 0
    %2850 = vmatpush2.bf16.xpose.msra.mxu0 0
    %2851 = vmatprep.mubr.bf16.mxu0 %v2543
    %2852 = vmatmul.mubr.bf16.gmra.mxu0 %v2542
    %v2853 = vpop.f32.mrf.mxu0
    %v2854 = vadd.f32 %v2806, %v2853
    %v2855 = vpop.f32.mrf.mxu0
    %v2856 = vpop.f32.mrf.mxu0
    %v2857 = vadd.f32 %v2809, %v2856
    %v2858 = vpop.f32.mrf.mxu0
    %2859 = vmatprep.mubr.bf16.mxu0 %v2559
    %2860 = vmatmul.mubr.bf16.gmra.mxu0 %v2558
    %v2861 = vpop.f32.mrf.mxu0
    %v2862 = vadd.f32 %v2814, %v2861
    %v2863 = vpop.f32.mrf.mxu0
    %v2864 = vpop.f32.mrf.mxu0
    %v2865 = vpop.f32.mrf.mxu0
    %2866 = vdwg.mxu0
    %2867 = vmatprep.subr.bf16.mxu0 0
    %2868 = vmatpush1.bf16.xpose.msra.mxu0 0
    %2869 = vmatprep.subr.bf16.mxu0 0
    %2870 = vmatpush1.bf16.xpose.msra.mxu0 0
    %2871 = vmatprep.subr.bf16.mxu0 0
    %2872 = vmatpush1.bf16.xpose.msra.mxu0 0
    %2873 = vmatprep.subr.bf16.mxu0 0
    %2874 = vmatpush1.bf16.xpose.msra.mxu0 0
    %2875 = vmatprep.subr.bf16.mxu0 0
    %2876 = vmatpush1.bf16.xpose.msra.mxu0 0
    %2877 = vmatprep.subr.bf16.mxu0 0
    %2878 = vmatpush1.bf16.xpose.msra.mxu0 0
    %2879 = vmatprep.subr.bf16.mxu0 %v2728
    %2880 = vmatpush1.bf16.xpose.msra.mxu0 %v2727
    %2881 = vmatprep.subr.bf16.mxu0 %v2712
    %2882 = vmatpush1.bf16.xpose.msra.mxu0 %v2711
    %2883 = vmatprep.subr.bf16.mxu0 0
    %2884 = vmatpush2.bf16.xpose.msra.mxu0 0
    %2885 = vmatprep.subr.bf16.mxu0 0
    %2886 = vmatpush2.bf16.xpose.msra.mxu0 0
    %2887 = vmatprep.subr.bf16.mxu0 0
    %2888 = vmatpush2.bf16.xpose.msra.mxu0 0
    %2889 = vmatprep.subr.bf16.mxu0 0
    %2890 = vmatpush2.bf16.xpose.msra.mxu0 0
    %2891 = vmatprep.subr.bf16.mxu0 0
    %2892 = vmatpush2.bf16.xpose.msra.mxu0 0
    %2893 = vmatprep.subr.bf16.mxu0 0
    %2894 = vmatpush2.bf16.xpose.msra.mxu0 0
    %2895 = vmatprep.subr.bf16.mxu0 0
    %2896 = vmatpush2.bf16.xpose.msra.mxu0 0
    %2897 = vmatprep.subr.bf16.mxu0 0
    %2898 = vmatpush2.bf16.xpose.msra.mxu0 0
    %2899 = vmatprep.mubr.bf16.mxu0 %v2545
    %2900 = vmatmul.mubr.bf16.gmra.mxu0 %v2544
    %v2901 = vpop.f32.mrf.mxu0
    %v2902 = vadd.f32 %v2854, %v2901
    %v2903 = vpop.f32.mrf.mxu0
    %v2904 = vpop.f32.mrf.mxu0
    %v2905 = vadd.f32 %v2857, %v2904
    %v2906 = vpop.f32.mrf.mxu0
    %2907 = vmatprep.mubr.bf16.mxu0 %v2561
    %2908 = vmatmul.mubr.bf16.gmra.mxu0 %v2560
    %v2909 = vpop.f32.mrf.mxu0
    %v2910 = vadd.f32 %v2862, %v2909
    %v2911 = vpop.f32.mrf.mxu0
    %v2912 = vpop.f32.mrf.mxu0
    %v2913 = vpop.f32.mrf.mxu0
    %2914 = vdwg.mxu0
    %2915 = vmatprep.subr.bf16.mxu0 0
    %2916 = vmatpush1.bf16.xpose.msra.mxu0 0
    %2917 = vmatprep.subr.bf16.mxu0 0
    %2918 = vmatpush1.bf16.xpose.msra.mxu0 0
    %2919 = vmatprep.subr.bf16.mxu0 0
    %2920 = vmatpush1.bf16.xpose.msra.mxu0 0
    %2921 = vmatprep.subr.bf16.mxu0 0
    %2922 = vmatpush1.bf16.xpose.msra.mxu0 0
    %2923 = vmatprep.subr.bf16.mxu0 0
    %2924 = vmatpush1.bf16.xpose.msra.mxu0 0
    %2925 = vmatprep.subr.bf16.mxu0 0
    %2926 = vmatpush1.bf16.xpose.msra.mxu0 0
    %2927 = vmatprep.subr.bf16.mxu0 %v2730
    %2928 = vmatpush1.bf16.xpose.msra.mxu0 %v2729
    %2929 = vmatprep.subr.bf16.mxu0 %v2714
    %2930 = vmatpush1.bf16.xpose.msra.mxu0 %v2713
    %2931 = vmatprep.subr.bf16.mxu0 0
    %2932 = vmatpush2.bf16.xpose.msra.mxu0 0
    %2933 = vmatprep.subr.bf16.mxu0 0
    %2934 = vmatpush2.bf16.xpose.msra.mxu0 0
    %2935 = vmatprep.subr.bf16.mxu0 0
    %2936 = vmatpush2.bf16.xpose.msra.mxu0 0
    %2937 = vmatprep.subr.bf16.mxu0 0
    %2938 = vmatpush2.bf16.xpose.msra.mxu0 0
    %2939 = vmatprep.subr.bf16.mxu0 0
    %2940 = vmatpush2.bf16.xpose.msra.mxu0 0
    %2941 = vmatprep.subr.bf16.mxu0 0
    %2942 = vmatpush2.bf16.xpose.msra.mxu0 0
    %2943 = vmatprep.subr.bf16.mxu0 0
    %2944 = vmatpush2.bf16.xpose.msra.mxu0 0
    %2945 = vmatprep.subr.bf16.mxu0 0
    %2946 = vmatpush2.bf16.xpose.msra.mxu0 0
    %2947 = vmatprep.mubr.bf16.mxu0 %v2547
    %2948 = vmatmul.mubr.bf16.gmra.mxu0 %v2546
    %v2949 = vpop.f32.mrf.mxu0
    %v2950 = vadd.f32 %v2902, %v2949
    %v2951 = vpop.f32.mrf.mxu0
    %v2952 = vpop.f32.mrf.mxu0
    %v2953 = vadd.f32 %v2905, %v2952
    %v2954 = vpop.f32.mrf.mxu0
    %2955 = vmatprep.mubr.bf16.mxu0 %v2563
    %2956 = vmatmul.mubr.bf16.gmra.mxu0 %v2562
    %v2957 = vpop.f32.mrf.mxu0
    %v2958 = vadd.f32 %v2910, %v2957
    %v2959 = vpop.f32.mrf.mxu0
    %v2960 = vpop.f32.mrf.mxu0
    %v2961 = vpop.f32.mrf.mxu0
    %2962 = vdwg.mxu0
    %2963 = vmatprep.subr.bf16.mxu0 0
    %2964 = vmatpush1.bf16.xpose.msra.mxu0 0
    %2965 = vmatprep.subr.bf16.mxu0 0
    %2966 = vmatpush1.bf16.xpose.msra.mxu0 0
    %2967 = vmatprep.subr.bf16.mxu0 0
    %2968 = vmatpush1.bf16.xpose.msra.mxu0 0
    %2969 = vmatprep.subr.bf16.mxu0 0
    %2970 = vmatpush1.bf16.xpose.msra.mxu0 0
    %2971 = vmatprep.subr.bf16.mxu0 0
    %2972 = vmatpush1.bf16.xpose.msra.mxu0 0
    %2973 = vmatprep.subr.bf16.mxu0 0
    %2974 = vmatpush1.bf16.xpose.msra.mxu0 0
    %2975 = vmatprep.subr.bf16.mxu0 %v2732
    %2976 = vmatpush1.bf16.xpose.msra.mxu0 %v2731
    %2977 = vmatprep.subr.bf16.mxu0 %v2716
    %2978 = vmatpush1.bf16.xpose.msra.mxu0 %v2715
    %2979 = vmatprep.subr.bf16.mxu0 0
    %2980 = vmatpush2.bf16.xpose.msra.mxu0 0
    %2981 = vmatprep.subr.bf16.mxu0 0
    %2982 = vmatpush2.bf16.xpose.msra.mxu0 0
    %2983 = vmatprep.subr.bf16.mxu0 0
    %2984 = vmatpush2.bf16.xpose.msra.mxu0 0
    %2985 = vmatprep.subr.bf16.mxu0 0
    %2986 = vmatpush2.bf16.xpose.msra.mxu0 0
    %2987 = vmatprep.subr.bf16.mxu0 0
    %2988 = vmatpush2.bf16.xpose.msra.mxu0 0
    %2989 = vmatprep.subr.bf16.mxu0 0
    %2990 = vmatpush2.bf16.xpose.msra.mxu0 0
    %2991 = vmatprep.subr.bf16.mxu0 0
    %2992 = vmatpush2.bf16.xpose.msra.mxu0 0
    %2993 = vmatprep.subr.bf16.mxu0 0
    %2994 = vmatpush2.bf16.xpose.msra.mxu0 0
    %2995 = vmatprep.mubr.bf16.mxu0 %v2549
    %2996 = vmatmul.mubr.bf16.gmra.mxu0 %v2548
    %v2997 = vpop.f32.mrf.mxu0
    %v2998 = vadd.f32 %v2950, %v2997
    %v2999 = vpop.f32.mrf.mxu0
    %v3000 = vpop.f32.mrf.mxu0
    %v3001 = vadd.f32 %v2953, %v3000
    %v3002 = vpop.f32.mrf.mxu0
    %3003 = vmatprep.mubr.bf16.mxu0 %v2565
    %3004 = vmatmul.mubr.bf16.gmra.mxu0 %v2564
    %v3005 = vpop.f32.mrf.mxu0
    %v3006 = vadd.f32 %v2958, %v3005
    %v3007 = vpop.f32.mrf.mxu0
    %v3008 = vpop.f32.mrf.mxu0
    %v3009 = vpop.f32.mrf.mxu0
    %3010 = vdwg.mxu0
    %3011 = vmatprep.subr.bf16.mxu0 0
    %3012 = vmatpush1.bf16.xpose.msra.mxu0 0
    %3013 = vmatprep.subr.bf16.mxu0 0
    %3014 = vmatpush1.bf16.xpose.msra.mxu0 0
    %3015 = vmatprep.subr.bf16.mxu0 0
    %3016 = vmatpush1.bf16.xpose.msra.mxu0 0
    %3017 = vmatprep.subr.bf16.mxu0 0
    %3018 = vmatpush1.bf16.xpose.msra.mxu0 0
    %3019 = vmatprep.subr.bf16.mxu0 0
    %3020 = vmatpush1.bf16.xpose.msra.mxu0 0
    %3021 = vmatprep.subr.bf16.mxu0 0
    %3022 = vmatpush1.bf16.xpose.msra.mxu0 0
    %3023 = vmatprep.subr.bf16.mxu0 %v2734
    %3024 = vmatpush1.bf16.xpose.msra.mxu0 %v2733
    %3025 = vmatprep.subr.bf16.mxu0 %v2718
    %3026 = vmatpush1.bf16.xpose.msra.mxu0 %v2717
    %3027 = vmatprep.subr.bf16.mxu0 0
    %3028 = vmatpush2.bf16.xpose.msra.mxu0 0
    %3029 = vmatprep.subr.bf16.mxu0 0
    %3030 = vmatpush2.bf16.xpose.msra.mxu0 0
    %3031 = vmatprep.subr.bf16.mxu0 0
    %3032 = vmatpush2.bf16.xpose.msra.mxu0 0
    %3033 = vmatprep.subr.bf16.mxu0 0
    %3034 = vmatpush2.bf16.xpose.msra.mxu0 0
    %3035 = vmatprep.subr.bf16.mxu0 0
    %3036 = vmatpush2.bf16.xpose.msra.mxu0 0
    %3037 = vmatprep.subr.bf16.mxu0 0
    %3038 = vmatpush2.bf16.xpose.msra.mxu0 0
    %3039 = vmatprep.subr.bf16.mxu0 0
    %3040 = vmatpush2.bf16.xpose.msra.mxu0 0
    %3041 = vmatprep.subr.bf16.mxu0 0
    %3042 = vmatpush2.bf16.xpose.msra.mxu0 0
    %3043 = vmatprep.mubr.bf16.mxu0 %v2551
    %3044 = vmatmul.mubr.bf16.gmra.mxu0 %v2550
    %v3045 = vpop.f32.mrf.mxu0
    %v3046 = vadd.f32 %v2998, %v3045
    %v3047 = vpop.f32.mrf.mxu0
    %v3048 = vpop.f32.mrf.mxu0
    %v3049 = vadd.f32 %v3001, %v3048
    %v3050 = vpop.f32.mrf.mxu0
    %3051 = vmatprep.mubr.bf16.mxu0 %v2567
    %3052 = vmatmul.mubr.bf16.gmra.mxu0 %v2566
    %v3053 = vpop.f32.mrf.mxu0
    %v3054 = vadd.f32 %v3006, %v3053
    %v3055 = vpop.f32.mrf.mxu0
    %v3056 = vpop.f32.mrf.mxu0
    %v3057 = vpop.f32.mrf.mxu0
    %3058 = vdwg.mxu0
    %3059 = vmatprep.subr.bf16.mxu0 0
    %3060 = vmatpush1.bf16.xpose.msra.mxu0 0
    %3061 = vmatprep.subr.bf16.mxu0 0
    %3062 = vmatpush1.bf16.xpose.msra.mxu0 0
    %3063 = vmatprep.subr.bf16.mxu0 0
    %3064 = vmatpush1.bf16.xpose.msra.mxu0 0
    %3065 = vmatprep.subr.bf16.mxu0 0
    %3066 = vmatpush1.bf16.xpose.msra.mxu0 0
    %3067 = vmatprep.subr.bf16.mxu0 0
    %3068 = vmatpush1.bf16.xpose.msra.mxu0 0
    %3069 = vmatprep.subr.bf16.mxu0 0
    %3070 = vmatpush1.bf16.xpose.msra.mxu0 0
    %3071 = vmatprep.subr.bf16.mxu0 %v2736
    %3072 = vmatpush1.bf16.xpose.msra.mxu0 %v2735
    %3073 = vmatprep.subr.bf16.mxu0 %v2720
    %3074 = vmatpush1.bf16.xpose.msra.mxu0 %v2719
    %3075 = vmatprep.subr.bf16.mxu0 0
    %3076 = vmatpush2.bf16.xpose.msra.mxu0 0
    %3077 = vmatprep.subr.bf16.mxu0 0
    %3078 = vmatpush2.bf16.xpose.msra.mxu0 0
    %3079 = vmatprep.subr.bf16.mxu0 0
    %3080 = vmatpush2.bf16.xpose.msra.mxu0 0
    %3081 = vmatprep.subr.bf16.mxu0 0
    %3082 = vmatpush2.bf16.xpose.msra.mxu0 0
    %3083 = vmatprep.subr.bf16.mxu0 0
    %3084 = vmatpush2.bf16.xpose.msra.mxu0 0
    %3085 = vmatprep.subr.bf16.mxu0 0
    %3086 = vmatpush2.bf16.xpose.msra.mxu0 0
    %3087 = vmatprep.subr.bf16.mxu0 0
    %3088 = vmatpush2.bf16.xpose.msra.mxu0 0
    %3089 = vmatprep.subr.bf16.mxu0 0
    %3090 = vmatpush2.bf16.xpose.msra.mxu0 0
    %3091 = vmatprep.mubr.bf16.mxu0 %v2553
    %3092 = vmatmul.mubr.bf16.gmra.mxu0 %v2552
    %v3093 = vpop.f32.mrf.mxu0
    %v3094 = vadd.f32 %v3046, %v3093
    %v3095 = vpop.f32.mrf.mxu0
    %v3096 = vpop.f32.mrf.mxu0
    %v3097 = vadd.f32 %v3049, %v3096
    %v3098 = vpop.f32.mrf.mxu0
    %3099 = vmatprep.mubr.bf16.mxu0 %v2569
    %3100 = vmatmul.mubr.bf16.gmra.mxu0 %v2568
    %v3101 = vpop.f32.mrf.mxu0
    %v3102 = vadd.f32 %v3054, %v3101
    %v3103 = vpop.f32.mrf.mxu0
    %v3104 = vpop.f32.mrf.mxu0
    %v3105 = vpop.f32.mrf.mxu0
    %3106 = vdwg.mxu0
    %3107 = vmatprep.subr.bf16.mxu0 0
    %3108 = vmatpush1.bf16.xpose.msra.mxu0 0
    %3109 = vmatprep.subr.bf16.mxu0 0
    %3110 = vmatpush1.bf16.xpose.msra.mxu0 0
    %3111 = vmatprep.subr.bf16.mxu0 0
    %3112 = vmatpush1.bf16.xpose.msra.mxu0 0
    %3113 = vmatprep.subr.bf16.mxu0 0
    %3114 = vmatpush1.bf16.xpose.msra.mxu0 0
    %3115 = vmatprep.subr.bf16.mxu0 0
    %3116 = vmatpush1.bf16.xpose.msra.mxu0 0
    %3117 = vmatprep.subr.bf16.mxu0 0
    %3118 = vmatpush1.bf16.xpose.msra.mxu0 0
    %3119 = vmatprep.subr.bf16.mxu0 %v2738
    %3120 = vmatpush1.bf16.xpose.msra.mxu0 %v2737
    %3121 = vmatprep.subr.bf16.mxu0 %v2722
    %3122 = vmatpush1.bf16.xpose.msra.mxu0 %v2721
    %3123 = vmatprep.subr.bf16.mxu0 0
    %3124 = vmatpush2.bf16.xpose.msra.mxu0 0
    %3125 = vmatprep.subr.bf16.mxu0 0
    %3126 = vmatpush2.bf16.xpose.msra.mxu0 0
    %3127 = vmatprep.subr.bf16.mxu0 0
    %3128 = vmatpush2.bf16.xpose.msra.mxu0 0
    %3129 = vmatprep.subr.bf16.mxu0 0
    %3130 = vmatpush2.bf16.xpose.msra.mxu0 0
    %3131 = vmatprep.subr.bf16.mxu0 0
    %3132 = vmatpush2.bf16.xpose.msra.mxu0 0
    %3133 = vmatprep.subr.bf16.mxu0 0
    %3134 = vmatpush2.bf16.xpose.msra.mxu0 0
    %3135 = vmatprep.subr.bf16.mxu0 0
    %3136 = vmatpush2.bf16.xpose.msra.mxu0 0
    %3137 = vmatprep.subr.bf16.mxu0 0
    %3138 = vmatpush2.bf16.xpose.msra.mxu0 0
    %3139 = vmatprep.mubr.bf16.mxu0 %v2555
    %3140 = vmatmul.mubr.bf16.gmra.mxu0 %v2554
    %v3141 = vpop.f32.mrf.mxu0
    %v3142 = vadd.f32 %v3094, %v3141
    %v3143 = vpop.f32.mrf.mxu0
    %v3144 = vpop.f32.mrf.mxu0
    %v3145 = vadd.f32 %v3097, %v3144
    %v3146 = vpop.f32.mrf.mxu0
    %3147 = vmatprep.mubr.bf16.mxu0 %v2571
    %3148 = vmatmul.mubr.bf16.gmra.mxu0 %v2570
    %v3149 = vpop.f32.mrf.mxu0
    %v3150 = vadd.f32 %v3102, %v3149
    %v3151 = vpop.f32.mrf.mxu0
    %v3152 = vpop.f32.mrf.mxu0
    %v3153 = vpop.f32.mrf.mxu0
    %3154 = vdwg.mxu0
    %v3155 = vadd.f32 %v1797, %v3142
    %v3156 = vadd.f32 %v1798, %v3145
    %v3157 = vadd.f32 %v1799, %v3150
    %v3158 = vld [vmem:[%s59] sm:$0x1]
    %v3159 = vld [vmem:[%s61] sm:$0x1]
    %v3160 = vsel %vm450, %v3155, 0.0
    %3161 = vadd.xlane.f32.xlu0 %v3160
    %v3162 = vpop.xlane.xlu0 %3161
    %v3163 = vsel %vm450, %v3156, 0.0
    %3164 = vadd.xlane.f32.xlu0 %v3163
    %v3165 = vpop.xlane.xlu0 %3164
    %v3166 = vsel %vm1748, %v3157, 0.0
    %3167 = vadd.xlane.f32.xlu0 %v3166
    %v3168 = vpop.xlane.xlu0 %3167
    %v3169 = vmul.f32 %v3162, %v457
    %v3170 = vmul.f32 %v3165, %v457
    %v3171 = vmul.f32 %v3168, %v457
    %v3172 = vsub.f32 %v3155, %v3169
    %v3173 = vsub.f32 %v3156, %v3170
    %v3174 = vsub.f32 %v3157, %v3171
    %v3175 = vmul.f32 %v3172, %v3172
    %v3176 = vmul.f32 %v3173, %v3173
    %v3177 = vmul.f32 %v3174, %v3174
    %v3178 = vsel %vm450, %v3175, 0.0
    %3179 = vadd.xlane.f32.xlu0 %v3178
    %v3180 = vpop.xlane.xlu0 %3179
    %v3181 = vsel %vm450, %v3176, 0.0
    %3182 = vadd.xlane.f32.xlu0 %v3181
    %v3183 = vpop.xlane.xlu0 %3182
    %v3184 = vsel %vm1748, %v3177, 0.0
    %3185 = vadd.xlane.f32.xlu0 %v3184
    %v3186 = vpop.xlane.xlu0 %3185
    %v3187 = vmul.f32 %v3180, %v457
    %v3188 = vmul.f32 %v3183, %v457
    %v3189 = vmul.f32 %v3186, %v457
    %v3190 = vadd.f32 %v3187, 1e-05
    %v3191 = vadd.f32 %v3188, 1e-05
    %v3192 = vadd.f32 %v3189, 1e-05
    %v3193 = vrsqrt.pop %v3190
    %v3194 = vrsqrt.pop %v3191
    %v3195 = vrsqrt.pop %v3192
    %v3196 = vmul.f32 %v3172, %v3193
    %v3197 = vmul.f32 %v3173, %v3194
    %v3198 = vmul.f32 %v3174, %v3195
    %v3200 = vlaneseq
    %v3201 = vshrl.u32 %v3200, 7
    %v3202 = vsub.s32 0, %v3201
    %v3203 = vrot.slane %v3158, %v3202
    %v3205 = vmul.f32 %v3196, %v3203
    %v3206 = vmul.f32 %v3197, %v3203
    %v3207 = vmul.f32 %v3198, %v3203
    %v3209 = vlaneseq
    %v3210 = vshrl.u32 %v3209, 7
    %v3211 = vsub.s32 0, %v3210
    %v3212 = vrot.slane %v3159, %v3211
    %v3214 = vadd.f32 %v3205, %v3212
    %v3215 = vadd.f32 %v3206, %v3212
    %v3216 = vadd.f32 %v3207, %v3212
    %v3217 = vpack.c.bf16 %v3215, %v3214
    %v3218 = vpack.c.bf16 %v3216, %v3216
    %s3219 = scalar_lea.vmem %s31, 16
    %v3220 = vld [vmem:[%s3219] sm:$0xf]
    %v3221 = vld [vmem:[%s3219 + $0x4] sm:$0xf]
    %v3222 = vld [vmem:[%s3219 + $0x8] sm:$0xf]
    %v3223 = vld [vmem:[%s3219 + $0xc] sm:$0xf]
    %s3224 = scalar_lea.vmem %s37, 1
    %v3225 = vld [vmem:[%s3224] sm:$0x1]
    %v3227 = vlaneseq
    %v3228 = vshrl.u32 %v3227, 7
    %v3229 = vsub.s32 0, %v3228
    %v3230 = vrot.slane %v3225, %v3229
    %v3236 = vunpack.c.l.b16 %v3220
    %v3237 = vunpack.c.l.b16 %v3221
    %v3238 = vunpack.c.l.b16 %v3222
    %v3239 = vunpack.c.l.b16 %v3223
    %v3240 = vpack.c.b16 %v3237, %v3236
    %v3241 = vpack.c.b16 %v3239, %v3238
    %v3245 = vsel %vm450, %v3217, 0
    %v3248 = vsel %vm450, %v3218, 0
    %3250 = vmatprep.subr.bf16.mxu0 0
    %3251 = vmatpush1.bf16.msra.mxu0 0
    %3252 = vmatprep.subr.bf16.mxu0 0
    %3253 = vmatpush1.bf16.msra.mxu0 0
    %3254 = vmatprep.subr.bf16.mxu0 0
    %3255 = vmatpush1.bf16.msra.mxu0 0
    %3256 = vmatprep.subr.bf16.mxu0 0
    %3257 = vmatpush1.bf16.msra.mxu0 0
    %3258 = vmatprep.subr.bf16.mxu0 0
    %3259 = vmatpush1.bf16.msra.mxu0 0
    %3260 = vmatprep.subr.bf16.mxu0 0
    %3261 = vmatpush1.bf16.msra.mxu0 0
    %3262 = vmatprep.subr.bf16.mxu0 0
    %3263 = vmatpush1.bf16.msra.mxu0 %v3241
    %3264 = vmatprep.subr.bf16.mxu0 0
    %3265 = vmatpush1.bf16.msra.mxu0 %v3240
    %3266 = vmatprep.subr.bf16.mxu0 0
    %3267 = vmatpush2.bf16.msra.mxu0 0
    %3268 = vmatprep.subr.bf16.mxu0 0
    %3269 = vmatpush2.bf16.msra.mxu0 0
    %3270 = vmatprep.subr.bf16.mxu0 0
    %3271 = vmatpush2.bf16.msra.mxu0 0
    %3272 = vmatprep.subr.bf16.mxu0 0
    %3273 = vmatpush2.bf16.msra.mxu0 0
    %3274 = vmatprep.subr.bf16.mxu0 0
    %3275 = vmatpush2.bf16.msra.mxu0 0
    %3276 = vmatprep.subr.bf16.mxu0 0
    %3277 = vmatpush2.bf16.msra.mxu0 0
    %3278 = vmatprep.subr.bf16.mxu0 0
    %3279 = vmatpush2.bf16.msra.mxu0 0
    %3280 = vmatprep.subr.bf16.mxu0 0
    %3281 = vmatpush2.bf16.msra.mxu0 0
    %3282 = vmatprep.mubr.bf16.mxu0 0
    %3283 = vmatmul.mubr.bf16.gmra.mxu0 %v3245
    %v3284 = vpop.f32.mrf.mxu0
    %v3285 = vadd.f32 %v3230, %v3284
    %v3286 = vpop.f32.mrf.mxu0
    %v3287 = vpop.f32.mrf.mxu0
    %v3288 = vadd.f32 %v3230, %v3287
    %v3289 = vpop.f32.mrf.mxu0
    %3290 = vmatprep.mubr.bf16.mxu0 0
    %3291 = vmatmul.mubr.bf16.gmra.mxu0 %v3248
    %v3292 = vpop.f32.mrf.mxu0
    %v3293 = vadd.f32 %v3230, %v3292
    %v3294 = vpop.f32.mrf.mxu0
    %v3295 = vpop.f32.mrf.mxu0
    %v3296 = vpop.f32.mrf.mxu0
    %3297 = vdwg.mxu0
    %s3298 = scalar_lea.vmem [#allocation23], 16
    %v3299 = vld [vmem:[%s3298] sm:$0xf]
    %v3300 = vld [vmem:[%s3298 + $0x4] sm:$0xf]
    %v3301 = vld [vmem:[%s3298 + $0x8] sm:$0xf]
    %v3302 = vld [vmem:[%s3298 + $0xc] sm:$0xf]
    %s3303 = scalar_lea.vmem %s39, 1
    %v3304 = vld [vmem:[%s3303] sm:$0x1]
    %v3306 = vlaneseq
    %v3307 = vshrl.u32 %v3306, 7
    %v3308 = vsub.s32 0, %v3307
    %v3309 = vrot.slane %v3304, %v3308
    %v3315 = vunpack.c.l.b16 %v3299
    %v3316 = vunpack.c.l.b16 %v3300
    %v3317 = vunpack.c.l.b16 %v3301
    %v3318 = vunpack.c.l.b16 %v3302
    %v3319 = vpack.c.b16 %v3316, %v3315
    %v3320 = vpack.c.b16 %v3318, %v3317
    %3323 = vmatprep.subr.bf16.mxu0 0
    %3324 = vmatpush1.bf16.msra.mxu0 0
    %3325 = vmatprep.subr.bf16.mxu0 0
    %3326 = vmatpush1.bf16.msra.mxu0 0
    %3327 = vmatprep.subr.bf16.mxu0 0
    %3328 = vmatpush1.bf16.msra.mxu0 0
    %3329 = vmatprep.subr.bf16.mxu0 0
    %3330 = vmatpush1.bf16.msra.mxu0 0
    %3331 = vmatprep.subr.bf16.mxu0 0
    %3332 = vmatpush1.bf16.msra.mxu0 0
    %3333 = vmatprep.subr.bf16.mxu0 0
    %3334 = vmatpush1.bf16.msra.mxu0 0
    %3335 = vmatprep.subr.bf16.mxu0 0
    %3336 = vmatpush1.bf16.msra.mxu0 %v3320
    %3337 = vmatprep.subr.bf16.mxu0 0
    %3338 = vmatpush1.bf16.msra.mxu0 %v3319
    %3339 = vmatprep.subr.bf16.mxu0 0
    %3340 = vmatpush2.bf16.msra.mxu0 0
    %3341 = vmatprep.subr.bf16.mxu0 0
    %3342 = vmatpush2.bf16.msra.mxu0 0
    %3343 = vmatprep.subr.bf16.mxu0 0
    %3344 = vmatpush2.bf16.msra.mxu0 0
    %3345 = vmatprep.subr.bf16.mxu0 0
    %3346 = vmatpush2.bf16.msra.mxu0 0
    %3347 = vmatprep.subr.bf16.mxu0 0
    %3348 = vmatpush2.bf16.msra.mxu0 0
    %3349 = vmatprep.subr.bf16.mxu0 0
    %3350 = vmatpush2.bf16.msra.mxu0 0
    %3351 = vmatprep.subr.bf16.mxu0 0
    %3352 = vmatpush2.bf16.msra.mxu0 0
    %3353 = vmatprep.subr.bf16.mxu0 0
    %3354 = vmatpush2.bf16.msra.mxu0 0
    %3355 = vmatprep.mubr.bf16.mxu0 0
    %3356 = vmatmul.mubr.bf16.gmra.mxu0 %v3245
    %v3357 = vpop.f32.mrf.mxu0
    %v3358 = vadd.f32 %v3309, %v3357
    %v3359 = vpop.f32.mrf.mxu0
    %v3360 = vpop.f32.mrf.mxu0
    %v3361 = vadd.f32 %v3309, %v3360
    %v3362 = vpop.f32.mrf.mxu0
    %3363 = vmatprep.mubr.bf16.mxu0 0
    %3364 = vmatmul.mubr.bf16.gmra.mxu0 %v3248
    %v3365 = vpop.f32.mrf.mxu0
    %v3366 = vadd.f32 %v3309, %v3365
    %v3367 = vpop.f32.mrf.mxu0
    %v3368 = vpop.f32.mrf.mxu0
    %v3369 = vpop.f32.mrf.mxu0
    %3370 = vdwg.mxu0
    %s3371 = scalar_lea.vmem [#allocation25], 16
    %v3372 = vld [vmem:[%s3371] sm:$0xf]
    %v3373 = vld [vmem:[%s3371 + $0x4] sm:$0xf]
    %v3374 = vld [vmem:[%s3371 + $0x8] sm:$0xf]
    %v3375 = vld [vmem:[%s3371 + $0xc] sm:$0xf]
    %s3376 = scalar_lea.vmem %s41, 1
    %v3377 = vld [vmem:[%s3376] sm:$0x1]
    %v3379 = vlaneseq
    %v3380 = vshrl.u32 %v3379, 7
    %v3381 = vsub.s32 0, %v3380
    %v3382 = vrot.slane %v3377, %v3381
    %v3388 = vunpack.c.l.b16 %v3372
    %v3389 = vunpack.c.l.b16 %v3373
    %v3390 = vunpack.c.l.b16 %v3374
    %v3391 = vunpack.c.l.b16 %v3375
    %v3392 = vpack.c.b16 %v3389, %v3388
    %v3393 = vpack.c.b16 %v3391, %v3390
    %3396 = vmatprep.subr.bf16.mxu0 0
    %3397 = vmatpush1.bf16.msra.mxu0 0
    %3398 = vmatprep.subr.bf16.mxu0 0
    %3399 = vmatpush1.bf16.msra.mxu0 0
    %3400 = vmatprep.subr.bf16.mxu0 0
    %3401 = vmatpush1.bf16.msra.mxu0 0
    %3402 = vmatprep.subr.bf16.mxu0 0
    %3403 = vmatpush1.bf16.msra.mxu0 0
    %3404 = vmatprep.subr.bf16.mxu0 0
    %3405 = vmatpush1.bf16.msra.mxu0 0
    %3406 = vmatprep.subr.bf16.mxu0 0
    %3407 = vmatpush1.bf16.msra.mxu0 0
    %3408 = vmatprep.subr.bf16.mxu0 0
    %3409 = vmatpush1.bf16.msra.mxu0 %v3393
    %3410 = vmatprep.subr.bf16.mxu0 0
    %3411 = vmatpush1.bf16.msra.mxu0 %v3392
    %3412 = vmatprep.subr.bf16.mxu0 0
    %3413 = vmatpush2.bf16.msra.mxu0 0
    %3414 = vmatprep.subr.bf16.mxu0 0
    %3415 = vmatpush2.bf16.msra.mxu0 0
    %3416 = vmatprep.subr.bf16.mxu0 0
    %3417 = vmatpush2.bf16.msra.mxu0 0
    %3418 = vmatprep.subr.bf16.mxu0 0
    %3419 = vmatpush2.bf16.msra.mxu0 0
    %3420 = vmatprep.subr.bf16.mxu0 0
    %3421 = vmatpush2.bf16.msra.mxu0 0
    %3422 = vmatprep.subr.bf16.mxu0 0
    %3423 = vmatpush2.bf16.msra.mxu0 0
    %3424 = vmatprep.subr.bf16.mxu0 0
    %3425 = vmatpush2.bf16.msra.mxu0 0
    %3426 = vmatprep.subr.bf16.mxu0 0
    %3427 = vmatpush2.bf16.msra.mxu0 0
    %3428 = vmatprep.mubr.bf16.mxu0 0
    %3429 = vmatmul.mubr.bf16.gmra.mxu0 %v3245
    %v3430 = vpop.f32.mrf.mxu0
    %v3431 = vadd.f32 %v3382, %v3430
    %v3432 = vpop.f32.mrf.mxu0
    %v3433 = vpop.f32.mrf.mxu0
    %v3434 = vadd.f32 %v3382, %v3433
    %v3435 = vpop.f32.mrf.mxu0
    %3436 = vmatprep.mubr.bf16.mxu0 0
    %3437 = vmatmul.mubr.bf16.gmra.mxu0 %v3248
    %v3438 = vpop.f32.mrf.mxu0
    %v3439 = vadd.f32 %v3382, %v3438
    %v3440 = vpop.f32.mrf.mxu0
    %v3441 = vpop.f32.mrf.mxu0
    %v3442 = vpop.f32.mrf.mxu0
    %3443 = vdwg.mxu0
    %v3446 = vrot.slane %v3358, 6
    %v3447 = vrot.slane %v3361, 6
    %v3448 = vsel %vm953, %v3446, %v3447
    %v3451 = vrot.slane %v3358, 4
    %v3452 = vrot.slane %v3361, 4
    %v3453 = vsel %vm509, %v3451, %v3452
    %v3456 = vrot.slane %v3358, 2
    %v3457 = vrot.slane %v3361, 2
    %v3458 = vsel %vm964, %v3456, %v3457
    %v3461 = vsel %vm953, %v3361, %v3446
    %v3462 = vsel %vm509, %v3448, %v3451
    %v3463 = vsel %vm964, %v3453, %v3456
    %v3464 = vmul.f32 %v3358, %v710
    %v3465 = vmul.f32 %v3461, %v711
    %v3466 = vmul.f32 %v3462, %v712
    %v3467 = vmul.f32 %v3463, %v713
    %v3468 = vmul.f32 %v3458, %v714
    %v3469 = vmul.f32 %v3358, %v715
    %v3470 = vmul.f32 %v3461, %v716
    %v3471 = vmul.f32 %v3462, %v717
    %v3472 = vmul.f32 %v3463, %v718
    %v3473 = vmul.f32 %v3458, %v719
    %v3476 = vrot.slane %v3431, 6
    %v3477 = vrot.slane %v3434, 6
    %v3478 = vsel %vm953, %v3476, %v3477
    %v3481 = vrot.slane %v3431, 4
    %v3482 = vrot.slane %v3434, 4
    %v3483 = vsel %vm509, %v3481, %v3482
    %v3486 = vrot.slane %v3431, 2
    %v3487 = vrot.slane %v3434, 2
    %v3488 = vsel %vm964, %v3486, %v3487
    %v3491 = vsel %vm953, %v3434, %v3476
    %v3492 = vsel %vm509, %v3478, %v3481
    %v3493 = vsel %vm964, %v3483, %v3486
    %v3494 = vmul.f32 %v3431, %v710
    %v3495 = vmul.f32 %v3491, %v711
    %v3496 = vmul.f32 %v3492, %v712
    %v3497 = vmul.f32 %v3493, %v713
    %v3498 = vmul.f32 %v3488, %v714
    %v3499 = vmul.f32 %v3431, %v715
    %v3500 = vmul.f32 %v3491, %v716
    %v3501 = vmul.f32 %v3492, %v717
    %v3502 = vmul.f32 %v3493, %v718
    %v3503 = vmul.f32 %v3488, %v719
    %v3505 = vsel %vm450, %v3285, 0
    %v3508 = vsel %vm450, %v3288, 0
    %v3511 = vsel %vm450, %v3464, 0
    %v3514 = vsel %vm450, %v3465, 0
    %v3517 = vsel %vm450, %v3466, 0
    %v3520 = vsel %vm450, %v3467, 0
    %v3523 = vsel %vm450, %v3468, 0
    %v3526 = vsel %vm450, %v3469, 0
    %v3529 = vsel %vm450, %v3470, 0
    %v3532 = vsel %vm450, %v3471, 0
    %v3535 = vsel %vm450, %v3472, 0
    %v3538 = vsel %vm450, %v3473, 0
    %3540 = vmatprep.subr.mxu0 0.0
    %3541 = vmatpush1.xpose.msra.mxu0 0.0
    %3542 = vmatprep.subr.mxu0 0.0
    %3543 = vmatpush1.xpose.msra.mxu0 0.0
    %3544 = vmatprep.subr.mxu0 0.0
    %3545 = vmatpush1.xpose.msra.mxu0 0.0
    %3546 = vmatprep.subr.mxu0 0.0
    %3547 = vmatpush1.xpose.msra.mxu0 0.0
    %3548 = vmatprep.subr.mxu0 0.0
    %3549 = vmatpush1.xpose.msra.mxu0 0.0
    %3550 = vmatprep.subr.mxu0 0.0
    %3551 = vmatpush1.xpose.msra.mxu0 0.0
    %3552 = vmatprep.subr.mxu0 0.0
    %3553 = vmatpush1.xpose.msra.mxu0 %v3538
    %3554 = vmatprep.subr.mxu0 0.0
    %3555 = vmatpush1.xpose.msra.mxu0 %v3535
    %3556 = vmatprep.subr.mxu0 0.0
    %3557 = vmatpush1.xpose.msra.mxu0 %v3532
    %3558 = vmatprep.subr.mxu0 0.0
    %3559 = vmatpush1.xpose.msra.mxu0 %v3529
    %3560 = vmatprep.subr.mxu0 0.0
    %3561 = vmatpush1.xpose.msra.mxu0 %v3526
    %3562 = vmatprep.subr.mxu0 0.0
    %3563 = vmatpush1.xpose.msra.mxu0 %v3523
    %3564 = vmatprep.subr.mxu0 0.0
    %3565 = vmatpush1.xpose.msra.mxu0 %v3520
    %3566 = vmatprep.subr.mxu0 0.0
    %3567 = vmatpush1.xpose.msra.mxu0 %v3517
    %3568 = vmatprep.subr.mxu0 0.0
    %3569 = vmatpush1.xpose.msra.mxu0 %v3514
    %3570 = vmatprep.subr.mxu0 0.0
    %3571 = vmatpush1.xpose.msra.mxu0 %v3511
    %3572 = vmatprep.subr.mxu0 0.0
    %3573 = vmatpush2.xpose.msra.mxu0 0.0
    %3574 = vmatprep.subr.mxu0 0.0
    %3575 = vmatpush2.xpose.msra.mxu0 0.0
    %3576 = vmatprep.subr.mxu0 0.0
    %3577 = vmatpush2.xpose.msra.mxu0 0.0
    %3578 = vmatprep.subr.mxu0 0.0
    %3579 = vmatpush2.xpose.msra.mxu0 0.0
    %3580 = vmatprep.subr.mxu0 0.0
    %3581 = vmatpush2.xpose.msra.mxu0 0.0
    %3582 = vmatprep.subr.mxu0 0.0
    %3583 = vmatpush2.xpose.msra.mxu0 0.0
    %3584 = vmatprep.subr.mxu0 0.0
    %3585 = vmatpush2.xpose.msra.mxu0 0.0
    %3586 = vmatprep.subr.mxu0 0.0
    %3587 = vmatpush2.xpose.msra.mxu0 0.0
    %3588 = vmatprep.subr.mxu0 0.0
    %3589 = vmatpush2.xpose.msra.mxu0 0.0
    %3590 = vmatprep.subr.mxu0 0.0
    %3591 = vmatpush2.xpose.msra.mxu0 0.0
    %3592 = vmatprep.subr.mxu0 0.0
    %3593 = vmatpush2.xpose.msra.mxu0 0.0
    %3594 = vmatprep.subr.mxu0 0.0
    %3595 = vmatpush2.xpose.msra.mxu0 0.0
    %3596 = vmatprep.subr.mxu0 0.0
    %3597 = vmatpush2.xpose.msra.mxu0 0.0
    %3598 = vmatprep.subr.mxu0 0.0
    %3599 = vmatpush2.xpose.msra.mxu0 0.0
    %3600 = vmatprep.subr.mxu0 0.0
    %3601 = vmatpush2.xpose.msra.mxu0 0.0
    %3602 = vmatprep.subr.mxu0 0.0
    %3603 = vmatpush2.xpose.msra.mxu0 0.0
    %3604 = vmatprep.mubr.f32.mxu0 0.0
    %3605 = vmatmul.mubr.f32.gmra.mxu0 %v3505
    %v3606 = vpop.f32.mrf.mxu0
    %v3607 = vadd.f32 0.0, %v3606
    %v3608 = vpop.f32.mrf.mxu0
    %3609 = vmatprep.mubr.f32.mxu0 0.0
    %3610 = vmatmul.mubr.f32.gmra.mxu0 %v3508
    %v3611 = vpop.f32.mrf.mxu0
    %v3612 = vadd.f32 0.0, %v3611
    %v3613 = vpop.f32.mrf.mxu0
    %3614 = vdwg.mxu0
    %v3615 = vsel %vm1124, %v3607, -inf
    %3616 = vmax.xlane.f32.xlu0 %v3615
    %v3617 = vpop.xlane.xlu0 %3616
    %v3618 = vsel %vm1128, %v3612, -inf
    %3619 = vmax.xlane.f32.xlu0 %v3618
    %v3620 = vpop.xlane.xlu0 %3619
    %v3621 = vsub.f32 %v3607, %v3617
    %v3622 = vsub.f32 %v3612, %v3620
    %v3623 = vmul.f32 %v3621, 1.442695
    %v3624 = vpow.pop %v3623
    %v3625 = vmul.f32 %v3622, 1.442695
    %v3626 = vpow.pop %v3625
    %v3628 = vsel %vm1124, %v3624, 0
    %v3631 = vsel %vm1124, %v3626, 0
    %3633 = vmatprep.subr.mxu0 0.0
    %3634 = vmatpush1.msra.mxu0 0.0
    %3635 = vmatprep.subr.mxu0 0.0
    %3636 = vmatpush1.msra.mxu0 0.0
    %3637 = vmatprep.subr.mxu0 0.0
    %3638 = vmatpush1.msra.mxu0 0.0
    %3639 = vmatprep.subr.mxu0 0.0
    %3640 = vmatpush1.msra.mxu0 0.0
    %3641 = vmatprep.subr.mxu0 0.0
    %3642 = vmatpush1.msra.mxu0 0.0
    %3643 = vmatprep.subr.mxu0 0.0
    %3644 = vmatpush1.msra.mxu0 0.0
    %3645 = vmatprep.subr.mxu0 0.0
    %3646 = vmatpush1.msra.mxu0 %v729
    %3647 = vmatprep.subr.mxu0 0.0
    %3648 = vmatpush1.msra.mxu0 %v728
    %3649 = vmatprep.subr.mxu0 0.0
    %3650 = vmatpush1.msra.mxu0 %v727
    %3651 = vmatprep.subr.mxu0 0.0
    %3652 = vmatpush1.msra.mxu0 %v726
    %3653 = vmatprep.subr.mxu0 0.0
    %3654 = vmatpush1.msra.mxu0 %v725
    %3655 = vmatprep.subr.mxu0 0.0
    %3656 = vmatpush1.msra.mxu0 %v724
    %3657 = vmatprep.subr.mxu0 0.0
    %3658 = vmatpush1.msra.mxu0 %v723
    %3659 = vmatprep.subr.mxu0 0.0
    %3660 = vmatpush1.msra.mxu0 %v722
    %3661 = vmatprep.subr.mxu0 0.0
    %3662 = vmatpush1.msra.mxu0 %v721
    %3663 = vmatprep.subr.mxu0 0.0
    %3664 = vmatpush1.msra.mxu0 %v720
    %3665 = vmatprep.subr.mxu0 0.0
    %3666 = vmatpush2.msra.mxu0 0.0
    %3667 = vmatprep.subr.mxu0 0.0
    %3668 = vmatpush2.msra.mxu0 0.0
    %3669 = vmatprep.subr.mxu0 0.0
    %3670 = vmatpush2.msra.mxu0 0.0
    %3671 = vmatprep.subr.mxu0 0.0
    %3672 = vmatpush2.msra.mxu0 0.0
    %3673 = vmatprep.subr.mxu0 0.0
    %3674 = vmatpush2.msra.mxu0 0.0
    %3675 = vmatprep.subr.mxu0 0.0
    %3676 = vmatpush2.msra.mxu0 0.0
    %3677 = vmatprep.subr.mxu0 0.0
    %3678 = vmatpush2.msra.mxu0 0.0
    %3679 = vmatprep.subr.mxu0 0.0
    %3680 = vmatpush2.msra.mxu0 0.0
    %3681 = vmatprep.subr.mxu0 0.0
    %3682 = vmatpush2.msra.mxu0 0.0
    %3683 = vmatprep.subr.mxu0 0.0
    %3684 = vmatpush2.msra.mxu0 0.0
    %3685 = vmatprep.subr.mxu0 0.0
    %3686 = vmatpush2.msra.mxu0 0.0
    %3687 = vmatprep.subr.mxu0 0.0
    %3688 = vmatpush2.msra.mxu0 0.0
    %3689 = vmatprep.subr.mxu0 0.0
    %3690 = vmatpush2.msra.mxu0 0.0
    %3691 = vmatprep.subr.mxu0 0.0
    %3692 = vmatpush2.msra.mxu0 0.0
    %3693 = vmatprep.subr.mxu0 0.0
    %3694 = vmatpush2.msra.mxu0 0.0
    %3695 = vmatprep.subr.mxu0 0.0
    %3696 = vmatpush2.msra.mxu0 0.0
    %3697 = vmatprep.mubr.f32.mxu0 0.0
    %3698 = vmatmul.mubr.f32.gmra.mxu0 %v3628
    %v3699 = vpop.f32.mrf.mxu0
    %v3700 = vadd.f32 0.0, %v3699
    %v3701 = vpop.f32.mrf.mxu0
    %3702 = vmatprep.mubr.f32.mxu0 0.0
    %3703 = vmatmul.mubr.f32.gmra.mxu0 %v3631
    %v3704 = vpop.f32.mrf.mxu0
    %v3705 = vadd.f32 0.0, %v3704
    %v3706 = vpop.f32.mrf.mxu0
    %3707 = vdwg.mxu0
    %v3708 = vmax.f32 %v3700, 1e-30
    %v3709 = vmax.f32 %v3705, 1e-30
    %v3710 = vrcp.pop %v3708
    %v3711 = vrcp.pop %v3709
    %v3712 = vmul.f32 %v3624, %v3710
    %v3713 = vmul.f32 %v3626, %v3711
    %v3715 = vsel %vm1124, %v3712, 0
    %v3718 = vsel %vm1124, %v3713, 0
    %3720 = vmatprep.subr.mxu0 0.0
    %3721 = vmatpush1.msra.mxu0 0.0
    %3722 = vmatprep.subr.mxu0 0.0
    %3723 = vmatpush1.msra.mxu0 0.0
    %3724 = vmatprep.subr.mxu0 0.0
    %3725 = vmatpush1.msra.mxu0 0.0
    %3726 = vmatprep.subr.mxu0 0.0
    %3727 = vmatpush1.msra.mxu0 0.0
    %3728 = vmatprep.subr.mxu0 0.0
    %3729 = vmatpush1.msra.mxu0 0.0
    %3730 = vmatprep.subr.mxu0 0.0
    %3731 = vmatpush1.msra.mxu0 0.0
    %3732 = vmatprep.subr.mxu0 0.0
    %3733 = vmatpush1.msra.mxu0 %v3503
    %3734 = vmatprep.subr.mxu0 0.0
    %3735 = vmatpush1.msra.mxu0 %v3502
    %3736 = vmatprep.subr.mxu0 0.0
    %3737 = vmatpush1.msra.mxu0 %v3501
    %3738 = vmatprep.subr.mxu0 0.0
    %3739 = vmatpush1.msra.mxu0 %v3500
    %3740 = vmatprep.subr.mxu0 0.0
    %3741 = vmatpush1.msra.mxu0 %v3499
    %3742 = vmatprep.subr.mxu0 0.0
    %3743 = vmatpush1.msra.mxu0 %v3498
    %3744 = vmatprep.subr.mxu0 0.0
    %3745 = vmatpush1.msra.mxu0 %v3497
    %3746 = vmatprep.subr.mxu0 0.0
    %3747 = vmatpush1.msra.mxu0 %v3496
    %3748 = vmatprep.subr.mxu0 0.0
    %3749 = vmatpush1.msra.mxu0 %v3495
    %3750 = vmatprep.subr.mxu0 0.0
    %3751 = vmatpush1.msra.mxu0 %v3494
    %3752 = vmatprep.subr.mxu0 0.0
    %3753 = vmatpush2.msra.mxu0 0.0
    %3754 = vmatprep.subr.mxu0 0.0
    %3755 = vmatpush2.msra.mxu0 0.0
    %3756 = vmatprep.subr.mxu0 0.0
    %3757 = vmatpush2.msra.mxu0 0.0
    %3758 = vmatprep.subr.mxu0 0.0
    %3759 = vmatpush2.msra.mxu0 0.0
    %3760 = vmatprep.subr.mxu0 0.0
    %3761 = vmatpush2.msra.mxu0 0.0
    %3762 = vmatprep.subr.mxu0 0.0
    %3763 = vmatpush2.msra.mxu0 0.0
    %3764 = vmatprep.subr.mxu0 0.0
    %3765 = vmatpush2.msra.mxu0 0.0
    %3766 = vmatprep.subr.mxu0 0.0
    %3767 = vmatpush2.msra.mxu0 0.0
    %3768 = vmatprep.subr.mxu0 0.0
    %3769 = vmatpush2.msra.mxu0 0.0
    %3770 = vmatprep.subr.mxu0 0.0
    %3771 = vmatpush2.msra.mxu0 0.0
    %3772 = vmatprep.subr.mxu0 0.0
    %3773 = vmatpush2.msra.mxu0 0.0
    %3774 = vmatprep.subr.mxu0 0.0
    %3775 = vmatpush2.msra.mxu0 0.0
    %3776 = vmatprep.subr.mxu0 0.0
    %3777 = vmatpush2.msra.mxu0 0.0
    %3778 = vmatprep.subr.mxu0 0.0
    %3779 = vmatpush2.msra.mxu0 0.0
    %3780 = vmatprep.subr.mxu0 0.0
    %3781 = vmatpush2.msra.mxu0 0.0
    %3782 = vmatprep.subr.mxu0 0.0
    %3783 = vmatpush2.msra.mxu0 0.0
    %3784 = vmatprep.mubr.f32.mxu0 0.0
    %3785 = vmatmul.mubr.f32.gmra.mxu0 %v3715
    %v3786 = vpop.f32.mrf.mxu0
    %v3787 = vadd.f32 0.0, %v3786
    %v3788 = vpop.f32.mrf.mxu0
    %3789 = vmatprep.mubr.f32.mxu0 0.0
    %3790 = vmatmul.mubr.f32.gmra.mxu0 %v3718
    %v3791 = vpop.f32.mrf.mxu0
    %v3792 = vadd.f32 0.0, %v3791
    %v3793 = vpop.f32.mrf.mxu0
    %3794 = vdwg.mxu0
    %3795 = vst.msk [vmem:[#allocation3] sm:$0xff] %vm450, %v3787
    %3796 = vst.msk [vmem:[#allocation3 + $0x8] sm:$0x3] %vm585, %v3792
    %v3798 = vrot.slane %v3366, 2
    %v3799 = vsel %vm964, %v3457, %v3798
    %v3802 = vrot.slane %v3366, 6
    %v3803 = vsel %vm953, %v3447, %v3802
    %v3806 = vrot.slane %v3366, 4
    %v3807 = vsel %vm509, %v3452, %v3806
    %v3810 = vsel %vm953, %v3798, %v3361
    %v3811 = vsel %vm509, %v3366, %v3447
    %v3812 = vsel %vm964, %v3803, %v3452
    %v3813 = vmul.f32 %v3799, %v710
    %v3814 = vmul.f32 %v3810, %v711
    %v3815 = vmul.f32 %v3811, %v712
    %v3816 = vmul.f32 %v3812, %v713
    %v3817 = vmul.f32 %v3807, %v714
    %v3818 = vmul.f32 %v3799, %v715
    %v3819 = vmul.f32 %v3810, %v716
    %v3820 = vmul.f32 %v3811, %v717
    %v3821 = vmul.f32 %v3812, %v718
    %v3822 = vmul.f32 %v3807, %v719
    %v3824 = vrot.slane %v3439, 2
    %v3825 = vsel %vm964, %v3487, %v3824
    %v3828 = vrot.slane %v3439, 6
    %v3829 = vsel %vm953, %v3477, %v3828
    %v3832 = vrot.slane %v3439, 4
    %v3833 = vsel %vm509, %v3482, %v3832
    %v3836 = vsel %vm953, %v3824, %v3434
    %v3837 = vsel %vm509, %v3439, %v3477
    %v3838 = vsel %vm964, %v3829, %v3482
    %v3839 = vmul.f32 %v3825, %v710
    %v3840 = vmul.f32 %v3836, %v711
    %v3841 = vmul.f32 %v3837, %v712
    %v3842 = vmul.f32 %v3838, %v713
    %v3843 = vmul.f32 %v3833, %v714
    %v3844 = vmul.f32 %v3825, %v715
    %v3845 = vmul.f32 %v3836, %v716
    %v3846 = vmul.f32 %v3837, %v717
    %v3847 = vmul.f32 %v3838, %v718
    %v3848 = vmul.f32 %v3833, %v719
    %v3850 = vrot.slane %v3288, 2
    %v3851 = vrot.slane %v3293, 2
    %v3852 = vsel %vm964, %v3850, %v3851
    %v3853 = vsel %vm450, %v3852, 0
    %v3855 = vsel %vm450, %v3851, 0
    %v3858 = vsel %vm450, %v3813, 0
    %v3861 = vsel %vm450, %v3814, 0
    %v3864 = vsel %vm450, %v3815, 0
    %v3867 = vsel %vm450, %v3816, 0
    %v3870 = vsel %vm450, %v3817, 0
    %v3873 = vsel %vm450, %v3818, 0
    %v3876 = vsel %vm450, %v3819, 0
    %v3879 = vsel %vm450, %v3820, 0
    %v3882 = vsel %vm450, %v3821, 0
    %v3885 = vsel %vm450, %v3822, 0
    %3887 = vmatprep.subr.mxu0 0.0
    %3888 = vmatpush1.xpose.msra.mxu0 0.0
    %3889 = vmatprep.subr.mxu0 0.0
    %3890 = vmatpush1.xpose.msra.mxu0 0.0
    %3891 = vmatprep.subr.mxu0 0.0
    %3892 = vmatpush1.xpose.msra.mxu0 0.0
    %3893 = vmatprep.subr.mxu0 0.0
    %3894 = vmatpush1.xpose.msra.mxu0 0.0
    %3895 = vmatprep.subr.mxu0 0.0
    %3896 = vmatpush1.xpose.msra.mxu0 0.0
    %3897 = vmatprep.subr.mxu0 0.0
    %3898 = vmatpush1.xpose.msra.mxu0 0.0
    %3899 = vmatprep.subr.mxu0 0.0
    %3900 = vmatpush1.xpose.msra.mxu0 %v3885
    %3901 = vmatprep.subr.mxu0 0.0
    %3902 = vmatpush1.xpose.msra.mxu0 %v3882
    %3903 = vmatprep.subr.mxu0 0.0
    %3904 = vmatpush1.xpose.msra.mxu0 %v3879
    %3905 = vmatprep.subr.mxu0 0.0
    %3906 = vmatpush1.xpose.msra.mxu0 %v3876
    %3907 = vmatprep.subr.mxu0 0.0
    %3908 = vmatpush1.xpose.msra.mxu0 %v3873
    %3909 = vmatprep.subr.mxu0 0.0
    %3910 = vmatpush1.xpose.msra.mxu0 %v3870
    %3911 = vmatprep.subr.mxu0 0.0
    %3912 = vmatpush1.xpose.msra.mxu0 %v3867
    %3913 = vmatprep.subr.mxu0 0.0
    %3914 = vmatpush1.xpose.msra.mxu0 %v3864
    %3915 = vmatprep.subr.mxu0 0.0
    %3916 = vmatpush1.xpose.msra.mxu0 %v3861
    %3917 = vmatprep.subr.mxu0 0.0
    %3918 = vmatpush1.xpose.msra.mxu0 %v3858
    %3919 = vmatprep.subr.mxu0 0.0
    %3920 = vmatpush2.xpose.msra.mxu0 0.0
    %3921 = vmatprep.subr.mxu0 0.0
    %3922 = vmatpush2.xpose.msra.mxu0 0.0
    %3923 = vmatprep.subr.mxu0 0.0
    %3924 = vmatpush2.xpose.msra.mxu0 0.0
    %3925 = vmatprep.subr.mxu0 0.0
    %3926 = vmatpush2.xpose.msra.mxu0 0.0
    %3927 = vmatprep.subr.mxu0 0.0
    %3928 = vmatpush2.xpose.msra.mxu0 0.0
    %3929 = vmatprep.subr.mxu0 0.0
    %3930 = vmatpush2.xpose.msra.mxu0 0.0
    %3931 = vmatprep.subr.mxu0 0.0
    %3932 = vmatpush2.xpose.msra.mxu0 0.0
    %3933 = vmatprep.subr.mxu0 0.0
    %3934 = vmatpush2.xpose.msra.mxu0 0.0
    %3935 = vmatprep.subr.mxu0 0.0
    %3936 = vmatpush2.xpose.msra.mxu0 0.0
    %3937 = vmatprep.subr.mxu0 0.0
    %3938 = vmatpush2.xpose.msra.mxu0 0.0
    %3939 = vmatprep.subr.mxu0 0.0
    %3940 = vmatpush2.xpose.msra.mxu0 0.0
    %3941 = vmatprep.subr.mxu0 0.0
    %3942 = vmatpush2.xpose.msra.mxu0 0.0
    %3943 = vmatprep.subr.mxu0 0.0
    %3944 = vmatpush2.xpose.msra.mxu0 0.0
    %3945 = vmatprep.subr.mxu0 0.0
    %3946 = vmatpush2.xpose.msra.mxu0 0.0
    %3947 = vmatprep.subr.mxu0 0.0
    %3948 = vmatpush2.xpose.msra.mxu0 0.0
    %3949 = vmatprep.subr.mxu0 0.0
    %3950 = vmatpush2.xpose.msra.mxu0 0.0
    %3951 = vmatprep.mubr.f32.mxu0 0.0
    %3952 = vmatmul.mubr.f32.gmra.mxu0 %v3853
    %v3953 = vpop.f32.mrf.mxu0
    %v3954 = vadd.f32 0.0, %v3953
    %v3955 = vpop.f32.mrf.mxu0
    %3956 = vmatprep.mubr.f32.mxu0 0.0
    %3957 = vmatmul.mubr.f32.gmra.mxu0 %v3855
    %v3958 = vpop.f32.mrf.mxu0
    %v3959 = vadd.f32 0.0, %v3958
    %v3960 = vpop.f32.mrf.mxu0
    %3961 = vdwg.mxu0
    %v3962 = vsel %vm1124, %v3954, -inf
    %3963 = vmax.xlane.f32.xlu0 %v3962
    %v3964 = vpop.xlane.xlu0 %3963
    %v3965 = vsel %vm1128, %v3959, -inf
    %3966 = vmax.xlane.f32.xlu0 %v3965
    %v3967 = vpop.xlane.xlu0 %3966
    %v3968 = vsub.f32 %v3954, %v3964
    %v3969 = vsub.f32 %v3959, %v3967
    %v3970 = vmul.f32 %v3968, 1.442695
    %v3971 = vpow.pop %v3970
    %v3972 = vmul.f32 %v3969, 1.442695
    %v3973 = vpow.pop %v3972
    %v3975 = vsel %vm1124, %v3971, 0
    %v3978 = vsel %vm1124, %v3973, 0
    %3980 = vmatprep.subr.mxu0 0.0
    %3981 = vmatpush1.msra.mxu0 0.0
    %3982 = vmatprep.subr.mxu0 0.0
    %3983 = vmatpush1.msra.mxu0 0.0
    %3984 = vmatprep.subr.mxu0 0.0
    %3985 = vmatpush1.msra.mxu0 0.0
    %3986 = vmatprep.subr.mxu0 0.0
    %3987 = vmatpush1.msra.mxu0 0.0
    %3988 = vmatprep.subr.mxu0 0.0
    %3989 = vmatpush1.msra.mxu0 0.0
    %3990 = vmatprep.subr.mxu0 0.0
    %3991 = vmatpush1.msra.mxu0 0.0
    %3992 = vmatprep.subr.mxu0 0.0
    %3993 = vmatpush1.msra.mxu0 %v729
    %3994 = vmatprep.subr.mxu0 0.0
    %3995 = vmatpush1.msra.mxu0 %v728
    %3996 = vmatprep.subr.mxu0 0.0
    %3997 = vmatpush1.msra.mxu0 %v727
    %3998 = vmatprep.subr.mxu0 0.0
    %3999 = vmatpush1.msra.mxu0 %v726
    %4000 = vmatprep.subr.mxu0 0.0
    %4001 = vmatpush1.msra.mxu0 %v725
    %4002 = vmatprep.subr.mxu0 0.0
    %4003 = vmatpush1.msra.mxu0 %v724
    %4004 = vmatprep.subr.mxu0 0.0
    %4005 = vmatpush1.msra.mxu0 %v723
    %4006 = vmatprep.subr.mxu0 0.0
    %4007 = vmatpush1.msra.mxu0 %v722
    %4008 = vmatprep.subr.mxu0 0.0
    %4009 = vmatpush1.msra.mxu0 %v721
    %4010 = vmatprep.subr.mxu0 0.0
    %4011 = vmatpush1.msra.mxu0 %v720
    %4012 = vmatprep.subr.mxu0 0.0
    %4013 = vmatpush2.msra.mxu0 0.0
    %4014 = vmatprep.subr.mxu0 0.0
    %4015 = vmatpush2.msra.mxu0 0.0
    %4016 = vmatprep.subr.mxu0 0.0
    %4017 = vmatpush2.msra.mxu0 0.0
    %4018 = vmatprep.subr.mxu0 0.0
    %4019 = vmatpush2.msra.mxu0 0.0
    %4020 = vmatprep.subr.mxu0 0.0
    %4021 = vmatpush2.msra.mxu0 0.0
    %4022 = vmatprep.subr.mxu0 0.0
    %4023 = vmatpush2.msra.mxu0 0.0
    %4024 = vmatprep.subr.mxu0 0.0
    %4025 = vmatpush2.msra.mxu0 0.0
    %4026 = vmatprep.subr.mxu0 0.0
    %4027 = vmatpush2.msra.mxu0 0.0
    %4028 = vmatprep.subr.mxu0 0.0
    %4029 = vmatpush2.msra.mxu0 0.0
    %4030 = vmatprep.subr.mxu0 0.0
    %4031 = vmatpush2.msra.mxu0 0.0
    %4032 = vmatprep.subr.mxu0 0.0
    %4033 = vmatpush2.msra.mxu0 0.0
    %4034 = vmatprep.subr.mxu0 0.0
    %4035 = vmatpush2.msra.mxu0 0.0
    %4036 = vmatprep.subr.mxu0 0.0
    %4037 = vmatpush2.msra.mxu0 0.0
    %4038 = vmatprep.subr.mxu0 0.0
    %4039 = vmatpush2.msra.mxu0 0.0
    %4040 = vmatprep.subr.mxu0 0.0
    %4041 = vmatpush2.msra.mxu0 0.0
    %4042 = vmatprep.subr.mxu0 0.0
    %4043 = vmatpush2.msra.mxu0 0.0
    %4044 = vmatprep.mubr.f32.mxu0 0.0
    %4045 = vmatmul.mubr.f32.gmra.mxu0 %v3975
    %v4046 = vpop.f32.mrf.mxu0
    %v4047 = vadd.f32 0.0, %v4046
    %v4048 = vpop.f32.mrf.mxu0
    %4049 = vmatprep.mubr.f32.mxu0 0.0
    %4050 = vmatmul.mubr.f32.gmra.mxu0 %v3978
    %v4051 = vpop.f32.mrf.mxu0
    %v4052 = vadd.f32 0.0, %v4051
    %v4053 = vpop.f32.mrf.mxu0
    %4054 = vdwg.mxu0
    %v4055 = vmax.f32 %v4047, 1e-30
    %v4056 = vmax.f32 %v4052, 1e-30
    %v4057 = vrcp.pop %v4055
    %v4058 = vrcp.pop %v4056
    %v4059 = vmul.f32 %v3971, %v4057
    %v4060 = vmul.f32 %v3973, %v4058
    %v4062 = vsel %vm1124, %v4059, 0
    %v4065 = vsel %vm1124, %v4060, 0
    %4067 = vmatprep.subr.mxu0 0.0
    %4068 = vmatpush1.msra.mxu0 0.0
    %4069 = vmatprep.subr.mxu0 0.0
    %4070 = vmatpush1.msra.mxu0 0.0
    %4071 = vmatprep.subr.mxu0 0.0
    %4072 = vmatpush1.msra.mxu0 0.0
    %4073 = vmatprep.subr.mxu0 0.0
    %4074 = vmatpush1.msra.mxu0 0.0
    %4075 = vmatprep.subr.mxu0 0.0
    %4076 = vmatpush1.msra.mxu0 0.0
    %4077 = vmatprep.subr.mxu0 0.0
    %4078 = vmatpush1.msra.mxu0 0.0
    %4079 = vmatprep.subr.mxu0 0.0
    %4080 = vmatpush1.msra.mxu0 %v3848
    %4081 = vmatprep.subr.mxu0 0.0
    %4082 = vmatpush1.msra.mxu0 %v3847
    %4083 = vmatprep.subr.mxu0 0.0
    %4084 = vmatpush1.msra.mxu0 %v3846
    %4085 = vmatprep.subr.mxu0 0.0
    %4086 = vmatpush1.msra.mxu0 %v3845
    %4087 = vmatprep.subr.mxu0 0.0
    %4088 = vmatpush1.msra.mxu0 %v3844
    %4089 = vmatprep.subr.mxu0 0.0
    %4090 = vmatpush1.msra.mxu0 %v3843
    %4091 = vmatprep.subr.mxu0 0.0
    %4092 = vmatpush1.msra.mxu0 %v3842
    %4093 = vmatprep.subr.mxu0 0.0
    %4094 = vmatpush1.msra.mxu0 %v3841
    %4095 = vmatprep.subr.mxu0 0.0
    %4096 = vmatpush1.msra.mxu0 %v3840
    %4097 = vmatprep.subr.mxu0 0.0
    %4098 = vmatpush1.msra.mxu0 %v3839
    %4099 = vmatprep.subr.mxu0 0.0
    %4100 = vmatpush2.msra.mxu0 0.0
    %4101 = vmatprep.subr.mxu0 0.0
    %4102 = vmatpush2.msra.mxu0 0.0
    %4103 = vmatprep.subr.mxu0 0.0
    %4104 = vmatpush2.msra.mxu0 0.0
    %4105 = vmatprep.subr.mxu0 0.0
    %4106 = vmatpush2.msra.mxu0 0.0
    %4107 = vmatprep.subr.mxu0 0.0
    %4108 = vmatpush2.msra.mxu0 0.0
    %4109 = vmatprep.subr.mxu0 0.0
    %4110 = vmatpush2.msra.mxu0 0.0
    %4111 = vmatprep.subr.mxu0 0.0
    %4112 = vmatpush2.msra.mxu0 0.0
    %4113 = vmatprep.subr.mxu0 0.0
    %4114 = vmatpush2.msra.mxu0 0.0
    %4115 = vmatprep.subr.mxu0 0.0
    %4116 = vmatpush2.msra.mxu0 0.0
    %4117 = vmatprep.subr.mxu0 0.0
    %4118 = vmatpush2.msra.mxu0 0.0
    %4119 = vmatprep.subr.mxu0 0.0
    %4120 = vmatpush2.msra.mxu0 0.0
    %4121 = vmatprep.subr.mxu0 0.0
    %4122 = vmatpush2.msra.mxu0 0.0
    %4123 = vmatprep.subr.mxu0 0.0
    %4124 = vmatpush2.msra.mxu0 0.0
    %4125 = vmatprep.subr.mxu0 0.0
    %4126 = vmatpush2.msra.mxu0 0.0
    %4127 = vmatprep.subr.mxu0 0.0
    %4128 = vmatpush2.msra.mxu0 0.0
    %4129 = vmatprep.subr.mxu0 0.0
    %4130 = vmatpush2.msra.mxu0 0.0
    %4131 = vmatprep.mubr.f32.mxu0 0.0
    %4132 = vmatmul.mubr.f32.gmra.mxu0 %v4062
    %v4133 = vpop.f32.mrf.mxu0
    %v4134 = vadd.f32 0.0, %v4133
    %v4135 = vpop.f32.mrf.mxu0
    %4136 = vmatprep.mubr.f32.mxu0 0.0
    %4137 = vmatmul.mubr.f32.gmra.mxu0 %v4065
    %v4138 = vpop.f32.mrf.mxu0
    %v4139 = vadd.f32 0.0, %v4138
    %v4140 = vpop.f32.mrf.mxu0
    %4141 = vdwg.mxu0
    %4142 = vst.msk [vmem:[#allocation3 + $0xa] sm:$0xff] %vm450, %v4134
    %4143 = vst.msk [vmem:[#allocation3 + $0x12] sm:$0x3] %vm585, %v4139
    %v4144 = vld [vmem:[#allocation3] sm:$0xff]
    %v4145 = vld [vmem:[#allocation3 + $0x8] sm:$0xff]
    %v4146 = vld [vmem:[#allocation3 + $0x10] sm:$0xf]
    %v4147 = vpack.c.bf16 %v4145, %v4144
    %v4148 = vpack.c.bf16 %v4146, %v4146
    %s4149 = scalar_lea.vmem [#allocation26], 16
    %v4150 = vld [vmem:[%s4149] sm:$0xf]
    %v4151 = vld [vmem:[%s4149 + $0x4] sm:$0xf]
    %v4152 = vld [vmem:[%s4149 + $0x8] sm:$0xf]
    %v4153 = vld [vmem:[%s4149 + $0xc] sm:$0xf]
    %s4154 = scalar_lea.vmem %s45, 1
    %v4155 = vld [vmem:[%s4154] sm:$0x1]
    %v4157 = vlaneseq
    %v4158 = vshrl.u32 %v4157, 7
    %v4159 = vsub.s32 0, %v4158
    %v4160 = vrot.slane %v4155, %v4159
    %v4166 = vunpack.c.l.b16 %v4150
    %v4167 = vunpack.c.l.b16 %v4151
    %v4168 = vunpack.c.l.b16 %v4152
    %v4169 = vunpack.c.l.b16 %v4153
    %v4170 = vpack.c.b16 %v4167, %v4166
    %v4171 = vpack.c.b16 %v4169, %v4168
    %v4175 = vsel %vm450, %v4147, 0
    %v4178 = vsel %vm450, %v4148, 0
    %4180 = vmatprep.subr.bf16.mxu0 0
    %4181 = vmatpush1.bf16.msra.mxu0 0
    %4182 = vmatprep.subr.bf16.mxu0 0
    %4183 = vmatpush1.bf16.msra.mxu0 0
    %4184 = vmatprep.subr.bf16.mxu0 0
    %4185 = vmatpush1.bf16.msra.mxu0 0
    %4186 = vmatprep.subr.bf16.mxu0 0
    %4187 = vmatpush1.bf16.msra.mxu0 0
    %4188 = vmatprep.subr.bf16.mxu0 0
    %4189 = vmatpush1.bf16.msra.mxu0 0
    %4190 = vmatprep.subr.bf16.mxu0 0
    %4191 = vmatpush1.bf16.msra.mxu0 0
    %4192 = vmatprep.subr.bf16.mxu0 0
    %4193 = vmatpush1.bf16.msra.mxu0 %v4171
    %4194 = vmatprep.subr.bf16.mxu0 0
    %4195 = vmatpush1.bf16.msra.mxu0 %v4170
    %4196 = vmatprep.subr.bf16.mxu0 0
    %4197 = vmatpush2.bf16.msra.mxu0 0
    %4198 = vmatprep.subr.bf16.mxu0 0
    %4199 = vmatpush2.bf16.msra.mxu0 0
    %4200 = vmatprep.subr.bf16.mxu0 0
    %4201 = vmatpush2.bf16.msra.mxu0 0
    %4202 = vmatprep.subr.bf16.mxu0 0
    %4203 = vmatpush2.bf16.msra.mxu0 0
    %4204 = vmatprep.subr.bf16.mxu0 0
    %4205 = vmatpush2.bf16.msra.mxu0 0
    %4206 = vmatprep.subr.bf16.mxu0 0
    %4207 = vmatpush2.bf16.msra.mxu0 0
    %4208 = vmatprep.subr.bf16.mxu0 0
    %4209 = vmatpush2.bf16.msra.mxu0 0
    %4210 = vmatprep.subr.bf16.mxu0 0
    %4211 = vmatpush2.bf16.msra.mxu0 0
    %4212 = vmatprep.mubr.bf16.mxu0 0
    %4213 = vmatmul.mubr.bf16.gmra.mxu0 %v4175
    %v4214 = vpop.f32.mrf.mxu0
    %v4215 = vadd.f32 %v4160, %v4214
    %v4216 = vpop.f32.mrf.mxu0
    %v4217 = vpop.f32.mrf.mxu0
    %v4218 = vadd.f32 %v4160, %v4217
    %v4219 = vpop.f32.mrf.mxu0
    %4220 = vmatprep.mubr.bf16.mxu0 0
    %4221 = vmatmul.mubr.bf16.gmra.mxu0 %v4178
    %v4222 = vpop.f32.mrf.mxu0
    %v4223 = vadd.f32 %v4160, %v4222
    %v4224 = vpop.f32.mrf.mxu0
    %v4225 = vpop.f32.mrf.mxu0
    %v4226 = vpop.f32.mrf.mxu0
    %4227 = vdwg.mxu0
    %v4228 = vadd.f32 %v3214, %v4215
    %v4229 = vadd.f32 %v3215, %v4218
    %v4230 = vadd.f32 %v3216, %v4223
    %s4231 = scalar_lea.vmem %s47, 1
    %v4232 = vld [vmem:[%s4231] sm:$0x1]
    %s4233 = scalar_lea.vmem %s49, 1
    %v4234 = vld [vmem:[%s4233] sm:$0x1]
    %v4235 = vsel %vm450, %v4228, 0.0
    %4236 = vadd.xlane.f32.xlu0 %v4235
    %v4237 = vpop.xlane.xlu0 %4236
    %v4238 = vsel %vm450, %v4229, 0.0
    %4239 = vadd.xlane.f32.xlu0 %v4238
    %v4240 = vpop.xlane.xlu0 %4239
    %v4241 = vsel %vm1748, %v4230, 0.0
    %4242 = vadd.xlane.f32.xlu0 %v4241
    %v4243 = vpop.xlane.xlu0 %4242
    %v4244 = vmul.f32 %v4237, %v457
    %v4245 = vmul.f32 %v4240, %v457
    %v4246 = vmul.f32 %v4243, %v457
    %v4247 = vsub.f32 %v4228, %v4244
    %v4248 = vsub.f32 %v4229, %v4245
    %v4249 = vsub.f32 %v4230, %v4246
    %v4250 = vmul.f32 %v4247, %v4247
    %v4251 = vmul.f32 %v4248, %v4248
    %v4252 = vmul.f32 %v4249, %v4249
    %v4253 = vsel %vm450, %v4250, 0.0
    %4254 = vadd.xlane.f32.xlu0 %v4253
    %v4255 = vpop.xlane.xlu0 %4254
    %v4256 = vsel %vm450, %v4251, 0.0
    %4257 = vadd.xlane.f32.xlu0 %v4256
    %v4258 = vpop.xlane.xlu0 %4257
    %v4259 = vsel %vm1748, %v4252, 0.0
    %4260 = vadd.xlane.f32.xlu0 %v4259
    %v4261 = vpop.xlane.xlu0 %4260
    %v4262 = vmul.f32 %v4255, %v457
    %v4263 = vmul.f32 %v4258, %v457
    %v4264 = vmul.f32 %v4261, %v457
    %v4265 = vadd.f32 %v4262, 1e-05
    %v4266 = vadd.f32 %v4263, 1e-05
    %v4267 = vadd.f32 %v4264, 1e-05
    %v4268 = vrsqrt.pop %v4265
    %v4269 = vrsqrt.pop %v4266
    %v4270 = vrsqrt.pop %v4267
    %v4271 = vmul.f32 %v4247, %v4268
    %v4272 = vmul.f32 %v4248, %v4269
    %v4273 = vmul.f32 %v4249, %v4270
    %v4275 = vlaneseq
    %v4276 = vshrl.u32 %v4275, 7
    %v4277 = vsub.s32 0, %v4276
    %v4278 = vrot.slane %v4232, %v4277
    %v4280 = vmul.f32 %v4271, %v4278
    %v4281 = vmul.f32 %v4272, %v4278
    %v4282 = vmul.f32 %v4273, %v4278
    %v4284 = vlaneseq
    %v4285 = vshrl.u32 %v4284, 7
    %v4286 = vsub.s32 0, %v4285
    %v4287 = vrot.slane %v4234, %v4286
    %v4289 = vadd.f32 %v4280, %v4287
    %v4290 = vadd.f32 %v4281, %v4287
    %v4291 = vadd.f32 %v4282, %v4287
    %v4292 = vpack.c.bf16 %v4290, %v4289
    %v4293 = vpack.c.bf16 %v4291, %v4291
    %s4294 = scalar_lea.vmem [#allocation28], 256
    %v4295 = vld [vmem:[%s4294] sm:$0xff]
    %v4296 = vld [vmem:[%s4294 + $0x8] sm:$0xff]
    %v4297 = vld [vmem:[%s4294 + $0x10] sm:$0xff]
    %v4298 = vld [vmem:[%s4294 + $0x18] sm:$0xff]
    %v4299 = vld [vmem:[%s4294 + $0x20] sm:$0xff]
    %v4300 = vld [vmem:[%s4294 + $0x28] sm:$0xff]
    %v4301 = vld [vmem:[%s4294 + $0x30] sm:$0xff]
    %v4302 = vld [vmem:[%s4294 + $0x38] sm:$0xff]
    %v4303 = vld [vmem:[%s4294 + $0x40] sm:$0xff]
    %v4304 = vld [vmem:[%s4294 + $0x48] sm:$0xff]
    %v4305 = vld [vmem:[%s4294 + $0x50] sm:$0xff]
    %v4306 = vld [vmem:[%s4294 + $0x58] sm:$0xff]
    %v4307 = vld [vmem:[%s4294 + $0x60] sm:$0xff]
    %v4308 = vld [vmem:[%s4294 + $0x68] sm:$0xff]
    %v4309 = vld [vmem:[%s4294 + $0x70] sm:$0xff]
    %v4310 = vld [vmem:[%s4294 + $0x78] sm:$0xff]
    %v4311 = vld [vmem:[%s4294 + $0x80] sm:$0xff]
    %v4312 = vld [vmem:[%s4294 + $0x88] sm:$0xff]
    %v4313 = vld [vmem:[%s4294 + $0x90] sm:$0xff]
    %v4314 = vld [vmem:[%s4294 + $0x98] sm:$0xff]
    %v4315 = vld [vmem:[%s4294 + $0xa0] sm:$0xff]
    %v4316 = vld [vmem:[%s4294 + $0xa8] sm:$0xff]
    %v4317 = vld [vmem:[%s4294 + $0xb0] sm:$0xff]
    %v4318 = vld [vmem:[%s4294 + $0xb8] sm:$0xff]
    %v4319 = vld [vmem:[%s4294 + $0xc0] sm:$0xff]
    %v4320 = vld [vmem:[%s4294 + $0xc8] sm:$0xff]
    %v4321 = vld [vmem:[%s4294 + $0xd0] sm:$0xff]
    %v4322 = vld [vmem:[%s4294 + $0xd8] sm:$0xff]
    %v4323 = vld [vmem:[%s4294 + $0xe0] sm:$0xff]
    %v4324 = vld [vmem:[%s4294 + $0xe8] sm:$0xff]
    %v4325 = vld [vmem:[%s4294 + $0xf0] sm:$0xff]
    %v4326 = vld [vmem:[%s4294 + $0xf8] sm:$0xff]
    %s4327 = scalar_lea.vmem [#allocation29], 16
    %v4328 = vld [vmem:[%s4327] sm:$0xff]
    %v4329 = vld [vmem:[%s4327 + $0x8] sm:$0xff]
    %v4332 = vlaneseq
    %v4333 = vshrl.u32 %v4332, 7
    %v4334 = vsub.s32 0, %v4333
    %v4335 = vrot.slane %v4328, %v4334
    %v4336 = vlaneseq
    %v4337 = vshrl.u32 %v4336, 7
    %v4338 = vsub.s32 1, %v4337
    %v4339 = vrot.slane %v4328, %v4338
    %v4340 = vlaneseq
    %v4341 = vshrl.u32 %v4340, 7
    %v4342 = vsub.s32 2, %v4341
    %v4343 = vrot.slane %v4328, %v4342
    %v4344 = vlaneseq
    %v4345 = vshrl.u32 %v4344, 7
    %v4346 = vsub.s32 3, %v4345
    %v4347 = vrot.slane %v4328, %v4346
    %v4348 = vlaneseq
    %v4349 = vshrl.u32 %v4348, 7
    %v4350 = vsub.s32 4, %v4349
    %v4351 = vrot.slane %v4328, %v4350
    %v4352 = vlaneseq
    %v4353 = vshrl.u32 %v4352, 7
    %v4354 = vsub.s32 5, %v4353
    %v4355 = vrot.slane %v4328, %v4354
    %v4356 = vlaneseq
    %v4357 = vshrl.u32 %v4356, 7
    %v4358 = vsub.s32 6, %v4357
    %v4359 = vrot.slane %v4328, %v4358
    %v4360 = vlaneseq
    %v4361 = vshrl.u32 %v4360, 7
    %v4362 = vsub.s32 7, %v4361
    %v4363 = vrot.slane %v4328, %v4362
    %v4364 = vlaneseq
    %v4365 = vshrl.u32 %v4364, 7
    %v4366 = vsub.s32 0, %v4365
    %v4367 = vrot.slane %v4329, %v4366
    %v4368 = vlaneseq
    %v4369 = vshrl.u32 %v4368, 7
    %v4370 = vsub.s32 1, %v4369
    %v4371 = vrot.slane %v4329, %v4370
    %v4372 = vlaneseq
    %v4373 = vshrl.u32 %v4372, 7
    %v4374 = vsub.s32 2, %v4373
    %v4375 = vrot.slane %v4329, %v4374
    %v4376 = vlaneseq
    %v4377 = vshrl.u32 %v4376, 7
    %v4378 = vsub.s32 3, %v4377
    %v4379 = vrot.slane %v4329, %v4378
    %v4380 = vlaneseq
    %v4381 = vshrl.u32 %v4380, 7
    %v4382 = vsub.s32 4, %v4381
    %v4383 = vrot.slane %v4329, %v4382
    %v4384 = vlaneseq
    %v4385 = vshrl.u32 %v4384, 7
    %v4386 = vsub.s32 5, %v4385
    %v4387 = vrot.slane %v4329, %v4386
    %v4388 = vlaneseq
    %v4389 = vshrl.u32 %v4388, 7
    %v4390 = vsub.s32 6, %v4389
    %v4391 = vrot.slane %v4329, %v4390
    %v4392 = vlaneseq
    %v4393 = vshrl.u32 %v4392, 7
    %v4394 = vsub.s32 7, %v4393
    %v4395 = vrot.slane %v4329, %v4394
    %v4444 = vunpack.c.l.b16 %v4295
    %v4445 = vunpack.c.h.b16 %v4295
    %v4446 = vunpack.c.l.b16 %v4296
    %v4447 = vunpack.c.h.b16 %v4296
    %v4448 = vunpack.c.l.b16 %v4297
    %v4449 = vunpack.c.h.b16 %v4297
    %v4450 = vunpack.c.l.b16 %v4298
    %v4451 = vunpack.c.h.b16 %v4298
    %v4452 = vunpack.c.l.b16 %v4299
    %v4453 = vunpack.c.h.b16 %v4299
    %v4454 = vunpack.c.l.b16 %v4300
    %v4455 = vunpack.c.h.b16 %v4300
    %v4456 = vunpack.c.l.b16 %v4301
    %v4457 = vunpack.c.h.b16 %v4301
    %v4458 = vunpack.c.l.b16 %v4302
    %v4459 = vunpack.c.h.b16 %v4302
    %v4460 = vunpack.c.l.b16 %v4303
    %v4461 = vunpack.c.h.b16 %v4303
    %v4462 = vunpack.c.l.b16 %v4304
    %v4463 = vunpack.c.h.b16 %v4304
    %v4464 = vunpack.c.l.b16 %v4305
    %v4465 = vunpack.c.h.b16 %v4305
    %v4466 = vunpack.c.l.b16 %v4306
    %v4467 = vunpack.c.h.b16 %v4306
    %v4468 = vunpack.c.l.b16 %v4307
    %v4469 = vunpack.c.h.b16 %v4307
    %v4470 = vunpack.c.l.b16 %v4308
    %v4471 = vunpack.c.h.b16 %v4308
    %v4472 = vunpack.c.l.b16 %v4309
    %v4473 = vunpack.c.h.b16 %v4309
    %v4474 = vunpack.c.l.b16 %v4310
    %v4475 = vunpack.c.h.b16 %v4310
    %v4476 = vunpack.c.l.b16 %v4311
    %v4477 = vunpack.c.h.b16 %v4311
    %v4478 = vunpack.c.l.b16 %v4312
    %v4479 = vunpack.c.h.b16 %v4312
    %v4480 = vunpack.c.l.b16 %v4313
    %v4481 = vunpack.c.h.b16 %v4313
    %v4482 = vunpack.c.l.b16 %v4314
    %v4483 = vunpack.c.h.b16 %v4314
    %v4484 = vunpack.c.l.b16 %v4315
    %v4485 = vunpack.c.h.b16 %v4315
    %v4486 = vunpack.c.l.b16 %v4316
    %v4487 = vunpack.c.h.b16 %v4316
    %v4488 = vunpack.c.l.b16 %v4317
    %v4489 = vunpack.c.h.b16 %v4317
    %v4490 = vunpack.c.l.b16 %v4318
    %v4491 = vunpack.c.h.b16 %v4318
    %v4492 = vunpack.c.l.b16 %v4319
    %v4493 = vunpack.c.h.b16 %v4319
    %v4494 = vunpack.c.l.b16 %v4320
    %v4495 = vunpack.c.h.b16 %v4320
    %v4496 = vunpack.c.l.b16 %v4321
    %v4497 = vunpack.c.h.b16 %v4321
    %v4498 = vunpack.c.l.b16 %v4322
    %v4499 = vunpack.c.h.b16 %v4322
    %v4500 = vunpack.c.l.b16 %v4323
    %v4501 = vunpack.c.h.b16 %v4323
    %v4502 = vunpack.c.l.b16 %v4324
    %v4503 = vunpack.c.h.b16 %v4324
    %v4504 = vunpack.c.l.b16 %v4325
    %v4505 = vunpack.c.h.b16 %v4325
    %v4506 = vunpack.c.l.b16 %v4326
    %v4507 = vunpack.c.h.b16 %v4326
    %v4508 = vpack.c.b16 %v4460, %v4444
    %v4509 = vpack.c.b16 %v4461, %v4445
    %v4510 = vpack.c.b16 %v4462, %v4446
    %v4511 = vpack.c.b16 %v4463, %v4447
    %v4512 = vpack.c.b16 %v4464, %v4448
    %v4513 = vpack.c.b16 %v4465, %v4449
    %v4514 = vpack.c.b16 %v4466, %v4450
    %v4515 = vpack.c.b16 %v4467, %v4451
    %v4516 = vpack.c.b16 %v4468, %v4452
    %v4517 = vpack.c.b16 %v4469, %v4453
    %v4518 = vpack.c.b16 %v4470, %v4454
    %v4519 = vpack.c.b16 %v4471, %v4455
    %v4520 = vpack.c.b16 %v4472, %v4456
    %v4521 = vpack.c.b16 %v4473, %v4457
    %v4522 = vpack.c.b16 %v4474, %v4458
    %v4523 = vpack.c.b16 %v4475, %v4459
    %v4524 = vpack.c.b16 %v4492, %v4476
    %v4525 = vpack.c.b16 %v4493, %v4477
    %v4526 = vpack.c.b16 %v4494, %v4478
    %v4527 = vpack.c.b16 %v4495, %v4479
    %v4528 = vpack.c.b16 %v4496, %v4480
    %v4529 = vpack.c.b16 %v4497, %v4481
    %v4530 = vpack.c.b16 %v4498, %v4482
    %v4531 = vpack.c.b16 %v4499, %v4483
    %v4532 = vpack.c.b16 %v4500, %v4484
    %v4533 = vpack.c.b16 %v4501, %v4485
    %v4534 = vpack.c.b16 %v4502, %v4486
    %v4535 = vpack.c.b16 %v4503, %v4487
    %v4536 = vpack.c.b16 %v4504, %v4488
    %v4537 = vpack.c.b16 %v4505, %v4489
    %v4538 = vpack.c.b16 %v4506, %v4490
    %v4539 = vpack.c.b16 %v4507, %v4491
    %v4573 = vsel %vm450, %v4292, 0
    %v4576 = vsel %vm450, %v4293, 0
    %4578 = vmatprep.subr.bf16.mxu0 0
    %4579 = vmatpush1.bf16.msra.mxu0 0
    %4580 = vmatprep.subr.bf16.mxu0 0
    %4581 = vmatpush1.bf16.msra.mxu0 0
    %4582 = vmatprep.subr.bf16.mxu0 0
    %4583 = vmatpush1.bf16.msra.mxu0 0
    %4584 = vmatprep.subr.bf16.mxu0 0
    %4585 = vmatpush1.bf16.msra.mxu0 0
    %4586 = vmatprep.subr.bf16.mxu0 0
    %4587 = vmatpush1.bf16.msra.mxu0 0
    %4588 = vmatprep.subr.bf16.mxu0 0
    %4589 = vmatpush1.bf16.msra.mxu0 0
    %4590 = vmatprep.subr.bf16.mxu0 %v4525
    %4591 = vmatpush1.bf16.msra.mxu0 %v4524
    %4592 = vmatprep.subr.bf16.mxu0 %v4509
    %4593 = vmatpush1.bf16.msra.mxu0 %v4508
    %4594 = vmatprep.subr.bf16.mxu0 0
    %4595 = vmatpush2.bf16.msra.mxu0 0
    %4596 = vmatprep.subr.bf16.mxu0 0
    %4597 = vmatpush2.bf16.msra.mxu0 0
    %4598 = vmatprep.subr.bf16.mxu0 0
    %4599 = vmatpush2.bf16.msra.mxu0 0
    %4600 = vmatprep.subr.bf16.mxu0 0
    %4601 = vmatpush2.bf16.msra.mxu0 0
    %4602 = vmatprep.subr.bf16.mxu0 0
    %4603 = vmatpush2.bf16.msra.mxu0 0
    %4604 = vmatprep.subr.bf16.mxu0 0
    %4605 = vmatpush2.bf16.msra.mxu0 0
    %4606 = vmatprep.subr.bf16.mxu0 0
    %4607 = vmatpush2.bf16.msra.mxu0 0
    %4608 = vmatprep.subr.bf16.mxu0 0
    %4609 = vmatpush2.bf16.msra.mxu0 0
    %4610 = vmatprep.mubr.bf16.mxu0 0
    %4611 = vmatmul.mubr.bf16.gmra.mxu0 %v4573
    %v4612 = vpop.f32.mrf.mxu0
    %v4613 = vadd.f32 %v4335, %v4612
    %v4614 = vpop.f32.mrf.mxu0
    %v4615 = vadd.f32 %v4339, %v4614
    %v4616 = vpop.f32.mrf.mxu0
    %v4617 = vadd.f32 %v4335, %v4616
    %v4618 = vpop.f32.mrf.mxu0
    %v4619 = vadd.f32 %v4339, %v4618
    %4620 = vmatprep.mubr.bf16.mxu0 0
    %4621 = vmatmul.mubr.bf16.gmra.mxu0 %v4576
    %v4622 = vpop.f32.mrf.mxu0
    %v4623 = vadd.f32 %v4335, %v4622
    %v4624 = vpop.f32.mrf.mxu0
    %v4625 = vadd.f32 %v4339, %v4624
    %v4626 = vpop.f32.mrf.mxu0
    %v4627 = vpop.f32.mrf.mxu0
    %4628 = vdwg.mxu0
    %4629 = vmatprep.subr.bf16.mxu0 0
    %4630 = vmatpush1.bf16.msra.mxu0 0
    %4631 = vmatprep.subr.bf16.mxu0 0
    %4632 = vmatpush1.bf16.msra.mxu0 0
    %4633 = vmatprep.subr.bf16.mxu0 0
    %4634 = vmatpush1.bf16.msra.mxu0 0
    %4635 = vmatprep.subr.bf16.mxu0 0
    %4636 = vmatpush1.bf16.msra.mxu0 0
    %4637 = vmatprep.subr.bf16.mxu0 0
    %4638 = vmatpush1.bf16.msra.mxu0 0
    %4639 = vmatprep.subr.bf16.mxu0 0
    %4640 = vmatpush1.bf16.msra.mxu0 0
    %4641 = vmatprep.subr.bf16.mxu0 %v4527
    %4642 = vmatpush1.bf16.msra.mxu0 %v4526
    %4643 = vmatprep.subr.bf16.mxu0 %v4511
    %4644 = vmatpush1.bf16.msra.mxu0 %v4510
    %4645 = vmatprep.subr.bf16.mxu0 0
    %4646 = vmatpush2.bf16.msra.mxu0 0
    %4647 = vmatprep.subr.bf16.mxu0 0
    %4648 = vmatpush2.bf16.msra.mxu0 0
    %4649 = vmatprep.subr.bf16.mxu0 0
    %4650 = vmatpush2.bf16.msra.mxu0 0
    %4651 = vmatprep.subr.bf16.mxu0 0
    %4652 = vmatpush2.bf16.msra.mxu0 0
    %4653 = vmatprep.subr.bf16.mxu0 0
    %4654 = vmatpush2.bf16.msra.mxu0 0
    %4655 = vmatprep.subr.bf16.mxu0 0
    %4656 = vmatpush2.bf16.msra.mxu0 0
    %4657 = vmatprep.subr.bf16.mxu0 0
    %4658 = vmatpush2.bf16.msra.mxu0 0
    %4659 = vmatprep.subr.bf16.mxu0 0
    %4660 = vmatpush2.bf16.msra.mxu0 0
    %4661 = vmatprep.mubr.bf16.mxu0 0
    %4662 = vmatmul.mubr.bf16.gmra.mxu0 %v4573
    %v4663 = vpop.f32.mrf.mxu0
    %v4664 = vadd.f32 %v4343, %v4663
    %v4665 = vpop.f32.mrf.mxu0
    %v4666 = vadd.f32 %v4347, %v4665
    %v4667 = vpop.f32.mrf.mxu0
    %v4668 = vadd.f32 %v4343, %v4667
    %v4669 = vpop.f32.mrf.mxu0
    %v4670 = vadd.f32 %v4347, %v4669
    %4671 = vmatprep.mubr.bf16.mxu0 0
    %4672 = vmatmul.mubr.bf16.gmra.mxu0 %v4576
    %v4673 = vpop.f32.mrf.mxu0
    %v4674 = vadd.f32 %v4343, %v4673
    %v4675 = vpop.f32.mrf.mxu0
    %v4676 = vadd.f32 %v4347, %v4675
    %v4677 = vpop.f32.mrf.mxu0
    %v4678 = vpop.f32.mrf.mxu0
    %4679 = vdwg.mxu0
    %4680 = vmatprep.subr.bf16.mxu0 0
    %4681 = vmatpush1.bf16.msra.mxu0 0
    %4682 = vmatprep.subr.bf16.mxu0 0
    %4683 = vmatpush1.bf16.msra.mxu0 0
    %4684 = vmatprep.subr.bf16.mxu0 0
    %4685 = vmatpush1.bf16.msra.mxu0 0
    %4686 = vmatprep.subr.bf16.mxu0 0
    %4687 = vmatpush1.bf16.msra.mxu0 0
    %4688 = vmatprep.subr.bf16.mxu0 0
    %4689 = vmatpush1.bf16.msra.mxu0 0
    %4690 = vmatprep.subr.bf16.mxu0 0
    %4691 = vmatpush1.bf16.msra.mxu0 0
    %4692 = vmatprep.subr.bf16.mxu0 %v4529
    %4693 = vmatpush1.bf16.msra.mxu0 %v4528
    %4694 = vmatprep.subr.bf16.mxu0 %v4513
    %4695 = vmatpush1.bf16.msra.mxu0 %v4512
    %4696 = vmatprep.subr.bf16.mxu0 0
    %4697 = vmatpush2.bf16.msra.mxu0 0
    %4698 = vmatprep.subr.bf16.mxu0 0
    %4699 = vmatpush2.bf16.msra.mxu0 0
    %4700 = vmatprep.subr.bf16.mxu0 0
    %4701 = vmatpush2.bf16.msra.mxu0 0
    %4702 = vmatprep.subr.bf16.mxu0 0
    %4703 = vmatpush2.bf16.msra.mxu0 0
    %4704 = vmatprep.subr.bf16.mxu0 0
    %4705 = vmatpush2.bf16.msra.mxu0 0
    %4706 = vmatprep.subr.bf16.mxu0 0
    %4707 = vmatpush2.bf16.msra.mxu0 0
    %4708 = vmatprep.subr.bf16.mxu0 0
    %4709 = vmatpush2.bf16.msra.mxu0 0
    %4710 = vmatprep.subr.bf16.mxu0 0
    %4711 = vmatpush2.bf16.msra.mxu0 0
    %4712 = vmatprep.mubr.bf16.mxu0 0
    %4713 = vmatmul.mubr.bf16.gmra.mxu0 %v4573
    %v4714 = vpop.f32.mrf.mxu0
    %v4715 = vadd.f32 %v4351, %v4714
    %v4716 = vpop.f32.mrf.mxu0
    %v4717 = vadd.f32 %v4355, %v4716
    %v4718 = vpop.f32.mrf.mxu0
    %v4719 = vadd.f32 %v4351, %v4718
    %v4720 = vpop.f32.mrf.mxu0
    %v4721 = vadd.f32 %v4355, %v4720
    %4722 = vmatprep.mubr.bf16.mxu0 0
    %4723 = vmatmul.mubr.bf16.gmra.mxu0 %v4576
    %v4724 = vpop.f32.mrf.mxu0
    %v4725 = vadd.f32 %v4351, %v4724
    %v4726 = vpop.f32.mrf.mxu0
    %v4727 = vadd.f32 %v4355, %v4726
    %v4728 = vpop.f32.mrf.mxu0
    %v4729 = vpop.f32.mrf.mxu0
    %4730 = vdwg.mxu0
    %4731 = vmatprep.subr.bf16.mxu0 0
    %4732 = vmatpush1.bf16.msra.mxu0 0
    %4733 = vmatprep.subr.bf16.mxu0 0
    %4734 = vmatpush1.bf16.msra.mxu0 0
    %4735 = vmatprep.subr.bf16.mxu0 0
    %4736 = vmatpush1.bf16.msra.mxu0 0
    %4737 = vmatprep.subr.bf16.mxu0 0
    %4738 = vmatpush1.bf16.msra.mxu0 0
    %4739 = vmatprep.subr.bf16.mxu0 0
    %4740 = vmatpush1.bf16.msra.mxu0 0
    %4741 = vmatprep.subr.bf16.mxu0 0
    %4742 = vmatpush1.bf16.msra.mxu0 0
    %4743 = vmatprep.subr.bf16.mxu0 %v4531
    %4744 = vmatpush1.bf16.msra.mxu0 %v4530
    %4745 = vmatprep.subr.bf16.mxu0 %v4515
    %4746 = vmatpush1.bf16.msra.mxu0 %v4514
    %4747 = vmatprep.subr.bf16.mxu0 0
    %4748 = vmatpush2.bf16.msra.mxu0 0
    %4749 = vmatprep.subr.bf16.mxu0 0
    %4750 = vmatpush2.bf16.msra.mxu0 0
    %4751 = vmatprep.subr.bf16.mxu0 0
    %4752 = vmatpush2.bf16.msra.mxu0 0
    %4753 = vmatprep.subr.bf16.mxu0 0
    %4754 = vmatpush2.bf16.msra.mxu0 0
    %4755 = vmatprep.subr.bf16.mxu0 0
    %4756 = vmatpush2.bf16.msra.mxu0 0
    %4757 = vmatprep.subr.bf16.mxu0 0
    %4758 = vmatpush2.bf16.msra.mxu0 0
    %4759 = vmatprep.subr.bf16.mxu0 0
    %4760 = vmatpush2.bf16.msra.mxu0 0
    %4761 = vmatprep.subr.bf16.mxu0 0
    %4762 = vmatpush2.bf16.msra.mxu0 0
    %4763 = vmatprep.mubr.bf16.mxu0 0
    %4764 = vmatmul.mubr.bf16.gmra.mxu0 %v4573
    %v4765 = vpop.f32.mrf.mxu0
    %v4766 = vadd.f32 %v4359, %v4765
    %v4767 = vpop.f32.mrf.mxu0
    %v4768 = vadd.f32 %v4363, %v4767
    %v4769 = vpop.f32.mrf.mxu0
    %v4770 = vadd.f32 %v4359, %v4769
    %v4771 = vpop.f32.mrf.mxu0
    %v4772 = vadd.f32 %v4363, %v4771
    %4773 = vmatprep.mubr.bf16.mxu0 0
    %4774 = vmatmul.mubr.bf16.gmra.mxu0 %v4576
    %v4775 = vpop.f32.mrf.mxu0
    %v4776 = vadd.f32 %v4359, %v4775
    %v4777 = vpop.f32.mrf.mxu0
    %v4778 = vadd.f32 %v4363, %v4777
    %v4779 = vpop.f32.mrf.mxu0
    %v4780 = vpop.f32.mrf.mxu0
    %4781 = vdwg.mxu0
    %4782 = vmatprep.subr.bf16.mxu0 0
    %4783 = vmatpush1.bf16.msra.mxu0 0
    %4784 = vmatprep.subr.bf16.mxu0 0
    %4785 = vmatpush1.bf16.msra.mxu0 0
    %4786 = vmatprep.subr.bf16.mxu0 0
    %4787 = vmatpush1.bf16.msra.mxu0 0
    %4788 = vmatprep.subr.bf16.mxu0 0
    %4789 = vmatpush1.bf16.msra.mxu0 0
    %4790 = vmatprep.subr.bf16.mxu0 0
    %4791 = vmatpush1.bf16.msra.mxu0 0
    %4792 = vmatprep.subr.bf16.mxu0 0
    %4793 = vmatpush1.bf16.msra.mxu0 0
    %4794 = vmatprep.subr.bf16.mxu0 %v4533
    %4795 = vmatpush1.bf16.msra.mxu0 %v4532
    %4796 = vmatprep.subr.bf16.mxu0 %v4517
    %4797 = vmatpush1.bf16.msra.mxu0 %v4516
    %4798 = vmatprep.subr.bf16.mxu0 0
    %4799 = vmatpush2.bf16.msra.mxu0 0
    %4800 = vmatprep.subr.bf16.mxu0 0
    %4801 = vmatpush2.bf16.msra.mxu0 0
    %4802 = vmatprep.subr.bf16.mxu0 0
    %4803 = vmatpush2.bf16.msra.mxu0 0
    %4804 = vmatprep.subr.bf16.mxu0 0
    %4805 = vmatpush2.bf16.msra.mxu0 0
    %4806 = vmatprep.subr.bf16.mxu0 0
    %4807 = vmatpush2.bf16.msra.mxu0 0
    %4808 = vmatprep.subr.bf16.mxu0 0
    %4809 = vmatpush2.bf16.msra.mxu0 0
    %4810 = vmatprep.subr.bf16.mxu0 0
    %4811 = vmatpush2.bf16.msra.mxu0 0
    %4812 = vmatprep.subr.bf16.mxu0 0
    %4813 = vmatpush2.bf16.msra.mxu0 0
    %4814 = vmatprep.mubr.bf16.mxu0 0
    %4815 = vmatmul.mubr.bf16.gmra.mxu0 %v4573
    %v4816 = vpop.f32.mrf.mxu0
    %v4817 = vadd.f32 %v4367, %v4816
    %v4818 = vpop.f32.mrf.mxu0
    %v4819 = vadd.f32 %v4371, %v4818
    %v4820 = vpop.f32.mrf.mxu0
    %v4821 = vadd.f32 %v4367, %v4820
    %v4822 = vpop.f32.mrf.mxu0
    %v4823 = vadd.f32 %v4371, %v4822
    %4824 = vmatprep.mubr.bf16.mxu0 0
    %4825 = vmatmul.mubr.bf16.gmra.mxu0 %v4576
    %v4826 = vpop.f32.mrf.mxu0
    %v4827 = vadd.f32 %v4367, %v4826
    %v4828 = vpop.f32.mrf.mxu0
    %v4829 = vadd.f32 %v4371, %v4828
    %v4830 = vpop.f32.mrf.mxu0
    %v4831 = vpop.f32.mrf.mxu0
    %4832 = vdwg.mxu0
    %4833 = vmatprep.subr.bf16.mxu0 0
    %4834 = vmatpush1.bf16.msra.mxu0 0
    %4835 = vmatprep.subr.bf16.mxu0 0
    %4836 = vmatpush1.bf16.msra.mxu0 0
    %4837 = vmatprep.subr.bf16.mxu0 0
    %4838 = vmatpush1.bf16.msra.mxu0 0
    %4839 = vmatprep.subr.bf16.mxu0 0
    %4840 = vmatpush1.bf16.msra.mxu0 0
    %4841 = vmatprep.subr.bf16.mxu0 0
    %4842 = vmatpush1.bf16.msra.mxu0 0
    %4843 = vmatprep.subr.bf16.mxu0 0
    %4844 = vmatpush1.bf16.msra.mxu0 0
    %4845 = vmatprep.subr.bf16.mxu0 %v4535
    %4846 = vmatpush1.bf16.msra.mxu0 %v4534
    %4847 = vmatprep.subr.bf16.mxu0 %v4519
    %4848 = vmatpush1.bf16.msra.mxu0 %v4518
    %4849 = vmatprep.subr.bf16.mxu0 0
    %4850 = vmatpush2.bf16.msra.mxu0 0
    %4851 = vmatprep.subr.bf16.mxu0 0
    %4852 = vmatpush2.bf16.msra.mxu0 0
    %4853 = vmatprep.subr.bf16.mxu0 0
    %4854 = vmatpush2.bf16.msra.mxu0 0
    %4855 = vmatprep.subr.bf16.mxu0 0
    %4856 = vmatpush2.bf16.msra.mxu0 0
    %4857 = vmatprep.subr.bf16.mxu0 0
    %4858 = vmatpush2.bf16.msra.mxu0 0
    %4859 = vmatprep.subr.bf16.mxu0 0
    %4860 = vmatpush2.bf16.msra.mxu0 0
    %4861 = vmatprep.subr.bf16.mxu0 0
    %4862 = vmatpush2.bf16.msra.mxu0 0
    %4863 = vmatprep.subr.bf16.mxu0 0
    %4864 = vmatpush2.bf16.msra.mxu0 0
    %4865 = vmatprep.mubr.bf16.mxu0 0
    %4866 = vmatmul.mubr.bf16.gmra.mxu0 %v4573
    %v4867 = vpop.f32.mrf.mxu0
    %v4868 = vadd.f32 %v4375, %v4867
    %v4869 = vpop.f32.mrf.mxu0
    %v4870 = vadd.f32 %v4379, %v4869
    %v4871 = vpop.f32.mrf.mxu0
    %v4872 = vadd.f32 %v4375, %v4871
    %v4873 = vpop.f32.mrf.mxu0
    %v4874 = vadd.f32 %v4379, %v4873
    %4875 = vmatprep.mubr.bf16.mxu0 0
    %4876 = vmatmul.mubr.bf16.gmra.mxu0 %v4576
    %v4877 = vpop.f32.mrf.mxu0
    %v4878 = vadd.f32 %v4375, %v4877
    %v4879 = vpop.f32.mrf.mxu0
    %v4880 = vadd.f32 %v4379, %v4879
    %v4881 = vpop.f32.mrf.mxu0
    %v4882 = vpop.f32.mrf.mxu0
    %4883 = vdwg.mxu0
    %4884 = vmatprep.subr.bf16.mxu0 0
    %4885 = vmatpush1.bf16.msra.mxu0 0
    %4886 = vmatprep.subr.bf16.mxu0 0
    %4887 = vmatpush1.bf16.msra.mxu0 0
    %4888 = vmatprep.subr.bf16.mxu0 0
    %4889 = vmatpush1.bf16.msra.mxu0 0
    %4890 = vmatprep.subr.bf16.mxu0 0
    %4891 = vmatpush1.bf16.msra.mxu0 0
    %4892 = vmatprep.subr.bf16.mxu0 0
    %4893 = vmatpush1.bf16.msra.mxu0 0
    %4894 = vmatprep.subr.bf16.mxu0 0
    %4895 = vmatpush1.bf16.msra.mxu0 0
    %4896 = vmatprep.subr.bf16.mxu0 %v4537
    %4897 = vmatpush1.bf16.msra.mxu0 %v4536
    %4898 = vmatprep.subr.bf16.mxu0 %v4521
    %4899 = vmatpush1.bf16.msra.mxu0 %v4520
    %4900 = vmatprep.subr.bf16.mxu0 0
    %4901 = vmatpush2.bf16.msra.mxu0 0
    %4902 = vmatprep.subr.bf16.mxu0 0
    %4903 = vmatpush2.bf16.msra.mxu0 0
    %4904 = vmatprep.subr.bf16.mxu0 0
    %4905 = vmatpush2.bf16.msra.mxu0 0
    %4906 = vmatprep.subr.bf16.mxu0 0
    %4907 = vmatpush2.bf16.msra.mxu0 0
    %4908 = vmatprep.subr.bf16.mxu0 0
    %4909 = vmatpush2.bf16.msra.mxu0 0
    %4910 = vmatprep.subr.bf16.mxu0 0
    %4911 = vmatpush2.bf16.msra.mxu0 0
    %4912 = vmatprep.subr.bf16.mxu0 0
    %4913 = vmatpush2.bf16.msra.mxu0 0
    %4914 = vmatprep.subr.bf16.mxu0 0
    %4915 = vmatpush2.bf16.msra.mxu0 0
    %4916 = vmatprep.mubr.bf16.mxu0 0
    %4917 = vmatmul.mubr.bf16.gmra.mxu0 %v4573
    %v4918 = vpop.f32.mrf.mxu0
    %v4919 = vadd.f32 %v4383, %v4918
    %v4920 = vpop.f32.mrf.mxu0
    %v4921 = vadd.f32 %v4387, %v4920
    %v4922 = vpop.f32.mrf.mxu0
    %v4923 = vadd.f32 %v4383, %v4922
    %v4924 = vpop.f32.mrf.mxu0
    %v4925 = vadd.f32 %v4387, %v4924
    %4926 = vmatprep.mubr.bf16.mxu0 0
    %4927 = vmatmul.mubr.bf16.gmra.mxu0 %v4576
    %v4928 = vpop.f32.mrf.mxu0
    %v4929 = vadd.f32 %v4383, %v4928
    %v4930 = vpop.f32.mrf.mxu0
    %v4931 = vadd.f32 %v4387, %v4930
    %v4932 = vpop.f32.mrf.mxu0
    %v4933 = vpop.f32.mrf.mxu0
    %4934 = vdwg.mxu0
    %4935 = vmatprep.subr.bf16.mxu0 0
    %4936 = vmatpush1.bf16.msra.mxu0 0
    %4937 = vmatprep.subr.bf16.mxu0 0
    %4938 = vmatpush1.bf16.msra.mxu0 0
    %4939 = vmatprep.subr.bf16.mxu0 0
    %4940 = vmatpush1.bf16.msra.mxu0 0
    %4941 = vmatprep.subr.bf16.mxu0 0
    %4942 = vmatpush1.bf16.msra.mxu0 0
    %4943 = vmatprep.subr.bf16.mxu0 0
    %4944 = vmatpush1.bf16.msra.mxu0 0
    %4945 = vmatprep.subr.bf16.mxu0 0
    %4946 = vmatpush1.bf16.msra.mxu0 0
    %4947 = vmatprep.subr.bf16.mxu0 %v4539
    %4948 = vmatpush1.bf16.msra.mxu0 %v4538
    %4949 = vmatprep.subr.bf16.mxu0 %v4523
    %4950 = vmatpush1.bf16.msra.mxu0 %v4522
    %4951 = vmatprep.subr.bf16.mxu0 0
    %4952 = vmatpush2.bf16.msra.mxu0 0
    %4953 = vmatprep.subr.bf16.mxu0 0
    %4954 = vmatpush2.bf16.msra.mxu0 0
    %4955 = vmatprep.subr.bf16.mxu0 0
    %4956 = vmatpush2.bf16.msra.mxu0 0
    %4957 = vmatprep.subr.bf16.mxu0 0
    %4958 = vmatpush2.bf16.msra.mxu0 0
    %4959 = vmatprep.subr.bf16.mxu0 0
    %4960 = vmatpush2.bf16.msra.mxu0 0
    %4961 = vmatprep.subr.bf16.mxu0 0
    %4962 = vmatpush2.bf16.msra.mxu0 0
    %4963 = vmatprep.subr.bf16.mxu0 0
    %4964 = vmatpush2.bf16.msra.mxu0 0
    %4965 = vmatprep.subr.bf16.mxu0 0
    %4966 = vmatpush2.bf16.msra.mxu0 0
    %4967 = vmatprep.mubr.bf16.mxu0 0
    %4968 = vmatmul.mubr.bf16.gmra.mxu0 %v4573
    %v4969 = vpop.f32.mrf.mxu0
    %v4970 = vadd.f32 %v4391, %v4969
    %v4971 = vpop.f32.mrf.mxu0
    %v4972 = vadd.f32 %v4395, %v4971
    %v4973 = vpop.f32.mrf.mxu0
    %v4974 = vadd.f32 %v4391, %v4973
    %v4975 = vpop.f32.mrf.mxu0
    %v4976 = vadd.f32 %v4395, %v4975
    %4977 = vmatprep.mubr.bf16.mxu0 0
    %4978 = vmatmul.mubr.bf16.gmra.mxu0 %v4576
    %v4979 = vpop.f32.mrf.mxu0
    %v4980 = vadd.f32 %v4391, %v4979
    %v4981 = vpop.f32.mrf.mxu0
    %v4982 = vadd.f32 %v4395, %v4981
    %v4983 = vpop.f32.mrf.mxu0
    %v4984 = vpop.f32.mrf.mxu0
    %4985 = vdwg.mxu0
    %v4986 = vmax.f32 %v4613, 0.0
    %v4987 = vmax.f32 %v4615, 0.0
    %v4988 = vmax.f32 %v4664, 0.0
    %v4989 = vmax.f32 %v4666, 0.0
    %v4990 = vmax.f32 %v4715, 0.0
    %v4991 = vmax.f32 %v4717, 0.0
    %v4992 = vmax.f32 %v4766, 0.0
    %v4993 = vmax.f32 %v4768, 0.0
    %v4994 = vmax.f32 %v4817, 0.0
    %v4995 = vmax.f32 %v4819, 0.0
    %v4996 = vmax.f32 %v4868, 0.0
    %v4997 = vmax.f32 %v4870, 0.0
    %v4998 = vmax.f32 %v4919, 0.0
    %v4999 = vmax.f32 %v4921, 0.0
    %v5000 = vmax.f32 %v4970, 0.0
    %v5001 = vmax.f32 %v4972, 0.0
    %v5002 = vmax.f32 %v4617, 0.0
    %v5003 = vmax.f32 %v4619, 0.0
    %v5004 = vmax.f32 %v4668, 0.0
    %v5005 = vmax.f32 %v4670, 0.0
    %v5006 = vmax.f32 %v4719, 0.0
    %v5007 = vmax.f32 %v4721, 0.0
    %v5008 = vmax.f32 %v4770, 0.0
    %v5009 = vmax.f32 %v4772, 0.0
    %v5010 = vmax.f32 %v4821, 0.0
    %v5011 = vmax.f32 %v4823, 0.0
    %v5012 = vmax.f32 %v4872, 0.0
    %v5013 = vmax.f32 %v4874, 0.0
    %v5014 = vmax.f32 %v4923, 0.0
    %v5015 = vmax.f32 %v4925, 0.0
    %v5016 = vmax.f32 %v4974, 0.0
    %v5017 = vmax.f32 %v4976, 0.0
    %v5018 = vmax.f32 %v4623, 0.0
    %v5019 = vmax.f32 %v4625, 0.0
    %v5020 = vmax.f32 %v4674, 0.0
    %v5021 = vmax.f32 %v4676, 0.0
    %v5022 = vmax.f32 %v4725, 0.0
    %v5023 = vmax.f32 %v4727, 0.0
    %v5024 = vmax.f32 %v4776, 0.0
    %v5025 = vmax.f32 %v4778, 0.0
    %v5026 = vmax.f32 %v4827, 0.0
    %v5027 = vmax.f32 %v4829, 0.0
    %v5028 = vmax.f32 %v4878, 0.0
    %v5029 = vmax.f32 %v4880, 0.0
    %v5030 = vmax.f32 %v4929, 0.0
    %v5031 = vmax.f32 %v4931, 0.0
    %v5032 = vmax.f32 %v4980, 0.0
    %v5033 = vmax.f32 %v4982, 0.0
    %v5034 = vpack.c.bf16 %v5002, %v4986
    %v5035 = vpack.c.bf16 %v5003, %v4987
    %v5036 = vpack.c.bf16 %v5004, %v4988
    %v5037 = vpack.c.bf16 %v5005, %v4989
    %v5038 = vpack.c.bf16 %v5006, %v4990
    %v5039 = vpack.c.bf16 %v5007, %v4991
    %v5040 = vpack.c.bf16 %v5008, %v4992
    %v5041 = vpack.c.bf16 %v5009, %v4993
    %v5042 = vpack.c.bf16 %v5010, %v4994
    %v5043 = vpack.c.bf16 %v5011, %v4995
    %v5044 = vpack.c.bf16 %v5012, %v4996
    %v5045 = vpack.c.bf16 %v5013, %v4997
    %v5046 = vpack.c.bf16 %v5014, %v4998
    %v5047 = vpack.c.bf16 %v5015, %v4999
    %v5048 = vpack.c.bf16 %v5016, %v5000
    %v5049 = vpack.c.bf16 %v5017, %v5001
    %v5050 = vpack.c.bf16 %v5018, %v5018
    %v5051 = vpack.c.bf16 %v5019, %v5019
    %v5052 = vpack.c.bf16 %v5020, %v5020
    %v5053 = vpack.c.bf16 %v5021, %v5021
    %v5054 = vpack.c.bf16 %v5022, %v5022
    %v5055 = vpack.c.bf16 %v5023, %v5023
    %v5056 = vpack.c.bf16 %v5024, %v5024
    %v5057 = vpack.c.bf16 %v5025, %v5025
    %v5058 = vpack.c.bf16 %v5026, %v5026
    %v5059 = vpack.c.bf16 %v5027, %v5027
    %v5060 = vpack.c.bf16 %v5028, %v5028
    %v5061 = vpack.c.bf16 %v5029, %v5029
    %v5062 = vpack.c.bf16 %v5030, %v5030
    %v5063 = vpack.c.bf16 %v5031, %v5031
    %v5064 = vpack.c.bf16 %v5032, %v5032
    %v5065 = vpack.c.bf16 %v5033, %v5033
    %s5066 = scalar_lea.vmem [#allocation31], 256
    %v5067 = vld [vmem:[%s5066] sm:$0xff]
    %v5068 = vld [vmem:[%s5066 + $0x8] sm:$0xff]
    %v5069 = vld [vmem:[%s5066 + $0x10] sm:$0xff]
    %v5070 = vld [vmem:[%s5066 + $0x18] sm:$0xff]
    %v5071 = vld [vmem:[%s5066 + $0x20] sm:$0xff]
    %v5072 = vld [vmem:[%s5066 + $0x28] sm:$0xff]
    %v5073 = vld [vmem:[%s5066 + $0x30] sm:$0xff]
    %v5074 = vld [vmem:[%s5066 + $0x38] sm:$0xff]
    %v5075 = vld [vmem:[%s5066 + $0x40] sm:$0xff]
    %v5076 = vld [vmem:[%s5066 + $0x48] sm:$0xff]
    %v5077 = vld [vmem:[%s5066 + $0x50] sm:$0xff]
    %v5078 = vld [vmem:[%s5066 + $0x58] sm:$0xff]
    %v5079 = vld [vmem:[%s5066 + $0x60] sm:$0xff]
    %v5080 = vld [vmem:[%s5066 + $0x68] sm:$0xff]
    %v5081 = vld [vmem:[%s5066 + $0x70] sm:$0xff]
    %v5082 = vld [vmem:[%s5066 + $0x78] sm:$0xff]
    %v5083 = vld [vmem:[%s5066 + $0x80] sm:$0xff]
    %v5084 = vld [vmem:[%s5066 + $0x88] sm:$0xff]
    %v5085 = vld [vmem:[%s5066 + $0x90] sm:$0xff]
    %v5086 = vld [vmem:[%s5066 + $0x98] sm:$0xff]
    %v5087 = vld [vmem:[%s5066 + $0xa0] sm:$0xff]
    %v5088 = vld [vmem:[%s5066 + $0xa8] sm:$0xff]
    %v5089 = vld [vmem:[%s5066 + $0xb0] sm:$0xff]
    %v5090 = vld [vmem:[%s5066 + $0xb8] sm:$0xff]
    %v5091 = vld [vmem:[%s5066 + $0xc0] sm:$0xff]
    %v5092 = vld [vmem:[%s5066 + $0xc8] sm:$0xff]
    %v5093 = vld [vmem:[%s5066 + $0xd0] sm:$0xff]
    %v5094 = vld [vmem:[%s5066 + $0xd8] sm:$0xff]
    %v5095 = vld [vmem:[%s5066 + $0xe0] sm:$0xff]
    %v5096 = vld [vmem:[%s5066 + $0xe8] sm:$0xff]
    %v5097 = vld [vmem:[%s5066 + $0xf0] sm:$0xff]
    %v5098 = vld [vmem:[%s5066 + $0xf8] sm:$0xff]
    %s5099 = scalar_lea.vmem %s57, 1
    %v5100 = vld [vmem:[%s5099] sm:$0x1]
    %v5102 = vlaneseq
    %v5103 = vshrl.u32 %v5102, 7
    %v5104 = vsub.s32 0, %v5103
    %v5105 = vrot.slane %v5100, %v5104
    %v5139 = vunpack.c.l.b16 %v5067
    %v5140 = vunpack.c.h.b16 %v5067
    %v5141 = vunpack.c.l.b16 %v5068
    %v5142 = vunpack.c.h.b16 %v5068
    %v5143 = vunpack.c.l.b16 %v5069
    %v5144 = vunpack.c.h.b16 %v5069
    %v5145 = vunpack.c.l.b16 %v5070
    %v5146 = vunpack.c.h.b16 %v5070
    %v5147 = vunpack.c.l.b16 %v5071
    %v5148 = vunpack.c.h.b16 %v5071
    %v5149 = vunpack.c.l.b16 %v5072
    %v5150 = vunpack.c.h.b16 %v5072
    %v5151 = vunpack.c.l.b16 %v5073
    %v5152 = vunpack.c.h.b16 %v5073
    %v5153 = vunpack.c.l.b16 %v5074
    %v5154 = vunpack.c.h.b16 %v5074
    %v5155 = vunpack.c.l.b16 %v5075
    %v5156 = vunpack.c.h.b16 %v5075
    %v5157 = vunpack.c.l.b16 %v5076
    %v5158 = vunpack.c.h.b16 %v5076
    %v5159 = vunpack.c.l.b16 %v5077
    %v5160 = vunpack.c.h.b16 %v5077
    %v5161 = vunpack.c.l.b16 %v5078
    %v5162 = vunpack.c.h.b16 %v5078
    %v5163 = vunpack.c.l.b16 %v5079
    %v5164 = vunpack.c.h.b16 %v5079
    %v5165 = vunpack.c.l.b16 %v5080
    %v5166 = vunpack.c.h.b16 %v5080
    %v5167 = vunpack.c.l.b16 %v5081
    %v5168 = vunpack.c.h.b16 %v5081
    %v5169 = vunpack.c.l.b16 %v5082
    %v5170 = vunpack.c.h.b16 %v5082
    %v5171 = vunpack.c.l.b16 %v5083
    %v5172 = vunpack.c.h.b16 %v5083
    %v5173 = vunpack.c.l.b16 %v5084
    %v5174 = vunpack.c.h.b16 %v5084
    %v5175 = vunpack.c.l.b16 %v5085
    %v5176 = vunpack.c.h.b16 %v5085
    %v5177 = vunpack.c.l.b16 %v5086
    %v5178 = vunpack.c.h.b16 %v5086
    %v5179 = vunpack.c.l.b16 %v5087
    %v5180 = vunpack.c.h.b16 %v5087
    %v5181 = vunpack.c.l.b16 %v5088
    %v5182 = vunpack.c.h.b16 %v5088
    %v5183 = vunpack.c.l.b16 %v5089
    %v5184 = vunpack.c.h.b16 %v5089
    %v5185 = vunpack.c.l.b16 %v5090
    %v5186 = vunpack.c.h.b16 %v5090
    %v5187 = vunpack.c.l.b16 %v5091
    %v5188 = vunpack.c.h.b16 %v5091
    %v5189 = vunpack.c.l.b16 %v5092
    %v5190 = vunpack.c.h.b16 %v5092
    %v5191 = vunpack.c.l.b16 %v5093
    %v5192 = vunpack.c.h.b16 %v5093
    %v5193 = vunpack.c.l.b16 %v5094
    %v5194 = vunpack.c.h.b16 %v5094
    %v5195 = vunpack.c.l.b16 %v5095
    %v5196 = vunpack.c.h.b16 %v5095
    %v5197 = vunpack.c.l.b16 %v5096
    %v5198 = vunpack.c.h.b16 %v5096
    %v5199 = vunpack.c.l.b16 %v5097
    %v5200 = vunpack.c.h.b16 %v5097
    %v5201 = vunpack.c.l.b16 %v5098
    %v5202 = vunpack.c.h.b16 %v5098
    %v5203 = vpack.c.b16 %v5155, %v5139
    %v5204 = vpack.c.b16 %v5156, %v5140
    %v5205 = vpack.c.b16 %v5157, %v5141
    %v5206 = vpack.c.b16 %v5158, %v5142
    %v5207 = vpack.c.b16 %v5159, %v5143
    %v5208 = vpack.c.b16 %v5160, %v5144
    %v5209 = vpack.c.b16 %v5161, %v5145
    %v5210 = vpack.c.b16 %v5162, %v5146
    %v5211 = vpack.c.b16 %v5163, %v5147
    %v5212 = vpack.c.b16 %v5164, %v5148
    %v5213 = vpack.c.b16 %v5165, %v5149
    %v5214 = vpack.c.b16 %v5166, %v5150
    %v5215 = vpack.c.b16 %v5167, %v5151
    %v5216 = vpack.c.b16 %v5168, %v5152
    %v5217 = vpack.c.b16 %v5169, %v5153
    %v5218 = vpack.c.b16 %v5170, %v5154
    %v5219 = vpack.c.b16 %v5187, %v5171
    %v5220 = vpack.c.b16 %v5188, %v5172
    %v5221 = vpack.c.b16 %v5189, %v5173
    %v5222 = vpack.c.b16 %v5190, %v5174
    %v5223 = vpack.c.b16 %v5191, %v5175
    %v5224 = vpack.c.b16 %v5192, %v5176
    %v5225 = vpack.c.b16 %v5193, %v5177
    %v5226 = vpack.c.b16 %v5194, %v5178
    %v5227 = vpack.c.b16 %v5195, %v5179
    %v5228 = vpack.c.b16 %v5196, %v5180
    %v5229 = vpack.c.b16 %v5197, %v5181
    %v5230 = vpack.c.b16 %v5198, %v5182
    %v5231 = vpack.c.b16 %v5199, %v5183
    %v5232 = vpack.c.b16 %v5200, %v5184
    %v5233 = vpack.c.b16 %v5201, %v5185
    %v5234 = vpack.c.b16 %v5202, %v5186
    %5267 = vmatprep.subr.bf16.mxu0 0
    %5268 = vmatpush1.bf16.xpose.msra.mxu0 0
    %5269 = vmatprep.subr.bf16.mxu0 0
    %5270 = vmatpush1.bf16.xpose.msra.mxu0 0
    %5271 = vmatprep.subr.bf16.mxu0 0
    %5272 = vmatpush1.bf16.xpose.msra.mxu0 0
    %5273 = vmatprep.subr.bf16.mxu0 0
    %5274 = vmatpush1.bf16.xpose.msra.mxu0 0
    %5275 = vmatprep.subr.bf16.mxu0 0
    %5276 = vmatpush1.bf16.xpose.msra.mxu0 0
    %5277 = vmatprep.subr.bf16.mxu0 0
    %5278 = vmatpush1.bf16.xpose.msra.mxu0 0
    %5279 = vmatprep.subr.bf16.mxu0 %v5220
    %5280 = vmatpush1.bf16.xpose.msra.mxu0 %v5219
    %5281 = vmatprep.subr.bf16.mxu0 %v5204
    %5282 = vmatpush1.bf16.xpose.msra.mxu0 %v5203
    %5283 = vmatprep.subr.bf16.mxu0 0
    %5284 = vmatpush2.bf16.xpose.msra.mxu0 0
    %5285 = vmatprep.subr.bf16.mxu0 0
    %5286 = vmatpush2.bf16.xpose.msra.mxu0 0
    %5287 = vmatprep.subr.bf16.mxu0 0
    %5288 = vmatpush2.bf16.xpose.msra.mxu0 0
    %5289 = vmatprep.subr.bf16.mxu0 0
    %5290 = vmatpush2.bf16.xpose.msra.mxu0 0
    %5291 = vmatprep.subr.bf16.mxu0 0
    %5292 = vmatpush2.bf16.xpose.msra.mxu0 0
    %5293 = vmatprep.subr.bf16.mxu0 0
    %5294 = vmatpush2.bf16.xpose.msra.mxu0 0
    %5295 = vmatprep.subr.bf16.mxu0 0
    %5296 = vmatpush2.bf16.xpose.msra.mxu0 0
    %5297 = vmatprep.subr.bf16.mxu0 0
    %5298 = vmatpush2.bf16.xpose.msra.mxu0 0
    %5299 = vmatprep.mubr.bf16.mxu0 %v5035
    %5300 = vmatmul.mubr.bf16.gmra.mxu0 %v5034
    %v5301 = vpop.f32.mrf.mxu0
    %v5302 = vadd.f32 %v5105, %v5301
    %v5303 = vpop.f32.mrf.mxu0
    %v5304 = vpop.f32.mrf.mxu0
    %v5305 = vadd.f32 %v5105, %v5304
    %v5306 = vpop.f32.mrf.mxu0
    %5307 = vmatprep.mubr.bf16.mxu0 %v5051
    %5308 = vmatmul.mubr.bf16.gmra.mxu0 %v5050
    %v5309 = vpop.f32.mrf.mxu0
    %v5310 = vadd.f32 %v5105, %v5309
    %v5311 = vpop.f32.mrf.mxu0
    %v5312 = vpop.f32.mrf.mxu0
    %v5313 = vpop.f32.mrf.mxu0
    %5314 = vdwg.mxu0
    %5315 = vmatprep.subr.bf16.mxu0 0
    %5316 = vmatpush1.bf16.xpose.msra.mxu0 0
    %5317 = vmatprep.subr.bf16.mxu0 0
    %5318 = vmatpush1.bf16.xpose.msra.mxu0 0
    %5319 = vmatprep.subr.bf16.mxu0 0
    %5320 = vmatpush1.bf16.xpose.msra.mxu0 0
    %5321 = vmatprep.subr.bf16.mxu0 0
    %5322 = vmatpush1.bf16.xpose.msra.mxu0 0
    %5323 = vmatprep.subr.bf16.mxu0 0
    %5324 = vmatpush1.bf16.xpose.msra.mxu0 0
    %5325 = vmatprep.subr.bf16.mxu0 0
    %5326 = vmatpush1.bf16.xpose.msra.mxu0 0
    %5327 = vmatprep.subr.bf16.mxu0 %v5222
    %5328 = vmatpush1.bf16.xpose.msra.mxu0 %v5221
    %5329 = vmatprep.subr.bf16.mxu0 %v5206
    %5330 = vmatpush1.bf16.xpose.msra.mxu0 %v5205
    %5331 = vmatprep.subr.bf16.mxu0 0
    %5332 = vmatpush2.bf16.xpose.msra.mxu0 0
    %5333 = vmatprep.subr.bf16.mxu0 0
    %5334 = vmatpush2.bf16.xpose.msra.mxu0 0
    %5335 = vmatprep.subr.bf16.mxu0 0
    %5336 = vmatpush2.bf16.xpose.msra.mxu0 0
    %5337 = vmatprep.subr.bf16.mxu0 0
    %5338 = vmatpush2.bf16.xpose.msra.mxu0 0
    %5339 = vmatprep.subr.bf16.mxu0 0
    %5340 = vmatpush2.bf16.xpose.msra.mxu0 0
    %5341 = vmatprep.subr.bf16.mxu0 0
    %5342 = vmatpush2.bf16.xpose.msra.mxu0 0
    %5343 = vmatprep.subr.bf16.mxu0 0
    %5344 = vmatpush2.bf16.xpose.msra.mxu0 0
    %5345 = vmatprep.subr.bf16.mxu0 0
    %5346 = vmatpush2.bf16.xpose.msra.mxu0 0
    %5347 = vmatprep.mubr.bf16.mxu0 %v5037
    %5348 = vmatmul.mubr.bf16.gmra.mxu0 %v5036
    %v5349 = vpop.f32.mrf.mxu0
    %v5350 = vadd.f32 %v5302, %v5349
    %v5351 = vpop.f32.mrf.mxu0
    %v5352 = vpop.f32.mrf.mxu0
    %v5353 = vadd.f32 %v5305, %v5352
    %v5354 = vpop.f32.mrf.mxu0
    %5355 = vmatprep.mubr.bf16.mxu0 %v5053
    %5356 = vmatmul.mubr.bf16.gmra.mxu0 %v5052
    %v5357 = vpop.f32.mrf.mxu0
    %v5358 = vadd.f32 %v5310, %v5357
    %v5359 = vpop.f32.mrf.mxu0
    %v5360 = vpop.f32.mrf.mxu0
    %v5361 = vpop.f32.mrf.mxu0
    %5362 = vdwg.mxu0
    %5363 = vmatprep.subr.bf16.mxu0 0
    %5364 = vmatpush1.bf16.xpose.msra.mxu0 0
    %5365 = vmatprep.subr.bf16.mxu0 0
    %5366 = vmatpush1.bf16.xpose.msra.mxu0 0
    %5367 = vmatprep.subr.bf16.mxu0 0
    %5368 = vmatpush1.bf16.xpose.msra.mxu0 0
    %5369 = vmatprep.subr.bf16.mxu0 0
    %5370 = vmatpush1.bf16.xpose.msra.mxu0 0
    %5371 = vmatprep.subr.bf16.mxu0 0
    %5372 = vmatpush1.bf16.xpose.msra.mxu0 0
    %5373 = vmatprep.subr.bf16.mxu0 0
    %5374 = vmatpush1.bf16.xpose.msra.mxu0 0
    %5375 = vmatprep.subr.bf16.mxu0 %v5224
    %5376 = vmatpush1.bf16.xpose.msra.mxu0 %v5223
    %5377 = vmatprep.subr.bf16.mxu0 %v5208
    %5378 = vmatpush1.bf16.xpose.msra.mxu0 %v5207
    %5379 = vmatprep.subr.bf16.mxu0 0
    %5380 = vmatpush2.bf16.xpose.msra.mxu0 0
    %5381 = vmatprep.subr.bf16.mxu0 0
    %5382 = vmatpush2.bf16.xpose.msra.mxu0 0
    %5383 = vmatprep.subr.bf16.mxu0 0
    %5384 = vmatpush2.bf16.xpose.msra.mxu0 0
    %5385 = vmatprep.subr.bf16.mxu0 0
    %5386 = vmatpush2.bf16.xpose.msra.mxu0 0
    %5387 = vmatprep.subr.bf16.mxu0 0
    %5388 = vmatpush2.bf16.xpose.msra.mxu0 0
    %5389 = vmatprep.subr.bf16.mxu0 0
    %5390 = vmatpush2.bf16.xpose.msra.mxu0 0
    %5391 = vmatprep.subr.bf16.mxu0 0
    %5392 = vmatpush2.bf16.xpose.msra.mxu0 0
    %5393 = vmatprep.subr.bf16.mxu0 0
    %5394 = vmatpush2.bf16.xpose.msra.mxu0 0
    %5395 = vmatprep.mubr.bf16.mxu0 %v5039
    %5396 = vmatmul.mubr.bf16.gmra.mxu0 %v5038
    %v5397 = vpop.f32.mrf.mxu0
    %v5398 = vadd.f32 %v5350, %v5397
    %v5399 = vpop.f32.mrf.mxu0
    %v5400 = vpop.f32.mrf.mxu0
    %v5401 = vadd.f32 %v5353, %v5400
    %v5402 = vpop.f32.mrf.mxu0
    %5403 = vmatprep.mubr.bf16.mxu0 %v5055
    %5404 = vmatmul.mubr.bf16.gmra.mxu0 %v5054
    %v5405 = vpop.f32.mrf.mxu0
    %v5406 = vadd.f32 %v5358, %v5405
    %v5407 = vpop.f32.mrf.mxu0
    %v5408 = vpop.f32.mrf.mxu0
    %v5409 = vpop.f32.mrf.mxu0
    %5410 = vdwg.mxu0
    %5411 = vmatprep.subr.bf16.mxu0 0
    %5412 = vmatpush1.bf16.xpose.msra.mxu0 0
    %5413 = vmatprep.subr.bf16.mxu0 0
    %5414 = vmatpush1.bf16.xpose.msra.mxu0 0
    %5415 = vmatprep.subr.bf16.mxu0 0
    %5416 = vmatpush1.bf16.xpose.msra.mxu0 0
    %5417 = vmatprep.subr.bf16.mxu0 0
    %5418 = vmatpush1.bf16.xpose.msra.mxu0 0
    %5419 = vmatprep.subr.bf16.mxu0 0
    %5420 = vmatpush1.bf16.xpose.msra.mxu0 0
    %5421 = vmatprep.subr.bf16.mxu0 0
    %5422 = vmatpush1.bf16.xpose.msra.mxu0 0
    %5423 = vmatprep.subr.bf16.mxu0 %v5226
    %5424 = vmatpush1.bf16.xpose.msra.mxu0 %v5225
    %5425 = vmatprep.subr.bf16.mxu0 %v5210
    %5426 = vmatpush1.bf16.xpose.msra.mxu0 %v5209
    %5427 = vmatprep.subr.bf16.mxu0 0
    %5428 = vmatpush2.bf16.xpose.msra.mxu0 0
    %5429 = vmatprep.subr.bf16.mxu0 0
    %5430 = vmatpush2.bf16.xpose.msra.mxu0 0
    %5431 = vmatprep.subr.bf16.mxu0 0
    %5432 = vmatpush2.bf16.xpose.msra.mxu0 0
    %5433 = vmatprep.subr.bf16.mxu0 0
    %5434 = vmatpush2.bf16.xpose.msra.mxu0 0
    %5435 = vmatprep.subr.bf16.mxu0 0
    %5436 = vmatpush2.bf16.xpose.msra.mxu0 0
    %5437 = vmatprep.subr.bf16.mxu0 0
    %5438 = vmatpush2.bf16.xpose.msra.mxu0 0
    %5439 = vmatprep.subr.bf16.mxu0 0
    %5440 = vmatpush2.bf16.xpose.msra.mxu0 0
    %5441 = vmatprep.subr.bf16.mxu0 0
    %5442 = vmatpush2.bf16.xpose.msra.mxu0 0
    %5443 = vmatprep.mubr.bf16.mxu0 %v5041
    %5444 = vmatmul.mubr.bf16.gmra.mxu0 %v5040
    %v5445 = vpop.f32.mrf.mxu0
    %v5446 = vadd.f32 %v5398, %v5445
    %v5447 = vpop.f32.mrf.mxu0
    %v5448 = vpop.f32.mrf.mxu0
    %v5449 = vadd.f32 %v5401, %v5448
    %v5450 = vpop.f32.mrf.mxu0
    %5451 = vmatprep.mubr.bf16.mxu0 %v5057
    %5452 = vmatmul.mubr.bf16.gmra.mxu0 %v5056
    %v5453 = vpop.f32.mrf.mxu0
    %v5454 = vadd.f32 %v5406, %v5453
    %v5455 = vpop.f32.mrf.mxu0
    %v5456 = vpop.f32.mrf.mxu0
    %v5457 = vpop.f32.mrf.mxu0
    %5458 = vdwg.mxu0
    %5459 = vmatprep.subr.bf16.mxu0 0
    %5460 = vmatpush1.bf16.xpose.msra.mxu0 0
    %5461 = vmatprep.subr.bf16.mxu0 0
    %5462 = vmatpush1.bf16.xpose.msra.mxu0 0
    %5463 = vmatprep.subr.bf16.mxu0 0
    %5464 = vmatpush1.bf16.xpose.msra.mxu0 0
    %5465 = vmatprep.subr.bf16.mxu0 0
    %5466 = vmatpush1.bf16.xpose.msra.mxu0 0
    %5467 = vmatprep.subr.bf16.mxu0 0
    %5468 = vmatpush1.bf16.xpose.msra.mxu0 0
    %5469 = vmatprep.subr.bf16.mxu0 0
    %5470 = vmatpush1.bf16.xpose.msra.mxu0 0
    %5471 = vmatprep.subr.bf16.mxu0 %v5228
    %5472 = vmatpush1.bf16.xpose.msra.mxu0 %v5227
    %5473 = vmatprep.subr.bf16.mxu0 %v5212
    %5474 = vmatpush1.bf16.xpose.msra.mxu0 %v5211
    %5475 = vmatprep.subr.bf16.mxu0 0
    %5476 = vmatpush2.bf16.xpose.msra.mxu0 0
    %5477 = vmatprep.subr.bf16.mxu0 0
    %5478 = vmatpush2.bf16.xpose.msra.mxu0 0
    %5479 = vmatprep.subr.bf16.mxu0 0
    %5480 = vmatpush2.bf16.xpose.msra.mxu0 0
    %5481 = vmatprep.subr.bf16.mxu0 0
    %5482 = vmatpush2.bf16.xpose.msra.mxu0 0
    %5483 = vmatprep.subr.bf16.mxu0 0
    %5484 = vmatpush2.bf16.xpose.msra.mxu0 0
    %5485 = vmatprep.subr.bf16.mxu0 0
    %5486 = vmatpush2.bf16.xpose.msra.mxu0 0
    %5487 = vmatprep.subr.bf16.mxu0 0
    %5488 = vmatpush2.bf16.xpose.msra.mxu0 0
    %5489 = vmatprep.subr.bf16.mxu0 0
    %5490 = vmatpush2.bf16.xpose.msra.mxu0 0
    %5491 = vmatprep.mubr.bf16.mxu0 %v5043
    %5492 = vmatmul.mubr.bf16.gmra.mxu0 %v5042
    %v5493 = vpop.f32.mrf.mxu0
    %v5494 = vadd.f32 %v5446, %v5493
    %v5495 = vpop.f32.mrf.mxu0
    %v5496 = vpop.f32.mrf.mxu0
    %v5497 = vadd.f32 %v5449, %v5496
    %v5498 = vpop.f32.mrf.mxu0
    %5499 = vmatprep.mubr.bf16.mxu0 %v5059
    %5500 = vmatmul.mubr.bf16.gmra.mxu0 %v5058
    %v5501 = vpop.f32.mrf.mxu0
    %v5502 = vadd.f32 %v5454, %v5501
    %v5503 = vpop.f32.mrf.mxu0
    %v5504 = vpop.f32.mrf.mxu0
    %v5505 = vpop.f32.mrf.mxu0
    %5506 = vdwg.mxu0
    %5507 = vmatprep.subr.bf16.mxu0 0
    %5508 = vmatpush1.bf16.xpose.msra.mxu0 0
    %5509 = vmatprep.subr.bf16.mxu0 0
    %5510 = vmatpush1.bf16.xpose.msra.mxu0 0
    %5511 = vmatprep.subr.bf16.mxu0 0
    %5512 = vmatpush1.bf16.xpose.msra.mxu0 0
    %5513 = vmatprep.subr.bf16.mxu0 0
    %5514 = vmatpush1.bf16.xpose.msra.mxu0 0
    %5515 = vmatprep.subr.bf16.mxu0 0
    %5516 = vmatpush1.bf16.xpose.msra.mxu0 0
    %5517 = vmatprep.subr.bf16.mxu0 0
    %5518 = vmatpush1.bf16.xpose.msra.mxu0 0
    %5519 = vmatprep.subr.bf16.mxu0 %v5230
    %5520 = vmatpush1.bf16.xpose.msra.mxu0 %v5229
    %5521 = vmatprep.subr.bf16.mxu0 %v5214
    %5522 = vmatpush1.bf16.xpose.msra.mxu0 %v5213
    %5523 = vmatprep.subr.bf16.mxu0 0
    %5524 = vmatpush2.bf16.xpose.msra.mxu0 0
    %5525 = vmatprep.subr.bf16.mxu0 0
    %5526 = vmatpush2.bf16.xpose.msra.mxu0 0
    %5527 = vmatprep.subr.bf16.mxu0 0
    %5528 = vmatpush2.bf16.xpose.msra.mxu0 0
    %5529 = vmatprep.subr.bf16.mxu0 0
    %5530 = vmatpush2.bf16.xpose.msra.mxu0 0
    %5531 = vmatprep.subr.bf16.mxu0 0
    %5532 = vmatpush2.bf16.xpose.msra.mxu0 0
    %5533 = vmatprep.subr.bf16.mxu0 0
    %5534 = vmatpush2.bf16.xpose.msra.mxu0 0
    %5535 = vmatprep.subr.bf16.mxu0 0
    %5536 = vmatpush2.bf16.xpose.msra.mxu0 0
    %5537 = vmatprep.subr.bf16.mxu0 0
    %5538 = vmatpush2.bf16.xpose.msra.mxu0 0
    %5539 = vmatprep.mubr.bf16.mxu0 %v5045
    %5540 = vmatmul.mubr.bf16.gmra.mxu0 %v5044
    %v5541 = vpop.f32.mrf.mxu0
    %v5542 = vadd.f32 %v5494, %v5541
    %v5543 = vpop.f32.mrf.mxu0
    %v5544 = vpop.f32.mrf.mxu0
    %v5545 = vadd.f32 %v5497, %v5544
    %v5546 = vpop.f32.mrf.mxu0
    %5547 = vmatprep.mubr.bf16.mxu0 %v5061
    %5548 = vmatmul.mubr.bf16.gmra.mxu0 %v5060
    %v5549 = vpop.f32.mrf.mxu0
    %v5550 = vadd.f32 %v5502, %v5549
    %v5551 = vpop.f32.mrf.mxu0
    %v5552 = vpop.f32.mrf.mxu0
    %v5553 = vpop.f32.mrf.mxu0
    %5554 = vdwg.mxu0
    %5555 = vmatprep.subr.bf16.mxu0 0
    %5556 = vmatpush1.bf16.xpose.msra.mxu0 0
    %5557 = vmatprep.subr.bf16.mxu0 0
    %5558 = vmatpush1.bf16.xpose.msra.mxu0 0
    %5559 = vmatprep.subr.bf16.mxu0 0
    %5560 = vmatpush1.bf16.xpose.msra.mxu0 0
    %5561 = vmatprep.subr.bf16.mxu0 0
    %5562 = vmatpush1.bf16.xpose.msra.mxu0 0
    %5563 = vmatprep.subr.bf16.mxu0 0
    %5564 = vmatpush1.bf16.xpose.msra.mxu0 0
    %5565 = vmatprep.subr.bf16.mxu0 0
    %5566 = vmatpush1.bf16.xpose.msra.mxu0 0
    %5567 = vmatprep.subr.bf16.mxu0 %v5232
    %5568 = vmatpush1.bf16.xpose.msra.mxu0 %v5231
    %5569 = vmatprep.subr.bf16.mxu0 %v5216
    %5570 = vmatpush1.bf16.xpose.msra.mxu0 %v5215
    %5571 = vmatprep.subr.bf16.mxu0 0
    %5572 = vmatpush2.bf16.xpose.msra.mxu0 0
    %5573 = vmatprep.subr.bf16.mxu0 0
    %5574 = vmatpush2.bf16.xpose.msra.mxu0 0
    %5575 = vmatprep.subr.bf16.mxu0 0
    %5576 = vmatpush2.bf16.xpose.msra.mxu0 0
    %5577 = vmatprep.subr.bf16.mxu0 0
    %5578 = vmatpush2.bf16.xpose.msra.mxu0 0
    %5579 = vmatprep.subr.bf16.mxu0 0
    %5580 = vmatpush2.bf16.xpose.msra.mxu0 0
    %5581 = vmatprep.subr.bf16.mxu0 0
    %5582 = vmatpush2.bf16.xpose.msra.mxu0 0
    %5583 = vmatprep.subr.bf16.mxu0 0
    %5584 = vmatpush2.bf16.xpose.msra.mxu0 0
    %5585 = vmatprep.subr.bf16.mxu0 0
    %5586 = vmatpush2.bf16.xpose.msra.mxu0 0
    %5587 = vmatprep.mubr.bf16.mxu0 %v5047
    %5588 = vmatmul.mubr.bf16.gmra.mxu0 %v5046
    %v5589 = vpop.f32.mrf.mxu0
    %v5590 = vadd.f32 %v5542, %v5589
    %v5591 = vpop.f32.mrf.mxu0
    %v5592 = vpop.f32.mrf.mxu0
    %v5593 = vadd.f32 %v5545, %v5592
    %v5594 = vpop.f32.mrf.mxu0
    %5595 = vmatprep.mubr.bf16.mxu0 %v5063
    %5596 = vmatmul.mubr.bf16.gmra.mxu0 %v5062
    %v5597 = vpop.f32.mrf.mxu0
    %v5598 = vadd.f32 %v5550, %v5597
    %v5599 = vpop.f32.mrf.mxu0
    %v5600 = vpop.f32.mrf.mxu0
    %v5601 = vpop.f32.mrf.mxu0
    %5602 = vdwg.mxu0
    %5603 = vmatprep.subr.bf16.mxu0 0
    %5604 = vmatpush1.bf16.xpose.msra.mxu0 0
    %5605 = vmatprep.subr.bf16.mxu0 0
    %5606 = vmatpush1.bf16.xpose.msra.mxu0 0
    %5607 = vmatprep.subr.bf16.mxu0 0
    %5608 = vmatpush1.bf16.xpose.msra.mxu0 0
    %5609 = vmatprep.subr.bf16.mxu0 0
    %5610 = vmatpush1.bf16.xpose.msra.mxu0 0
    %5611 = vmatprep.subr.bf16.mxu0 0
    %5612 = vmatpush1.bf16.xpose.msra.mxu0 0
    %5613 = vmatprep.subr.bf16.mxu0 0
    %5614 = vmatpush1.bf16.xpose.msra.mxu0 0
    %5615 = vmatprep.subr.bf16.mxu0 %v5234
    %5616 = vmatpush1.bf16.xpose.msra.mxu0 %v5233
    %5617 = vmatprep.subr.bf16.mxu0 %v5218
    %5618 = vmatpush1.bf16.xpose.msra.mxu0 %v5217
    %5619 = vmatprep.subr.bf16.mxu0 0
    %5620 = vmatpush2.bf16.xpose.msra.mxu0 0
    %5621 = vmatprep.subr.bf16.mxu0 0
    %5622 = vmatpush2.bf16.xpose.msra.mxu0 0
    %5623 = vmatprep.subr.bf16.mxu0 0
    %5624 = vmatpush2.bf16.xpose.msra.mxu0 0
    %5625 = vmatprep.subr.bf16.mxu0 0
    %5626 = vmatpush2.bf16.xpose.msra.mxu0 0
    %5627 = vmatprep.subr.bf16.mxu0 0
    %5628 = vmatpush2.bf16.xpose.msra.mxu0 0
    %5629 = vmatprep.subr.bf16.mxu0 0
    %5630 = vmatpush2.bf16.xpose.msra.mxu0 0
    %5631 = vmatprep.subr.bf16.mxu0 0
    %5632 = vmatpush2.bf16.xpose.msra.mxu0 0
    %5633 = vmatprep.subr.bf16.mxu0 0
    %5634 = vmatpush2.bf16.xpose.msra.mxu0 0
    %5635 = vmatprep.mubr.bf16.mxu0 %v5049
    %5636 = vmatmul.mubr.bf16.gmra.mxu0 %v5048
    %v5637 = vpop.f32.mrf.mxu0
    %v5638 = vadd.f32 %v5590, %v5637
    %v5639 = vpop.f32.mrf.mxu0
    %v5640 = vpop.f32.mrf.mxu0
    %v5641 = vadd.f32 %v5593, %v5640
    %v5642 = vpop.f32.mrf.mxu0
    %5643 = vmatprep.mubr.bf16.mxu0 %v5065
    %5644 = vmatmul.mubr.bf16.gmra.mxu0 %v5064
    %v5645 = vpop.f32.mrf.mxu0
    %v5646 = vadd.f32 %v5598, %v5645
    %v5647 = vpop.f32.mrf.mxu0
    %v5648 = vpop.f32.mrf.mxu0
    %v5649 = vpop.f32.mrf.mxu0
    %5650 = vdwg.mxu0
    %v5651 = vadd.f32 %v4289, %v5638
    %v5652 = vadd.f32 %v4290, %v5641
    %v5653 = vadd.f32 %v4291, %v5646
    %s5654 = scalar_lea.vmem %s59, 1
    %v5655 = vld [vmem:[%s5654] sm:$0x1]
    %s5656 = scalar_lea.vmem %s61, 1
    %v5657 = vld [vmem:[%s5656] sm:$0x1]
    %v5658 = vsel %vm450, %v5651, 0.0
    %5659 = vadd.xlane.f32.xlu0 %v5658
    %v5660 = vpop.xlane.xlu0 %5659
    %v5661 = vsel %vm450, %v5652, 0.0
    %5662 = vadd.xlane.f32.xlu0 %v5661
    %v5663 = vpop.xlane.xlu0 %5662
    %v5664 = vsel %vm1748, %v5653, 0.0
    %5665 = vadd.xlane.f32.xlu0 %v5664
    %v5666 = vpop.xlane.xlu0 %5665
    %v5667 = vmul.f32 %v5660, %v457
    %v5668 = vmul.f32 %v5663, %v457
    %v5669 = vmul.f32 %v5666, %v457
    %v5670 = vsub.f32 %v5651, %v5667
    %v5671 = vsub.f32 %v5652, %v5668
    %v5672 = vsub.f32 %v5653, %v5669
    %v5673 = vmul.f32 %v5670, %v5670
    %v5674 = vmul.f32 %v5671, %v5671
    %v5675 = vmul.f32 %v5672, %v5672
    %v5676 = vsel %vm450, %v5673, 0.0
    %5677 = vadd.xlane.f32.xlu0 %v5676
    %v5678 = vpop.xlane.xlu0 %5677
    %v5679 = vsel %vm450, %v5674, 0.0
    %5680 = vadd.xlane.f32.xlu0 %v5679
    %v5681 = vpop.xlane.xlu0 %5680
    %v5682 = vsel %vm1748, %v5675, 0.0
    %5683 = vadd.xlane.f32.xlu0 %v5682
    %v5684 = vpop.xlane.xlu0 %5683
    %v5685 = vmul.f32 %v5678, %v457
    %v5686 = vmul.f32 %v5681, %v457
    %v5687 = vmul.f32 %v5684, %v457
    %v5688 = vadd.f32 %v5685, 1e-05
    %v5689 = vadd.f32 %v5686, 1e-05
    %v5690 = vadd.f32 %v5687, 1e-05
    %v5691 = vrsqrt.pop %v5688
    %v5692 = vrsqrt.pop %v5689
    %v5693 = vrsqrt.pop %v5690
    %v5694 = vmul.f32 %v5670, %v5691
    %v5695 = vmul.f32 %v5671, %v5692
    %v5696 = vmul.f32 %v5672, %v5693
    %v5698 = vlaneseq
    %v5699 = vshrl.u32 %v5698, 7
    %v5700 = vsub.s32 0, %v5699
    %v5701 = vrot.slane %v5655, %v5700
    %v5703 = vmul.f32 %v5694, %v5701
    %v5704 = vmul.f32 %v5695, %v5701
    %v5705 = vmul.f32 %v5696, %v5701
    %v5707 = vlaneseq
    %v5708 = vshrl.u32 %v5707, 7
    %v5709 = vsub.s32 0, %v5708
    %v5710 = vrot.slane %v5657, %v5709
    %v5712 = vadd.f32 %v5703, %v5710
    %v5713 = vadd.f32 %v5704, %v5710
    %v5714 = vadd.f32 %v5705, %v5710
    %v5715 = vpack.c.bf16 %v5713, %v5712
    %v5716 = vpack.c.bf16 %v5714, %v5714
    %s5717 = scalar_lea.vmem %s31, 32
    %v5718 = vld [vmem:[%s5717] sm:$0xf]
    %v5719 = vld [vmem:[%s5717 + $0x4] sm:$0xf]
    %v5720 = vld [vmem:[%s5717 + $0x8] sm:$0xf]
    %v5721 = vld [vmem:[%s5717 + $0xc] sm:$0xf]
    %s5722 = scalar_lea.vmem %s37, 2
    %v5723 = vld [vmem:[%s5722] sm:$0x1]
    %v5725 = vlaneseq
    %v5726 = vshrl.u32 %v5725, 7
    %v5727 = vsub.s32 0, %v5726
    %v5728 = vrot.slane %v5723, %v5727
    %v5734 = vunpack.c.l.b16 %v5718
    %v5735 = vunpack.c.l.b16 %v5719
    %v5736 = vunpack.c.l.b16 %v5720
    %v5737 = vunpack.c.l.b16 %v5721
    %v5738 = vpack.c.b16 %v5735, %v5734
    %v5739 = vpack.c.b16 %v5737, %v5736
    %v5743 = vsel %vm450, %v5715, 0
    %v5746 = vsel %vm450, %v5716, 0
    %5748 = vmatprep.subr.bf16.mxu0 0
    %5749 = vmatpush1.bf16.msra.mxu0 0
    %5750 = vmatprep.subr.bf16.mxu0 0
    %5751 = vmatpush1.bf16.msra.mxu0 0
    %5752 = vmatprep.subr.bf16.mxu0 0
    %5753 = vmatpush1.bf16.msra.mxu0 0
    %5754 = vmatprep.subr.bf16.mxu0 0
    %5755 = vmatpush1.bf16.msra.mxu0 0
    %5756 = vmatprep.subr.bf16.mxu0 0
    %5757 = vmatpush1.bf16.msra.mxu0 0
    %5758 = vmatprep.subr.bf16.mxu0 0
    %5759 = vmatpush1.bf16.msra.mxu0 0
    %5760 = vmatprep.subr.bf16.mxu0 0
    %5761 = vmatpush1.bf16.msra.mxu0 %v5739
    %5762 = vmatprep.subr.bf16.mxu0 0
    %5763 = vmatpush1.bf16.msra.mxu0 %v5738
    %5764 = vmatprep.subr.bf16.mxu0 0
    %5765 = vmatpush2.bf16.msra.mxu0 0
    %5766 = vmatprep.subr.bf16.mxu0 0
    %5767 = vmatpush2.bf16.msra.mxu0 0
    %5768 = vmatprep.subr.bf16.mxu0 0
    %5769 = vmatpush2.bf16.msra.mxu0 0
    %5770 = vmatprep.subr.bf16.mxu0 0
    %5771 = vmatpush2.bf16.msra.mxu0 0
    %5772 = vmatprep.subr.bf16.mxu0 0
    %5773 = vmatpush2.bf16.msra.mxu0 0
    %5774 = vmatprep.subr.bf16.mxu0 0
    %5775 = vmatpush2.bf16.msra.mxu0 0
    %5776 = vmatprep.subr.bf16.mxu0 0
    %5777 = vmatpush2.bf16.msra.mxu0 0
    %5778 = vmatprep.subr.bf16.mxu0 0
    %5779 = vmatpush2.bf16.msra.mxu0 0
    %5780 = vmatprep.mubr.bf16.mxu0 0
    %5781 = vmatmul.mubr.bf16.gmra.mxu0 %v5743
    %v5782 = vpop.f32.mrf.mxu0
    %v5783 = vadd.f32 %v5728, %v5782
    %v5784 = vpop.f32.mrf.mxu0
    %v5785 = vpop.f32.mrf.mxu0
    %v5786 = vadd.f32 %v5728, %v5785
    %v5787 = vpop.f32.mrf.mxu0
    %5788 = vmatprep.mubr.bf16.mxu0 0
    %5789 = vmatmul.mubr.bf16.gmra.mxu0 %v5746
    %v5790 = vpop.f32.mrf.mxu0
    %v5791 = vadd.f32 %v5728, %v5790
    %v5792 = vpop.f32.mrf.mxu0
    %v5793 = vpop.f32.mrf.mxu0
    %v5794 = vpop.f32.mrf.mxu0
    %5795 = vdwg.mxu0
    %s5796 = scalar_lea.vmem [#allocation23], 32
    %v5797 = vld [vmem:[%s5796] sm:$0xf]
    %v5798 = vld [vmem:[%s5796 + $0x4] sm:$0xf]
    %v5799 = vld [vmem:[%s5796 + $0x8] sm:$0xf]
    %v5800 = vld [vmem:[%s5796 + $0xc] sm:$0xf]
    %s5801 = scalar_lea.vmem %s39, 2
    %v5802 = vld [vmem:[%s5801] sm:$0x1]
    %v5804 = vlaneseq
    %v5805 = vshrl.u32 %v5804, 7
    %v5806 = vsub.s32 0, %v5805
    %v5807 = vrot.slane %v5802, %v5806
    %v5813 = vunpack.c.l.b16 %v5797
    %v5814 = vunpack.c.l.b16 %v5798
    %v5815 = vunpack.c.l.b16 %v5799
    %v5816 = vunpack.c.l.b16 %v5800
    %v5817 = vpack.c.b16 %v5814, %v5813
    %v5818 = vpack.c.b16 %v5816, %v5815
    %5821 = vmatprep.subr.bf16.mxu0 0
    %5822 = vmatpush1.bf16.msra.mxu0 0
    %5823 = vmatprep.subr.bf16.mxu0 0
    %5824 = vmatpush1.bf16.msra.mxu0 0
    %5825 = vmatprep.subr.bf16.mxu0 0
    %5826 = vmatpush1.bf16.msra.mxu0 0
    %5827 = vmatprep.subr.bf16.mxu0 0
    %5828 = vmatpush1.bf16.msra.mxu0 0
    %5829 = vmatprep.subr.bf16.mxu0 0
    %5830 = vmatpush1.bf16.msra.mxu0 0
    %5831 = vmatprep.subr.bf16.mxu0 0
    %5832 = vmatpush1.bf16.msra.mxu0 0
    %5833 = vmatprep.subr.bf16.mxu0 0
    %5834 = vmatpush1.bf16.msra.mxu0 %v5818
    %5835 = vmatprep.subr.bf16.mxu0 0
    %5836 = vmatpush1.bf16.msra.mxu0 %v5817
    %5837 = vmatprep.subr.bf16.mxu0 0
    %5838 = vmatpush2.bf16.msra.mxu0 0
    %5839 = vmatprep.subr.bf16.mxu0 0
    %5840 = vmatpush2.bf16.msra.mxu0 0
    %5841 = vmatprep.subr.bf16.mxu0 0
    %5842 = vmatpush2.bf16.msra.mxu0 0
    %5843 = vmatprep.subr.bf16.mxu0 0
    %5844 = vmatpush2.bf16.msra.mxu0 0
    %5845 = vmatprep.subr.bf16.mxu0 0
    %5846 = vmatpush2.bf16.msra.mxu0 0
    %5847 = vmatprep.subr.bf16.mxu0 0
    %5848 = vmatpush2.bf16.msra.mxu0 0
    %5849 = vmatprep.subr.bf16.mxu0 0
    %5850 = vmatpush2.bf16.msra.mxu0 0
    %5851 = vmatprep.subr.bf16.mxu0 0
    %5852 = vmatpush2.bf16.msra.mxu0 0
    %5853 = vmatprep.mubr.bf16.mxu0 0
    %5854 = vmatmul.mubr.bf16.gmra.mxu0 %v5743
    %v5855 = vpop.f32.mrf.mxu0
    %v5856 = vadd.f32 %v5807, %v5855
    %v5857 = vpop.f32.mrf.mxu0
    %v5858 = vpop.f32.mrf.mxu0
    %v5859 = vadd.f32 %v5807, %v5858
    %v5860 = vpop.f32.mrf.mxu0
    %5861 = vmatprep.mubr.bf16.mxu0 0
    %5862 = vmatmul.mubr.bf16.gmra.mxu0 %v5746
    %v5863 = vpop.f32.mrf.mxu0
    %v5864 = vadd.f32 %v5807, %v5863
    %v5865 = vpop.f32.mrf.mxu0
    %v5866 = vpop.f32.mrf.mxu0
    %v5867 = vpop.f32.mrf.mxu0
    %5868 = vdwg.mxu0
    %s5869 = scalar_lea.vmem [#allocation25], 32
    %v5870 = vld [vmem:[%s5869] sm:$0xf]
    %v5871 = vld [vmem:[%s5869 + $0x4] sm:$0xf]
    %v5872 = vld [vmem:[%s5869 + $0x8] sm:$0xf]
    %v5873 = vld [vmem:[%s5869 + $0xc] sm:$0xf]
    %s5874 = scalar_lea.vmem %s41, 2
    %v5875 = vld [vmem:[%s5874] sm:$0x1]
    %v5877 = vlaneseq
    %v5878 = vshrl.u32 %v5877, 7
    %v5879 = vsub.s32 0, %v5878
    %v5880 = vrot.slane %v5875, %v5879
    %v5886 = vunpack.c.l.b16 %v5870
    %v5887 = vunpack.c.l.b16 %v5871
    %v5888 = vunpack.c.l.b16 %v5872
    %v5889 = vunpack.c.l.b16 %v5873
    %v5890 = vpack.c.b16 %v5887, %v5886
    %v5891 = vpack.c.b16 %v5889, %v5888
    %5894 = vmatprep.subr.bf16.mxu0 0
    %5895 = vmatpush1.bf16.msra.mxu0 0
    %5896 = vmatprep.subr.bf16.mxu0 0
    %5897 = vmatpush1.bf16.msra.mxu0 0
    %5898 = vmatprep.subr.bf16.mxu0 0
    %5899 = vmatpush1.bf16.msra.mxu0 0
    %5900 = vmatprep.subr.bf16.mxu0 0
    %5901 = vmatpush1.bf16.msra.mxu0 0
    %5902 = vmatprep.subr.bf16.mxu0 0
    %5903 = vmatpush1.bf16.msra.mxu0 0
    %5904 = vmatprep.subr.bf16.mxu0 0
    %5905 = vmatpush1.bf16.msra.mxu0 0
    %5906 = vmatprep.subr.bf16.mxu0 0
    %5907 = vmatpush1.bf16.msra.mxu0 %v5891
    %5908 = vmatprep.subr.bf16.mxu0 0
    %5909 = vmatpush1.bf16.msra.mxu0 %v5890
    %5910 = vmatprep.subr.bf16.mxu0 0
    %5911 = vmatpush2.bf16.msra.mxu0 0
    %5912 = vmatprep.subr.bf16.mxu0 0
    %5913 = vmatpush2.bf16.msra.mxu0 0
    %5914 = vmatprep.subr.bf16.mxu0 0
    %5915 = vmatpush2.bf16.msra.mxu0 0
    %5916 = vmatprep.subr.bf16.mxu0 0
    %5917 = vmatpush2.bf16.msra.mxu0 0
    %5918 = vmatprep.subr.bf16.mxu0 0
    %5919 = vmatpush2.bf16.msra.mxu0 0
    %5920 = vmatprep.subr.bf16.mxu0 0
    %5921 = vmatpush2.bf16.msra.mxu0 0
    %5922 = vmatprep.subr.bf16.mxu0 0
    %5923 = vmatpush2.bf16.msra.mxu0 0
    %5924 = vmatprep.subr.bf16.mxu0 0
    %5925 = vmatpush2.bf16.msra.mxu0 0
    %5926 = vmatprep.mubr.bf16.mxu0 0
    %5927 = vmatmul.mubr.bf16.gmra.mxu0 %v5743
    %v5928 = vpop.f32.mrf.mxu0
    %v5929 = vadd.f32 %v5880, %v5928
    %v5930 = vpop.f32.mrf.mxu0
    %v5931 = vpop.f32.mrf.mxu0
    %v5932 = vadd.f32 %v5880, %v5931
    %v5933 = vpop.f32.mrf.mxu0
    %5934 = vmatprep.mubr.bf16.mxu0 0
    %5935 = vmatmul.mubr.bf16.gmra.mxu0 %v5746
    %v5936 = vpop.f32.mrf.mxu0
    %v5937 = vadd.f32 %v5880, %v5936
    %v5938 = vpop.f32.mrf.mxu0
    %v5939 = vpop.f32.mrf.mxu0
    %v5940 = vpop.f32.mrf.mxu0
    %5941 = vdwg.mxu0
    %v5944 = vrot.slane %v5856, 6
    %v5945 = vrot.slane %v5859, 6
    %v5946 = vsel %vm953, %v5944, %v5945
    %v5949 = vrot.slane %v5856, 4
    %v5950 = vrot.slane %v5859, 4
    %v5951 = vsel %vm509, %v5949, %v5950
    %v5954 = vrot.slane %v5856, 2
    %v5955 = vrot.slane %v5859, 2
    %v5956 = vsel %vm964, %v5954, %v5955
    %v5959 = vsel %vm953, %v5859, %v5944
    %v5960 = vsel %vm509, %v5946, %v5949
    %v5961 = vsel %vm964, %v5951, %v5954
    %v5962 = vmul.f32 %v5856, %v710
    %v5963 = vmul.f32 %v5959, %v711
    %v5964 = vmul.f32 %v5960, %v712
    %v5965 = vmul.f32 %v5961, %v713
    %v5966 = vmul.f32 %v5956, %v714
    %v5967 = vmul.f32 %v5856, %v715
    %v5968 = vmul.f32 %v5959, %v716
    %v5969 = vmul.f32 %v5960, %v717
    %v5970 = vmul.f32 %v5961, %v718
    %v5971 = vmul.f32 %v5956, %v719
    %v5974 = vrot.slane %v5929, 6
    %v5975 = vrot.slane %v5932, 6
    %v5976 = vsel %vm953, %v5974, %v5975
    %v5979 = vrot.slane %v5929, 4
    %v5980 = vrot.slane %v5932, 4
    %v5981 = vsel %vm509, %v5979, %v5980
    %v5984 = vrot.slane %v5929, 2
    %v5985 = vrot.slane %v5932, 2
    %v5986 = vsel %vm964, %v5984, %v5985
    %v5989 = vsel %vm953, %v5932, %v5974
    %v5990 = vsel %vm509, %v5976, %v5979
    %v5991 = vsel %vm964, %v5981, %v5984
    %v5992 = vmul.f32 %v5929, %v710
    %v5993 = vmul.f32 %v5989, %v711
    %v5994 = vmul.f32 %v5990, %v712
    %v5995 = vmul.f32 %v5991, %v713
    %v5996 = vmul.f32 %v5986, %v714
    %v5997 = vmul.f32 %v5929, %v715
    %v5998 = vmul.f32 %v5989, %v716
    %v5999 = vmul.f32 %v5990, %v717
    %v6000 = vmul.f32 %v5991, %v718
    %v6001 = vmul.f32 %v5986, %v719
    %v6003 = vsel %vm450, %v5783, 0
    %v6006 = vsel %vm450, %v5786, 0
    %v6009 = vsel %vm450, %v5962, 0
    %v6012 = vsel %vm450, %v5963, 0
    %v6015 = vsel %vm450, %v5964, 0
    %v6018 = vsel %vm450, %v5965, 0
    %v6021 = vsel %vm450, %v5966, 0
    %v6024 = vsel %vm450, %v5967, 0
    %v6027 = vsel %vm450, %v5968, 0
    %v6030 = vsel %vm450, %v5969, 0
    %v6033 = vsel %vm450, %v5970, 0
    %v6036 = vsel %vm450, %v5971, 0
    %6038 = vmatprep.subr.mxu0 0.0
    %6039 = vmatpush1.xpose.msra.mxu0 0.0
    %6040 = vmatprep.subr.mxu0 0.0
    %6041 = vmatpush1.xpose.msra.mxu0 0.0
    %6042 = vmatprep.subr.mxu0 0.0
    %6043 = vmatpush1.xpose.msra.mxu0 0.0
    %6044 = vmatprep.subr.mxu0 0.0
    %6045 = vmatpush1.xpose.msra.mxu0 0.0
    %6046 = vmatprep.subr.mxu0 0.0
    %6047 = vmatpush1.xpose.msra.mxu0 0.0
    %6048 = vmatprep.subr.mxu0 0.0
    %6049 = vmatpush1.xpose.msra.mxu0 0.0
    %6050 = vmatprep.subr.mxu0 0.0
    %6051 = vmatpush1.xpose.msra.mxu0 %v6036
    %6052 = vmatprep.subr.mxu0 0.0
    %6053 = vmatpush1.xpose.msra.mxu0 %v6033
    %6054 = vmatprep.subr.mxu0 0.0
    %6055 = vmatpush1.xpose.msra.mxu0 %v6030
    %6056 = vmatprep.subr.mxu0 0.0
    %6057 = vmatpush1.xpose.msra.mxu0 %v6027
    %6058 = vmatprep.subr.mxu0 0.0
    %6059 = vmatpush1.xpose.msra.mxu0 %v6024
    %6060 = vmatprep.subr.mxu0 0.0
    %6061 = vmatpush1.xpose.msra.mxu0 %v6021
    %6062 = vmatprep.subr.mxu0 0.0
    %6063 = vmatpush1.xpose.msra.mxu0 %v6018
    %6064 = vmatprep.subr.mxu0 0.0
    %6065 = vmatpush1.xpose.msra.mxu0 %v6015
    %6066 = vmatprep.subr.mxu0 0.0
    %6067 = vmatpush1.xpose.msra.mxu0 %v6012
    %6068 = vmatprep.subr.mxu0 0.0
    %6069 = vmatpush1.xpose.msra.mxu0 %v6009
    %6070 = vmatprep.subr.mxu0 0.0
    %6071 = vmatpush2.xpose.msra.mxu0 0.0
    %6072 = vmatprep.subr.mxu0 0.0
    %6073 = vmatpush2.xpose.msra.mxu0 0.0
    %6074 = vmatprep.subr.mxu0 0.0
    %6075 = vmatpush2.xpose.msra.mxu0 0.0
    %6076 = vmatprep.subr.mxu0 0.0
    %6077 = vmatpush2.xpose.msra.mxu0 0.0
    %6078 = vmatprep.subr.mxu0 0.0
    %6079 = vmatpush2.xpose.msra.mxu0 0.0
    %6080 = vmatprep.subr.mxu0 0.0
    %6081 = vmatpush2.xpose.msra.mxu0 0.0
    %6082 = vmatprep.subr.mxu0 0.0
    %6083 = vmatpush2.xpose.msra.mxu0 0.0
    %6084 = vmatprep.subr.mxu0 0.0
    %6085 = vmatpush2.xpose.msra.mxu0 0.0
    %6086 = vmatprep.subr.mxu0 0.0
    %6087 = vmatpush2.xpose.msra.mxu0 0.0
    %6088 = vmatprep.subr.mxu0 0.0
    %6089 = vmatpush2.xpose.msra.mxu0 0.0
    %6090 = vmatprep.subr.mxu0 0.0
    %6091 = vmatpush2.xpose.msra.mxu0 0.0
    %6092 = vmatprep.subr.mxu0 0.0
    %6093 = vmatpush2.xpose.msra.mxu0 0.0
    %6094 = vmatprep.subr.mxu0 0.0
    %6095 = vmatpush2.xpose.msra.mxu0 0.0
    %6096 = vmatprep.subr.mxu0 0.0
    %6097 = vmatpush2.xpose.msra.mxu0 0.0
    %6098 = vmatprep.subr.mxu0 0.0
    %6099 = vmatpush2.xpose.msra.mxu0 0.0
    %6100 = vmatprep.subr.mxu0 0.0
    %6101 = vmatpush2.xpose.msra.mxu0 0.0
    %6102 = vmatprep.mubr.f32.mxu0 0.0
    %6103 = vmatmul.mubr.f32.gmra.mxu0 %v6003
    %v6104 = vpop.f32.mrf.mxu0
    %v6105 = vadd.f32 0.0, %v6104
    %v6106 = vpop.f32.mrf.mxu0
    %6107 = vmatprep.mubr.f32.mxu0 0.0
    %6108 = vmatmul.mubr.f32.gmra.mxu0 %v6006
    %v6109 = vpop.f32.mrf.mxu0
    %v6110 = vadd.f32 0.0, %v6109
    %v6111 = vpop.f32.mrf.mxu0
    %6112 = vdwg.mxu0
    %v6113 = vsel %vm1124, %v6105, -inf
    %6114 = vmax.xlane.f32.xlu0 %v6113
    %v6115 = vpop.xlane.xlu0 %6114
    %v6116 = vsel %vm1128, %v6110, -inf
    %6117 = vmax.xlane.f32.xlu0 %v6116
    %v6118 = vpop.xlane.xlu0 %6117
    %v6119 = vsub.f32 %v6105, %v6115
    %v6120 = vsub.f32 %v6110, %v6118
    %v6121 = vmul.f32 %v6119, 1.442695
    %v6122 = vpow.pop %v6121
    %v6123 = vmul.f32 %v6120, 1.442695
    %v6124 = vpow.pop %v6123
    %v6126 = vsel %vm1124, %v6122, 0
    %v6129 = vsel %vm1124, %v6124, 0
    %6131 = vmatprep.subr.mxu0 0.0
    %6132 = vmatpush1.msra.mxu0 0.0
    %6133 = vmatprep.subr.mxu0 0.0
    %6134 = vmatpush1.msra.mxu0 0.0
    %6135 = vmatprep.subr.mxu0 0.0
    %6136 = vmatpush1.msra.mxu0 0.0
    %6137 = vmatprep.subr.mxu0 0.0
    %6138 = vmatpush1.msra.mxu0 0.0
    %6139 = vmatprep.subr.mxu0 0.0
    %6140 = vmatpush1.msra.mxu0 0.0
    %6141 = vmatprep.subr.mxu0 0.0
    %6142 = vmatpush1.msra.mxu0 0.0
    %6143 = vmatprep.subr.mxu0 0.0
    %6144 = vmatpush1.msra.mxu0 %v729
    %6145 = vmatprep.subr.mxu0 0.0
    %6146 = vmatpush1.msra.mxu0 %v728
    %6147 = vmatprep.subr.mxu0 0.0
    %6148 = vmatpush1.msra.mxu0 %v727
    %6149 = vmatprep.subr.mxu0 0.0
    %6150 = vmatpush1.msra.mxu0 %v726
    %6151 = vmatprep.subr.mxu0 0.0
    %6152 = vmatpush1.msra.mxu0 %v725
    %6153 = vmatprep.subr.mxu0 0.0
    %6154 = vmatpush1.msra.mxu0 %v724
    %6155 = vmatprep.subr.mxu0 0.0
    %6156 = vmatpush1.msra.mxu0 %v723
    %6157 = vmatprep.subr.mxu0 0.0
    %6158 = vmatpush1.msra.mxu0 %v722
    %6159 = vmatprep.subr.mxu0 0.0
    %6160 = vmatpush1.msra.mxu0 %v721
    %6161 = vmatprep.subr.mxu0 0.0
    %6162 = vmatpush1.msra.mxu0 %v720
    %6163 = vmatprep.subr.mxu0 0.0
    %6164 = vmatpush2.msra.mxu0 0.0
    %6165 = vmatprep.subr.mxu0 0.0
    %6166 = vmatpush2.msra.mxu0 0.0
    %6167 = vmatprep.subr.mxu0 0.0
    %6168 = vmatpush2.msra.mxu0 0.0
    %6169 = vmatprep.subr.mxu0 0.0
    %6170 = vmatpush2.msra.mxu0 0.0
    %6171 = vmatprep.subr.mxu0 0.0
    %6172 = vmatpush2.msra.mxu0 0.0
    %6173 = vmatprep.subr.mxu0 0.0
    %6174 = vmatpush2.msra.mxu0 0.0
    %6175 = vmatprep.subr.mxu0 0.0
    %6176 = vmatpush2.msra.mxu0 0.0
    %6177 = vmatprep.subr.mxu0 0.0
    %6178 = vmatpush2.msra.mxu0 0.0
    %6179 = vmatprep.subr.mxu0 0.0
    %6180 = vmatpush2.msra.mxu0 0.0
    %6181 = vmatprep.subr.mxu0 0.0
    %6182 = vmatpush2.msra.mxu0 0.0
    %6183 = vmatprep.subr.mxu0 0.0
    %6184 = vmatpush2.msra.mxu0 0.0
    %6185 = vmatprep.subr.mxu0 0.0
    %6186 = vmatpush2.msra.mxu0 0.0
    %6187 = vmatprep.subr.mxu0 0.0
    %6188 = vmatpush2.msra.mxu0 0.0
    %6189 = vmatprep.subr.mxu0 0.0
    %6190 = vmatpush2.msra.mxu0 0.0
    %6191 = vmatprep.subr.mxu0 0.0
    %6192 = vmatpush2.msra.mxu0 0.0
    %6193 = vmatprep.subr.mxu0 0.0
    %6194 = vmatpush2.msra.mxu0 0.0
    %6195 = vmatprep.mubr.f32.mxu0 0.0
    %6196 = vmatmul.mubr.f32.gmra.mxu0 %v6126
    %v6197 = vpop.f32.mrf.mxu0
    %v6198 = vadd.f32 0.0, %v6197
    %v6199 = vpop.f32.mrf.mxu0
    %6200 = vmatprep.mubr.f32.mxu0 0.0
    %6201 = vmatmul.mubr.f32.gmra.mxu0 %v6129
    %v6202 = vpop.f32.mrf.mxu0
    %v6203 = vadd.f32 0.0, %v6202
    %v6204 = vpop.f32.mrf.mxu0
    %6205 = vdwg.mxu0
    %v6206 = vmax.f32 %v6198, 1e-30
    %v6207 = vmax.f32 %v6203, 1e-30
    %v6208 = vrcp.pop %v6206
    %v6209 = vrcp.pop %v6207
    %v6210 = vmul.f32 %v6122, %v6208
    %v6211 = vmul.f32 %v6124, %v6209
    %v6213 = vsel %vm1124, %v6210, 0
    %v6216 = vsel %vm1124, %v6211, 0
    %6218 = vmatprep.subr.mxu0 0.0
    %6219 = vmatpush1.msra.mxu0 0.0
    %6220 = vmatprep.subr.mxu0 0.0
    %6221 = vmatpush1.msra.mxu0 0.0
    %6222 = vmatprep.subr.mxu0 0.0
    %6223 = vmatpush1.msra.mxu0 0.0
    %6224 = vmatprep.subr.mxu0 0.0
    %6225 = vmatpush1.msra.mxu0 0.0
    %6226 = vmatprep.subr.mxu0 0.0
    %6227 = vmatpush1.msra.mxu0 0.0
    %6228 = vmatprep.subr.mxu0 0.0
    %6229 = vmatpush1.msra.mxu0 0.0
    %6230 = vmatprep.subr.mxu0 0.0
    %6231 = vmatpush1.msra.mxu0 %v6001
    %6232 = vmatprep.subr.mxu0 0.0
    %6233 = vmatpush1.msra.mxu0 %v6000
    %6234 = vmatprep.subr.mxu0 0.0
    %6235 = vmatpush1.msra.mxu0 %v5999
    %6236 = vmatprep.subr.mxu0 0.0
    %6237 = vmatpush1.msra.mxu0 %v5998
    %6238 = vmatprep.subr.mxu0 0.0
    %6239 = vmatpush1.msra.mxu0 %v5997
    %6240 = vmatprep.subr.mxu0 0.0
    %6241 = vmatpush1.msra.mxu0 %v5996
    %6242 = vmatprep.subr.mxu0 0.0
    %6243 = vmatpush1.msra.mxu0 %v5995
    %6244 = vmatprep.subr.mxu0 0.0
    %6245 = vmatpush1.msra.mxu0 %v5994
    %6246 = vmatprep.subr.mxu0 0.0
    %6247 = vmatpush1.msra.mxu0 %v5993
    %6248 = vmatprep.subr.mxu0 0.0
    %6249 = vmatpush1.msra.mxu0 %v5992
    %6250 = vmatprep.subr.mxu0 0.0
    %6251 = vmatpush2.msra.mxu0 0.0
    %6252 = vmatprep.subr.mxu0 0.0
    %6253 = vmatpush2.msra.mxu0 0.0
    %6254 = vmatprep.subr.mxu0 0.0
    %6255 = vmatpush2.msra.mxu0 0.0
    %6256 = vmatprep.subr.mxu0 0.0
    %6257 = vmatpush2.msra.mxu0 0.0
    %6258 = vmatprep.subr.mxu0 0.0
    %6259 = vmatpush2.msra.mxu0 0.0
    %6260 = vmatprep.subr.mxu0 0.0
    %6261 = vmatpush2.msra.mxu0 0.0
    %6262 = vmatprep.subr.mxu0 0.0
    %6263 = vmatpush2.msra.mxu0 0.0
    %6264 = vmatprep.subr.mxu0 0.0
    %6265 = vmatpush2.msra.mxu0 0.0
    %6266 = vmatprep.subr.mxu0 0.0
    %6267 = vmatpush2.msra.mxu0 0.0
    %6268 = vmatprep.subr.mxu0 0.0
    %6269 = vmatpush2.msra.mxu0 0.0
    %6270 = vmatprep.subr.mxu0 0.0
    %6271 = vmatpush2.msra.mxu0 0.0
    %6272 = vmatprep.subr.mxu0 0.0
    %6273 = vmatpush2.msra.mxu0 0.0
    %6274 = vmatprep.subr.mxu0 0.0
    %6275 = vmatpush2.msra.mxu0 0.0
    %6276 = vmatprep.subr.mxu0 0.0
    %6277 = vmatpush2.msra.mxu0 0.0
    %6278 = vmatprep.subr.mxu0 0.0
    %6279 = vmatpush2.msra.mxu0 0.0
    %6280 = vmatprep.subr.mxu0 0.0
    %6281 = vmatpush2.msra.mxu0 0.0
    %6282 = vmatprep.mubr.f32.mxu0 0.0
    %6283 = vmatmul.mubr.f32.gmra.mxu0 %v6213
    %v6284 = vpop.f32.mrf.mxu0
    %v6285 = vadd.f32 0.0, %v6284
    %v6286 = vpop.f32.mrf.mxu0
    %6287 = vmatprep.mubr.f32.mxu0 0.0
    %6288 = vmatmul.mubr.f32.gmra.mxu0 %v6216
    %v6289 = vpop.f32.mrf.mxu0
    %v6290 = vadd.f32 0.0, %v6289
    %v6291 = vpop.f32.mrf.mxu0
    %6292 = vdwg.mxu0
    %6293 = vst.msk [vmem:[#allocation3] sm:$0xff] %vm450, %v6285
    %6294 = vst.msk [vmem:[#allocation3 + $0x8] sm:$0x3] %vm585, %v6290
    %v6296 = vrot.slane %v5864, 2
    %v6297 = vsel %vm964, %v5955, %v6296
    %v6300 = vrot.slane %v5864, 6
    %v6301 = vsel %vm953, %v5945, %v6300
    %v6304 = vrot.slane %v5864, 4
    %v6305 = vsel %vm509, %v5950, %v6304
    %v6308 = vsel %vm953, %v6296, %v5859
    %v6309 = vsel %vm509, %v5864, %v5945
    %v6310 = vsel %vm964, %v6301, %v5950
    %v6311 = vmul.f32 %v6297, %v710
    %v6312 = vmul.f32 %v6308, %v711
    %v6313 = vmul.f32 %v6309, %v712
    %v6314 = vmul.f32 %v6310, %v713
    %v6315 = vmul.f32 %v6305, %v714
    %v6316 = vmul.f32 %v6297, %v715
    %v6317 = vmul.f32 %v6308, %v716
    %v6318 = vmul.f32 %v6309, %v717
    %v6319 = vmul.f32 %v6310, %v718
    %v6320 = vmul.f32 %v6305, %v719
    %v6322 = vrot.slane %v5937, 2
    %v6323 = vsel %vm964, %v5985, %v6322
    %v6326 = vrot.slane %v5937, 6
    %v6327 = vsel %vm953, %v5975, %v6326
    %v6330 = vrot.slane %v5937, 4
    %v6331 = vsel %vm509, %v5980, %v6330
    %v6334 = vsel %vm953, %v6322, %v5932
    %v6335 = vsel %vm509, %v5937, %v5975
    %v6336 = vsel %vm964, %v6327, %v5980
    %v6337 = vmul.f32 %v6323, %v710
    %v6338 = vmul.f32 %v6334, %v711
    %v6339 = vmul.f32 %v6335, %v712
    %v6340 = vmul.f32 %v6336, %v713
    %v6341 = vmul.f32 %v6331, %v714
    %v6342 = vmul.f32 %v6323, %v715
    %v6343 = vmul.f32 %v6334, %v716
    %v6344 = vmul.f32 %v6335, %v717
    %v6345 = vmul.f32 %v6336, %v718
    %v6346 = vmul.f32 %v6331, %v719
    %v6348 = vrot.slane %v5786, 2
    %v6349 = vrot.slane %v5791, 2
    %v6350 = vsel %vm964, %v6348, %v6349
    %v6351 = vsel %vm450, %v6350, 0
    %v6353 = vsel %vm450, %v6349, 0
    %v6356 = vsel %vm450, %v6311, 0
    %v6359 = vsel %vm450, %v6312, 0
    %v6362 = vsel %vm450, %v6313, 0
    %v6365 = vsel %vm450, %v6314, 0
    %v6368 = vsel %vm450, %v6315, 0
    %v6371 = vsel %vm450, %v6316, 0
    %v6374 = vsel %vm450, %v6317, 0
    %v6377 = vsel %vm450, %v6318, 0
    %v6380 = vsel %vm450, %v6319, 0
    %v6383 = vsel %vm450, %v6320, 0
    %6385 = vmatprep.subr.mxu0 0.0
    %6386 = vmatpush1.xpose.msra.mxu0 0.0
    %6387 = vmatprep.subr.mxu0 0.0
    %6388 = vmatpush1.xpose.msra.mxu0 0.0
    %6389 = vmatprep.subr.mxu0 0.0
    %6390 = vmatpush1.xpose.msra.mxu0 0.0
    %6391 = vmatprep.subr.mxu0 0.0
    %6392 = vmatpush1.xpose.msra.mxu0 0.0
    %6393 = vmatprep.subr.mxu0 0.0
    %6394 = vmatpush1.xpose.msra.mxu0 0.0
    %6395 = vmatprep.subr.mxu0 0.0
    %6396 = vmatpush1.xpose.msra.mxu0 0.0
    %6397 = vmatprep.subr.mxu0 0.0
    %6398 = vmatpush1.xpose.msra.mxu0 %v6383
    %6399 = vmatprep.subr.mxu0 0.0
    %6400 = vmatpush1.xpose.msra.mxu0 %v6380
    %6401 = vmatprep.subr.mxu0 0.0
    %6402 = vmatpush1.xpose.msra.mxu0 %v6377
    %6403 = vmatprep.subr.mxu0 0.0
    %6404 = vmatpush1.xpose.msra.mxu0 %v6374
    %6405 = vmatprep.subr.mxu0 0.0
    %6406 = vmatpush1.xpose.msra.mxu0 %v6371
    %6407 = vmatprep.subr.mxu0 0.0
    %6408 = vmatpush1.xpose.msra.mxu0 %v6368
    %6409 = vmatprep.subr.mxu0 0.0
    %6410 = vmatpush1.xpose.msra.mxu0 %v6365
    %6411 = vmatprep.subr.mxu0 0.0
    %6412 = vmatpush1.xpose.msra.mxu0 %v6362
    %6413 = vmatprep.subr.mxu0 0.0
    %6414 = vmatpush1.xpose.msra.mxu0 %v6359
    %6415 = vmatprep.subr.mxu0 0.0
    %6416 = vmatpush1.xpose.msra.mxu0 %v6356
    %6417 = vmatprep.subr.mxu0 0.0
    %6418 = vmatpush2.xpose.msra.mxu0 0.0
    %6419 = vmatprep.subr.mxu0 0.0
    %6420 = vmatpush2.xpose.msra.mxu0 0.0
    %6421 = vmatprep.subr.mxu0 0.0
    %6422 = vmatpush2.xpose.msra.mxu0 0.0
    %6423 = vmatprep.subr.mxu0 0.0
    %6424 = vmatpush2.xpose.msra.mxu0 0.0
    %6425 = vmatprep.subr.mxu0 0.0
    %6426 = vmatpush2.xpose.msra.mxu0 0.0
    %6427 = vmatprep.subr.mxu0 0.0
    %6428 = vmatpush2.xpose.msra.mxu0 0.0
    %6429 = vmatprep.subr.mxu0 0.0
    %6430 = vmatpush2.xpose.msra.mxu0 0.0
    %6431 = vmatprep.subr.mxu0 0.0
    %6432 = vmatpush2.xpose.msra.mxu0 0.0
    %6433 = vmatprep.subr.mxu0 0.0
    %6434 = vmatpush2.xpose.msra.mxu0 0.0
    %6435 = vmatprep.subr.mxu0 0.0
    %6436 = vmatpush2.xpose.msra.mxu0 0.0
    %6437 = vmatprep.subr.mxu0 0.0
    %6438 = vmatpush2.xpose.msra.mxu0 0.0
    %6439 = vmatprep.subr.mxu0 0.0
    %6440 = vmatpush2.xpose.msra.mxu0 0.0
    %6441 = vmatprep.subr.mxu0 0.0
    %6442 = vmatpush2.xpose.msra.mxu0 0.0
    %6443 = vmatprep.subr.mxu0 0.0
    %6444 = vmatpush2.xpose.msra.mxu0 0.0
    %6445 = vmatprep.subr.mxu0 0.0
    %6446 = vmatpush2.xpose.msra.mxu0 0.0
    %6447 = vmatprep.subr.mxu0 0.0
    %6448 = vmatpush2.xpose.msra.mxu0 0.0
    %6449 = vmatprep.mubr.f32.mxu0 0.0
    %6450 = vmatmul.mubr.f32.gmra.mxu0 %v6351
    %v6451 = vpop.f32.mrf.mxu0
    %v6452 = vadd.f32 0.0, %v6451
    %v6453 = vpop.f32.mrf.mxu0
    %6454 = vmatprep.mubr.f32.mxu0 0.0
    %6455 = vmatmul.mubr.f32.gmra.mxu0 %v6353
    %v6456 = vpop.f32.mrf.mxu0
    %v6457 = vadd.f32 0.0, %v6456
    %v6458 = vpop.f32.mrf.mxu0
    %6459 = vdwg.mxu0
    %v6460 = vsel %vm1124, %v6452, -inf
    %6461 = vmax.xlane.f32.xlu0 %v6460
    %v6462 = vpop.xlane.xlu0 %6461
    %v6463 = vsel %vm1128, %v6457, -inf
    %6464 = vmax.xlane.f32.xlu0 %v6463
    %v6465 = vpop.xlane.xlu0 %6464
    %v6466 = vsub.f32 %v6452, %v6462
    %v6467 = vsub.f32 %v6457, %v6465
    %v6468 = vmul.f32 %v6466, 1.442695
    %v6469 = vpow.pop %v6468
    %v6470 = vmul.f32 %v6467, 1.442695
    %v6471 = vpow.pop %v6470
    %v6473 = vsel %vm1124, %v6469, 0
    %v6476 = vsel %vm1124, %v6471, 0
    %6478 = vmatprep.subr.mxu0 0.0
    %6479 = vmatpush1.msra.mxu0 0.0
    %6480 = vmatprep.subr.mxu0 0.0
    %6481 = vmatpush1.msra.mxu0 0.0
    %6482 = vmatprep.subr.mxu0 0.0
    %6483 = vmatpush1.msra.mxu0 0.0
    %6484 = vmatprep.subr.mxu0 0.0
    %6485 = vmatpush1.msra.mxu0 0.0
    %6486 = vmatprep.subr.mxu0 0.0
    %6487 = vmatpush1.msra.mxu0 0.0
    %6488 = vmatprep.subr.mxu0 0.0
    %6489 = vmatpush1.msra.mxu0 0.0
    %6490 = vmatprep.subr.mxu0 0.0
    %6491 = vmatpush1.msra.mxu0 %v729
    %6492 = vmatprep.subr.mxu0 0.0
    %6493 = vmatpush1.msra.mxu0 %v728
    %6494 = vmatprep.subr.mxu0 0.0
    %6495 = vmatpush1.msra.mxu0 %v727
    %6496 = vmatprep.subr.mxu0 0.0
    %6497 = vmatpush1.msra.mxu0 %v726
    %6498 = vmatprep.subr.mxu0 0.0
    %6499 = vmatpush1.msra.mxu0 %v725
    %6500 = vmatprep.subr.mxu0 0.0
    %6501 = vmatpush1.msra.mxu0 %v724
    %6502 = vmatprep.subr.mxu0 0.0
    %6503 = vmatpush1.msra.mxu0 %v723
    %6504 = vmatprep.subr.mxu0 0.0
    %6505 = vmatpush1.msra.mxu0 %v722
    %6506 = vmatprep.subr.mxu0 0.0
    %6507 = vmatpush1.msra.mxu0 %v721
    %6508 = vmatprep.subr.mxu0 0.0
    %6509 = vmatpush1.msra.mxu0 %v720
    %6510 = vmatprep.subr.mxu0 0.0
    %6511 = vmatpush2.msra.mxu0 0.0
    %6512 = vmatprep.subr.mxu0 0.0
    %6513 = vmatpush2.msra.mxu0 0.0
    %6514 = vmatprep.subr.mxu0 0.0
    %6515 = vmatpush2.msra.mxu0 0.0
    %6516 = vmatprep.subr.mxu0 0.0
    %6517 = vmatpush2.msra.mxu0 0.0
    %6518 = vmatprep.subr.mxu0 0.0
    %6519 = vmatpush2.msra.mxu0 0.0
    %6520 = vmatprep.subr.mxu0 0.0
    %6521 = vmatpush2.msra.mxu0 0.0
    %6522 = vmatprep.subr.mxu0 0.0
    %6523 = vmatpush2.msra.mxu0 0.0
    %6524 = vmatprep.subr.mxu0 0.0
    %6525 = vmatpush2.msra.mxu0 0.0
    %6526 = vmatprep.subr.mxu0 0.0
    %6527 = vmatpush2.msra.mxu0 0.0
    %6528 = vmatprep.subr.mxu0 0.0
    %6529 = vmatpush2.msra.mxu0 0.0
    %6530 = vmatprep.subr.mxu0 0.0
    %6531 = vmatpush2.msra.mxu0 0.0
    %6532 = vmatprep.subr.mxu0 0.0
    %6533 = vmatpush2.msra.mxu0 0.0
    %6534 = vmatprep.subr.mxu0 0.0
    %6535 = vmatpush2.msra.mxu0 0.0
    %6536 = vmatprep.subr.mxu0 0.0
    %6537 = vmatpush2.msra.mxu0 0.0
    %6538 = vmatprep.subr.mxu0 0.0
    %6539 = vmatpush2.msra.mxu0 0.0
    %6540 = vmatprep.subr.mxu0 0.0
    %6541 = vmatpush2.msra.mxu0 0.0
    %6542 = vmatprep.mubr.f32.mxu0 0.0
    %6543 = vmatmul.mubr.f32.gmra.mxu0 %v6473
    %v6544 = vpop.f32.mrf.mxu0
    %v6545 = vadd.f32 0.0, %v6544
    %v6546 = vpop.f32.mrf.mxu0
    %6547 = vmatprep.mubr.f32.mxu0 0.0
    %6548 = vmatmul.mubr.f32.gmra.mxu0 %v6476
    %v6549 = vpop.f32.mrf.mxu0
    %v6550 = vadd.f32 0.0, %v6549
    %v6551 = vpop.f32.mrf.mxu0
    %6552 = vdwg.mxu0
    %v6553 = vmax.f32 %v6545, 1e-30
    %v6554 = vmax.f32 %v6550, 1e-30
    %v6555 = vrcp.pop %v6553
    %v6556 = vrcp.pop %v6554
    %v6557 = vmul.f32 %v6469, %v6555
    %v6558 = vmul.f32 %v6471, %v6556
    %v6560 = vsel %vm1124, %v6557, 0
    %v6563 = vsel %vm1124, %v6558, 0
    %6565 = vmatprep.subr.mxu0 0.0
    %6566 = vmatpush1.msra.mxu0 0.0
    %6567 = vmatprep.subr.mxu0 0.0
    %6568 = vmatpush1.msra.mxu0 0.0
    %6569 = vmatprep.subr.mxu0 0.0
    %6570 = vmatpush1.msra.mxu0 0.0
    %6571 = vmatprep.subr.mxu0 0.0
    %6572 = vmatpush1.msra.mxu0 0.0
    %6573 = vmatprep.subr.mxu0 0.0
    %6574 = vmatpush1.msra.mxu0 0.0
    %6575 = vmatprep.subr.mxu0 0.0
    %6576 = vmatpush1.msra.mxu0 0.0
    %6577 = vmatprep.subr.mxu0 0.0
    %6578 = vmatpush1.msra.mxu0 %v6346
    %6579 = vmatprep.subr.mxu0 0.0
    %6580 = vmatpush1.msra.mxu0 %v6345
    %6581 = vmatprep.subr.mxu0 0.0
    %6582 = vmatpush1.msra.mxu0 %v6344
    %6583 = vmatprep.subr.mxu0 0.0
    %6584 = vmatpush1.msra.mxu0 %v6343
    %6585 = vmatprep.subr.mxu0 0.0
    %6586 = vmatpush1.msra.mxu0 %v6342
    %6587 = vmatprep.subr.mxu0 0.0
    %6588 = vmatpush1.msra.mxu0 %v6341
    %6589 = vmatprep.subr.mxu0 0.0
    %6590 = vmatpush1.msra.mxu0 %v6340
    %6591 = vmatprep.subr.mxu0 0.0
    %6592 = vmatpush1.msra.mxu0 %v6339
    %6593 = vmatprep.subr.mxu0 0.0
    %6594 = vmatpush1.msra.mxu0 %v6338
    %6595 = vmatprep.subr.mxu0 0.0
    %6596 = vmatpush1.msra.mxu0 %v6337
    %6597 = vmatprep.subr.mxu0 0.0
    %6598 = vmatpush2.msra.mxu0 0.0
    %6599 = vmatprep.subr.mxu0 0.0
    %6600 = vmatpush2.msra.mxu0 0.0
    %6601 = vmatprep.subr.mxu0 0.0
    %6602 = vmatpush2.msra.mxu0 0.0
    %6603 = vmatprep.subr.mxu0 0.0
    %6604 = vmatpush2.msra.mxu0 0.0
    %6605 = vmatprep.subr.mxu0 0.0
    %6606 = vmatpush2.msra.mxu0 0.0
    %6607 = vmatprep.subr.mxu0 0.0
    %6608 = vmatpush2.msra.mxu0 0.0
    %6609 = vmatprep.subr.mxu0 0.0
    %6610 = vmatpush2.msra.mxu0 0.0
    %6611 = vmatprep.subr.mxu0 0.0
    %6612 = vmatpush2.msra.mxu0 0.0
    %6613 = vmatprep.subr.mxu0 0.0
    %6614 = vmatpush2.msra.mxu0 0.0
    %6615 = vmatprep.subr.mxu0 0.0
    %6616 = vmatpush2.msra.mxu0 0.0
    %6617 = vmatprep.subr.mxu0 0.0
    %6618 = vmatpush2.msra.mxu0 0.0
    %6619 = vmatprep.subr.mxu0 0.0
    %6620 = vmatpush2.msra.mxu0 0.0
    %6621 = vmatprep.subr.mxu0 0.0
    %6622 = vmatpush2.msra.mxu0 0.0
    %6623 = vmatprep.subr.mxu0 0.0
    %6624 = vmatpush2.msra.mxu0 0.0
    %6625 = vmatprep.subr.mxu0 0.0
    %6626 = vmatpush2.msra.mxu0 0.0
    %6627 = vmatprep.subr.mxu0 0.0
    %6628 = vmatpush2.msra.mxu0 0.0
    %6629 = vmatprep.mubr.f32.mxu0 0.0
    %6630 = vmatmul.mubr.f32.gmra.mxu0 %v6560
    %v6631 = vpop.f32.mrf.mxu0
    %v6632 = vadd.f32 0.0, %v6631
    %v6633 = vpop.f32.mrf.mxu0
    %6634 = vmatprep.mubr.f32.mxu0 0.0
    %6635 = vmatmul.mubr.f32.gmra.mxu0 %v6563
    %v6636 = vpop.f32.mrf.mxu0
    %v6637 = vadd.f32 0.0, %v6636
    %v6638 = vpop.f32.mrf.mxu0
    %6639 = vdwg.mxu0
    %6640 = vst.msk [vmem:[#allocation3 + $0xa] sm:$0xff] %vm450, %v6632
    %6641 = vst.msk [vmem:[#allocation3 + $0x12] sm:$0x3] %vm585, %v6637
    %v6642 = vld [vmem:[#allocation3] sm:$0xff]
    %v6643 = vld [vmem:[#allocation3 + $0x8] sm:$0xff]
    %v6644 = vld [vmem:[#allocation3 + $0x10] sm:$0xf]
    %v6645 = vpack.c.bf16 %v6643, %v6642
    %v6646 = vpack.c.bf16 %v6644, %v6644
    %s6647 = scalar_lea.vmem [#allocation26], 32
    %v6648 = vld [vmem:[%s6647] sm:$0xf]
    %v6649 = vld [vmem:[%s6647 + $0x4] sm:$0xf]
    %v6650 = vld [vmem:[%s6647 + $0x8] sm:$0xf]
    %v6651 = vld [vmem:[%s6647 + $0xc] sm:$0xf]
    %s6652 = scalar_lea.vmem %s45, 2
    %v6653 = vld [vmem:[%s6652] sm:$0x1]
    %v6655 = vlaneseq
    %v6656 = vshrl.u32 %v6655, 7
    %v6657 = vsub.s32 0, %v6656
    %v6658 = vrot.slane %v6653, %v6657
    %v6664 = vunpack.c.l.b16 %v6648
    %v6665 = vunpack.c.l.b16 %v6649
    %v6666 = vunpack.c.l.b16 %v6650
    %v6667 = vunpack.c.l.b16 %v6651
    %v6668 = vpack.c.b16 %v6665, %v6664
    %v6669 = vpack.c.b16 %v6667, %v6666
    %v6673 = vsel %vm450, %v6645, 0
    %v6676 = vsel %vm450, %v6646, 0
    %6678 = vmatprep.subr.bf16.mxu0 0
    %6679 = vmatpush1.bf16.msra.mxu0 0
    %6680 = vmatprep.subr.bf16.mxu0 0
    %6681 = vmatpush1.bf16.msra.mxu0 0
    %6682 = vmatprep.subr.bf16.mxu0 0
    %6683 = vmatpush1.bf16.msra.mxu0 0
    %6684 = vmatprep.subr.bf16.mxu0 0
    %6685 = vmatpush1.bf16.msra.mxu0 0
    %6686 = vmatprep.subr.bf16.mxu0 0
    %6687 = vmatpush1.bf16.msra.mxu0 0
    %6688 = vmatprep.subr.bf16.mxu0 0
    %6689 = vmatpush1.bf16.msra.mxu0 0
    %6690 = vmatprep.subr.bf16.mxu0 0
    %6691 = vmatpush1.bf16.msra.mxu0 %v6669
    %6692 = vmatprep.subr.bf16.mxu0 0
    %6693 = vmatpush1.bf16.msra.mxu0 %v6668
    %6694 = vmatprep.subr.bf16.mxu0 0
    %6695 = vmatpush2.bf16.msra.mxu0 0
    %6696 = vmatprep.subr.bf16.mxu0 0
    %6697 = vmatpush2.bf16.msra.mxu0 0
    %6698 = vmatprep.subr.bf16.mxu0 0
    %6699 = vmatpush2.bf16.msra.mxu0 0
    %6700 = vmatprep.subr.bf16.mxu0 0
    %6701 = vmatpush2.bf16.msra.mxu0 0
    %6702 = vmatprep.subr.bf16.mxu0 0
    %6703 = vmatpush2.bf16.msra.mxu0 0
    %6704 = vmatprep.subr.bf16.mxu0 0
    %6705 = vmatpush2.bf16.msra.mxu0 0
    %6706 = vmatprep.subr.bf16.mxu0 0
    %6707 = vmatpush2.bf16.msra.mxu0 0
    %6708 = vmatprep.subr.bf16.mxu0 0
    %6709 = vmatpush2.bf16.msra.mxu0 0
    %6710 = vmatprep.mubr.bf16.mxu0 0
    %6711 = vmatmul.mubr.bf16.gmra.mxu0 %v6673
    %v6712 = vpop.f32.mrf.mxu0
    %v6713 = vadd.f32 %v6658, %v6712
    %v6714 = vpop.f32.mrf.mxu0
    %v6715 = vpop.f32.mrf.mxu0
    %v6716 = vadd.f32 %v6658, %v6715
    %v6717 = vpop.f32.mrf.mxu0
    %6718 = vmatprep.mubr.bf16.mxu0 0
    %6719 = vmatmul.mubr.bf16.gmra.mxu0 %v6676
    %v6720 = vpop.f32.mrf.mxu0
    %v6721 = vadd.f32 %v6658, %v6720
    %v6722 = vpop.f32.mrf.mxu0
    %v6723 = vpop.f32.mrf.mxu0
    %v6724 = vpop.f32.mrf.mxu0
    %6725 = vdwg.mxu0
    %v6726 = vadd.f32 %v5712, %v6713
    %v6727 = vadd.f32 %v5713, %v6716
    %v6728 = vadd.f32 %v5714, %v6721
    %s6729 = scalar_lea.vmem %s47, 2
    %v6730 = vld [vmem:[%s6729] sm:$0x1]
    %s6731 = scalar_lea.vmem %s49, 2
    %v6732 = vld [vmem:[%s6731] sm:$0x1]
    %v6733 = vsel %vm450, %v6726, 0.0
    %6734 = vadd.xlane.f32.xlu0 %v6733
    %v6735 = vpop.xlane.xlu0 %6734
    %v6736 = vsel %vm450, %v6727, 0.0
    %6737 = vadd.xlane.f32.xlu0 %v6736
    %v6738 = vpop.xlane.xlu0 %6737
    %v6739 = vsel %vm1748, %v6728, 0.0
    %6740 = vadd.xlane.f32.xlu0 %v6739
    %v6741 = vpop.xlane.xlu0 %6740
    %v6742 = vmul.f32 %v6735, %v457
    %v6743 = vmul.f32 %v6738, %v457
    %v6744 = vmul.f32 %v6741, %v457
    %v6745 = vsub.f32 %v6726, %v6742
    %v6746 = vsub.f32 %v6727, %v6743
    %v6747 = vsub.f32 %v6728, %v6744
    %v6748 = vmul.f32 %v6745, %v6745
    %v6749 = vmul.f32 %v6746, %v6746
    %v6750 = vmul.f32 %v6747, %v6747
    %v6751 = vsel %vm450, %v6748, 0.0
    %6752 = vadd.xlane.f32.xlu0 %v6751
    %v6753 = vpop.xlane.xlu0 %6752
    %v6754 = vsel %vm450, %v6749, 0.0
    %6755 = vadd.xlane.f32.xlu0 %v6754
    %v6756 = vpop.xlane.xlu0 %6755
    %v6757 = vsel %vm1748, %v6750, 0.0
    %6758 = vadd.xlane.f32.xlu0 %v6757
    %v6759 = vpop.xlane.xlu0 %6758
    %v6760 = vmul.f32 %v6753, %v457
    %v6761 = vmul.f32 %v6756, %v457
    %v6762 = vmul.f32 %v6759, %v457
    %v6763 = vadd.f32 %v6760, 1e-05
    %v6764 = vadd.f32 %v6761, 1e-05
    %v6765 = vadd.f32 %v6762, 1e-05
    %v6766 = vrsqrt.pop %v6763
    %v6767 = vrsqrt.pop %v6764
    %v6768 = vrsqrt.pop %v6765
    %v6769 = vmul.f32 %v6745, %v6766
    %v6770 = vmul.f32 %v6746, %v6767
    %v6771 = vmul.f32 %v6747, %v6768
    %v6773 = vlaneseq
    %v6774 = vshrl.u32 %v6773, 7
    %v6775 = vsub.s32 0, %v6774
    %v6776 = vrot.slane %v6730, %v6775
    %v6778 = vmul.f32 %v6769, %v6776
    %v6779 = vmul.f32 %v6770, %v6776
    %v6780 = vmul.f32 %v6771, %v6776
    %v6782 = vlaneseq
    %v6783 = vshrl.u32 %v6782, 7
    %v6784 = vsub.s32 0, %v6783
    %v6785 = vrot.slane %v6732, %v6784
    %v6787 = vadd.f32 %v6778, %v6785
    %v6788 = vadd.f32 %v6779, %v6785
    %v6789 = vadd.f32 %v6780, %v6785
    %v6790 = vpack.c.bf16 %v6788, %v6787
    %v6791 = vpack.c.bf16 %v6789, %v6789
    %s6792 = scalar_lea.vmem [#allocation28], 512
    %v6793 = vld [vmem:[%s6792] sm:$0xff]
    %v6794 = vld [vmem:[%s6792 + $0x8] sm:$0xff]
    %v6795 = vld [vmem:[%s6792 + $0x10] sm:$0xff]
    %v6796 = vld [vmem:[%s6792 + $0x18] sm:$0xff]
    %v6797 = vld [vmem:[%s6792 + $0x20] sm:$0xff]
    %v6798 = vld [vmem:[%s6792 + $0x28] sm:$0xff]
    %v6799 = vld [vmem:[%s6792 + $0x30] sm:$0xff]
    %v6800 = vld [vmem:[%s6792 + $0x38] sm:$0xff]
    %v6801 = vld [vmem:[%s6792 + $0x40] sm:$0xff]
    %v6802 = vld [vmem:[%s6792 + $0x48] sm:$0xff]
    %v6803 = vld [vmem:[%s6792 + $0x50] sm:$0xff]
    %v6804 = vld [vmem:[%s6792 + $0x58] sm:$0xff]
    %v6805 = vld [vmem:[%s6792 + $0x60] sm:$0xff]
    %v6806 = vld [vmem:[%s6792 + $0x68] sm:$0xff]
    %v6807 = vld [vmem:[%s6792 + $0x70] sm:$0xff]
    %v6808 = vld [vmem:[%s6792 + $0x78] sm:$0xff]
    %v6809 = vld [vmem:[%s6792 + $0x80] sm:$0xff]
    %v6810 = vld [vmem:[%s6792 + $0x88] sm:$0xff]
    %v6811 = vld [vmem:[%s6792 + $0x90] sm:$0xff]
    %v6812 = vld [vmem:[%s6792 + $0x98] sm:$0xff]
    %v6813 = vld [vmem:[%s6792 + $0xa0] sm:$0xff]
    %v6814 = vld [vmem:[%s6792 + $0xa8] sm:$0xff]
    %v6815 = vld [vmem:[%s6792 + $0xb0] sm:$0xff]
    %v6816 = vld [vmem:[%s6792 + $0xb8] sm:$0xff]
    %v6817 = vld [vmem:[%s6792 + $0xc0] sm:$0xff]
    %v6818 = vld [vmem:[%s6792 + $0xc8] sm:$0xff]
    %v6819 = vld [vmem:[%s6792 + $0xd0] sm:$0xff]
    %v6820 = vld [vmem:[%s6792 + $0xd8] sm:$0xff]
    %v6821 = vld [vmem:[%s6792 + $0xe0] sm:$0xff]
    %v6822 = vld [vmem:[%s6792 + $0xe8] sm:$0xff]
    %v6823 = vld [vmem:[%s6792 + $0xf0] sm:$0xff]
    %v6824 = vld [vmem:[%s6792 + $0xf8] sm:$0xff]
    %s6825 = scalar_lea.vmem [#allocation29], 32
    %v6826 = vld [vmem:[%s6825] sm:$0xff]
    %v6827 = vld [vmem:[%s6825 + $0x8] sm:$0xff]
    %v6830 = vlaneseq
    %v6831 = vshrl.u32 %v6830, 7
    %v6832 = vsub.s32 0, %v6831
    %v6833 = vrot.slane %v6826, %v6832
    %v6834 = vlaneseq
    %v6835 = vshrl.u32 %v6834, 7
    %v6836 = vsub.s32 1, %v6835
    %v6837 = vrot.slane %v6826, %v6836
    %v6838 = vlaneseq
    %v6839 = vshrl.u32 %v6838, 7
    %v6840 = vsub.s32 2, %v6839
    %v6841 = vrot.slane %v6826, %v6840
    %v6842 = vlaneseq
    %v6843 = vshrl.u32 %v6842, 7
    %v6844 = vsub.s32 3, %v6843
    %v6845 = vrot.slane %v6826, %v6844
    %v6846 = vlaneseq
    %v6847 = vshrl.u32 %v6846, 7
    %v6848 = vsub.s32 4, %v6847
    %v6849 = vrot.slane %v6826, %v6848
    %v6850 = vlaneseq
    %v6851 = vshrl.u32 %v6850, 7
    %v6852 = vsub.s32 5, %v6851
    %v6853 = vrot.slane %v6826, %v6852
    %v6854 = vlaneseq
    %v6855 = vshrl.u32 %v6854, 7
    %v6856 = vsub.s32 6, %v6855
    %v6857 = vrot.slane %v6826, %v6856
    %v6858 = vlaneseq
    %v6859 = vshrl.u32 %v6858, 7
    %v6860 = vsub.s32 7, %v6859
    %v6861 = vrot.slane %v6826, %v6860
    %v6862 = vlaneseq
    %v6863 = vshrl.u32 %v6862, 7
    %v6864 = vsub.s32 0, %v6863
    %v6865 = vrot.slane %v6827, %v6864
    %v6866 = vlaneseq
    %v6867 = vshrl.u32 %v6866, 7
    %v6868 = vsub.s32 1, %v6867
    %v6869 = vrot.slane %v6827, %v6868
    %v6870 = vlaneseq
    %v6871 = vshrl.u32 %v6870, 7
    %v6872 = vsub.s32 2, %v6871
    %v6873 = vrot.slane %v6827, %v6872
    %v6874 = vlaneseq
    %v6875 = vshrl.u32 %v6874, 7
    %v6876 = vsub.s32 3, %v6875
    %v6877 = vrot.slane %v6827, %v6876
    %v6878 = vlaneseq
    %v6879 = vshrl.u32 %v6878, 7
    %v6880 = vsub.s32 4, %v6879
    %v6881 = vrot.slane %v6827, %v6880
    %v6882 = vlaneseq
    %v6883 = vshrl.u32 %v6882, 7
    %v6884 = vsub.s32 5, %v6883
    %v6885 = vrot.slane %v6827, %v6884
    %v6886 = vlaneseq
    %v6887 = vshrl.u32 %v6886, 7
    %v6888 = vsub.s32 6, %v6887
    %v6889 = vrot.slane %v6827, %v6888
    %v6890 = vlaneseq
    %v6891 = vshrl.u32 %v6890, 7
    %v6892 = vsub.s32 7, %v6891
    %v6893 = vrot.slane %v6827, %v6892
    %v6942 = vunpack.c.l.b16 %v6793
    %v6943 = vunpack.c.h.b16 %v6793
    %v6944 = vunpack.c.l.b16 %v6794
    %v6945 = vunpack.c.h.b16 %v6794
    %v6946 = vunpack.c.l.b16 %v6795
    %v6947 = vunpack.c.h.b16 %v6795
    %v6948 = vunpack.c.l.b16 %v6796
    %v6949 = vunpack.c.h.b16 %v6796
    %v6950 = vunpack.c.l.b16 %v6797
    %v6951 = vunpack.c.h.b16 %v6797
    %v6952 = vunpack.c.l.b16 %v6798
    %v6953 = vunpack.c.h.b16 %v6798
    %v6954 = vunpack.c.l.b16 %v6799
    %v6955 = vunpack.c.h.b16 %v6799
    %v6956 = vunpack.c.l.b16 %v6800
    %v6957 = vunpack.c.h.b16 %v6800
    %v6958 = vunpack.c.l.b16 %v6801
    %v6959 = vunpack.c.h.b16 %v6801
    %v6960 = vunpack.c.l.b16 %v6802
    %v6961 = vunpack.c.h.b16 %v6802
    %v6962 = vunpack.c.l.b16 %v6803
    %v6963 = vunpack.c.h.b16 %v6803
    %v6964 = vunpack.c.l.b16 %v6804
    %v6965 = vunpack.c.h.b16 %v6804
    %v6966 = vunpack.c.l.b16 %v6805
    %v6967 = vunpack.c.h.b16 %v6805
    %v6968 = vunpack.c.l.b16 %v6806
    %v6969 = vunpack.c.h.b16 %v6806
    %v6970 = vunpack.c.l.b16 %v6807
    %v6971 = vunpack.c.h.b16 %v6807
    %v6972 = vunpack.c.l.b16 %v6808
    %v6973 = vunpack.c.h.b16 %v6808
    %v6974 = vunpack.c.l.b16 %v6809
    %v6975 = vunpack.c.h.b16 %v6809
    %v6976 = vunpack.c.l.b16 %v6810
    %v6977 = vunpack.c.h.b16 %v6810
    %v6978 = vunpack.c.l.b16 %v6811
    %v6979 = vunpack.c.h.b16 %v6811
    %v6980 = vunpack.c.l.b16 %v6812
    %v6981 = vunpack.c.h.b16 %v6812
    %v6982 = vunpack.c.l.b16 %v6813
    %v6983 = vunpack.c.h.b16 %v6813
    %v6984 = vunpack.c.l.b16 %v6814
    %v6985 = vunpack.c.h.b16 %v6814
    %v6986 = vunpack.c.l.b16 %v6815
    %v6987 = vunpack.c.h.b16 %v6815
    %v6988 = vunpack.c.l.b16 %v6816
    %v6989 = vunpack.c.h.b16 %v6816
    %v6990 = vunpack.c.l.b16 %v6817
    %v6991 = vunpack.c.h.b16 %v6817
    %v6992 = vunpack.c.l.b16 %v6818
    %v6993 = vunpack.c.h.b16 %v6818
    %v6994 = vunpack.c.l.b16 %v6819
    %v6995 = vunpack.c.h.b16 %v6819
    %v6996 = vunpack.c.l.b16 %v6820
    %v6997 = vunpack.c.h.b16 %v6820
    %v6998 = vunpack.c.l.b16 %v6821
    %v6999 = vunpack.c.h.b16 %v6821
    %v7000 = vunpack.c.l.b16 %v6822
    %v7001 = vunpack.c.h.b16 %v6822
    %v7002 = vunpack.c.l.b16 %v6823
    %v7003 = vunpack.c.h.b16 %v6823
    %v7004 = vunpack.c.l.b16 %v6824
    %v7005 = vunpack.c.h.b16 %v6824
    %v7006 = vpack.c.b16 %v6958, %v6942
    %v7007 = vpack.c.b16 %v6959, %v6943
    %v7008 = vpack.c.b16 %v6960, %v6944
    %v7009 = vpack.c.b16 %v6961, %v6945
    %v7010 = vpack.c.b16 %v6962, %v6946
    %v7011 = vpack.c.b16 %v6963, %v6947
    %v7012 = vpack.c.b16 %v6964, %v6948
    %v7013 = vpack.c.b16 %v6965, %v6949
    %v7014 = vpack.c.b16 %v6966, %v6950
    %v7015 = vpack.c.b16 %v6967, %v6951
    %v7016 = vpack.c.b16 %v6968, %v6952
    %v7017 = vpack.c.b16 %v6969, %v6953
    %v7018 = vpack.c.b16 %v6970, %v6954
    %v7019 = vpack.c.b16 %v6971, %v6955
    %v7020 = vpack.c.b16 %v6972, %v6956
    %v7021 = vpack.c.b16 %v6973, %v6957
    %v7022 = vpack.c.b16 %v6990, %v6974
    %v7023 = vpack.c.b16 %v6991, %v6975
    %v7024 = vpack.c.b16 %v6992, %v6976
    %v7025 = vpack.c.b16 %v6993, %v6977
    %v7026 = vpack.c.b16 %v6994, %v6978
    %v7027 = vpack.c.b16 %v6995, %v6979
    %v7028 = vpack.c.b16 %v6996, %v6980
    %v7029 = vpack.c.b16 %v6997, %v6981
    %v7030 = vpack.c.b16 %v6998, %v6982
    %v7031 = vpack.c.b16 %v6999, %v6983
    %v7032 = vpack.c.b16 %v7000, %v6984
    %v7033 = vpack.c.b16 %v7001, %v6985
    %v7034 = vpack.c.b16 %v7002, %v6986
    %v7035 = vpack.c.b16 %v7003, %v6987
    %v7036 = vpack.c.b16 %v7004, %v6988
    %v7037 = vpack.c.b16 %v7005, %v6989
    %v7071 = vsel %vm450, %v6790, 0
    %v7074 = vsel %vm450, %v6791, 0
    %7076 = vmatprep.subr.bf16.mxu0 0
    %7077 = vmatpush1.bf16.msra.mxu0 0
    %7078 = vmatprep.subr.bf16.mxu0 0
    %7079 = vmatpush1.bf16.msra.mxu0 0
    %7080 = vmatprep.subr.bf16.mxu0 0
    %7081 = vmatpush1.bf16.msra.mxu0 0
    %7082 = vmatprep.subr.bf16.mxu0 0
    %7083 = vmatpush1.bf16.msra.mxu0 0
    %7084 = vmatprep.subr.bf16.mxu0 0
    %7085 = vmatpush1.bf16.msra.mxu0 0
    %7086 = vmatprep.subr.bf16.mxu0 0
    %7087 = vmatpush1.bf16.msra.mxu0 0
    %7088 = vmatprep.subr.bf16.mxu0 %v7023
    %7089 = vmatpush1.bf16.msra.mxu0 %v7022
    %7090 = vmatprep.subr.bf16.mxu0 %v7007
    %7091 = vmatpush1.bf16.msra.mxu0 %v7006
    %7092 = vmatprep.subr.bf16.mxu0 0
    %7093 = vmatpush2.bf16.msra.mxu0 0
    %7094 = vmatprep.subr.bf16.mxu0 0
    %7095 = vmatpush2.bf16.msra.mxu0 0
    %7096 = vmatprep.subr.bf16.mxu0 0
    %7097 = vmatpush2.bf16.msra.mxu0 0
    %7098 = vmatprep.subr.bf16.mxu0 0
    %7099 = vmatpush2.bf16.msra.mxu0 0
    %7100 = vmatprep.subr.bf16.mxu0 0
    %7101 = vmatpush2.bf16.msra.mxu0 0
    %7102 = vmatprep.subr.bf16.mxu0 0
    %7103 = vmatpush2.bf16.msra.mxu0 0
    %7104 = vmatprep.subr.bf16.mxu0 0
    %7105 = vmatpush2.bf16.msra.mxu0 0
    %7106 = vmatprep.subr.bf16.mxu0 0
    %7107 = vmatpush2.bf16.msra.mxu0 0
    %7108 = vmatprep.mubr.bf16.mxu0 0
    %7109 = vmatmul.mubr.bf16.gmra.mxu0 %v7071
    %v7110 = vpop.f32.mrf.mxu0
    %v7111 = vadd.f32 %v6833, %v7110
    %v7112 = vpop.f32.mrf.mxu0
    %v7113 = vadd.f32 %v6837, %v7112
    %v7114 = vpop.f32.mrf.mxu0
    %v7115 = vadd.f32 %v6833, %v7114
    %v7116 = vpop.f32.mrf.mxu0
    %v7117 = vadd.f32 %v6837, %v7116
    %7118 = vmatprep.mubr.bf16.mxu0 0
    %7119 = vmatmul.mubr.bf16.gmra.mxu0 %v7074
    %v7120 = vpop.f32.mrf.mxu0
    %v7121 = vadd.f32 %v6833, %v7120
    %v7122 = vpop.f32.mrf.mxu0
    %v7123 = vadd.f32 %v6837, %v7122
    %v7124 = vpop.f32.mrf.mxu0
    %v7125 = vpop.f32.mrf.mxu0
    %7126 = vdwg.mxu0
    %7127 = vmatprep.subr.bf16.mxu0 0
    %7128 = vmatpush1.bf16.msra.mxu0 0
    %7129 = vmatprep.subr.bf16.mxu0 0
    %7130 = vmatpush1.bf16.msra.mxu0 0
    %7131 = vmatprep.subr.bf16.mxu0 0
    %7132 = vmatpush1.bf16.msra.mxu0 0
    %7133 = vmatprep.subr.bf16.mxu0 0
    %7134 = vmatpush1.bf16.msra.mxu0 0
    %7135 = vmatprep.subr.bf16.mxu0 0
    %7136 = vmatpush1.bf16.msra.mxu0 0
    %7137 = vmatprep.subr.bf16.mxu0 0
    %7138 = vmatpush1.bf16.msra.mxu0 0
    %7139 = vmatprep.subr.bf16.mxu0 %v7025
    %7140 = vmatpush1.bf16.msra.mxu0 %v7024
    %7141 = vmatprep.subr.bf16.mxu0 %v7009
    %7142 = vmatpush1.bf16.msra.mxu0 %v7008
    %7143 = vmatprep.subr.bf16.mxu0 0
    %7144 = vmatpush2.bf16.msra.mxu0 0
    %7145 = vmatprep.subr.bf16.mxu0 0
    %7146 = vmatpush2.bf16.msra.mxu0 0
    %7147 = vmatprep.subr.bf16.mxu0 0
    %7148 = vmatpush2.bf16.msra.mxu0 0
    %7149 = vmatprep.subr.bf16.mxu0 0
    %7150 = vmatpush2.bf16.msra.mxu0 0
    %7151 = vmatprep.subr.bf16.mxu0 0
    %7152 = vmatpush2.bf16.msra.mxu0 0
    %7153 = vmatprep.subr.bf16.mxu0 0
    %7154 = vmatpush2.bf16.msra.mxu0 0
    %7155 = vmatprep.subr.bf16.mxu0 0
    %7156 = vmatpush2.bf16.msra.mxu0 0
    %7157 = vmatprep.subr.bf16.mxu0 0
    %7158 = vmatpush2.bf16.msra.mxu0 0
    %7159 = vmatprep.mubr.bf16.mxu0 0
    %7160 = vmatmul.mubr.bf16.gmra.mxu0 %v7071
    %v7161 = vpop.f32.mrf.mxu0
    %v7162 = vadd.f32 %v6841, %v7161
    %v7163 = vpop.f32.mrf.mxu0
    %v7164 = vadd.f32 %v6845, %v7163
    %v7165 = vpop.f32.mrf.mxu0
    %v7166 = vadd.f32 %v6841, %v7165
    %v7167 = vpop.f32.mrf.mxu0
    %v7168 = vadd.f32 %v6845, %v7167
    %7169 = vmatprep.mubr.bf16.mxu0 0
    %7170 = vmatmul.mubr.bf16.gmra.mxu0 %v7074
    %v7171 = vpop.f32.mrf.mxu0
    %v7172 = vadd.f32 %v6841, %v7171
    %v7173 = vpop.f32.mrf.mxu0
    %v7174 = vadd.f32 %v6845, %v7173
    %v7175 = vpop.f32.mrf.mxu0
    %v7176 = vpop.f32.mrf.mxu0
    %7177 = vdwg.mxu0
    %7178 = vmatprep.subr.bf16.mxu0 0
    %7179 = vmatpush1.bf16.msra.mxu0 0
    %7180 = vmatprep.subr.bf16.mxu0 0
    %7181 = vmatpush1.bf16.msra.mxu0 0
    %7182 = vmatprep.subr.bf16.mxu0 0
    %7183 = vmatpush1.bf16.msra.mxu0 0
    %7184 = vmatprep.subr.bf16.mxu0 0
    %7185 = vmatpush1.bf16.msra.mxu0 0
    %7186 = vmatprep.subr.bf16.mxu0 0
    %7187 = vmatpush1.bf16.msra.mxu0 0
    %7188 = vmatprep.subr.bf16.mxu0 0
    %7189 = vmatpush1.bf16.msra.mxu0 0
    %7190 = vmatprep.subr.bf16.mxu0 %v7027
    %7191 = vmatpush1.bf16.msra.mxu0 %v7026
    %7192 = vmatprep.subr.bf16.mxu0 %v7011
    %7193 = vmatpush1.bf16.msra.mxu0 %v7010
    %7194 = vmatprep.subr.bf16.mxu0 0
    %7195 = vmatpush2.bf16.msra.mxu0 0
    %7196 = vmatprep.subr.bf16.mxu0 0
    %7197 = vmatpush2.bf16.msra.mxu0 0
    %7198 = vmatprep.subr.bf16.mxu0 0
    %7199 = vmatpush2.bf16.msra.mxu0 0
    %7200 = vmatprep.subr.bf16.mxu0 0
    %7201 = vmatpush2.bf16.msra.mxu0 0
    %7202 = vmatprep.subr.bf16.mxu0 0
    %7203 = vmatpush2.bf16.msra.mxu0 0
    %7204 = vmatprep.subr.bf16.mxu0 0
    %7205 = vmatpush2.bf16.msra.mxu0 0
    %7206 = vmatprep.subr.bf16.mxu0 0
    %7207 = vmatpush2.bf16.msra.mxu0 0
    %7208 = vmatprep.subr.bf16.mxu0 0
    %7209 = vmatpush2.bf16.msra.mxu0 0
    %7210 = vmatprep.mubr.bf16.mxu0 0
    %7211 = vmatmul.mubr.bf16.gmra.mxu0 %v7071
    %v7212 = vpop.f32.mrf.mxu0
    %v7213 = vadd.f32 %v6849, %v7212
    %v7214 = vpop.f32.mrf.mxu0
    %v7215 = vadd.f32 %v6853, %v7214
    %v7216 = vpop.f32.mrf.mxu0
    %v7217 = vadd.f32 %v6849, %v7216
    %v7218 = vpop.f32.mrf.mxu0
    %v7219 = vadd.f32 %v6853, %v7218
    %7220 = vmatprep.mubr.bf16.mxu0 0
    %7221 = vmatmul.mubr.bf16.gmra.mxu0 %v7074
    %v7222 = vpop.f32.mrf.mxu0
    %v7223 = vadd.f32 %v6849, %v7222
    %v7224 = vpop.f32.mrf.mxu0
    %v7225 = vadd.f32 %v6853, %v7224
    %v7226 = vpop.f32.mrf.mxu0
    %v7227 = vpop.f32.mrf.mxu0
    %7228 = vdwg.mxu0
    %7229 = vmatprep.subr.bf16.mxu0 0
    %7230 = vmatpush1.bf16.msra.mxu0 0
    %7231 = vmatprep.subr.bf16.mxu0 0
    %7232 = vmatpush1.bf16.msra.mxu0 0
    %7233 = vmatprep.subr.bf16.mxu0 0
    %7234 = vmatpush1.bf16.msra.mxu0 0
    %7235 = vmatprep.subr.bf16.mxu0 0
    %7236 = vmatpush1.bf16.msra.mxu0 0
    %7237 = vmatprep.subr.bf16.mxu0 0
    %7238 = vmatpush1.bf16.msra.mxu0 0
    %7239 = vmatprep.subr.bf16.mxu0 0
    %7240 = vmatpush1.bf16.msra.mxu0 0
    %7241 = vmatprep.subr.bf16.mxu0 %v7029
    %7242 = vmatpush1.bf16.msra.mxu0 %v7028
    %7243 = vmatprep.subr.bf16.mxu0 %v7013
    %7244 = vmatpush1.bf16.msra.mxu0 %v7012
    %7245 = vmatprep.subr.bf16.mxu0 0
    %7246 = vmatpush2.bf16.msra.mxu0 0
    %7247 = vmatprep.subr.bf16.mxu0 0
    %7248 = vmatpush2.bf16.msra.mxu0 0
    %7249 = vmatprep.subr.bf16.mxu0 0
    %7250 = vmatpush2.bf16.msra.mxu0 0
    %7251 = vmatprep.subr.bf16.mxu0 0
    %7252 = vmatpush2.bf16.msra.mxu0 0
    %7253 = vmatprep.subr.bf16.mxu0 0
    %7254 = vmatpush2.bf16.msra.mxu0 0
    %7255 = vmatprep.subr.bf16.mxu0 0
    %7256 = vmatpush2.bf16.msra.mxu0 0
    %7257 = vmatprep.subr.bf16.mxu0 0
    %7258 = vmatpush2.bf16.msra.mxu0 0
    %7259 = vmatprep.subr.bf16.mxu0 0
    %7260 = vmatpush2.bf16.msra.mxu0 0
    %7261 = vmatprep.mubr.bf16.mxu0 0
    %7262 = vmatmul.mubr.bf16.gmra.mxu0 %v7071
    %v7263 = vpop.f32.mrf.mxu0
    %v7264 = vadd.f32 %v6857, %v7263
    %v7265 = vpop.f32.mrf.mxu0
    %v7266 = vadd.f32 %v6861, %v7265
    %v7267 = vpop.f32.mrf.mxu0
    %v7268 = vadd.f32 %v6857, %v7267
    %v7269 = vpop.f32.mrf.mxu0
    %v7270 = vadd.f32 %v6861, %v7269
    %7271 = vmatprep.mubr.bf16.mxu0 0
    %7272 = vmatmul.mubr.bf16.gmra.mxu0 %v7074
    %v7273 = vpop.f32.mrf.mxu0
    %v7274 = vadd.f32 %v6857, %v7273
    %v7275 = vpop.f32.mrf.mxu0
    %v7276 = vadd.f32 %v6861, %v7275
    %v7277 = vpop.f32.mrf.mxu0
    %v7278 = vpop.f32.mrf.mxu0
    %7279 = vdwg.mxu0
    %7280 = vmatprep.subr.bf16.mxu0 0
    %7281 = vmatpush1.bf16.msra.mxu0 0
    %7282 = vmatprep.subr.bf16.mxu0 0
    %7283 = vmatpush1.bf16.msra.mxu0 0
    %7284 = vmatprep.subr.bf16.mxu0 0
    %7285 = vmatpush1.bf16.msra.mxu0 0
    %7286 = vmatprep.subr.bf16.mxu0 0
    %7287 = vmatpush1.bf16.msra.mxu0 0
    %7288 = vmatprep.subr.bf16.mxu0 0
    %7289 = vmatpush1.bf16.msra.mxu0 0
    %7290 = vmatprep.subr.bf16.mxu0 0
    %7291 = vmatpush1.bf16.msra.mxu0 0
    %7292 = vmatprep.subr.bf16.mxu0 %v7031
    %7293 = vmatpush1.bf16.msra.mxu0 %v7030
    %7294 = vmatprep.subr.bf16.mxu0 %v7015
    %7295 = vmatpush1.bf16.msra.mxu0 %v7014
    %7296 = vmatprep.subr.bf16.mxu0 0
    %7297 = vmatpush2.bf16.msra.mxu0 0
    %7298 = vmatprep.subr.bf16.mxu0 0
    %7299 = vmatpush2.bf16.msra.mxu0 0
    %7300 = vmatprep.subr.bf16.mxu0 0
    %7301 = vmatpush2.bf16.msra.mxu0 0
    %7302 = vmatprep.subr.bf16.mxu0 0
    %7303 = vmatpush2.bf16.msra.mxu0 0
    %7304 = vmatprep.subr.bf16.mxu0 0
    %7305 = vmatpush2.bf16.msra.mxu0 0
    %7306 = vmatprep.subr.bf16.mxu0 0
    %7307 = vmatpush2.bf16.msra.mxu0 0
    %7308 = vmatprep.subr.bf16.mxu0 0
    %7309 = vmatpush2.bf16.msra.mxu0 0
    %7310 = vmatprep.subr.bf16.mxu0 0
    %7311 = vmatpush2.bf16.msra.mxu0 0
    %7312 = vmatprep.mubr.bf16.mxu0 0
    %7313 = vmatmul.mubr.bf16.gmra.mxu0 %v7071
    %v7314 = vpop.f32.mrf.mxu0
    %v7315 = vadd.f32 %v6865, %v7314
    %v7316 = vpop.f32.mrf.mxu0
    %v7317 = vadd.f32 %v6869, %v7316
    %v7318 = vpop.f32.mrf.mxu0
    %v7319 = vadd.f32 %v6865, %v7318
    %v7320 = vpop.f32.mrf.mxu0
    %v7321 = vadd.f32 %v6869, %v7320
    %7322 = vmatprep.mubr.bf16.mxu0 0
    %7323 = vmatmul.mubr.bf16.gmra.mxu0 %v7074
    %v7324 = vpop.f32.mrf.mxu0
    %v7325 = vadd.f32 %v6865, %v7324
    %v7326 = vpop.f32.mrf.mxu0
    %v7327 = vadd.f32 %v6869, %v7326
    %v7328 = vpop.f32.mrf.mxu0
    %v7329 = vpop.f32.mrf.mxu0
    %7330 = vdwg.mxu0
    %7331 = vmatprep.subr.bf16.mxu0 0
    %7332 = vmatpush1.bf16.msra.mxu0 0
    %7333 = vmatprep.subr.bf16.mxu0 0
    %7334 = vmatpush1.bf16.msra.mxu0 0
    %7335 = vmatprep.subr.bf16.mxu0 0
    %7336 = vmatpush1.bf16.msra.mxu0 0
    %7337 = vmatprep.subr.bf16.mxu0 0
    %7338 = vmatpush1.bf16.msra.mxu0 0
    %7339 = vmatprep.subr.bf16.mxu0 0
    %7340 = vmatpush1.bf16.msra.mxu0 0
    %7341 = vmatprep.subr.bf16.mxu0 0
    %7342 = vmatpush1.bf16.msra.mxu0 0
    %7343 = vmatprep.subr.bf16.mxu0 %v7033
    %7344 = vmatpush1.bf16.msra.mxu0 %v7032
    %7345 = vmatprep.subr.bf16.mxu0 %v7017
    %7346 = vmatpush1.bf16.msra.mxu0 %v7016
    %7347 = vmatprep.subr.bf16.mxu0 0
    %7348 = vmatpush2.bf16.msra.mxu0 0
    %7349 = vmatprep.subr.bf16.mxu0 0
    %7350 = vmatpush2.bf16.msra.mxu0 0
    %7351 = vmatprep.subr.bf16.mxu0 0
    %7352 = vmatpush2.bf16.msra.mxu0 0
    %7353 = vmatprep.subr.bf16.mxu0 0
    %7354 = vmatpush2.bf16.msra.mxu0 0
    %7355 = vmatprep.subr.bf16.mxu0 0
    %7356 = vmatpush2.bf16.msra.mxu0 0
    %7357 = vmatprep.subr.bf16.mxu0 0
    %7358 = vmatpush2.bf16.msra.mxu0 0
    %7359 = vmatprep.subr.bf16.mxu0 0
    %7360 = vmatpush2.bf16.msra.mxu0 0
    %7361 = vmatprep.subr.bf16.mxu0 0
    %7362 = vmatpush2.bf16.msra.mxu0 0
    %7363 = vmatprep.mubr.bf16.mxu0 0
    %7364 = vmatmul.mubr.bf16.gmra.mxu0 %v7071
    %v7365 = vpop.f32.mrf.mxu0
    %v7366 = vadd.f32 %v6873, %v7365
    %v7367 = vpop.f32.mrf.mxu0
    %v7368 = vadd.f32 %v6877, %v7367
    %v7369 = vpop.f32.mrf.mxu0
    %v7370 = vadd.f32 %v6873, %v7369
    %v7371 = vpop.f32.mrf.mxu0
    %v7372 = vadd.f32 %v6877, %v7371
    %7373 = vmatprep.mubr.bf16.mxu0 0
    %7374 = vmatmul.mubr.bf16.gmra.mxu0 %v7074
    %v7375 = vpop.f32.mrf.mxu0
    %v7376 = vadd.f32 %v6873, %v7375
    %v7377 = vpop.f32.mrf.mxu0
    %v7378 = vadd.f32 %v6877, %v7377
    %v7379 = vpop.f32.mrf.mxu0
    %v7380 = vpop.f32.mrf.mxu0
    %7381 = vdwg.mxu0
    %7382 = vmatprep.subr.bf16.mxu0 0
    %7383 = vmatpush1.bf16.msra.mxu0 0
    %7384 = vmatprep.subr.bf16.mxu0 0
    %7385 = vmatpush1.bf16.msra.mxu0 0
    %7386 = vmatprep.subr.bf16.mxu0 0
    %7387 = vmatpush1.bf16.msra.mxu0 0
    %7388 = vmatprep.subr.bf16.mxu0 0
    %7389 = vmatpush1.bf16.msra.mxu0 0
    %7390 = vmatprep.subr.bf16.mxu0 0
    %7391 = vmatpush1.bf16.msra.mxu0 0
    %7392 = vmatprep.subr.bf16.mxu0 0
    %7393 = vmatpush1.bf16.msra.mxu0 0
    %7394 = vmatprep.subr.bf16.mxu0 %v7035
    %7395 = vmatpush1.bf16.msra.mxu0 %v7034
    %7396 = vmatprep.subr.bf16.mxu0 %v7019
    %7397 = vmatpush1.bf16.msra.mxu0 %v7018
    %7398 = vmatprep.subr.bf16.mxu0 0
    %7399 = vmatpush2.bf16.msra.mxu0 0
    %7400 = vmatprep.subr.bf16.mxu0 0
    %7401 = vmatpush2.bf16.msra.mxu0 0
    %7402 = vmatprep.subr.bf16.mxu0 0
    %7403 = vmatpush2.bf16.msra.mxu0 0
    %7404 = vmatprep.subr.bf16.mxu0 0
    %7405 = vmatpush2.bf16.msra.mxu0 0
    %7406 = vmatprep.subr.bf16.mxu0 0
    %7407 = vmatpush2.bf16.msra.mxu0 0
    %7408 = vmatprep.subr.bf16.mxu0 0
    %7409 = vmatpush2.bf16.msra.mxu0 0
    %7410 = vmatprep.subr.bf16.mxu0 0
    %7411 = vmatpush2.bf16.msra.mxu0 0
    %7412 = vmatprep.subr.bf16.mxu0 0
    %7413 = vmatpush2.bf16.msra.mxu0 0
    %7414 = vmatprep.mubr.bf16.mxu0 0
    %7415 = vmatmul.mubr.bf16.gmra.mxu0 %v7071
    %v7416 = vpop.f32.mrf.mxu0
    %v7417 = vadd.f32 %v6881, %v7416
    %v7418 = vpop.f32.mrf.mxu0
    %v7419 = vadd.f32 %v6885, %v7418
    %v7420 = vpop.f32.mrf.mxu0
    %v7421 = vadd.f32 %v6881, %v7420
    %v7422 = vpop.f32.mrf.mxu0
    %v7423 = vadd.f32 %v6885, %v7422
    %7424 = vmatprep.mubr.bf16.mxu0 0
    %7425 = vmatmul.mubr.bf16.gmra.mxu0 %v7074
    %v7426 = vpop.f32.mrf.mxu0
    %v7427 = vadd.f32 %v6881, %v7426
    %v7428 = vpop.f32.mrf.mxu0
    %v7429 = vadd.f32 %v6885, %v7428
    %v7430 = vpop.f32.mrf.mxu0
    %v7431 = vpop.f32.mrf.mxu0
    %7432 = vdwg.mxu0
    %7433 = vmatprep.subr.bf16.mxu0 0
    %7434 = vmatpush1.bf16.msra.mxu0 0
    %7435 = vmatprep.subr.bf16.mxu0 0
    %7436 = vmatpush1.bf16.msra.mxu0 0
    %7437 = vmatprep.subr.bf16.mxu0 0
    %7438 = vmatpush1.bf16.msra.mxu0 0
    %7439 = vmatprep.subr.bf16.mxu0 0
    %7440 = vmatpush1.bf16.msra.mxu0 0
    %7441 = vmatprep.subr.bf16.mxu0 0
    %7442 = vmatpush1.bf16.msra.mxu0 0
    %7443 = vmatprep.subr.bf16.mxu0 0
    %7444 = vmatpush1.bf16.msra.mxu0 0
    %7445 = vmatprep.subr.bf16.mxu0 %v7037
    %7446 = vmatpush1.bf16.msra.mxu0 %v7036
    %7447 = vmatprep.subr.bf16.mxu0 %v7021
    %7448 = vmatpush1.bf16.msra.mxu0 %v7020
    %7449 = vmatprep.subr.bf16.mxu0 0
    %7450 = vmatpush2.bf16.msra.mxu0 0
    %7451 = vmatprep.subr.bf16.mxu0 0
    %7452 = vmatpush2.bf16.msra.mxu0 0
    %7453 = vmatprep.subr.bf16.mxu0 0
    %7454 = vmatpush2.bf16.msra.mxu0 0
    %7455 = vmatprep.subr.bf16.mxu0 0
    %7456 = vmatpush2.bf16.msra.mxu0 0
    %7457 = vmatprep.subr.bf16.mxu0 0
    %7458 = vmatpush2.bf16.msra.mxu0 0
    %7459 = vmatprep.subr.bf16.mxu0 0
    %7460 = vmatpush2.bf16.msra.mxu0 0
    %7461 = vmatprep.subr.bf16.mxu0 0
    %7462 = vmatpush2.bf16.msra.mxu0 0
    %7463 = vmatprep.subr.bf16.mxu0 0
    %7464 = vmatpush2.bf16.msra.mxu0 0
    %7465 = vmatprep.mubr.bf16.mxu0 0
    %7466 = vmatmul.mubr.bf16.gmra.mxu0 %v7071
    %v7467 = vpop.f32.mrf.mxu0
    %v7468 = vadd.f32 %v6889, %v7467
    %v7469 = vpop.f32.mrf.mxu0
    %v7470 = vadd.f32 %v6893, %v7469
    %v7471 = vpop.f32.mrf.mxu0
    %v7472 = vadd.f32 %v6889, %v7471
    %v7473 = vpop.f32.mrf.mxu0
    %v7474 = vadd.f32 %v6893, %v7473
    %7475 = vmatprep.mubr.bf16.mxu0 0
    %7476 = vmatmul.mubr.bf16.gmra.mxu0 %v7074
    %v7477 = vpop.f32.mrf.mxu0
    %v7478 = vadd.f32 %v6889, %v7477
    %v7479 = vpop.f32.mrf.mxu0
    %v7480 = vadd.f32 %v6893, %v7479
    %v7481 = vpop.f32.mrf.mxu0
    %v7482 = vpop.f32.mrf.mxu0
    %7483 = vdwg.mxu0
    %v7484 = vmax.f32 %v7111, 0.0
    %v7485 = vmax.f32 %v7113, 0.0
    %v7486 = vmax.f32 %v7162, 0.0
    %v7487 = vmax.f32 %v7164, 0.0
    %v7488 = vmax.f32 %v7213, 0.0
    %v7489 = vmax.f32 %v7215, 0.0
    %v7490 = vmax.f32 %v7264, 0.0
    %v7491 = vmax.f32 %v7266, 0.0
    %v7492 = vmax.f32 %v7315, 0.0
    %v7493 = vmax.f32 %v7317, 0.0
    %v7494 = vmax.f32 %v7366, 0.0
    %v7495 = vmax.f32 %v7368, 0.0
    %v7496 = vmax.f32 %v7417, 0.0
    %v7497 = vmax.f32 %v7419, 0.0
    %v7498 = vmax.f32 %v7468, 0.0
    %v7499 = vmax.f32 %v7470, 0.0
    %v7500 = vmax.f32 %v7115, 0.0
    %v7501 = vmax.f32 %v7117, 0.0
    %v7502 = vmax.f32 %v7166, 0.0
    %v7503 = vmax.f32 %v7168, 0.0
    %v7504 = vmax.f32 %v7217, 0.0
    %v7505 = vmax.f32 %v7219, 0.0
    %v7506 = vmax.f32 %v7268, 0.0
    %v7507 = vmax.f32 %v7270, 0.0
    %v7508 = vmax.f32 %v7319, 0.0
    %v7509 = vmax.f32 %v7321, 0.0
    %v7510 = vmax.f32 %v7370, 0.0
    %v7511 = vmax.f32 %v7372, 0.0
    %v7512 = vmax.f32 %v7421, 0.0
    %v7513 = vmax.f32 %v7423, 0.0
    %v7514 = vmax.f32 %v7472, 0.0
    %v7515 = vmax.f32 %v7474, 0.0
    %v7516 = vmax.f32 %v7121, 0.0
    %v7517 = vmax.f32 %v7123, 0.0
    %v7518 = vmax.f32 %v7172, 0.0
    %v7519 = vmax.f32 %v7174, 0.0
    %v7520 = vmax.f32 %v7223, 0.0
    %v7521 = vmax.f32 %v7225, 0.0
    %v7522 = vmax.f32 %v7274, 0.0
    %v7523 = vmax.f32 %v7276, 0.0
    %v7524 = vmax.f32 %v7325, 0.0
    %v7525 = vmax.f32 %v7327, 0.0
    %v7526 = vmax.f32 %v7376, 0.0
    %v7527 = vmax.f32 %v7378, 0.0
    %v7528 = vmax.f32 %v7427, 0.0
    %v7529 = vmax.f32 %v7429, 0.0
    %v7530 = vmax.f32 %v7478, 0.0
    %v7531 = vmax.f32 %v7480, 0.0
    %v7532 = vpack.c.bf16 %v7500, %v7484
    %v7533 = vpack.c.bf16 %v7501, %v7485
    %v7534 = vpack.c.bf16 %v7502, %v7486
    %v7535 = vpack.c.bf16 %v7503, %v7487
    %v7536 = vpack.c.bf16 %v7504, %v7488
    %v7537 = vpack.c.bf16 %v7505, %v7489
    %v7538 = vpack.c.bf16 %v7506, %v7490
    %v7539 = vpack.c.bf16 %v7507, %v7491
    %v7540 = vpack.c.bf16 %v7508, %v7492
    %v7541 = vpack.c.bf16 %v7509, %v7493
    %v7542 = vpack.c.bf16 %v7510, %v7494
    %v7543 = vpack.c.bf16 %v7511, %v7495
    %v7544 = vpack.c.bf16 %v7512, %v7496
    %v7545 = vpack.c.bf16 %v7513, %v7497
    %v7546 = vpack.c.bf16 %v7514, %v7498
    %v7547 = vpack.c.bf16 %v7515, %v7499
    %v7548 = vpack.c.bf16 %v7516, %v7516
    %v7549 = vpack.c.bf16 %v7517, %v7517
    %v7550 = vpack.c.bf16 %v7518, %v7518
    %v7551 = vpack.c.bf16 %v7519, %v7519
    %v7552 = vpack.c.bf16 %v7520, %v7520
    %v7553 = vpack.c.bf16 %v7521, %v7521
    %v7554 = vpack.c.bf16 %v7522, %v7522
    %v7555 = vpack.c.bf16 %v7523, %v7523
    %v7556 = vpack.c.bf16 %v7524, %v7524
    %v7557 = vpack.c.bf16 %v7525, %v7525
    %v7558 = vpack.c.bf16 %v7526, %v7526
    %v7559 = vpack.c.bf16 %v7527, %v7527
    %v7560 = vpack.c.bf16 %v7528, %v7528
    %v7561 = vpack.c.bf16 %v7529, %v7529
    %v7562 = vpack.c.bf16 %v7530, %v7530
    %v7563 = vpack.c.bf16 %v7531, %v7531
    %s7564 = scalar_lea.vmem [#allocation31], 512
    %v7565 = vld [vmem:[%s7564] sm:$0xff]
    %v7566 = vld [vmem:[%s7564 + $0x8] sm:$0xff]
    %v7567 = vld [vmem:[%s7564 + $0x10] sm:$0xff]
    %v7568 = vld [vmem:[%s7564 + $0x18] sm:$0xff]
    %v7569 = vld [vmem:[%s7564 + $0x20] sm:$0xff]
    %v7570 = vld [vmem:[%s7564 + $0x28] sm:$0xff]
    %v7571 = vld [vmem:[%s7564 + $0x30] sm:$0xff]
    %v7572 = vld [vmem:[%s7564 + $0x38] sm:$0xff]
    %v7573 = vld [vmem:[%s7564 + $0x40] sm:$0xff]
    %v7574 = vld [vmem:[%s7564 + $0x48] sm:$0xff]
    %v7575 = vld [vmem:[%s7564 + $0x50] sm:$0xff]
    %v7576 = vld [vmem:[%s7564 + $0x58] sm:$0xff]
    %v7577 = vld [vmem:[%s7564 + $0x60] sm:$0xff]
    %v7578 = vld [vmem:[%s7564 + $0x68] sm:$0xff]
    %v7579 = vld [vmem:[%s7564 + $0x70] sm:$0xff]
    %v7580 = vld [vmem:[%s7564 + $0x78] sm:$0xff]
    %v7581 = vld [vmem:[%s7564 + $0x80] sm:$0xff]
    %v7582 = vld [vmem:[%s7564 + $0x88] sm:$0xff]
    %v7583 = vld [vmem:[%s7564 + $0x90] sm:$0xff]
    %v7584 = vld [vmem:[%s7564 + $0x98] sm:$0xff]
    %v7585 = vld [vmem:[%s7564 + $0xa0] sm:$0xff]
    %v7586 = vld [vmem:[%s7564 + $0xa8] sm:$0xff]
    %v7587 = vld [vmem:[%s7564 + $0xb0] sm:$0xff]
    %v7588 = vld [vmem:[%s7564 + $0xb8] sm:$0xff]
    %v7589 = vld [vmem:[%s7564 + $0xc0] sm:$0xff]
    %v7590 = vld [vmem:[%s7564 + $0xc8] sm:$0xff]
    %v7591 = vld [vmem:[%s7564 + $0xd0] sm:$0xff]
    %v7592 = vld [vmem:[%s7564 + $0xd8] sm:$0xff]
    %v7593 = vld [vmem:[%s7564 + $0xe0] sm:$0xff]
    %v7594 = vld [vmem:[%s7564 + $0xe8] sm:$0xff]
    %v7595 = vld [vmem:[%s7564 + $0xf0] sm:$0xff]
    %v7596 = vld [vmem:[%s7564 + $0xf8] sm:$0xff]
    %s7597 = scalar_lea.vmem %s57, 2
    %v7598 = vld [vmem:[%s7597] sm:$0x1]
    %v7600 = vlaneseq
    %v7601 = vshrl.u32 %v7600, 7
    %v7602 = vsub.s32 0, %v7601
    %v7603 = vrot.slane %v7598, %v7602
    %v7637 = vunpack.c.l.b16 %v7565
    %v7638 = vunpack.c.h.b16 %v7565
    %v7639 = vunpack.c.l.b16 %v7566
    %v7640 = vunpack.c.h.b16 %v7566
    %v7641 = vunpack.c.l.b16 %v7567
    %v7642 = vunpack.c.h.b16 %v7567
    %v7643 = vunpack.c.l.b16 %v7568
    %v7644 = vunpack.c.h.b16 %v7568
    %v7645 = vunpack.c.l.b16 %v7569
    %v7646 = vunpack.c.h.b16 %v7569
    %v7647 = vunpack.c.l.b16 %v7570
    %v7648 = vunpack.c.h.b16 %v7570
    %v7649 = vunpack.c.l.b16 %v7571
    %v7650 = vunpack.c.h.b16 %v7571
    %v7651 = vunpack.c.l.b16 %v7572
    %v7652 = vunpack.c.h.b16 %v7572
    %v7653 = vunpack.c.l.b16 %v7573
    %v7654 = vunpack.c.h.b16 %v7573
    %v7655 = vunpack.c.l.b16 %v7574
    %v7656 = vunpack.c.h.b16 %v7574
    %v7657 = vunpack.c.l.b16 %v7575
    %v7658 = vunpack.c.h.b16 %v7575
    %v7659 = vunpack.c.l.b16 %v7576
    %v7660 = vunpack.c.h.b16 %v7576
    %v7661 = vunpack.c.l.b16 %v7577
    %v7662 = vunpack.c.h.b16 %v7577
    %v7663 = vunpack.c.l.b16 %v7578
    %v7664 = vunpack.c.h.b16 %v7578
    %v7665 = vunpack.c.l.b16 %v7579
    %v7666 = vunpack.c.h.b16 %v7579
    %v7667 = vunpack.c.l.b16 %v7580
    %v7668 = vunpack.c.h.b16 %v7580
    %v7669 = vunpack.c.l.b16 %v7581
    %v7670 = vunpack.c.h.b16 %v7581
    %v7671 = vunpack.c.l.b16 %v7582
    %v7672 = vunpack.c.h.b16 %v7582
    %v7673 = vunpack.c.l.b16 %v7583
    %v7674 = vunpack.c.h.b16 %v7583
    %v7675 = vunpack.c.l.b16 %v7584
    %v7676 = vunpack.c.h.b16 %v7584
    %v7677 = vunpack.c.l.b16 %v7585
    %v7678 = vunpack.c.h.b16 %v7585
    %v7679 = vunpack.c.l.b16 %v7586
    %v7680 = vunpack.c.h.b16 %v7586
    %v7681 = vunpack.c.l.b16 %v7587
    %v7682 = vunpack.c.h.b16 %v7587
    %v7683 = vunpack.c.l.b16 %v7588
    %v7684 = vunpack.c.h.b16 %v7588
    %v7685 = vunpack.c.l.b16 %v7589
    %v7686 = vunpack.c.h.b16 %v7589
    %v7687 = vunpack.c.l.b16 %v7590
    %v7688 = vunpack.c.h.b16 %v7590
    %v7689 = vunpack.c.l.b16 %v7591
    %v7690 = vunpack.c.h.b16 %v7591
    %v7691 = vunpack.c.l.b16 %v7592
    %v7692 = vunpack.c.h.b16 %v7592
    %v7693 = vunpack.c.l.b16 %v7593
    %v7694 = vunpack.c.h.b16 %v7593
    %v7695 = vunpack.c.l.b16 %v7594
    %v7696 = vunpack.c.h.b16 %v7594
    %v7697 = vunpack.c.l.b16 %v7595
    %v7698 = vunpack.c.h.b16 %v7595
    %v7699 = vunpack.c.l.b16 %v7596
    %v7700 = vunpack.c.h.b16 %v7596
    %v7701 = vpack.c.b16 %v7653, %v7637
    %v7702 = vpack.c.b16 %v7654, %v7638
    %v7703 = vpack.c.b16 %v7655, %v7639
    %v7704 = vpack.c.b16 %v7656, %v7640
    %v7705 = vpack.c.b16 %v7657, %v7641
    %v7706 = vpack.c.b16 %v7658, %v7642
    %v7707 = vpack.c.b16 %v7659, %v7643
    %v7708 = vpack.c.b16 %v7660, %v7644
    %v7709 = vpack.c.b16 %v7661, %v7645
    %v7710 = vpack.c.b16 %v7662, %v7646
    %v7711 = vpack.c.b16 %v7663, %v7647
    %v7712 = vpack.c.b16 %v7664, %v7648
    %v7713 = vpack.c.b16 %v7665, %v7649
    %v7714 = vpack.c.b16 %v7666, %v7650
    %v7715 = vpack.c.b16 %v7667, %v7651
    %v7716 = vpack.c.b16 %v7668, %v7652
    %v7717 = vpack.c.b16 %v7685, %v7669
    %v7718 = vpack.c.b16 %v7686, %v7670
    %v7719 = vpack.c.b16 %v7687, %v7671
    %v7720 = vpack.c.b16 %v7688, %v7672
    %v7721 = vpack.c.b16 %v7689, %v7673
    %v7722 = vpack.c.b16 %v7690, %v7674
    %v7723 = vpack.c.b16 %v7691, %v7675
    %v7724 = vpack.c.b16 %v7692, %v7676
    %v7725 = vpack.c.b16 %v7693, %v7677
    %v7726 = vpack.c.b16 %v7694, %v7678
    %v7727 = vpack.c.b16 %v7695, %v7679
    %v7728 = vpack.c.b16 %v7696, %v7680
    %v7729 = vpack.c.b16 %v7697, %v7681
    %v7730 = vpack.c.b16 %v7698, %v7682
    %v7731 = vpack.c.b16 %v7699, %v7683
    %v7732 = vpack.c.b16 %v7700, %v7684
    %7765 = vmatprep.subr.bf16.mxu0 0
    %7766 = vmatpush1.bf16.xpose.msra.mxu0 0
    %7767 = vmatprep.subr.bf16.mxu0 0
    %7768 = vmatpush1.bf16.xpose.msra.mxu0 0
    %7769 = vmatprep.subr.bf16.mxu0 0
    %7770 = vmatpush1.bf16.xpose.msra.mxu0 0
    %7771 = vmatprep.subr.bf16.mxu0 0
    %7772 = vmatpush1.bf16.xpose.msra.mxu0 0
    %7773 = vmatprep.subr.bf16.mxu0 0
    %7774 = vmatpush1.bf16.xpose.msra.mxu0 0
    %7775 = vmatprep.subr.bf16.mxu0 0
    %7776 = vmatpush1.bf16.xpose.msra.mxu0 0
    %7777 = vmatprep.subr.bf16.mxu0 %v7718
    %7778 = vmatpush1.bf16.xpose.msra.mxu0 %v7717
    %7779 = vmatprep.subr.bf16.mxu0 %v7702
    %7780 = vmatpush1.bf16.xpose.msra.mxu0 %v7701
    %7781 = vmatprep.subr.bf16.mxu0 0
    %7782 = vmatpush2.bf16.xpose.msra.mxu0 0
    %7783 = vmatprep.subr.bf16.mxu0 0
    %7784 = vmatpush2.bf16.xpose.msra.mxu0 0
    %7785 = vmatprep.subr.bf16.mxu0 0
    %7786 = vmatpush2.bf16.xpose.msra.mxu0 0
    %7787 = vmatprep.subr.bf16.mxu0 0
    %7788 = vmatpush2.bf16.xpose.msra.mxu0 0
    %7789 = vmatprep.subr.bf16.mxu0 0
    %7790 = vmatpush2.bf16.xpose.msra.mxu0 0
    %7791 = vmatprep.subr.bf16.mxu0 0
    %7792 = vmatpush2.bf16.xpose.msra.mxu0 0
    %7793 = vmatprep.subr.bf16.mxu0 0
    %7794 = vmatpush2.bf16.xpose.msra.mxu0 0
    %7795 = vmatprep.subr.bf16.mxu0 0
    %7796 = vmatpush2.bf16.xpose.msra.mxu0 0
    %7797 = vmatprep.mubr.bf16.mxu0 %v7533
    %7798 = vmatmul.mubr.bf16.gmra.mxu0 %v7532
    %v7799 = vpop.f32.mrf.mxu0
    %v7800 = vadd.f32 %v7603, %v7799
    %v7801 = vpop.f32.mrf.mxu0
    %v7802 = vpop.f32.mrf.mxu0
    %v7803 = vadd.f32 %v7603, %v7802
    %v7804 = vpop.f32.mrf.mxu0
    %7805 = vmatprep.mubr.bf16.mxu0 %v7549
    %7806 = vmatmul.mubr.bf16.gmra.mxu0 %v7548
    %v7807 = vpop.f32.mrf.mxu0
    %v7808 = vadd.f32 %v7603, %v7807
    %v7809 = vpop.f32.mrf.mxu0
    %v7810 = vpop.f32.mrf.mxu0
    %v7811 = vpop.f32.mrf.mxu0
    %7812 = vdwg.mxu0
    %7813 = vmatprep.subr.bf16.mxu0 0
    %7814 = vmatpush1.bf16.xpose.msra.mxu0 0
    %7815 = vmatprep.subr.bf16.mxu0 0
    %7816 = vmatpush1.bf16.xpose.msra.mxu0 0
    %7817 = vmatprep.subr.bf16.mxu0 0
    %7818 = vmatpush1.bf16.xpose.msra.mxu0 0
    %7819 = vmatprep.subr.bf16.mxu0 0
    %7820 = vmatpush1.bf16.xpose.msra.mxu0 0
    %7821 = vmatprep.subr.bf16.mxu0 0
    %7822 = vmatpush1.bf16.xpose.msra.mxu0 0
    %7823 = vmatprep.subr.bf16.mxu0 0
    %7824 = vmatpush1.bf16.xpose.msra.mxu0 0
    %7825 = vmatprep.subr.bf16.mxu0 %v7720
    %7826 = vmatpush1.bf16.xpose.msra.mxu0 %v7719
    %7827 = vmatprep.subr.bf16.mxu0 %v7704
    %7828 = vmatpush1.bf16.xpose.msra.mxu0 %v7703
    %7829 = vmatprep.subr.bf16.mxu0 0
    %7830 = vmatpush2.bf16.xpose.msra.mxu0 0
    %7831 = vmatprep.subr.bf16.mxu0 0
    %7832 = vmatpush2.bf16.xpose.msra.mxu0 0
    %7833 = vmatprep.subr.bf16.mxu0 0
    %7834 = vmatpush2.bf16.xpose.msra.mxu0 0
    %7835 = vmatprep.subr.bf16.mxu0 0
    %7836 = vmatpush2.bf16.xpose.msra.mxu0 0
    %7837 = vmatprep.subr.bf16.mxu0 0
    %7838 = vmatpush2.bf16.xpose.msra.mxu0 0
    %7839 = vmatprep.subr.bf16.mxu0 0
    %7840 = vmatpush2.bf16.xpose.msra.mxu0 0
    %7841 = vmatprep.subr.bf16.mxu0 0
    %7842 = vmatpush2.bf16.xpose.msra.mxu0 0
    %7843 = vmatprep.subr.bf16.mxu0 0
    %7844 = vmatpush2.bf16.xpose.msra.mxu0 0
    %7845 = vmatprep.mubr.bf16.mxu0 %v7535
    %7846 = vmatmul.mubr.bf16.gmra.mxu0 %v7534
    %v7847 = vpop.f32.mrf.mxu0
    %v7848 = vadd.f32 %v7800, %v7847
    %v7849 = vpop.f32.mrf.mxu0
    %v7850 = vpop.f32.mrf.mxu0
    %v7851 = vadd.f32 %v7803, %v7850
    %v7852 = vpop.f32.mrf.mxu0
    %7853 = vmatprep.mubr.bf16.mxu0 %v7551
    %7854 = vmatmul.mubr.bf16.gmra.mxu0 %v7550
    %v7855 = vpop.f32.mrf.mxu0
    %v7856 = vadd.f32 %v7808, %v7855
    %v7857 = vpop.f32.mrf.mxu0
    %v7858 = vpop.f32.mrf.mxu0
    %v7859 = vpop.f32.mrf.mxu0
    %7860 = vdwg.mxu0
    %7861 = vmatprep.subr.bf16.mxu0 0
    %7862 = vmatpush1.bf16.xpose.msra.mxu0 0
    %7863 = vmatprep.subr.bf16.mxu0 0
    %7864 = vmatpush1.bf16.xpose.msra.mxu0 0
    %7865 = vmatprep.subr.bf16.mxu0 0
    %7866 = vmatpush1.bf16.xpose.msra.mxu0 0
    %7867 = vmatprep.subr.bf16.mxu0 0
    %7868 = vmatpush1.bf16.xpose.msra.mxu0 0
    %7869 = vmatprep.subr.bf16.mxu0 0
    %7870 = vmatpush1.bf16.xpose.msra.mxu0 0
    %7871 = vmatprep.subr.bf16.mxu0 0
    %7872 = vmatpush1.bf16.xpose.msra.mxu0 0
    %7873 = vmatprep.subr.bf16.mxu0 %v7722
    %7874 = vmatpush1.bf16.xpose.msra.mxu0 %v7721
    %7875 = vmatprep.subr.bf16.mxu0 %v7706
    %7876 = vmatpush1.bf16.xpose.msra.mxu0 %v7705
    %7877 = vmatprep.subr.bf16.mxu0 0
    %7878 = vmatpush2.bf16.xpose.msra.mxu0 0
    %7879 = vmatprep.subr.bf16.mxu0 0
    %7880 = vmatpush2.bf16.xpose.msra.mxu0 0
    %7881 = vmatprep.subr.bf16.mxu0 0
    %7882 = vmatpush2.bf16.xpose.msra.mxu0 0
    %7883 = vmatprep.subr.bf16.mxu0 0
    %7884 = vmatpush2.bf16.xpose.msra.mxu0 0
    %7885 = vmatprep.subr.bf16.mxu0 0
    %7886 = vmatpush2.bf16.xpose.msra.mxu0 0
    %7887 = vmatprep.subr.bf16.mxu0 0
    %7888 = vmatpush2.bf16.xpose.msra.mxu0 0
    %7889 = vmatprep.subr.bf16.mxu0 0
    %7890 = vmatpush2.bf16.xpose.msra.mxu0 0
    %7891 = vmatprep.subr.bf16.mxu0 0
    %7892 = vmatpush2.bf16.xpose.msra.mxu0 0
    %7893 = vmatprep.mubr.bf16.mxu0 %v7537
    %7894 = vmatmul.mubr.bf16.gmra.mxu0 %v7536
    %v7895 = vpop.f32.mrf.mxu0
    %v7896 = vadd.f32 %v7848, %v7895
    %v7897 = vpop.f32.mrf.mxu0
    %v7898 = vpop.f32.mrf.mxu0
    %v7899 = vadd.f32 %v7851, %v7898
    %v7900 = vpop.f32.mrf.mxu0
    %7901 = vmatprep.mubr.bf16.mxu0 %v7553
    %7902 = vmatmul.mubr.bf16.gmra.mxu0 %v7552
    %v7903 = vpop.f32.mrf.mxu0
    %v7904 = vadd.f32 %v7856, %v7903
    %v7905 = vpop.f32.mrf.mxu0
    %v7906 = vpop.f32.mrf.mxu0
    %v7907 = vpop.f32.mrf.mxu0
    %7908 = vdwg.mxu0
    %7909 = vmatprep.subr.bf16.mxu0 0
    %7910 = vmatpush1.bf16.xpose.msra.mxu0 0
    %7911 = vmatprep.subr.bf16.mxu0 0
    %7912 = vmatpush1.bf16.xpose.msra.mxu0 0
    %7913 = vmatprep.subr.bf16.mxu0 0
    %7914 = vmatpush1.bf16.xpose.msra.mxu0 0
    %7915 = vmatprep.subr.bf16.mxu0 0
    %7916 = vmatpush1.bf16.xpose.msra.mxu0 0
    %7917 = vmatprep.subr.bf16.mxu0 0
    %7918 = vmatpush1.bf16.xpose.msra.mxu0 0
    %7919 = vmatprep.subr.bf16.mxu0 0
    %7920 = vmatpush1.bf16.xpose.msra.mxu0 0
    %7921 = vmatprep.subr.bf16.mxu0 %v7724
    %7922 = vmatpush1.bf16.xpose.msra.mxu0 %v7723
    %7923 = vmatprep.subr.bf16.mxu0 %v7708
    %7924 = vmatpush1.bf16.xpose.msra.mxu0 %v7707
    %7925 = vmatprep.subr.bf16.mxu0 0
    %7926 = vmatpush2.bf16.xpose.msra.mxu0 0
    %7927 = vmatprep.subr.bf16.mxu0 0
    %7928 = vmatpush2.bf16.xpose.msra.mxu0 0
    %7929 = vmatprep.subr.bf16.mxu0 0
    %7930 = vmatpush2.bf16.xpose.msra.mxu0 0
    %7931 = vmatprep.subr.bf16.mxu0 0
    %7932 = vmatpush2.bf16.xpose.msra.mxu0 0
    %7933 = vmatprep.subr.bf16.mxu0 0
    %7934 = vmatpush2.bf16.xpose.msra.mxu0 0
    %7935 = vmatprep.subr.bf16.mxu0 0
    %7936 = vmatpush2.bf16.xpose.msra.mxu0 0
    %7937 = vmatprep.subr.bf16.mxu0 0
    %7938 = vmatpush2.bf16.xpose.msra.mxu0 0
    %7939 = vmatprep.subr.bf16.mxu0 0
    %7940 = vmatpush2.bf16.xpose.msra.mxu0 0
    %7941 = vmatprep.mubr.bf16.mxu0 %v7539
    %7942 = vmatmul.mubr.bf16.gmra.mxu0 %v7538
    %v7943 = vpop.f32.mrf.mxu0
    %v7944 = vadd.f32 %v7896, %v7943
    %v7945 = vpop.f32.mrf.mxu0
    %v7946 = vpop.f32.mrf.mxu0
    %v7947 = vadd.f32 %v7899, %v7946
    %v7948 = vpop.f32.mrf.mxu0
    %7949 = vmatprep.mubr.bf16.mxu0 %v7555
    %7950 = vmatmul.mubr.bf16.gmra.mxu0 %v7554
    %v7951 = vpop.f32.mrf.mxu0
    %v7952 = vadd.f32 %v7904, %v7951
    %v7953 = vpop.f32.mrf.mxu0
    %v7954 = vpop.f32.mrf.mxu0
    %v7955 = vpop.f32.mrf.mxu0
    %7956 = vdwg.mxu0
    %7957 = vmatprep.subr.bf16.mxu0 0
    %7958 = vmatpush1.bf16.xpose.msra.mxu0 0
    %7959 = vmatprep.subr.bf16.mxu0 0
    %7960 = vmatpush1.bf16.xpose.msra.mxu0 0
    %7961 = vmatprep.subr.bf16.mxu0 0
    %7962 = vmatpush1.bf16.xpose.msra.mxu0 0
    %7963 = vmatprep.subr.bf16.mxu0 0
    %7964 = vmatpush1.bf16.xpose.msra.mxu0 0
    %7965 = vmatprep.subr.bf16.mxu0 0
    %7966 = vmatpush1.bf16.xpose.msra.mxu0 0
    %7967 = vmatprep.subr.bf16.mxu0 0
    %7968 = vmatpush1.bf16.xpose.msra.mxu0 0
    %7969 = vmatprep.subr.bf16.mxu0 %v7726
    %7970 = vmatpush1.bf16.xpose.msra.mxu0 %v7725
    %7971 = vmatprep.subr.bf16.mxu0 %v7710
    %7972 = vmatpush1.bf16.xpose.msra.mxu0 %v7709
    %7973 = vmatprep.subr.bf16.mxu0 0
    %7974 = vmatpush2.bf16.xpose.msra.mxu0 0
    %7975 = vmatprep.subr.bf16.mxu0 0
    %7976 = vmatpush2.bf16.xpose.msra.mxu0 0
    %7977 = vmatprep.subr.bf16.mxu0 0
    %7978 = vmatpush2.bf16.xpose.msra.mxu0 0
    %7979 = vmatprep.subr.bf16.mxu0 0
    %7980 = vmatpush2.bf16.xpose.msra.mxu0 0
    %7981 = vmatprep.subr.bf16.mxu0 0
    %7982 = vmatpush2.bf16.xpose.msra.mxu0 0
    %7983 = vmatprep.subr.bf16.mxu0 0
    %7984 = vmatpush2.bf16.xpose.msra.mxu0 0
    %7985 = vmatprep.subr.bf16.mxu0 0
    %7986 = vmatpush2.bf16.xpose.msra.mxu0 0
    %7987 = vmatprep.subr.bf16.mxu0 0
    %7988 = vmatpush2.bf16.xpose.msra.mxu0 0
    %7989 = vmatprep.mubr.bf16.mxu0 %v7541
    %7990 = vmatmul.mubr.bf16.gmra.mxu0 %v7540
    %v7991 = vpop.f32.mrf.mxu0
    %v7992 = vadd.f32 %v7944, %v7991
    %v7993 = vpop.f32.mrf.mxu0
    %v7994 = vpop.f32.mrf.mxu0
    %v7995 = vadd.f32 %v7947, %v7994
    %v7996 = vpop.f32.mrf.mxu0
    %7997 = vmatprep.mubr.bf16.mxu0 %v7557
    %7998 = vmatmul.mubr.bf16.gmra.mxu0 %v7556
    %v7999 = vpop.f32.mrf.mxu0
    %v8000 = vadd.f32 %v7952, %v7999
    %v8001 = vpop.f32.mrf.mxu0
    %v8002 = vpop.f32.mrf.mxu0
    %v8003 = vpop.f32.mrf.mxu0
    %8004 = vdwg.mxu0
    %8005 = vmatprep.subr.bf16.mxu0 0
    %8006 = vmatpush1.bf16.xpose.msra.mxu0 0
    %8007 = vmatprep.subr.bf16.mxu0 0
    %8008 = vmatpush1.bf16.xpose.msra.mxu0 0
    %8009 = vmatprep.subr.bf16.mxu0 0
    %8010 = vmatpush1.bf16.xpose.msra.mxu0 0
    %8011 = vmatprep.subr.bf16.mxu0 0
    %8012 = vmatpush1.bf16.xpose.msra.mxu0 0
    %8013 = vmatprep.subr.bf16.mxu0 0
    %8014 = vmatpush1.bf16.xpose.msra.mxu0 0
    %8015 = vmatprep.subr.bf16.mxu0 0
    %8016 = vmatpush1.bf16.xpose.msra.mxu0 0
    %8017 = vmatprep.subr.bf16.mxu0 %v7728
    %8018 = vmatpush1.bf16.xpose.msra.mxu0 %v7727
    %8019 = vmatprep.subr.bf16.mxu0 %v7712
    %8020 = vmatpush1.bf16.xpose.msra.mxu0 %v7711
    %8021 = vmatprep.subr.bf16.mxu0 0
    %8022 = vmatpush2.bf16.xpose.msra.mxu0 0
    %8023 = vmatprep.subr.bf16.mxu0 0
    %8024 = vmatpush2.bf16.xpose.msra.mxu0 0
    %8025 = vmatprep.subr.bf16.mxu0 0
    %8026 = vmatpush2.bf16.xpose.msra.mxu0 0
    %8027 = vmatprep.subr.bf16.mxu0 0
    %8028 = vmatpush2.bf16.xpose.msra.mxu0 0
    %8029 = vmatprep.subr.bf16.mxu0 0
    %8030 = vmatpush2.bf16.xpose.msra.mxu0 0
    %8031 = vmatprep.subr.bf16.mxu0 0
    %8032 = vmatpush2.bf16.xpose.msra.mxu0 0
    %8033 = vmatprep.subr.bf16.mxu0 0
    %8034 = vmatpush2.bf16.xpose.msra.mxu0 0
    %8035 = vmatprep.subr.bf16.mxu0 0
    %8036 = vmatpush2.bf16.xpose.msra.mxu0 0
    %8037 = vmatprep.mubr.bf16.mxu0 %v7543
    %8038 = vmatmul.mubr.bf16.gmra.mxu0 %v7542
    %v8039 = vpop.f32.mrf.mxu0
    %v8040 = vadd.f32 %v7992, %v8039
    %v8041 = vpop.f32.mrf.mxu0
    %v8042 = vpop.f32.mrf.mxu0
    %v8043 = vadd.f32 %v7995, %v8042
    %v8044 = vpop.f32.mrf.mxu0
    %8045 = vmatprep.mubr.bf16.mxu0 %v7559
    %8046 = vmatmul.mubr.bf16.gmra.mxu0 %v7558
    %v8047 = vpop.f32.mrf.mxu0
    %v8048 = vadd.f32 %v8000, %v8047
    %v8049 = vpop.f32.mrf.mxu0
    %v8050 = vpop.f32.mrf.mxu0
    %v8051 = vpop.f32.mrf.mxu0
    %8052 = vdwg.mxu0
    %8053 = vmatprep.subr.bf16.mxu0 0
    %8054 = vmatpush1.bf16.xpose.msra.mxu0 0
    %8055 = vmatprep.subr.bf16.mxu0 0
    %8056 = vmatpush1.bf16.xpose.msra.mxu0 0
    %8057 = vmatprep.subr.bf16.mxu0 0
    %8058 = vmatpush1.bf16.xpose.msra.mxu0 0
    %8059 = vmatprep.subr.bf16.mxu0 0
    %8060 = vmatpush1.bf16.xpose.msra.mxu0 0
    %8061 = vmatprep.subr.bf16.mxu0 0
    %8062 = vmatpush1.bf16.xpose.msra.mxu0 0
    %8063 = vmatprep.subr.bf16.mxu0 0
    %8064 = vmatpush1.bf16.xpose.msra.mxu0 0
    %8065 = vmatprep.subr.bf16.mxu0 %v7730
    %8066 = vmatpush1.bf16.xpose.msra.mxu0 %v7729
    %8067 = vmatprep.subr.bf16.mxu0 %v7714
    %8068 = vmatpush1.bf16.xpose.msra.mxu0 %v7713
    %8069 = vmatprep.subr.bf16.mxu0 0
    %8070 = vmatpush2.bf16.xpose.msra.mxu0 0
    %8071 = vmatprep.subr.bf16.mxu0 0
    %8072 = vmatpush2.bf16.xpose.msra.mxu0 0
    %8073 = vmatprep.subr.bf16.mxu0 0
    %8074 = vmatpush2.bf16.xpose.msra.mxu0 0
    %8075 = vmatprep.subr.bf16.mxu0 0
    %8076 = vmatpush2.bf16.xpose.msra.mxu0 0
    %8077 = vmatprep.subr.bf16.mxu0 0
    %8078 = vmatpush2.bf16.xpose.msra.mxu0 0
    %8079 = vmatprep.subr.bf16.mxu0 0
    %8080 = vmatpush2.bf16.xpose.msra.mxu0 0
    %8081 = vmatprep.subr.bf16.mxu0 0
    %8082 = vmatpush2.bf16.xpose.msra.mxu0 0
    %8083 = vmatprep.subr.bf16.mxu0 0
    %8084 = vmatpush2.bf16.xpose.msra.mxu0 0
    %8085 = vmatprep.mubr.bf16.mxu0 %v7545
    %8086 = vmatmul.mubr.bf16.gmra.mxu0 %v7544
    %v8087 = vpop.f32.mrf.mxu0
    %v8088 = vadd.f32 %v8040, %v8087
    %v8089 = vpop.f32.mrf.mxu0
    %v8090 = vpop.f32.mrf.mxu0
    %v8091 = vadd.f32 %v8043, %v8090
    %v8092 = vpop.f32.mrf.mxu0
    %8093 = vmatprep.mubr.bf16.mxu0 %v7561
    %8094 = vmatmul.mubr.bf16.gmra.mxu0 %v7560
    %v8095 = vpop.f32.mrf.mxu0
    %v8096 = vadd.f32 %v8048, %v8095
    %v8097 = vpop.f32.mrf.mxu0
    %v8098 = vpop.f32.mrf.mxu0
    %v8099 = vpop.f32.mrf.mxu0
    %8100 = vdwg.mxu0
    %8101 = vmatprep.subr.bf16.mxu0 0
    %8102 = vmatpush1.bf16.xpose.msra.mxu0 0
    %8103 = vmatprep.subr.bf16.mxu0 0
    %8104 = vmatpush1.bf16.xpose.msra.mxu0 0
    %8105 = vmatprep.subr.bf16.mxu0 0
    %8106 = vmatpush1.bf16.xpose.msra.mxu0 0
    %8107 = vmatprep.subr.bf16.mxu0 0
    %8108 = vmatpush1.bf16.xpose.msra.mxu0 0
    %8109 = vmatprep.subr.bf16.mxu0 0
    %8110 = vmatpush1.bf16.xpose.msra.mxu0 0
    %8111 = vmatprep.subr.bf16.mxu0 0
    %8112 = vmatpush1.bf16.xpose.msra.mxu0 0
    %8113 = vmatprep.subr.bf16.mxu0 %v7732
    %8114 = vmatpush1.bf16.xpose.msra.mxu0 %v7731
    %8115 = vmatprep.subr.bf16.mxu0 %v7716
    %8116 = vmatpush1.bf16.xpose.msra.mxu0 %v7715
    %8117 = vmatprep.subr.bf16.mxu0 0
    %8118 = vmatpush2.bf16.xpose.msra.mxu0 0
    %8119 = vmatprep.subr.bf16.mxu0 0
    %8120 = vmatpush2.bf16.xpose.msra.mxu0 0
    %8121 = vmatprep.subr.bf16.mxu0 0
    %8122 = vmatpush2.bf16.xpose.msra.mxu0 0
    %8123 = vmatprep.subr.bf16.mxu0 0
    %8124 = vmatpush2.bf16.xpose.msra.mxu0 0
    %8125 = vmatprep.subr.bf16.mxu0 0
    %8126 = vmatpush2.bf16.xpose.msra.mxu0 0
    %8127 = vmatprep.subr.bf16.mxu0 0
    %8128 = vmatpush2.bf16.xpose.msra.mxu0 0
    %8129 = vmatprep.subr.bf16.mxu0 0
    %8130 = vmatpush2.bf16.xpose.msra.mxu0 0
    %8131 = vmatprep.subr.bf16.mxu0 0
    %8132 = vmatpush2.bf16.xpose.msra.mxu0 0
    %8133 = vmatprep.mubr.bf16.mxu0 %v7547
    %8134 = vmatmul.mubr.bf16.gmra.mxu0 %v7546
    %v8135 = vpop.f32.mrf.mxu0
    %v8136 = vadd.f32 %v8088, %v8135
    %v8137 = vpop.f32.mrf.mxu0
    %v8138 = vpop.f32.mrf.mxu0
    %v8139 = vadd.f32 %v8091, %v8138
    %v8140 = vpop.f32.mrf.mxu0
    %8141 = vmatprep.mubr.bf16.mxu0 %v7563
    %8142 = vmatmul.mubr.bf16.gmra.mxu0 %v7562
    %v8143 = vpop.f32.mrf.mxu0
    %v8144 = vadd.f32 %v8096, %v8143
    %v8145 = vpop.f32.mrf.mxu0
    %v8146 = vpop.f32.mrf.mxu0
    %v8147 = vpop.f32.mrf.mxu0
    %8148 = vdwg.mxu0
    %v8149 = vadd.f32 %v6787, %v8136
    %v8150 = vadd.f32 %v6788, %v8139
    %v8151 = vadd.f32 %v6789, %v8144
    %s8152 = scalar_lea.vmem %s59, 2
    %v8153 = vld [vmem:[%s8152] sm:$0x1]
    %s8154 = scalar_lea.vmem %s61, 2
    %v8155 = vld [vmem:[%s8154] sm:$0x1]
    %v8156 = vsel %vm450, %v8149, 0.0
    %8157 = vadd.xlane.f32.xlu0 %v8156
    %v8158 = vpop.xlane.xlu0 %8157
    %v8159 = vsel %vm450, %v8150, 0.0
    %8160 = vadd.xlane.f32.xlu0 %v8159
    %v8161 = vpop.xlane.xlu0 %8160
    %v8162 = vsel %vm1748, %v8151, 0.0
    %8163 = vadd.xlane.f32.xlu0 %v8162
    %v8164 = vpop.xlane.xlu0 %8163
    %v8165 = vmul.f32 %v8158, %v457
    %v8166 = vmul.f32 %v8161, %v457
    %v8167 = vmul.f32 %v8164, %v457
    %v8168 = vsub.f32 %v8149, %v8165
    %v8169 = vsub.f32 %v8150, %v8166
    %v8170 = vsub.f32 %v8151, %v8167
    %v8171 = vmul.f32 %v8168, %v8168
    %v8172 = vmul.f32 %v8169, %v8169
    %v8173 = vmul.f32 %v8170, %v8170
    %v8174 = vsel %vm450, %v8171, 0.0
    %8175 = vadd.xlane.f32.xlu0 %v8174
    %v8176 = vpop.xlane.xlu0 %8175
    %v8177 = vsel %vm450, %v8172, 0.0
    %8178 = vadd.xlane.f32.xlu0 %v8177
    %v8179 = vpop.xlane.xlu0 %8178
    %v8180 = vsel %vm1748, %v8173, 0.0
    %8181 = vadd.xlane.f32.xlu0 %v8180
    %v8182 = vpop.xlane.xlu0 %8181
    %v8183 = vmul.f32 %v8176, %v457
    %v8184 = vmul.f32 %v8179, %v457
    %v8185 = vmul.f32 %v8182, %v457
    %v8186 = vadd.f32 %v8183, 1e-05
    %v8187 = vadd.f32 %v8184, 1e-05
    %v8188 = vadd.f32 %v8185, 1e-05
    %v8189 = vrsqrt.pop %v8186
    %v8190 = vrsqrt.pop %v8187
    %v8191 = vrsqrt.pop %v8188
    %v8192 = vmul.f32 %v8168, %v8189
    %v8193 = vmul.f32 %v8169, %v8190
    %v8194 = vmul.f32 %v8170, %v8191
    %v8196 = vlaneseq
    %v8197 = vshrl.u32 %v8196, 7
    %v8198 = vsub.s32 0, %v8197
    %v8199 = vrot.slane %v8153, %v8198
    %v8201 = vmul.f32 %v8192, %v8199
    %v8202 = vmul.f32 %v8193, %v8199
    %v8203 = vmul.f32 %v8194, %v8199
    %v8205 = vlaneseq
    %v8206 = vshrl.u32 %v8205, 7
    %v8207 = vsub.s32 0, %v8206
    %v8208 = vrot.slane %v8155, %v8207
    %v8210 = vadd.f32 %v8201, %v8208
    %v8211 = vadd.f32 %v8202, %v8208
    %v8212 = vadd.f32 %v8203, %v8208
    %v8213 = vpack.c.bf16 %v8211, %v8210
    %v8214 = vpack.c.bf16 %v8212, %v8212
    %s8215 = scalar_lea.vmem %s31, 48
    %v8216 = vld [vmem:[%s8215] sm:$0xf]
    %v8217 = vld [vmem:[%s8215 + $0x4] sm:$0xf]
    %v8218 = vld [vmem:[%s8215 + $0x8] sm:$0xf]
    %v8219 = vld [vmem:[%s8215 + $0xc] sm:$0xf]
    %s8220 = scalar_lea.vmem %s37, 3
    %v8221 = vld [vmem:[%s8220] sm:$0x1]
    %v8223 = vlaneseq
    %v8224 = vshrl.u32 %v8223, 7
    %v8225 = vsub.s32 0, %v8224
    %v8226 = vrot.slane %v8221, %v8225
    %v8232 = vunpack.c.l.b16 %v8216
    %v8233 = vunpack.c.l.b16 %v8217
    %v8234 = vunpack.c.l.b16 %v8218
    %v8235 = vunpack.c.l.b16 %v8219
    %v8236 = vpack.c.b16 %v8233, %v8232
    %v8237 = vpack.c.b16 %v8235, %v8234
    %v8241 = vsel %vm450, %v8213, 0
    %v8244 = vsel %vm450, %v8214, 0
    %8246 = vmatprep.subr.bf16.mxu0 0
    %8247 = vmatpush1.bf16.msra.mxu0 0
    %8248 = vmatprep.subr.bf16.mxu0 0
    %8249 = vmatpush1.bf16.msra.mxu0 0
    %8250 = vmatprep.subr.bf16.mxu0 0
    %8251 = vmatpush1.bf16.msra.mxu0 0
    %8252 = vmatprep.subr.bf16.mxu0 0
    %8253 = vmatpush1.bf16.msra.mxu0 0
    %8254 = vmatprep.subr.bf16.mxu0 0
    %8255 = vmatpush1.bf16.msra.mxu0 0
    %8256 = vmatprep.subr.bf16.mxu0 0
    %8257 = vmatpush1.bf16.msra.mxu0 0
    %8258 = vmatprep.subr.bf16.mxu0 0
    %8259 = vmatpush1.bf16.msra.mxu0 %v8237
    %8260 = vmatprep.subr.bf16.mxu0 0
    %8261 = vmatpush1.bf16.msra.mxu0 %v8236
    %8262 = vmatprep.subr.bf16.mxu0 0
    %8263 = vmatpush2.bf16.msra.mxu0 0
    %8264 = vmatprep.subr.bf16.mxu0 0
    %8265 = vmatpush2.bf16.msra.mxu0 0
    %8266 = vmatprep.subr.bf16.mxu0 0
    %8267 = vmatpush2.bf16.msra.mxu0 0
    %8268 = vmatprep.subr.bf16.mxu0 0
    %8269 = vmatpush2.bf16.msra.mxu0 0
    %8270 = vmatprep.subr.bf16.mxu0 0
    %8271 = vmatpush2.bf16.msra.mxu0 0
    %8272 = vmatprep.subr.bf16.mxu0 0
    %8273 = vmatpush2.bf16.msra.mxu0 0
    %8274 = vmatprep.subr.bf16.mxu0 0
    %8275 = vmatpush2.bf16.msra.mxu0 0
    %8276 = vmatprep.subr.bf16.mxu0 0
    %8277 = vmatpush2.bf16.msra.mxu0 0
    %8278 = vmatprep.mubr.bf16.mxu0 0
    %8279 = vmatmul.mubr.bf16.gmra.mxu0 %v8241
    %v8280 = vpop.f32.mrf.mxu0
    %v8281 = vadd.f32 %v8226, %v8280
    %v8282 = vpop.f32.mrf.mxu0
    %v8283 = vpop.f32.mrf.mxu0
    %v8284 = vadd.f32 %v8226, %v8283
    %v8285 = vpop.f32.mrf.mxu0
    %8286 = vmatprep.mubr.bf16.mxu0 0
    %8287 = vmatmul.mubr.bf16.gmra.mxu0 %v8244
    %v8288 = vpop.f32.mrf.mxu0
    %v8289 = vadd.f32 %v8226, %v8288
    %v8290 = vpop.f32.mrf.mxu0
    %v8291 = vpop.f32.mrf.mxu0
    %v8292 = vpop.f32.mrf.mxu0
    %8293 = vdwg.mxu0
    %s8294 = scalar_lea.vmem [#allocation23], 48
    %v8295 = vld [vmem:[%s8294] sm:$0xf]
    %v8296 = vld [vmem:[%s8294 + $0x4] sm:$0xf]
    %v8297 = vld [vmem:[%s8294 + $0x8] sm:$0xf]
    %v8298 = vld [vmem:[%s8294 + $0xc] sm:$0xf]
    %s8299 = scalar_lea.vmem %s39, 3
    %v8300 = vld [vmem:[%s8299] sm:$0x1]
    %v8302 = vlaneseq
    %v8303 = vshrl.u32 %v8302, 7
    %v8304 = vsub.s32 0, %v8303
    %v8305 = vrot.slane %v8300, %v8304
    %v8311 = vunpack.c.l.b16 %v8295
    %v8312 = vunpack.c.l.b16 %v8296
    %v8313 = vunpack.c.l.b16 %v8297
    %v8314 = vunpack.c.l.b16 %v8298
    %v8315 = vpack.c.b16 %v8312, %v8311
    %v8316 = vpack.c.b16 %v8314, %v8313
    %8319 = vmatprep.subr.bf16.mxu0 0
    %8320 = vmatpush1.bf16.msra.mxu0 0
    %8321 = vmatprep.subr.bf16.mxu0 0
    %8322 = vmatpush1.bf16.msra.mxu0 0
    %8323 = vmatprep.subr.bf16.mxu0 0
    %8324 = vmatpush1.bf16.msra.mxu0 0
    %8325 = vmatprep.subr.bf16.mxu0 0
    %8326 = vmatpush1.bf16.msra.mxu0 0
    %8327 = vmatprep.subr.bf16.mxu0 0
    %8328 = vmatpush1.bf16.msra.mxu0 0
    %8329 = vmatprep.subr.bf16.mxu0 0
    %8330 = vmatpush1.bf16.msra.mxu0 0
    %8331 = vmatprep.subr.bf16.mxu0 0
    %8332 = vmatpush1.bf16.msra.mxu0 %v8316
    %8333 = vmatprep.subr.bf16.mxu0 0
    %8334 = vmatpush1.bf16.msra.mxu0 %v8315
    %8335 = vmatprep.subr.bf16.mxu0 0
    %8336 = vmatpush2.bf16.msra.mxu0 0
    %8337 = vmatprep.subr.bf16.mxu0 0
    %8338 = vmatpush2.bf16.msra.mxu0 0
    %8339 = vmatprep.subr.bf16.mxu0 0
    %8340 = vmatpush2.bf16.msra.mxu0 0
    %8341 = vmatprep.subr.bf16.mxu0 0
    %8342 = vmatpush2.bf16.msra.mxu0 0
    %8343 = vmatprep.subr.bf16.mxu0 0
    %8344 = vmatpush2.bf16.msra.mxu0 0
    %8345 = vmatprep.subr.bf16.mxu0 0
    %8346 = vmatpush2.bf16.msra.mxu0 0
    %8347 = vmatprep.subr.bf16.mxu0 0
    %8348 = vmatpush2.bf16.msra.mxu0 0
    %8349 = vmatprep.subr.bf16.mxu0 0
    %8350 = vmatpush2.bf16.msra.mxu0 0
    %8351 = vmatprep.mubr.bf16.mxu0 0
    %8352 = vmatmul.mubr.bf16.gmra.mxu0 %v8241
    %v8353 = vpop.f32.mrf.mxu0
    %v8354 = vadd.f32 %v8305, %v8353
    %v8355 = vpop.f32.mrf.mxu0
    %v8356 = vpop.f32.mrf.mxu0
    %v8357 = vadd.f32 %v8305, %v8356
    %v8358 = vpop.f32.mrf.mxu0
    %8359 = vmatprep.mubr.bf16.mxu0 0
    %8360 = vmatmul.mubr.bf16.gmra.mxu0 %v8244
    %v8361 = vpop.f32.mrf.mxu0
    %v8362 = vadd.f32 %v8305, %v8361
    %v8363 = vpop.f32.mrf.mxu0
    %v8364 = vpop.f32.mrf.mxu0
    %v8365 = vpop.f32.mrf.mxu0
    %8366 = vdwg.mxu0
    %s8367 = scalar_lea.vmem [#allocation25], 48
    %v8368 = vld [vmem:[%s8367] sm:$0xf]
    %v8369 = vld [vmem:[%s8367 + $0x4] sm:$0xf]
    %v8370 = vld [vmem:[%s8367 + $0x8] sm:$0xf]
    %v8371 = vld [vmem:[%s8367 + $0xc] sm:$0xf]
    %s8372 = scalar_lea.vmem %s41, 3
    %v8373 = vld [vmem:[%s8372] sm:$0x1]
    %v8375 = vlaneseq
    %v8376 = vshrl.u32 %v8375, 7
    %v8377 = vsub.s32 0, %v8376
    %v8378 = vrot.slane %v8373, %v8377
    %v8384 = vunpack.c.l.b16 %v8368
    %v8385 = vunpack.c.l.b16 %v8369
    %v8386 = vunpack.c.l.b16 %v8370
    %v8387 = vunpack.c.l.b16 %v8371
    %v8388 = vpack.c.b16 %v8385, %v8384
    %v8389 = vpack.c.b16 %v8387, %v8386
    %8392 = vmatprep.subr.bf16.mxu0 0
    %8393 = vmatpush1.bf16.msra.mxu0 0
    %8394 = vmatprep.subr.bf16.mxu0 0
    %8395 = vmatpush1.bf16.msra.mxu0 0
    %8396 = vmatprep.subr.bf16.mxu0 0
    %8397 = vmatpush1.bf16.msra.mxu0 0
    %8398 = vmatprep.subr.bf16.mxu0 0
    %8399 = vmatpush1.bf16.msra.mxu0 0
    %8400 = vmatprep.subr.bf16.mxu0 0
    %8401 = vmatpush1.bf16.msra.mxu0 0
    %8402 = vmatprep.subr.bf16.mxu0 0
    %8403 = vmatpush1.bf16.msra.mxu0 0
    %8404 = vmatprep.subr.bf16.mxu0 0
    %8405 = vmatpush1.bf16.msra.mxu0 %v8389
    %8406 = vmatprep.subr.bf16.mxu0 0
    %8407 = vmatpush1.bf16.msra.mxu0 %v8388
    %8408 = vmatprep.subr.bf16.mxu0 0
    %8409 = vmatpush2.bf16.msra.mxu0 0
    %8410 = vmatprep.subr.bf16.mxu0 0
    %8411 = vmatpush2.bf16.msra.mxu0 0
    %8412 = vmatprep.subr.bf16.mxu0 0
    %8413 = vmatpush2.bf16.msra.mxu0 0
    %8414 = vmatprep.subr.bf16.mxu0 0
    %8415 = vmatpush2.bf16.msra.mxu0 0
    %8416 = vmatprep.subr.bf16.mxu0 0
    %8417 = vmatpush2.bf16.msra.mxu0 0
    %8418 = vmatprep.subr.bf16.mxu0 0
    %8419 = vmatpush2.bf16.msra.mxu0 0
    %8420 = vmatprep.subr.bf16.mxu0 0
    %8421 = vmatpush2.bf16.msra.mxu0 0
    %8422 = vmatprep.subr.bf16.mxu0 0
    %8423 = vmatpush2.bf16.msra.mxu0 0
    %8424 = vmatprep.mubr.bf16.mxu0 0
    %8425 = vmatmul.mubr.bf16.gmra.mxu0 %v8241
    %v8426 = vpop.f32.mrf.mxu0
    %v8427 = vadd.f32 %v8378, %v8426
    %v8428 = vpop.f32.mrf.mxu0
    %v8429 = vpop.f32.mrf.mxu0
    %v8430 = vadd.f32 %v8378, %v8429
    %v8431 = vpop.f32.mrf.mxu0
    %8432 = vmatprep.mubr.bf16.mxu0 0
    %8433 = vmatmul.mubr.bf16.gmra.mxu0 %v8244
    %v8434 = vpop.f32.mrf.mxu0
    %v8435 = vadd.f32 %v8378, %v8434
    %v8436 = vpop.f32.mrf.mxu0
    %v8437 = vpop.f32.mrf.mxu0
    %v8438 = vpop.f32.mrf.mxu0
    %8439 = vdwg.mxu0
    %v8442 = vrot.slane %v8354, 6
    %v8443 = vrot.slane %v8357, 6
    %v8444 = vsel %vm953, %v8442, %v8443
    %v8447 = vrot.slane %v8354, 4
    %v8448 = vrot.slane %v8357, 4
    %v8449 = vsel %vm509, %v8447, %v8448
    %v8452 = vrot.slane %v8354, 2
    %v8453 = vrot.slane %v8357, 2
    %v8454 = vsel %vm964, %v8452, %v8453
    %v8457 = vsel %vm953, %v8357, %v8442
    %v8458 = vsel %vm509, %v8444, %v8447
    %v8459 = vsel %vm964, %v8449, %v8452
    %v8460 = vmul.f32 %v8354, %v710
    %v8461 = vmul.f32 %v8457, %v711
    %v8462 = vmul.f32 %v8458, %v712
    %v8463 = vmul.f32 %v8459, %v713
    %v8464 = vmul.f32 %v8454, %v714
    %v8465 = vmul.f32 %v8354, %v715
    %v8466 = vmul.f32 %v8457, %v716
    %v8467 = vmul.f32 %v8458, %v717
    %v8468 = vmul.f32 %v8459, %v718
    %v8469 = vmul.f32 %v8454, %v719
    %v8472 = vrot.slane %v8427, 6
    %v8473 = vrot.slane %v8430, 6
    %v8474 = vsel %vm953, %v8472, %v8473
    %v8477 = vrot.slane %v8427, 4
    %v8478 = vrot.slane %v8430, 4
    %v8479 = vsel %vm509, %v8477, %v8478
    %v8482 = vrot.slane %v8427, 2
    %v8483 = vrot.slane %v8430, 2
    %v8484 = vsel %vm964, %v8482, %v8483
    %v8487 = vsel %vm953, %v8430, %v8472
    %v8488 = vsel %vm509, %v8474, %v8477
    %v8489 = vsel %vm964, %v8479, %v8482
    %v8490 = vmul.f32 %v8427, %v710
    %v8491 = vmul.f32 %v8487, %v711
    %v8492 = vmul.f32 %v8488, %v712
    %v8493 = vmul.f32 %v8489, %v713
    %v8494 = vmul.f32 %v8484, %v714
    %v8495 = vmul.f32 %v8427, %v715
    %v8496 = vmul.f32 %v8487, %v716
    %v8497 = vmul.f32 %v8488, %v717
    %v8498 = vmul.f32 %v8489, %v718
    %v8499 = vmul.f32 %v8484, %v719
    %v8501 = vsel %vm450, %v8281, 0
    %v8504 = vsel %vm450, %v8284, 0
    %v8507 = vsel %vm450, %v8460, 0
    %v8510 = vsel %vm450, %v8461, 0
    %v8513 = vsel %vm450, %v8462, 0
    %v8516 = vsel %vm450, %v8463, 0
    %v8519 = vsel %vm450, %v8464, 0
    %v8522 = vsel %vm450, %v8465, 0
    %v8525 = vsel %vm450, %v8466, 0
    %v8528 = vsel %vm450, %v8467, 0
    %v8531 = vsel %vm450, %v8468, 0
    %v8534 = vsel %vm450, %v8469, 0
    %8536 = vmatprep.subr.mxu0 0.0
    %8537 = vmatpush1.xpose.msra.mxu0 0.0
    %8538 = vmatprep.subr.mxu0 0.0
    %8539 = vmatpush1.xpose.msra.mxu0 0.0
    %8540 = vmatprep.subr.mxu0 0.0
    %8541 = vmatpush1.xpose.msra.mxu0 0.0
    %8542 = vmatprep.subr.mxu0 0.0
    %8543 = vmatpush1.xpose.msra.mxu0 0.0
    %8544 = vmatprep.subr.mxu0 0.0
    %8545 = vmatpush1.xpose.msra.mxu0 0.0
    %8546 = vmatprep.subr.mxu0 0.0
    %8547 = vmatpush1.xpose.msra.mxu0 0.0
    %8548 = vmatprep.subr.mxu0 0.0
    %8549 = vmatpush1.xpose.msra.mxu0 %v8534
    %8550 = vmatprep.subr.mxu0 0.0
    %8551 = vmatpush1.xpose.msra.mxu0 %v8531
    %8552 = vmatprep.subr.mxu0 0.0
    %8553 = vmatpush1.xpose.msra.mxu0 %v8528
    %8554 = vmatprep.subr.mxu0 0.0
    %8555 = vmatpush1.xpose.msra.mxu0 %v8525
    %8556 = vmatprep.subr.mxu0 0.0
    %8557 = vmatpush1.xpose.msra.mxu0 %v8522
    %8558 = vmatprep.subr.mxu0 0.0
    %8559 = vmatpush1.xpose.msra.mxu0 %v8519
    %8560 = vmatprep.subr.mxu0 0.0
    %8561 = vmatpush1.xpose.msra.mxu0 %v8516
    %8562 = vmatprep.subr.mxu0 0.0
    %8563 = vmatpush1.xpose.msra.mxu0 %v8513
    %8564 = vmatprep.subr.mxu0 0.0
    %8565 = vmatpush1.xpose.msra.mxu0 %v8510
    %8566 = vmatprep.subr.mxu0 0.0
    %8567 = vmatpush1.xpose.msra.mxu0 %v8507
    %8568 = vmatprep.subr.mxu0 0.0
    %8569 = vmatpush2.xpose.msra.mxu0 0.0
    %8570 = vmatprep.subr.mxu0 0.0
    %8571 = vmatpush2.xpose.msra.mxu0 0.0
    %8572 = vmatprep.subr.mxu0 0.0
    %8573 = vmatpush2.xpose.msra.mxu0 0.0
    %8574 = vmatprep.subr.mxu0 0.0
    %8575 = vmatpush2.xpose.msra.mxu0 0.0
    %8576 = vmatprep.subr.mxu0 0.0
    %8577 = vmatpush2.xpose.msra.mxu0 0.0
    %8578 = vmatprep.subr.mxu0 0.0
    %8579 = vmatpush2.xpose.msra.mxu0 0.0
    %8580 = vmatprep.subr.mxu0 0.0
    %8581 = vmatpush2.xpose.msra.mxu0 0.0
    %8582 = vmatprep.subr.mxu0 0.0
    %8583 = vmatpush2.xpose.msra.mxu0 0.0
    %8584 = vmatprep.subr.mxu0 0.0
    %8585 = vmatpush2.xpose.msra.mxu0 0.0
    %8586 = vmatprep.subr.mxu0 0.0
    %8587 = vmatpush2.xpose.msra.mxu0 0.0
    %8588 = vmatprep.subr.mxu0 0.0
    %8589 = vmatpush2.xpose.msra.mxu0 0.0
    %8590 = vmatprep.subr.mxu0 0.0
    %8591 = vmatpush2.xpose.msra.mxu0 0.0
    %8592 = vmatprep.subr.mxu0 0.0
    %8593 = vmatpush2.xpose.msra.mxu0 0.0
    %8594 = vmatprep.subr.mxu0 0.0
    %8595 = vmatpush2.xpose.msra.mxu0 0.0
    %8596 = vmatprep.subr.mxu0 0.0
    %8597 = vmatpush2.xpose.msra.mxu0 0.0
    %8598 = vmatprep.subr.mxu0 0.0
    %8599 = vmatpush2.xpose.msra.mxu0 0.0
    %8600 = vmatprep.mubr.f32.mxu0 0.0
    %8601 = vmatmul.mubr.f32.gmra.mxu0 %v8501
    %v8602 = vpop.f32.mrf.mxu0
    %v8603 = vadd.f32 0.0, %v8602
    %v8604 = vpop.f32.mrf.mxu0
    %8605 = vmatprep.mubr.f32.mxu0 0.0
    %8606 = vmatmul.mubr.f32.gmra.mxu0 %v8504
    %v8607 = vpop.f32.mrf.mxu0
    %v8608 = vadd.f32 0.0, %v8607
    %v8609 = vpop.f32.mrf.mxu0
    %8610 = vdwg.mxu0
    %v8611 = vsel %vm1124, %v8603, -inf
    %8612 = vmax.xlane.f32.xlu0 %v8611
    %v8613 = vpop.xlane.xlu0 %8612
    %v8614 = vsel %vm1128, %v8608, -inf
    %8615 = vmax.xlane.f32.xlu0 %v8614
    %v8616 = vpop.xlane.xlu0 %8615
    %v8617 = vsub.f32 %v8603, %v8613
    %v8618 = vsub.f32 %v8608, %v8616
    %v8619 = vmul.f32 %v8617, 1.442695
    %v8620 = vpow.pop %v8619
    %v8621 = vmul.f32 %v8618, 1.442695
    %v8622 = vpow.pop %v8621
    %v8624 = vsel %vm1124, %v8620, 0
    %v8627 = vsel %vm1124, %v8622, 0
    %8629 = vmatprep.subr.mxu0 0.0
    %8630 = vmatpush1.msra.mxu0 0.0
    %8631 = vmatprep.subr.mxu0 0.0
    %8632 = vmatpush1.msra.mxu0 0.0
    %8633 = vmatprep.subr.mxu0 0.0
    %8634 = vmatpush1.msra.mxu0 0.0
    %8635 = vmatprep.subr.mxu0 0.0
    %8636 = vmatpush1.msra.mxu0 0.0
    %8637 = vmatprep.subr.mxu0 0.0
    %8638 = vmatpush1.msra.mxu0 0.0
    %8639 = vmatprep.subr.mxu0 0.0
    %8640 = vmatpush1.msra.mxu0 0.0
    %8641 = vmatprep.subr.mxu0 0.0
    %8642 = vmatpush1.msra.mxu0 %v729
    %8643 = vmatprep.subr.mxu0 0.0
    %8644 = vmatpush1.msra.mxu0 %v728
    %8645 = vmatprep.subr.mxu0 0.0
    %8646 = vmatpush1.msra.mxu0 %v727
    %8647 = vmatprep.subr.mxu0 0.0
    %8648 = vmatpush1.msra.mxu0 %v726
    %8649 = vmatprep.subr.mxu0 0.0
    %8650 = vmatpush1.msra.mxu0 %v725
    %8651 = vmatprep.subr.mxu0 0.0
    %8652 = vmatpush1.msra.mxu0 %v724
    %8653 = vmatprep.subr.mxu0 0.0
    %8654 = vmatpush1.msra.mxu0 %v723
    %8655 = vmatprep.subr.mxu0 0.0
    %8656 = vmatpush1.msra.mxu0 %v722
    %8657 = vmatprep.subr.mxu0 0.0
    %8658 = vmatpush1.msra.mxu0 %v721
    %8659 = vmatprep.subr.mxu0 0.0
    %8660 = vmatpush1.msra.mxu0 %v720
    %8661 = vmatprep.subr.mxu0 0.0
    %8662 = vmatpush2.msra.mxu0 0.0
    %8663 = vmatprep.subr.mxu0 0.0
    %8664 = vmatpush2.msra.mxu0 0.0
    %8665 = vmatprep.subr.mxu0 0.0
    %8666 = vmatpush2.msra.mxu0 0.0
    %8667 = vmatprep.subr.mxu0 0.0
    %8668 = vmatpush2.msra.mxu0 0.0
    %8669 = vmatprep.subr.mxu0 0.0
    %8670 = vmatpush2.msra.mxu0 0.0
    %8671 = vmatprep.subr.mxu0 0.0
    %8672 = vmatpush2.msra.mxu0 0.0
    %8673 = vmatprep.subr.mxu0 0.0
    %8674 = vmatpush2.msra.mxu0 0.0
    %8675 = vmatprep.subr.mxu0 0.0
    %8676 = vmatpush2.msra.mxu0 0.0
    %8677 = vmatprep.subr.mxu0 0.0
    %8678 = vmatpush2.msra.mxu0 0.0
    %8679 = vmatprep.subr.mxu0 0.0
    %8680 = vmatpush2.msra.mxu0 0.0
    %8681 = vmatprep.subr.mxu0 0.0
    %8682 = vmatpush2.msra.mxu0 0.0
    %8683 = vmatprep.subr.mxu0 0.0
    %8684 = vmatpush2.msra.mxu0 0.0
    %8685 = vmatprep.subr.mxu0 0.0
    %8686 = vmatpush2.msra.mxu0 0.0
    %8687 = vmatprep.subr.mxu0 0.0
    %8688 = vmatpush2.msra.mxu0 0.0
    %8689 = vmatprep.subr.mxu0 0.0
    %8690 = vmatpush2.msra.mxu0 0.0
    %8691 = vmatprep.subr.mxu0 0.0
    %8692 = vmatpush2.msra.mxu0 0.0
    %8693 = vmatprep.mubr.f32.mxu0 0.0
    %8694 = vmatmul.mubr.f32.gmra.mxu0 %v8624
    %v8695 = vpop.f32.mrf.mxu0
    %v8696 = vadd.f32 0.0, %v8695
    %v8697 = vpop.f32.mrf.mxu0
    %8698 = vmatprep.mubr.f32.mxu0 0.0
    %8699 = vmatmul.mubr.f32.gmra.mxu0 %v8627
    %v8700 = vpop.f32.mrf.mxu0
    %v8701 = vadd.f32 0.0, %v8700
    %v8702 = vpop.f32.mrf.mxu0
    %8703 = vdwg.mxu0
    %v8704 = vmax.f32 %v8696, 1e-30
    %v8705 = vmax.f32 %v8701, 1e-30
    %v8706 = vrcp.pop %v8704
    %v8707 = vrcp.pop %v8705
    %v8708 = vmul.f32 %v8620, %v8706
    %v8709 = vmul.f32 %v8622, %v8707
    %v8711 = vsel %vm1124, %v8708, 0
    %v8714 = vsel %vm1124, %v8709, 0
    %8716 = vmatprep.subr.mxu0 0.0
    %8717 = vmatpush1.msra.mxu0 0.0
    %8718 = vmatprep.subr.mxu0 0.0
    %8719 = vmatpush1.msra.mxu0 0.0
    %8720 = vmatprep.subr.mxu0 0.0
    %8721 = vmatpush1.msra.mxu0 0.0
    %8722 = vmatprep.subr.mxu0 0.0
    %8723 = vmatpush1.msra.mxu0 0.0
    %8724 = vmatprep.subr.mxu0 0.0
    %8725 = vmatpush1.msra.mxu0 0.0
    %8726 = vmatprep.subr.mxu0 0.0
    %8727 = vmatpush1.msra.mxu0 0.0
    %8728 = vmatprep.subr.mxu0 0.0
    %8729 = vmatpush1.msra.mxu0 %v8499
    %8730 = vmatprep.subr.mxu0 0.0
    %8731 = vmatpush1.msra.mxu0 %v8498
    %8732 = vmatprep.subr.mxu0 0.0
    %8733 = vmatpush1.msra.mxu0 %v8497
    %8734 = vmatprep.subr.mxu0 0.0
    %8735 = vmatpush1.msra.mxu0 %v8496
    %8736 = vmatprep.subr.mxu0 0.0
    %8737 = vmatpush1.msra.mxu0 %v8495
    %8738 = vmatprep.subr.mxu0 0.0
    %8739 = vmatpush1.msra.mxu0 %v8494
    %8740 = vmatprep.subr.mxu0 0.0
    %8741 = vmatpush1.msra.mxu0 %v8493
    %8742 = vmatprep.subr.mxu0 0.0
    %8743 = vmatpush1.msra.mxu0 %v8492
    %8744 = vmatprep.subr.mxu0 0.0
    %8745 = vmatpush1.msra.mxu0 %v8491
    %8746 = vmatprep.subr.mxu0 0.0
    %8747 = vmatpush1.msra.mxu0 %v8490
    %8748 = vmatprep.subr.mxu0 0.0
    %8749 = vmatpush2.msra.mxu0 0.0
    %8750 = vmatprep.subr.mxu0 0.0
    %8751 = vmatpush2.msra.mxu0 0.0
    %8752 = vmatprep.subr.mxu0 0.0
    %8753 = vmatpush2.msra.mxu0 0.0
    %8754 = vmatprep.subr.mxu0 0.0
    %8755 = vmatpush2.msra.mxu0 0.0
    %8756 = vmatprep.subr.mxu0 0.0
    %8757 = vmatpush2.msra.mxu0 0.0
    %8758 = vmatprep.subr.mxu0 0.0
    %8759 = vmatpush2.msra.mxu0 0.0
    %8760 = vmatprep.subr.mxu0 0.0
    %8761 = vmatpush2.msra.mxu0 0.0
    %8762 = vmatprep.subr.mxu0 0.0
    %8763 = vmatpush2.msra.mxu0 0.0
    %8764 = vmatprep.subr.mxu0 0.0
    %8765 = vmatpush2.msra.mxu0 0.0
    %8766 = vmatprep.subr.mxu0 0.0
    %8767 = vmatpush2.msra.mxu0 0.0
    %8768 = vmatprep.subr.mxu0 0.0
    %8769 = vmatpush2.msra.mxu0 0.0
    %8770 = vmatprep.subr.mxu0 0.0
    %8771 = vmatpush2.msra.mxu0 0.0
    %8772 = vmatprep.subr.mxu0 0.0
    %8773 = vmatpush2.msra.mxu0 0.0
    %8774 = vmatprep.subr.mxu0 0.0
    %8775 = vmatpush2.msra.mxu0 0.0
    %8776 = vmatprep.subr.mxu0 0.0
    %8777 = vmatpush2.msra.mxu0 0.0
    %8778 = vmatprep.subr.mxu0 0.0
    %8779 = vmatpush2.msra.mxu0 0.0
    %8780 = vmatprep.mubr.f32.mxu0 0.0
    %8781 = vmatmul.mubr.f32.gmra.mxu0 %v8711
    %v8782 = vpop.f32.mrf.mxu0
    %v8783 = vadd.f32 0.0, %v8782
    %v8784 = vpop.f32.mrf.mxu0
    %8785 = vmatprep.mubr.f32.mxu0 0.0
    %8786 = vmatmul.mubr.f32.gmra.mxu0 %v8714
    %v8787 = vpop.f32.mrf.mxu0
    %v8788 = vadd.f32 0.0, %v8787
    %v8789 = vpop.f32.mrf.mxu0
    %8790 = vdwg.mxu0
    %8791 = vst.msk [vmem:[#allocation3] sm:$0xff] %vm450, %v8783
    %8792 = vst.msk [vmem:[#allocation3 + $0x8] sm:$0x3] %vm585, %v8788
    %v8794 = vrot.slane %v8362, 2
    %v8795 = vsel %vm964, %v8453, %v8794
    %v8798 = vrot.slane %v8362, 6
    %v8799 = vsel %vm953, %v8443, %v8798
    %v8802 = vrot.slane %v8362, 4
    %v8803 = vsel %vm509, %v8448, %v8802
    %v8806 = vsel %vm953, %v8794, %v8357
    %v8807 = vsel %vm509, %v8362, %v8443
    %v8808 = vsel %vm964, %v8799, %v8448
    %v8809 = vmul.f32 %v8795, %v710
    %v8810 = vmul.f32 %v8806, %v711
    %v8811 = vmul.f32 %v8807, %v712
    %v8812 = vmul.f32 %v8808, %v713
    %v8813 = vmul.f32 %v8803, %v714
    %v8814 = vmul.f32 %v8795, %v715
    %v8815 = vmul.f32 %v8806, %v716
    %v8816 = vmul.f32 %v8807, %v717
    %v8817 = vmul.f32 %v8808, %v718
    %v8818 = vmul.f32 %v8803, %v719
    %v8820 = vrot.slane %v8435, 2
    %v8821 = vsel %vm964, %v8483, %v8820
    %v8824 = vrot.slane %v8435, 6
    %v8825 = vsel %vm953, %v8473, %v8824
    %v8828 = vrot.slane %v8435, 4
    %v8829 = vsel %vm509, %v8478, %v8828
    %v8832 = vsel %vm953, %v8820, %v8430
    %v8833 = vsel %vm509, %v8435, %v8473
    %v8834 = vsel %vm964, %v8825, %v8478
    %v8835 = vmul.f32 %v8821, %v710
    %v8836 = vmul.f32 %v8832, %v711
    %v8837 = vmul.f32 %v8833, %v712
    %v8838 = vmul.f32 %v8834, %v713
    %v8839 = vmul.f32 %v8829, %v714
    %v8840 = vmul.f32 %v8821, %v715
    %v8841 = vmul.f32 %v8832, %v716
    %v8842 = vmul.f32 %v8833, %v717
    %v8843 = vmul.f32 %v8834, %v718
    %v8844 = vmul.f32 %v8829, %v719
    %v8846 = vrot.slane %v8284, 2
    %v8847 = vrot.slane %v8289, 2
    %v8848 = vsel %vm964, %v8846, %v8847
    %v8849 = vsel %vm450, %v8848, 0
    %v8851 = vsel %vm450, %v8847, 0
    %v8854 = vsel %vm450, %v8809, 0
    %v8857 = vsel %vm450, %v8810, 0
    %v8860 = vsel %vm450, %v8811, 0
    %v8863 = vsel %vm450, %v8812, 0
    %v8866 = vsel %vm450, %v8813, 0
    %v8869 = vsel %vm450, %v8814, 0
    %v8872 = vsel %vm450, %v8815, 0
    %v8875 = vsel %vm450, %v8816, 0
    %v8878 = vsel %vm450, %v8817, 0
    %v8881 = vsel %vm450, %v8818, 0
    %8883 = vmatprep.subr.mxu0 0.0
    %8884 = vmatpush1.xpose.msra.mxu0 0.0
    %8885 = vmatprep.subr.mxu0 0.0
    %8886 = vmatpush1.xpose.msra.mxu0 0.0
    %8887 = vmatprep.subr.mxu0 0.0
    %8888 = vmatpush1.xpose.msra.mxu0 0.0
    %8889 = vmatprep.subr.mxu0 0.0
    %8890 = vmatpush1.xpose.msra.mxu0 0.0
    %8891 = vmatprep.subr.mxu0 0.0
    %8892 = vmatpush1.xpose.msra.mxu0 0.0
    %8893 = vmatprep.subr.mxu0 0.0
    %8894 = vmatpush1.xpose.msra.mxu0 0.0
    %8895 = vmatprep.subr.mxu0 0.0
    %8896 = vmatpush1.xpose.msra.mxu0 %v8881
    %8897 = vmatprep.subr.mxu0 0.0
    %8898 = vmatpush1.xpose.msra.mxu0 %v8878
    %8899 = vmatprep.subr.mxu0 0.0
    %8900 = vmatpush1.xpose.msra.mxu0 %v8875
    %8901 = vmatprep.subr.mxu0 0.0
    %8902 = vmatpush1.xpose.msra.mxu0 %v8872
    %8903 = vmatprep.subr.mxu0 0.0
    %8904 = vmatpush1.xpose.msra.mxu0 %v8869
    %8905 = vmatprep.subr.mxu0 0.0
    %8906 = vmatpush1.xpose.msra.mxu0 %v8866
    %8907 = vmatprep.subr.mxu0 0.0
    %8908 = vmatpush1.xpose.msra.mxu0 %v8863
    %8909 = vmatprep.subr.mxu0 0.0
    %8910 = vmatpush1.xpose.msra.mxu0 %v8860
    %8911 = vmatprep.subr.mxu0 0.0
    %8912 = vmatpush1.xpose.msra.mxu0 %v8857
    %8913 = vmatprep.subr.mxu0 0.0
    %8914 = vmatpush1.xpose.msra.mxu0 %v8854
    %8915 = vmatprep.subr.mxu0 0.0
    %8916 = vmatpush2.xpose.msra.mxu0 0.0
    %8917 = vmatprep.subr.mxu0 0.0
    %8918 = vmatpush2.xpose.msra.mxu0 0.0
    %8919 = vmatprep.subr.mxu0 0.0
    %8920 = vmatpush2.xpose.msra.mxu0 0.0
    %8921 = vmatprep.subr.mxu0 0.0
    %8922 = vmatpush2.xpose.msra.mxu0 0.0
    %8923 = vmatprep.subr.mxu0 0.0
    %8924 = vmatpush2.xpose.msra.mxu0 0.0
    %8925 = vmatprep.subr.mxu0 0.0
    %8926 = vmatpush2.xpose.msra.mxu0 0.0
    %8927 = vmatprep.subr.mxu0 0.0
    %8928 = vmatpush2.xpose.msra.mxu0 0.0
    %8929 = vmatprep.subr.mxu0 0.0
    %8930 = vmatpush2.xpose.msra.mxu0 0.0
    %8931 = vmatprep.subr.mxu0 0.0
    %8932 = vmatpush2.xpose.msra.mxu0 0.0
    %8933 = vmatprep.subr.mxu0 0.0
    %8934 = vmatpush2.xpose.msra.mxu0 0.0
    %8935 = vmatprep.subr.mxu0 0.0
    %8936 = vmatpush2.xpose.msra.mxu0 0.0
    %8937 = vmatprep.subr.mxu0 0.0
    %8938 = vmatpush2.xpose.msra.mxu0 0.0
    %8939 = vmatprep.subr.mxu0 0.0
    %8940 = vmatpush2.xpose.msra.mxu0 0.0
    %8941 = vmatprep.subr.mxu0 0.0
    %8942 = vmatpush2.xpose.msra.mxu0 0.0
    %8943 = vmatprep.subr.mxu0 0.0
    %8944 = vmatpush2.xpose.msra.mxu0 0.0
    %8945 = vmatprep.subr.mxu0 0.0
    %8946 = vmatpush2.xpose.msra.mxu0 0.0
    %8947 = vmatprep.mubr.f32.mxu0 0.0
    %8948 = vmatmul.mubr.f32.gmra.mxu0 %v8849
    %v8949 = vpop.f32.mrf.mxu0
    %v8950 = vadd.f32 0.0, %v8949
    %v8951 = vpop.f32.mrf.mxu0
    %8952 = vmatprep.mubr.f32.mxu0 0.0
    %8953 = vmatmul.mubr.f32.gmra.mxu0 %v8851
    %v8954 = vpop.f32.mrf.mxu0
    %v8955 = vadd.f32 0.0, %v8954
    %v8956 = vpop.f32.mrf.mxu0
    %8957 = vdwg.mxu0
    %v8958 = vsel %vm1124, %v8950, -inf
    %8959 = vmax.xlane.f32.xlu0 %v8958
    %v8960 = vpop.xlane.xlu0 %8959
    %v8961 = vsel %vm1128, %v8955, -inf
    %8962 = vmax.xlane.f32.xlu0 %v8961
    %v8963 = vpop.xlane.xlu0 %8962
    %v8964 = vsub.f32 %v8950, %v8960
    %v8965 = vsub.f32 %v8955, %v8963
    %v8966 = vmul.f32 %v8964, 1.442695
    %v8967 = vpow.pop %v8966
    %v8968 = vmul.f32 %v8965, 1.442695
    %v8969 = vpow.pop %v8968
    %v8971 = vsel %vm1124, %v8967, 0
    %v8974 = vsel %vm1124, %v8969, 0
    %8976 = vmatprep.subr.mxu0 0.0
    %8977 = vmatpush1.msra.mxu0 0.0
    %8978 = vmatprep.subr.mxu0 0.0
    %8979 = vmatpush1.msra.mxu0 0.0
    %8980 = vmatprep.subr.mxu0 0.0
    %8981 = vmatpush1.msra.mxu0 0.0
    %8982 = vmatprep.subr.mxu0 0.0
    %8983 = vmatpush1.msra.mxu0 0.0
    %8984 = vmatprep.subr.mxu0 0.0
    %8985 = vmatpush1.msra.mxu0 0.0
    %8986 = vmatprep.subr.mxu0 0.0
    %8987 = vmatpush1.msra.mxu0 0.0
    %8988 = vmatprep.subr.mxu0 0.0
    %8989 = vmatpush1.msra.mxu0 %v729
    %8990 = vmatprep.subr.mxu0 0.0
    %8991 = vmatpush1.msra.mxu0 %v728
    %8992 = vmatprep.subr.mxu0 0.0
    %8993 = vmatpush1.msra.mxu0 %v727
    %8994 = vmatprep.subr.mxu0 0.0
    %8995 = vmatpush1.msra.mxu0 %v726
    %8996 = vmatprep.subr.mxu0 0.0
    %8997 = vmatpush1.msra.mxu0 %v725
    %8998 = vmatprep.subr.mxu0 0.0
    %8999 = vmatpush1.msra.mxu0 %v724
    %9000 = vmatprep.subr.mxu0 0.0
    %9001 = vmatpush1.msra.mxu0 %v723
    %9002 = vmatprep.subr.mxu0 0.0
    %9003 = vmatpush1.msra.mxu0 %v722
    %9004 = vmatprep.subr.mxu0 0.0
    %9005 = vmatpush1.msra.mxu0 %v721
    %9006 = vmatprep.subr.mxu0 0.0
    %9007 = vmatpush1.msra.mxu0 %v720
    %9008 = vmatprep.subr.mxu0 0.0
    %9009 = vmatpush2.msra.mxu0 0.0
    %9010 = vmatprep.subr.mxu0 0.0
    %9011 = vmatpush2.msra.mxu0 0.0
    %9012 = vmatprep.subr.mxu0 0.0
    %9013 = vmatpush2.msra.mxu0 0.0
    %9014 = vmatprep.subr.mxu0 0.0
    %9015 = vmatpush2.msra.mxu0 0.0
    %9016 = vmatprep.subr.mxu0 0.0
    %9017 = vmatpush2.msra.mxu0 0.0
    %9018 = vmatprep.subr.mxu0 0.0
    %9019 = vmatpush2.msra.mxu0 0.0
    %9020 = vmatprep.subr.mxu0 0.0
    %9021 = vmatpush2.msra.mxu0 0.0
    %9022 = vmatprep.subr.mxu0 0.0
    %9023 = vmatpush2.msra.mxu0 0.0
    %9024 = vmatprep.subr.mxu0 0.0
    %9025 = vmatpush2.msra.mxu0 0.0
    %9026 = vmatprep.subr.mxu0 0.0
    %9027 = vmatpush2.msra.mxu0 0.0
    %9028 = vmatprep.subr.mxu0 0.0
    %9029 = vmatpush2.msra.mxu0 0.0
    %9030 = vmatprep.subr.mxu0 0.0
    %9031 = vmatpush2.msra.mxu0 0.0
    %9032 = vmatprep.subr.mxu0 0.0
    %9033 = vmatpush2.msra.mxu0 0.0
    %9034 = vmatprep.subr.mxu0 0.0
    %9035 = vmatpush2.msra.mxu0 0.0
    %9036 = vmatprep.subr.mxu0 0.0
    %9037 = vmatpush2.msra.mxu0 0.0
    %9038 = vmatprep.subr.mxu0 0.0
    %9039 = vmatpush2.msra.mxu0 0.0
    %9040 = vmatprep.mubr.f32.mxu0 0.0
    %9041 = vmatmul.mubr.f32.gmra.mxu0 %v8971
    %v9042 = vpop.f32.mrf.mxu0
    %v9043 = vadd.f32 0.0, %v9042
    %v9044 = vpop.f32.mrf.mxu0
    %9045 = vmatprep.mubr.f32.mxu0 0.0
    %9046 = vmatmul.mubr.f32.gmra.mxu0 %v8974
    %v9047 = vpop.f32.mrf.mxu0
    %v9048 = vadd.f32 0.0, %v9047
    %v9049 = vpop.f32.mrf.mxu0
    %9050 = vdwg.mxu0
    %v9051 = vmax.f32 %v9043, 1e-30
    %v9052 = vmax.f32 %v9048, 1e-30
    %v9053 = vrcp.pop %v9051
    %v9054 = vrcp.pop %v9052
    %v9055 = vmul.f32 %v8967, %v9053
    %v9056 = vmul.f32 %v8969, %v9054
    %v9058 = vsel %vm1124, %v9055, 0
    %v9061 = vsel %vm1124, %v9056, 0
    %9063 = vmatprep.subr.mxu0 0.0
    %9064 = vmatpush1.msra.mxu0 0.0
    %9065 = vmatprep.subr.mxu0 0.0
    %9066 = vmatpush1.msra.mxu0 0.0
    %9067 = vmatprep.subr.mxu0 0.0
    %9068 = vmatpush1.msra.mxu0 0.0
    %9069 = vmatprep.subr.mxu0 0.0
    %9070 = vmatpush1.msra.mxu0 0.0
    %9071 = vmatprep.subr.mxu0 0.0
    %9072 = vmatpush1.msra.mxu0 0.0
    %9073 = vmatprep.subr.mxu0 0.0
    %9074 = vmatpush1.msra.mxu0 0.0
    %9075 = vmatprep.subr.mxu0 0.0
    %9076 = vmatpush1.msra.mxu0 %v8844
    %9077 = vmatprep.subr.mxu0 0.0
    %9078 = vmatpush1.msra.mxu0 %v8843
    %9079 = vmatprep.subr.mxu0 0.0
    %9080 = vmatpush1.msra.mxu0 %v8842
    %9081 = vmatprep.subr.mxu0 0.0
    %9082 = vmatpush1.msra.mxu0 %v8841
    %9083 = vmatprep.subr.mxu0 0.0
    %9084 = vmatpush1.msra.mxu0 %v8840
    %9085 = vmatprep.subr.mxu0 0.0
    %9086 = vmatpush1.msra.mxu0 %v8839
    %9087 = vmatprep.subr.mxu0 0.0
    %9088 = vmatpush1.msra.mxu0 %v8838
    %9089 = vmatprep.subr.mxu0 0.0
    %9090 = vmatpush1.msra.mxu0 %v8837
    %9091 = vmatprep.subr.mxu0 0.0
    %9092 = vmatpush1.msra.mxu0 %v8836
    %9093 = vmatprep.subr.mxu0 0.0
    %9094 = vmatpush1.msra.mxu0 %v8835
    %9095 = vmatprep.subr.mxu0 0.0
    %9096 = vmatpush2.msra.mxu0 0.0
    %9097 = vmatprep.subr.mxu0 0.0
    %9098 = vmatpush2.msra.mxu0 0.0
    %9099 = vmatprep.subr.mxu0 0.0
    %9100 = vmatpush2.msra.mxu0 0.0
    %9101 = vmatprep.subr.mxu0 0.0
    %9102 = vmatpush2.msra.mxu0 0.0
    %9103 = vmatprep.subr.mxu0 0.0
    %9104 = vmatpush2.msra.mxu0 0.0
    %9105 = vmatprep.subr.mxu0 0.0
    %9106 = vmatpush2.msra.mxu0 0.0
    %9107 = vmatprep.subr.mxu0 0.0
    %9108 = vmatpush2.msra.mxu0 0.0
    %9109 = vmatprep.subr.mxu0 0.0
    %9110 = vmatpush2.msra.mxu0 0.0
    %9111 = vmatprep.subr.mxu0 0.0
    %9112 = vmatpush2.msra.mxu0 0.0
    %9113 = vmatprep.subr.mxu0 0.0
    %9114 = vmatpush2.msra.mxu0 0.0
    %9115 = vmatprep.subr.mxu0 0.0
    %9116 = vmatpush2.msra.mxu0 0.0
    %9117 = vmatprep.subr.mxu0 0.0
    %9118 = vmatpush2.msra.mxu0 0.0
    %9119 = vmatprep.subr.mxu0 0.0
    %9120 = vmatpush2.msra.mxu0 0.0
    %9121 = vmatprep.subr.mxu0 0.0
    %9122 = vmatpush2.msra.mxu0 0.0
    %9123 = vmatprep.subr.mxu0 0.0
    %9124 = vmatpush2.msra.mxu0 0.0
    %9125 = vmatprep.subr.mxu0 0.0
    %9126 = vmatpush2.msra.mxu0 0.0
    %9127 = vmatprep.mubr.f32.mxu0 0.0
    %9128 = vmatmul.mubr.f32.gmra.mxu0 %v9058
    %v9129 = vpop.f32.mrf.mxu0
    %v9130 = vadd.f32 0.0, %v9129
    %v9131 = vpop.f32.mrf.mxu0
    %9132 = vmatprep.mubr.f32.mxu0 0.0
    %9133 = vmatmul.mubr.f32.gmra.mxu0 %v9061
    %v9134 = vpop.f32.mrf.mxu0
    %v9135 = vadd.f32 0.0, %v9134
    %v9136 = vpop.f32.mrf.mxu0
    %9137 = vdwg.mxu0
    %9138 = vst.msk [vmem:[#allocation3 + $0xa] sm:$0xff] %vm450, %v9130
    %9139 = vst.msk [vmem:[#allocation3 + $0x12] sm:$0x3] %vm585, %v9135
    %v9140 = vld [vmem:[#allocation3] sm:$0xff]
    %v9141 = vld [vmem:[#allocation3 + $0x8] sm:$0xff]
    %v9142 = vld [vmem:[#allocation3 + $0x10] sm:$0xf]
    %v9143 = vpack.c.bf16 %v9141, %v9140
    %v9144 = vpack.c.bf16 %v9142, %v9142
    %s9145 = scalar_lea.vmem [#allocation26], 48
    %v9146 = vld [vmem:[%s9145] sm:$0xf]
    %v9147 = vld [vmem:[%s9145 + $0x4] sm:$0xf]
    %v9148 = vld [vmem:[%s9145 + $0x8] sm:$0xf]
    %v9149 = vld [vmem:[%s9145 + $0xc] sm:$0xf]
    %s9150 = scalar_lea.vmem %s45, 3
    %v9151 = vld [vmem:[%s9150] sm:$0x1]
    %v9153 = vlaneseq
    %v9154 = vshrl.u32 %v9153, 7
    %v9155 = vsub.s32 0, %v9154
    %v9156 = vrot.slane %v9151, %v9155
    %v9162 = vunpack.c.l.b16 %v9146
    %v9163 = vunpack.c.l.b16 %v9147
    %v9164 = vunpack.c.l.b16 %v9148
    %v9165 = vunpack.c.l.b16 %v9149
    %v9166 = vpack.c.b16 %v9163, %v9162
    %v9167 = vpack.c.b16 %v9165, %v9164
    %v9171 = vsel %vm450, %v9143, 0
    %v9174 = vsel %vm450, %v9144, 0
    %9176 = vmatprep.subr.bf16.mxu0 0
    %9177 = vmatpush1.bf16.msra.mxu0 0
    %9178 = vmatprep.subr.bf16.mxu0 0
    %9179 = vmatpush1.bf16.msra.mxu0 0
    %9180 = vmatprep.subr.bf16.mxu0 0
    %9181 = vmatpush1.bf16.msra.mxu0 0
    %9182 = vmatprep.subr.bf16.mxu0 0
    %9183 = vmatpush1.bf16.msra.mxu0 0
    %9184 = vmatprep.subr.bf16.mxu0 0
    %9185 = vmatpush1.bf16.msra.mxu0 0
    %9186 = vmatprep.subr.bf16.mxu0 0
    %9187 = vmatpush1.bf16.msra.mxu0 0
    %9188 = vmatprep.subr.bf16.mxu0 0
    %9189 = vmatpush1.bf16.msra.mxu0 %v9167
    %9190 = vmatprep.subr.bf16.mxu0 0
    %9191 = vmatpush1.bf16.msra.mxu0 %v9166
    %9192 = vmatprep.subr.bf16.mxu0 0
    %9193 = vmatpush2.bf16.msra.mxu0 0
    %9194 = vmatprep.subr.bf16.mxu0 0
    %9195 = vmatpush2.bf16.msra.mxu0 0
    %9196 = vmatprep.subr.bf16.mxu0 0
    %9197 = vmatpush2.bf16.msra.mxu0 0
    %9198 = vmatprep.subr.bf16.mxu0 0
    %9199 = vmatpush2.bf16.msra.mxu0 0
    %9200 = vmatprep.subr.bf16.mxu0 0
    %9201 = vmatpush2.bf16.msra.mxu0 0
    %9202 = vmatprep.subr.bf16.mxu0 0
    %9203 = vmatpush2.bf16.msra.mxu0 0
    %9204 = vmatprep.subr.bf16.mxu0 0
    %9205 = vmatpush2.bf16.msra.mxu0 0
    %9206 = vmatprep.subr.bf16.mxu0 0
    %9207 = vmatpush2.bf16.msra.mxu0 0
    %9208 = vmatprep.mubr.bf16.mxu0 0
    %9209 = vmatmul.mubr.bf16.gmra.mxu0 %v9171
    %v9210 = vpop.f32.mrf.mxu0
    %v9211 = vadd.f32 %v9156, %v9210
    %v9212 = vpop.f32.mrf.mxu0
    %v9213 = vpop.f32.mrf.mxu0
    %v9214 = vadd.f32 %v9156, %v9213
    %v9215 = vpop.f32.mrf.mxu0
    %9216 = vmatprep.mubr.bf16.mxu0 0
    %9217 = vmatmul.mubr.bf16.gmra.mxu0 %v9174
    %v9218 = vpop.f32.mrf.mxu0
    %v9219 = vadd.f32 %v9156, %v9218
    %v9220 = vpop.f32.mrf.mxu0
    %v9221 = vpop.f32.mrf.mxu0
    %v9222 = vpop.f32.mrf.mxu0
    %9223 = vdwg.mxu0
    %v9224 = vadd.f32 %v8210, %v9211
    %v9225 = vadd.f32 %v8211, %v9214
    %v9226 = vadd.f32 %v8212, %v9219
    %s9227 = scalar_lea.vmem %s47, 3
    %v9228 = vld [vmem:[%s9227] sm:$0x1]
    %s9229 = scalar_lea.vmem %s49, 3
    %v9230 = vld [vmem:[%s9229] sm:$0x1]
    %v9231 = vsel %vm450, %v9224, 0.0
    %9232 = vadd.xlane.f32.xlu0 %v9231
    %v9233 = vpop.xlane.xlu0 %9232
    %v9234 = vsel %vm450, %v9225, 0.0
    %9235 = vadd.xlane.f32.xlu0 %v9234
    %v9236 = vpop.xlane.xlu0 %9235
    %v9237 = vsel %vm1748, %v9226, 0.0
    %9238 = vadd.xlane.f32.xlu0 %v9237
    %v9239 = vpop.xlane.xlu0 %9238
    %v9240 = vmul.f32 %v9233, %v457
    %v9241 = vmul.f32 %v9236, %v457
    %v9242 = vmul.f32 %v9239, %v457
    %v9243 = vsub.f32 %v9224, %v9240
    %v9244 = vsub.f32 %v9225, %v9241
    %v9245 = vsub.f32 %v9226, %v9242
    %v9246 = vmul.f32 %v9243, %v9243
    %v9247 = vmul.f32 %v9244, %v9244
    %v9248 = vmul.f32 %v9245, %v9245
    %v9249 = vsel %vm450, %v9246, 0.0
    %9250 = vadd.xlane.f32.xlu0 %v9249
    %v9251 = vpop.xlane.xlu0 %9250
    %v9252 = vsel %vm450, %v9247, 0.0
    %9253 = vadd.xlane.f32.xlu0 %v9252
    %v9254 = vpop.xlane.xlu0 %9253
    %v9255 = vsel %vm1748, %v9248, 0.0
    %9256 = vadd.xlane.f32.xlu0 %v9255
    %v9257 = vpop.xlane.xlu0 %9256
    %v9258 = vmul.f32 %v9251, %v457
    %v9259 = vmul.f32 %v9254, %v457
    %v9260 = vmul.f32 %v9257, %v457
    %v9261 = vadd.f32 %v9258, 1e-05
    %v9262 = vadd.f32 %v9259, 1e-05
    %v9263 = vadd.f32 %v9260, 1e-05
    %v9264 = vrsqrt.pop %v9261
    %v9265 = vrsqrt.pop %v9262
    %v9266 = vrsqrt.pop %v9263
    %v9267 = vmul.f32 %v9243, %v9264
    %v9268 = vmul.f32 %v9244, %v9265
    %v9269 = vmul.f32 %v9245, %v9266
    %v9271 = vlaneseq
    %v9272 = vshrl.u32 %v9271, 7
    %v9273 = vsub.s32 0, %v9272
    %v9274 = vrot.slane %v9228, %v9273
    %v9276 = vmul.f32 %v9267, %v9274
    %v9277 = vmul.f32 %v9268, %v9274
    %v9278 = vmul.f32 %v9269, %v9274
    %v9280 = vlaneseq
    %v9281 = vshrl.u32 %v9280, 7
    %v9282 = vsub.s32 0, %v9281
    %v9283 = vrot.slane %v9230, %v9282
    %v9285 = vadd.f32 %v9276, %v9283
    %v9286 = vadd.f32 %v9277, %v9283
    %v9287 = vadd.f32 %v9278, %v9283
    %v9288 = vpack.c.bf16 %v9286, %v9285
    %v9289 = vpack.c.bf16 %v9287, %v9287
    %s9290 = scalar_lea.vmem [#allocation28], 768
    %v9291 = vld [vmem:[%s9290] sm:$0xff]
    %v9292 = vld [vmem:[%s9290 + $0x8] sm:$0xff]
    %v9293 = vld [vmem:[%s9290 + $0x10] sm:$0xff]
    %v9294 = vld [vmem:[%s9290 + $0x18] sm:$0xff]
    %v9295 = vld [vmem:[%s9290 + $0x20] sm:$0xff]
    %v9296 = vld [vmem:[%s9290 + $0x28] sm:$0xff]
    %v9297 = vld [vmem:[%s9290 + $0x30] sm:$0xff]
    %v9298 = vld [vmem:[%s9290 + $0x38] sm:$0xff]
    %v9299 = vld [vmem:[%s9290 + $0x40] sm:$0xff]
    %v9300 = vld [vmem:[%s9290 + $0x48] sm:$0xff]
    %v9301 = vld [vmem:[%s9290 + $0x50] sm:$0xff]
    %v9302 = vld [vmem:[%s9290 + $0x58] sm:$0xff]
    %v9303 = vld [vmem:[%s9290 + $0x60] sm:$0xff]
    %v9304 = vld [vmem:[%s9290 + $0x68] sm:$0xff]
    %v9305 = vld [vmem:[%s9290 + $0x70] sm:$0xff]
    %v9306 = vld [vmem:[%s9290 + $0x78] sm:$0xff]
    %v9307 = vld [vmem:[%s9290 + $0x80] sm:$0xff]
    %v9308 = vld [vmem:[%s9290 + $0x88] sm:$0xff]
    %v9309 = vld [vmem:[%s9290 + $0x90] sm:$0xff]
    %v9310 = vld [vmem:[%s9290 + $0x98] sm:$0xff]
    %v9311 = vld [vmem:[%s9290 + $0xa0] sm:$0xff]
    %v9312 = vld [vmem:[%s9290 + $0xa8] sm:$0xff]
    %v9313 = vld [vmem:[%s9290 + $0xb0] sm:$0xff]
    %v9314 = vld [vmem:[%s9290 + $0xb8] sm:$0xff]
    %v9315 = vld [vmem:[%s9290 + $0xc0] sm:$0xff]
    %v9316 = vld [vmem:[%s9290 + $0xc8] sm:$0xff]
    %v9317 = vld [vmem:[%s9290 + $0xd0] sm:$0xff]
    %v9318 = vld [vmem:[%s9290 + $0xd8] sm:$0xff]
    %v9319 = vld [vmem:[%s9290 + $0xe0] sm:$0xff]
    %v9320 = vld [vmem:[%s9290 + $0xe8] sm:$0xff]
    %v9321 = vld [vmem:[%s9290 + $0xf0] sm:$0xff]
    %v9322 = vld [vmem:[%s9290 + $0xf8] sm:$0xff]
    %s9323 = scalar_lea.vmem [#allocation29], 48
    %v9324 = vld [vmem:[%s9323] sm:$0xff]
    %v9325 = vld [vmem:[%s9323 + $0x8] sm:$0xff]
    %v9328 = vlaneseq
    %v9329 = vshrl.u32 %v9328, 7
    %v9330 = vsub.s32 0, %v9329
    %v9331 = vrot.slane %v9324, %v9330
    %v9332 = vlaneseq
    %v9333 = vshrl.u32 %v9332, 7
    %v9334 = vsub.s32 1, %v9333
    %v9335 = vrot.slane %v9324, %v9334
    %v9336 = vlaneseq
    %v9337 = vshrl.u32 %v9336, 7
    %v9338 = vsub.s32 2, %v9337
    %v9339 = vrot.slane %v9324, %v9338
    %v9340 = vlaneseq
    %v9341 = vshrl.u32 %v9340, 7
    %v9342 = vsub.s32 3, %v9341
    %v9343 = vrot.slane %v9324, %v9342
    %v9344 = vlaneseq
    %v9345 = vshrl.u32 %v9344, 7
    %v9346 = vsub.s32 4, %v9345
    %v9347 = vrot.slane %v9324, %v9346
    %v9348 = vlaneseq
    %v9349 = vshrl.u32 %v9348, 7
    %v9350 = vsub.s32 5, %v9349
    %v9351 = vrot.slane %v9324, %v9350
    %v9352 = vlaneseq
    %v9353 = vshrl.u32 %v9352, 7
    %v9354 = vsub.s32 6, %v9353
    %v9355 = vrot.slane %v9324, %v9354
    %v9356 = vlaneseq
    %v9357 = vshrl.u32 %v9356, 7
    %v9358 = vsub.s32 7, %v9357
    %v9359 = vrot.slane %v9324, %v9358
    %v9360 = vlaneseq
    %v9361 = vshrl.u32 %v9360, 7
    %v9362 = vsub.s32 0, %v9361
    %v9363 = vrot.slane %v9325, %v9362
    %v9364 = vlaneseq
    %v9365 = vshrl.u32 %v9364, 7
    %v9366 = vsub.s32 1, %v9365
    %v9367 = vrot.slane %v9325, %v9366
    %v9368 = vlaneseq
    %v9369 = vshrl.u32 %v9368, 7
    %v9370 = vsub.s32 2, %v9369
    %v9371 = vrot.slane %v9325, %v9370
    %v9372 = vlaneseq
    %v9373 = vshrl.u32 %v9372, 7
    %v9374 = vsub.s32 3, %v9373
    %v9375 = vrot.slane %v9325, %v9374
    %v9376 = vlaneseq
    %v9377 = vshrl.u32 %v9376, 7
    %v9378 = vsub.s32 4, %v9377
    %v9379 = vrot.slane %v9325, %v9378
    %v9380 = vlaneseq
    %v9381 = vshrl.u32 %v9380, 7
    %v9382 = vsub.s32 5, %v9381
    %v9383 = vrot.slane %v9325, %v9382
    %v9384 = vlaneseq
    %v9385 = vshrl.u32 %v9384, 7
    %v9386 = vsub.s32 6, %v9385
    %v9387 = vrot.slane %v9325, %v9386
    %v9388 = vlaneseq
    %v9389 = vshrl.u32 %v9388, 7
    %v9390 = vsub.s32 7, %v9389
    %v9391 = vrot.slane %v9325, %v9390
    %v9440 = vunpack.c.l.b16 %v9291
    %v9441 = vunpack.c.h.b16 %v9291
    %v9442 = vunpack.c.l.b16 %v9292
    %v9443 = vunpack.c.h.b16 %v9292
    %v9444 = vunpack.c.l.b16 %v9293
    %v9445 = vunpack.c.h.b16 %v9293
    %v9446 = vunpack.c.l.b16 %v9294
    %v9447 = vunpack.c.h.b16 %v9294
    %v9448 = vunpack.c.l.b16 %v9295
    %v9449 = vunpack.c.h.b16 %v9295
    %v9450 = vunpack.c.l.b16 %v9296
    %v9451 = vunpack.c.h.b16 %v9296
    %v9452 = vunpack.c.l.b16 %v9297
    %v9453 = vunpack.c.h.b16 %v9297
    %v9454 = vunpack.c.l.b16 %v9298
    %v9455 = vunpack.c.h.b16 %v9298
    %v9456 = vunpack.c.l.b16 %v9299
    %v9457 = vunpack.c.h.b16 %v9299
    %v9458 = vunpack.c.l.b16 %v9300
    %v9459 = vunpack.c.h.b16 %v9300
    %v9460 = vunpack.c.l.b16 %v9301
    %v9461 = vunpack.c.h.b16 %v9301
    %v9462 = vunpack.c.l.b16 %v9302
    %v9463 = vunpack.c.h.b16 %v9302
    %v9464 = vunpack.c.l.b16 %v9303
    %v9465 = vunpack.c.h.b16 %v9303
    %v9466 = vunpack.c.l.b16 %v9304
    %v9467 = vunpack.c.h.b16 %v9304
    %v9468 = vunpack.c.l.b16 %v9305
    %v9469 = vunpack.c.h.b16 %v9305
    %v9470 = vunpack.c.l.b16 %v9306
    %v9471 = vunpack.c.h.b16 %v9306
    %v9472 = vunpack.c.l.b16 %v9307
    %v9473 = vunpack.c.h.b16 %v9307
    %v9474 = vunpack.c.l.b16 %v9308
    %v9475 = vunpack.c.h.b16 %v9308
    %v9476 = vunpack.c.l.b16 %v9309
    %v9477 = vunpack.c.h.b16 %v9309
    %v9478 = vunpack.c.l.b16 %v9310
    %v9479 = vunpack.c.h.b16 %v9310
    %v9480 = vunpack.c.l.b16 %v9311
    %v9481 = vunpack.c.h.b16 %v9311
    %v9482 = vunpack.c.l.b16 %v9312
    %v9483 = vunpack.c.h.b16 %v9312
    %v9484 = vunpack.c.l.b16 %v9313
    %v9485 = vunpack.c.h.b16 %v9313
    %v9486 = vunpack.c.l.b16 %v9314
    %v9487 = vunpack.c.h.b16 %v9314
    %v9488 = vunpack.c.l.b16 %v9315
    %v9489 = vunpack.c.h.b16 %v9315
    %v9490 = vunpack.c.l.b16 %v9316
    %v9491 = vunpack.c.h.b16 %v9316
    %v9492 = vunpack.c.l.b16 %v9317
    %v9493 = vunpack.c.h.b16 %v9317
    %v9494 = vunpack.c.l.b16 %v9318
    %v9495 = vunpack.c.h.b16 %v9318
    %v9496 = vunpack.c.l.b16 %v9319
    %v9497 = vunpack.c.h.b16 %v9319
    %v9498 = vunpack.c.l.b16 %v9320
    %v9499 = vunpack.c.h.b16 %v9320
    %v9500 = vunpack.c.l.b16 %v9321
    %v9501 = vunpack.c.h.b16 %v9321
    %v9502 = vunpack.c.l.b16 %v9322
    %v9503 = vunpack.c.h.b16 %v9322
    %v9504 = vpack.c.b16 %v9456, %v9440
    %v9505 = vpack.c.b16 %v9457, %v9441
    %v9506 = vpack.c.b16 %v9458, %v9442
    %v9507 = vpack.c.b16 %v9459, %v9443
    %v9508 = vpack.c.b16 %v9460, %v9444
    %v9509 = vpack.c.b16 %v9461, %v9445
    %v9510 = vpack.c.b16 %v9462, %v9446
    %v9511 = vpack.c.b16 %v9463, %v9447
    %v9512 = vpack.c.b16 %v9464, %v9448
    %v9513 = vpack.c.b16 %v9465, %v9449
    %v9514 = vpack.c.b16 %v9466, %v9450
    %v9515 = vpack.c.b16 %v9467, %v9451
    %v9516 = vpack.c.b16 %v9468, %v9452
    %v9517 = vpack.c.b16 %v9469, %v9453
    %v9518 = vpack.c.b16 %v9470, %v9454
    %v9519 = vpack.c.b16 %v9471, %v9455
    %v9520 = vpack.c.b16 %v9488, %v9472
    %v9521 = vpack.c.b16 %v9489, %v9473
    %v9522 = vpack.c.b16 %v9490, %v9474
    %v9523 = vpack.c.b16 %v9491, %v9475
    %v9524 = vpack.c.b16 %v9492, %v9476
    %v9525 = vpack.c.b16 %v9493, %v9477
    %v9526 = vpack.c.b16 %v9494, %v9478
    %v9527 = vpack.c.b16 %v9495, %v9479
    %v9528 = vpack.c.b16 %v9496, %v9480
    %v9529 = vpack.c.b16 %v9497, %v9481
    %v9530 = vpack.c.b16 %v9498, %v9482
    %v9531 = vpack.c.b16 %v9499, %v9483
    %v9532 = vpack.c.b16 %v9500, %v9484
    %v9533 = vpack.c.b16 %v9501, %v9485
    %v9534 = vpack.c.b16 %v9502, %v9486
    %v9535 = vpack.c.b16 %v9503, %v9487
    %v9569 = vsel %vm450, %v9288, 0
    %v9572 = vsel %vm450, %v9289, 0
    %9574 = vmatprep.subr.bf16.mxu0 0
    %9575 = vmatpush1.bf16.msra.mxu0 0
    %9576 = vmatprep.subr.bf16.mxu0 0
    %9577 = vmatpush1.bf16.msra.mxu0 0
    %9578 = vmatprep.subr.bf16.mxu0 0
    %9579 = vmatpush1.bf16.msra.mxu0 0
    %9580 = vmatprep.subr.bf16.mxu0 0
    %9581 = vmatpush1.bf16.msra.mxu0 0
    %9582 = vmatprep.subr.bf16.mxu0 0
    %9583 = vmatpush1.bf16.msra.mxu0 0
    %9584 = vmatprep.subr.bf16.mxu0 0
    %9585 = vmatpush1.bf16.msra.mxu0 0
    %9586 = vmatprep.subr.bf16.mxu0 %v9521
    %9587 = vmatpush1.bf16.msra.mxu0 %v9520
    %9588 = vmatprep.subr.bf16.mxu0 %v9505
    %9589 = vmatpush1.bf16.msra.mxu0 %v9504
    %9590 = vmatprep.subr.bf16.mxu0 0
    %9591 = vmatpush2.bf16.msra.mxu0 0
    %9592 = vmatprep.subr.bf16.mxu0 0
    %9593 = vmatpush2.bf16.msra.mxu0 0
    %9594 = vmatprep.subr.bf16.mxu0 0
    %9595 = vmatpush2.bf16.msra.mxu0 0
    %9596 = vmatprep.subr.bf16.mxu0 0
    %9597 = vmatpush2.bf16.msra.mxu0 0
    %9598 = vmatprep.subr.bf16.mxu0 0
    %9599 = vmatpush2.bf16.msra.mxu0 0
    %9600 = vmatprep.subr.bf16.mxu0 0
    %9601 = vmatpush2.bf16.msra.mxu0 0
    %9602 = vmatprep.subr.bf16.mxu0 0
    %9603 = vmatpush2.bf16.msra.mxu0 0
    %9604 = vmatprep.subr.bf16.mxu0 0
    %9605 = vmatpush2.bf16.msra.mxu0 0
    %9606 = vmatprep.mubr.bf16.mxu0 0
    %9607 = vmatmul.mubr.bf16.gmra.mxu0 %v9569
    %v9608 = vpop.f32.mrf.mxu0
    %v9609 = vadd.f32 %v9331, %v9608
    %v9610 = vpop.f32.mrf.mxu0
    %v9611 = vadd.f32 %v9335, %v9610
    %v9612 = vpop.f32.mrf.mxu0
    %v9613 = vadd.f32 %v9331, %v9612
    %v9614 = vpop.f32.mrf.mxu0
    %v9615 = vadd.f32 %v9335, %v9614
    %9616 = vmatprep.mubr.bf16.mxu0 0
    %9617 = vmatmul.mubr.bf16.gmra.mxu0 %v9572
    %v9618 = vpop.f32.mrf.mxu0
    %v9619 = vadd.f32 %v9331, %v9618
    %v9620 = vpop.f32.mrf.mxu0
    %v9621 = vadd.f32 %v9335, %v9620
    %v9622 = vpop.f32.mrf.mxu0
    %v9623 = vpop.f32.mrf.mxu0
    %9624 = vdwg.mxu0
    %9625 = vmatprep.subr.bf16.mxu0 0
    %9626 = vmatpush1.bf16.msra.mxu0 0
    %9627 = vmatprep.subr.bf16.mxu0 0
    %9628 = vmatpush1.bf16.msra.mxu0 0
    %9629 = vmatprep.subr.bf16.mxu0 0
    %9630 = vmatpush1.bf16.msra.mxu0 0
    %9631 = vmatprep.subr.bf16.mxu0 0
    %9632 = vmatpush1.bf16.msra.mxu0 0
    %9633 = vmatprep.subr.bf16.mxu0 0
    %9634 = vmatpush1.bf16.msra.mxu0 0
    %9635 = vmatprep.subr.bf16.mxu0 0
    %9636 = vmatpush1.bf16.msra.mxu0 0
    %9637 = vmatprep.subr.bf16.mxu0 %v9523
    %9638 = vmatpush1.bf16.msra.mxu0 %v9522
    %9639 = vmatprep.subr.bf16.mxu0 %v9507
    %9640 = vmatpush1.bf16.msra.mxu0 %v9506
    %9641 = vmatprep.subr.bf16.mxu0 0
    %9642 = vmatpush2.bf16.msra.mxu0 0
    %9643 = vmatprep.subr.bf16.mxu0 0
    %9644 = vmatpush2.bf16.msra.mxu0 0
    %9645 = vmatprep.subr.bf16.mxu0 0
    %9646 = vmatpush2.bf16.msra.mxu0 0
    %9647 = vmatprep.subr.bf16.mxu0 0
    %9648 = vmatpush2.bf16.msra.mxu0 0
    %9649 = vmatprep.subr.bf16.mxu0 0
    %9650 = vmatpush2.bf16.msra.mxu0 0
    %9651 = vmatprep.subr.bf16.mxu0 0
    %9652 = vmatpush2.bf16.msra.mxu0 0
    %9653 = vmatprep.subr.bf16.mxu0 0
    %9654 = vmatpush2.bf16.msra.mxu0 0
    %9655 = vmatprep.subr.bf16.mxu0 0
    %9656 = vmatpush2.bf16.msra.mxu0 0
    %9657 = vmatprep.mubr.bf16.mxu0 0
    %9658 = vmatmul.mubr.bf16.gmra.mxu0 %v9569
    %v9659 = vpop.f32.mrf.mxu0
    %v9660 = vadd.f32 %v9339, %v9659
    %v9661 = vpop.f32.mrf.mxu0
    %v9662 = vadd.f32 %v9343, %v9661
    %v9663 = vpop.f32.mrf.mxu0
    %v9664 = vadd.f32 %v9339, %v9663
    %v9665 = vpop.f32.mrf.mxu0
    %v9666 = vadd.f32 %v9343, %v9665
    %9667 = vmatprep.mubr.bf16.mxu0 0
    %9668 = vmatmul.mubr.bf16.gmra.mxu0 %v9572
    %v9669 = vpop.f32.mrf.mxu0
    %v9670 = vadd.f32 %v9339, %v9669
    %v9671 = vpop.f32.mrf.mxu0
    %v9672 = vadd.f32 %v9343, %v9671
    %v9673 = vpop.f32.mrf.mxu0
    %v9674 = vpop.f32.mrf.mxu0
    %9675 = vdwg.mxu0
    %9676 = vmatprep.subr.bf16.mxu0 0
    %9677 = vmatpush1.bf16.msra.mxu0 0
    %9678 = vmatprep.subr.bf16.mxu0 0
    %9679 = vmatpush1.bf16.msra.mxu0 0
    %9680 = vmatprep.subr.bf16.mxu0 0
    %9681 = vmatpush1.bf16.msra.mxu0 0
    %9682 = vmatprep.subr.bf16.mxu0 0
    %9683 = vmatpush1.bf16.msra.mxu0 0
    %9684 = vmatprep.subr.bf16.mxu0 0
    %9685 = vmatpush1.bf16.msra.mxu0 0
    %9686 = vmatprep.subr.bf16.mxu0 0
    %9687 = vmatpush1.bf16.msra.mxu0 0
    %9688 = vmatprep.subr.bf16.mxu0 %v9525
    %9689 = vmatpush1.bf16.msra.mxu0 %v9524
    %9690 = vmatprep.subr.bf16.mxu0 %v9509
    %9691 = vmatpush1.bf16.msra.mxu0 %v9508
    %9692 = vmatprep.subr.bf16.mxu0 0
    %9693 = vmatpush2.bf16.msra.mxu0 0
    %9694 = vmatprep.subr.bf16.mxu0 0
    %9695 = vmatpush2.bf16.msra.mxu0 0
    %9696 = vmatprep.subr.bf16.mxu0 0
    %9697 = vmatpush2.bf16.msra.mxu0 0
    %9698 = vmatprep.subr.bf16.mxu0 0
    %9699 = vmatpush2.bf16.msra.mxu0 0
    %9700 = vmatprep.subr.bf16.mxu0 0
    %9701 = vmatpush2.bf16.msra.mxu0 0
    %9702 = vmatprep.subr.bf16.mxu0 0
    %9703 = vmatpush2.bf16.msra.mxu0 0
    %9704 = vmatprep.subr.bf16.mxu0 0
    %9705 = vmatpush2.bf16.msra.mxu0 0
    %9706 = vmatprep.subr.bf16.mxu0 0
    %9707 = vmatpush2.bf16.msra.mxu0 0
    %9708 = vmatprep.mubr.bf16.mxu0 0
    %9709 = vmatmul.mubr.bf16.gmra.mxu0 %v9569
    %v9710 = vpop.f32.mrf.mxu0
    %v9711 = vadd.f32 %v9347, %v9710
    %v9712 = vpop.f32.mrf.mxu0
    %v9713 = vadd.f32 %v9351, %v9712
    %v9714 = vpop.f32.mrf.mxu0
    %v9715 = vadd.f32 %v9347, %v9714
    %v9716 = vpop.f32.mrf.mxu0
    %v9717 = vadd.f32 %v9351, %v9716
    %9718 = vmatprep.mubr.bf16.mxu0 0
    %9719 = vmatmul.mubr.bf16.gmra.mxu0 %v9572
    %v9720 = vpop.f32.mrf.mxu0
    %v9721 = vadd.f32 %v9347, %v9720
    %v9722 = vpop.f32.mrf.mxu0
    %v9723 = vadd.f32 %v9351, %v9722
    %v9724 = vpop.f32.mrf.mxu0
    %v9725 = vpop.f32.mrf.mxu0
    %9726 = vdwg.mxu0
    %9727 = vmatprep.subr.bf16.mxu0 0
    %9728 = vmatpush1.bf16.msra.mxu0 0
    %9729 = vmatprep.subr.bf16.mxu0 0
    %9730 = vmatpush1.bf16.msra.mxu0 0
    %9731 = vmatprep.subr.bf16.mxu0 0
    %9732 = vmatpush1.bf16.msra.mxu0 0
    %9733 = vmatprep.subr.bf16.mxu0 0
    %9734 = vmatpush1.bf16.msra.mxu0 0
    %9735 = vmatprep.subr.bf16.mxu0 0
    %9736 = vmatpush1.bf16.msra.mxu0 0
    %9737 = vmatprep.subr.bf16.mxu0 0
    %9738 = vmatpush1.bf16.msra.mxu0 0
    %9739 = vmatprep.subr.bf16.mxu0 %v9527
    %9740 = vmatpush1.bf16.msra.mxu0 %v9526
    %9741 = vmatprep.subr.bf16.mxu0 %v9511
    %9742 = vmatpush1.bf16.msra.mxu0 %v9510
    %9743 = vmatprep.subr.bf16.mxu0 0
    %9744 = vmatpush2.bf16.msra.mxu0 0
    %9745 = vmatprep.subr.bf16.mxu0 0
    %9746 = vmatpush2.bf16.msra.mxu0 0
    %9747 = vmatprep.subr.bf16.mxu0 0
    %9748 = vmatpush2.bf16.msra.mxu0 0
    %9749 = vmatprep.subr.bf16.mxu0 0
    %9750 = vmatpush2.bf16.msra.mxu0 0
    %9751 = vmatprep.subr.bf16.mxu0 0
    %9752 = vmatpush2.bf16.msra.mxu0 0
    %9753 = vmatprep.subr.bf16.mxu0 0
    %9754 = vmatpush2.bf16.msra.mxu0 0
    %9755 = vmatprep.subr.bf16.mxu0 0
    %9756 = vmatpush2.bf16.msra.mxu0 0
    %9757 = vmatprep.subr.bf16.mxu0 0
    %9758 = vmatpush2.bf16.msra.mxu0 0
    %9759 = vmatprep.mubr.bf16.mxu0 0
    %9760 = vmatmul.mubr.bf16.gmra.mxu0 %v9569
    %v9761 = vpop.f32.mrf.mxu0
    %v9762 = vadd.f32 %v9355, %v9761
    %v9763 = vpop.f32.mrf.mxu0
    %v9764 = vadd.f32 %v9359, %v9763
    %v9765 = vpop.f32.mrf.mxu0
    %v9766 = vadd.f32 %v9355, %v9765
    %v9767 = vpop.f32.mrf.mxu0
    %v9768 = vadd.f32 %v9359, %v9767
    %9769 = vmatprep.mubr.bf16.mxu0 0
    %9770 = vmatmul.mubr.bf16.gmra.mxu0 %v9572
    %v9771 = vpop.f32.mrf.mxu0
    %v9772 = vadd.f32 %v9355, %v9771
    %v9773 = vpop.f32.mrf.mxu0
    %v9774 = vadd.f32 %v9359, %v9773
    %v9775 = vpop.f32.mrf.mxu0
    %v9776 = vpop.f32.mrf.mxu0
    %9777 = vdwg.mxu0
    %9778 = vmatprep.subr.bf16.mxu0 0
    %9779 = vmatpush1.bf16.msra.mxu0 0
    %9780 = vmatprep.subr.bf16.mxu0 0
    %9781 = vmatpush1.bf16.msra.mxu0 0
    %9782 = vmatprep.subr.bf16.mxu0 0
    %9783 = vmatpush1.bf16.msra.mxu0 0
    %9784 = vmatprep.subr.bf16.mxu0 0
    %9785 = vmatpush1.bf16.msra.mxu0 0
    %9786 = vmatprep.subr.bf16.mxu0 0
    %9787 = vmatpush1.bf16.msra.mxu0 0
    %9788 = vmatprep.subr.bf16.mxu0 0
    %9789 = vmatpush1.bf16.msra.mxu0 0
    %9790 = vmatprep.subr.bf16.mxu0 %v9529
    %9791 = vmatpush1.bf16.msra.mxu0 %v9528
    %9792 = vmatprep.subr.bf16.mxu0 %v9513
    %9793 = vmatpush1.bf16.msra.mxu0 %v9512
    %9794 = vmatprep.subr.bf16.mxu0 0
    %9795 = vmatpush2.bf16.msra.mxu0 0
    %9796 = vmatprep.subr.bf16.mxu0 0
    %9797 = vmatpush2.bf16.msra.mxu0 0
    %9798 = vmatprep.subr.bf16.mxu0 0
    %9799 = vmatpush2.bf16.msra.mxu0 0
    %9800 = vmatprep.subr.bf16.mxu0 0
    %9801 = vmatpush2.bf16.msra.mxu0 0
    %9802 = vmatprep.subr.bf16.mxu0 0
    %9803 = vmatpush2.bf16.msra.mxu0 0
    %9804 = vmatprep.subr.bf16.mxu0 0
    %9805 = vmatpush2.bf16.msra.mxu0 0
    %9806 = vmatprep.subr.bf16.mxu0 0
    %9807 = vmatpush2.bf16.msra.mxu0 0
    %9808 = vmatprep.subr.bf16.mxu0 0
    %9809 = vmatpush2.bf16.msra.mxu0 0
    %9810 = vmatprep.mubr.bf16.mxu0 0
    %9811 = vmatmul.mubr.bf16.gmra.mxu0 %v9569
    %v9812 = vpop.f32.mrf.mxu0
    %v9813 = vadd.f32 %v9363, %v9812
    %v9814 = vpop.f32.mrf.mxu0
    %v9815 = vadd.f32 %v9367, %v9814
    %v9816 = vpop.f32.mrf.mxu0
    %v9817 = vadd.f32 %v9363, %v9816
    %v9818 = vpop.f32.mrf.mxu0
    %v9819 = vadd.f32 %v9367, %v9818
    %9820 = vmatprep.mubr.bf16.mxu0 0
    %9821 = vmatmul.mubr.bf16.gmra.mxu0 %v9572
    %v9822 = vpop.f32.mrf.mxu0
    %v9823 = vadd.f32 %v9363, %v9822
    %v9824 = vpop.f32.mrf.mxu0
    %v9825 = vadd.f32 %v9367, %v9824
    %v9826 = vpop.f32.mrf.mxu0
    %v9827 = vpop.f32.mrf.mxu0
    %9828 = vdwg.mxu0
    %9829 = vmatprep.subr.bf16.mxu0 0
    %9830 = vmatpush1.bf16.msra.mxu0 0
    %9831 = vmatprep.subr.bf16.mxu0 0
    %9832 = vmatpush1.bf16.msra.mxu0 0
    %9833 = vmatprep.subr.bf16.mxu0 0
    %9834 = vmatpush1.bf16.msra.mxu0 0
    %9835 = vmatprep.subr.bf16.mxu0 0
    %9836 = vmatpush1.bf16.msra.mxu0 0
    %9837 = vmatprep.subr.bf16.mxu0 0
    %9838 = vmatpush1.bf16.msra.mxu0 0
    %9839 = vmatprep.subr.bf16.mxu0 0
    %9840 = vmatpush1.bf16.msra.mxu0 0
    %9841 = vmatprep.subr.bf16.mxu0 %v9531
    %9842 = vmatpush1.bf16.msra.mxu0 %v9530
    %9843 = vmatprep.subr.bf16.mxu0 %v9515
    %9844 = vmatpush1.bf16.msra.mxu0 %v9514
    %9845 = vmatprep.subr.bf16.mxu0 0
    %9846 = vmatpush2.bf16.msra.mxu0 0
    %9847 = vmatprep.subr.bf16.mxu0 0
    %9848 = vmatpush2.bf16.msra.mxu0 0
    %9849 = vmatprep.subr.bf16.mxu0 0
    %9850 = vmatpush2.bf16.msra.mxu0 0
    %9851 = vmatprep.subr.bf16.mxu0 0
    %9852 = vmatpush2.bf16.msra.mxu0 0
    %9853 = vmatprep.subr.bf16.mxu0 0
    %9854 = vmatpush2.bf16.msra.mxu0 0
    %9855 = vmatprep.subr.bf16.mxu0 0
    %9856 = vmatpush2.bf16.msra.mxu0 0
    %9857 = vmatprep.subr.bf16.mxu0 0
    %9858 = vmatpush2.bf16.msra.mxu0 0
    %9859 = vmatprep.subr.bf16.mxu0 0
    %9860 = vmatpush2.bf16.msra.mxu0 0
    %9861 = vmatprep.mubr.bf16.mxu0 0
    %9862 = vmatmul.mubr.bf16.gmra.mxu0 %v9569
    %v9863 = vpop.f32.mrf.mxu0
    %v9864 = vadd.f32 %v9371, %v9863
    %v9865 = vpop.f32.mrf.mxu0
    %v9866 = vadd.f32 %v9375, %v9865
    %v9867 = vpop.f32.mrf.mxu0
    %v9868 = vadd.f32 %v9371, %v9867
    %v9869 = vpop.f32.mrf.mxu0
    %v9870 = vadd.f32 %v9375, %v9869
    %9871 = vmatprep.mubr.bf16.mxu0 0
    %9872 = vmatmul.mubr.bf16.gmra.mxu0 %v9572
    %v9873 = vpop.f32.mrf.mxu0
    %v9874 = vadd.f32 %v9371, %v9873
    %v9875 = vpop.f32.mrf.mxu0
    %v9876 = vadd.f32 %v9375, %v9875
    %v9877 = vpop.f32.mrf.mxu0
    %v9878 = vpop.f32.mrf.mxu0
    %9879 = vdwg.mxu0
    %9880 = vmatprep.subr.bf16.mxu0 0
    %9881 = vmatpush1.bf16.msra.mxu0 0
    %9882 = vmatprep.subr.bf16.mxu0 0
    %9883 = vmatpush1.bf16.msra.mxu0 0
    %9884 = vmatprep.subr.bf16.mxu0 0
    %9885 = vmatpush1.bf16.msra.mxu0 0
    %9886 = vmatprep.subr.bf16.mxu0 0
    %9887 = vmatpush1.bf16.msra.mxu0 0
    %9888 = vmatprep.subr.bf16.mxu0 0
    %9889 = vmatpush1.bf16.msra.mxu0 0
    %9890 = vmatprep.subr.bf16.mxu0 0
    %9891 = vmatpush1.bf16.msra.mxu0 0
    %9892 = vmatprep.subr.bf16.mxu0 %v9533
    %9893 = vmatpush1.bf16.msra.mxu0 %v9532
    %9894 = vmatprep.subr.bf16.mxu0 %v9517
    %9895 = vmatpush1.bf16.msra.mxu0 %v9516
    %9896 = vmatprep.subr.bf16.mxu0 0
    %9897 = vmatpush2.bf16.msra.mxu0 0
    %9898 = vmatprep.subr.bf16.mxu0 0
    %9899 = vmatpush2.bf16.msra.mxu0 0
    %9900 = vmatprep.subr.bf16.mxu0 0
    %9901 = vmatpush2.bf16.msra.mxu0 0
    %9902 = vmatprep.subr.bf16.mxu0 0
    %9903 = vmatpush2.bf16.msra.mxu0 0
    %9904 = vmatprep.subr.bf16.mxu0 0
    %9905 = vmatpush2.bf16.msra.mxu0 0
    %9906 = vmatprep.subr.bf16.mxu0 0
    %9907 = vmatpush2.bf16.msra.mxu0 0
    %9908 = vmatprep.subr.bf16.mxu0 0
    %9909 = vmatpush2.bf16.msra.mxu0 0
    %9910 = vmatprep.subr.bf16.mxu0 0
    %9911 = vmatpush2.bf16.msra.mxu0 0
    %9912 = vmatprep.mubr.bf16.mxu0 0
    %9913 = vmatmul.mubr.bf16.gmra.mxu0 %v9569
    %v9914 = vpop.f32.mrf.mxu0
    %v9915 = vadd.f32 %v9379, %v9914
    %v9916 = vpop.f32.mrf.mxu0
    %v9917 = vadd.f32 %v9383, %v9916
    %v9918 = vpop.f32.mrf.mxu0
    %v9919 = vadd.f32 %v9379, %v9918
    %v9920 = vpop.f32.mrf.mxu0
    %v9921 = vadd.f32 %v9383, %v9920
    %9922 = vmatprep.mubr.bf16.mxu0 0
    %9923 = vmatmul.mubr.bf16.gmra.mxu0 %v9572
    %v9924 = vpop.f32.mrf.mxu0
    %v9925 = vadd.f32 %v9379, %v9924
    %v9926 = vpop.f32.mrf.mxu0
    %v9927 = vadd.f32 %v9383, %v9926
    %v9928 = vpop.f32.mrf.mxu0
    %v9929 = vpop.f32.mrf.mxu0
    %9930 = vdwg.mxu0
    %9931 = vmatprep.subr.bf16.mxu0 0
    %9932 = vmatpush1.bf16.msra.mxu0 0
    %9933 = vmatprep.subr.bf16.mxu0 0
    %9934 = vmatpush1.bf16.msra.mxu0 0
    %9935 = vmatprep.subr.bf16.mxu0 0
    %9936 = vmatpush1.bf16.msra.mxu0 0
    %9937 = vmatprep.subr.bf16.mxu0 0
    %9938 = vmatpush1.bf16.msra.mxu0 0
    %9939 = vmatprep.subr.bf16.mxu0 0
    %9940 = vmatpush1.bf16.msra.mxu0 0
    %9941 = vmatprep.subr.bf16.mxu0 0
    %9942 = vmatpush1.bf16.msra.mxu0 0
    %9943 = vmatprep.subr.bf16.mxu0 %v9535
    %9944 = vmatpush1.bf16.msra.mxu0 %v9534
    %9945 = vmatprep.subr.bf16.mxu0 %v9519
    %9946 = vmatpush1.bf16.msra.mxu0 %v9518
    %9947 = vmatprep.subr.bf16.mxu0 0
    %9948 = vmatpush2.bf16.msra.mxu0 0
    %9949 = vmatprep.subr.bf16.mxu0 0
    %9950 = vmatpush2.bf16.msra.mxu0 0
    %9951 = vmatprep.subr.bf16.mxu0 0
    %9952 = vmatpush2.bf16.msra.mxu0 0
    %9953 = vmatprep.subr.bf16.mxu0 0
    %9954 = vmatpush2.bf16.msra.mxu0 0
    %9955 = vmatprep.subr.bf16.mxu0 0
    %9956 = vmatpush2.bf16.msra.mxu0 0
    %9957 = vmatprep.subr.bf16.mxu0 0
    %9958 = vmatpush2.bf16.msra.mxu0 0
    %9959 = vmatprep.subr.bf16.mxu0 0
    %9960 = vmatpush2.bf16.msra.mxu0 0
    %9961 = vmatprep.subr.bf16.mxu0 0
    %9962 = vmatpush2.bf16.msra.mxu0 0
    %9963 = vmatprep.mubr.bf16.mxu0 0
    %9964 = vmatmul.mubr.bf16.gmra.mxu0 %v9569
    %v9965 = vpop.f32.mrf.mxu0
    %v9966 = vadd.f32 %v9387, %v9965
    %v9967 = vpop.f32.mrf.mxu0
    %v9968 = vadd.f32 %v9391, %v9967
    %v9969 = vpop.f32.mrf.mxu0
    %v9970 = vadd.f32 %v9387, %v9969
    %v9971 = vpop.f32.mrf.mxu0
    %v9972 = vadd.f32 %v9391, %v9971
    %9973 = vmatprep.mubr.bf16.mxu0 0
    %9974 = vmatmul.mubr.bf16.gmra.mxu0 %v9572
    %v9975 = vpop.f32.mrf.mxu0
    %v9976 = vadd.f32 %v9387, %v9975
    %v9977 = vpop.f32.mrf.mxu0
    %v9978 = vadd.f32 %v9391, %v9977
    %v9979 = vpop.f32.mrf.mxu0
    %v9980 = vpop.f32.mrf.mxu0
    %9981 = vdwg.mxu0
    %v9982 = vmax.f32 %v9609, 0.0
    %v9983 = vmax.f32 %v9611, 0.0
    %v9984 = vmax.f32 %v9660, 0.0
    %v9985 = vmax.f32 %v9662, 0.0
    %v9986 = vmax.f32 %v9711, 0.0
    %v9987 = vmax.f32 %v9713, 0.0
    %v9988 = vmax.f32 %v9762, 0.0
    %v9989 = vmax.f32 %v9764, 0.0
    %v9990 = vmax.f32 %v9813, 0.0
    %v9991 = vmax.f32 %v9815, 0.0
    %v9992 = vmax.f32 %v9864, 0.0
    %v9993 = vmax.f32 %v9866, 0.0
    %v9994 = vmax.f32 %v9915, 0.0
    %v9995 = vmax.f32 %v9917, 0.0
    %v9996 = vmax.f32 %v9966, 0.0
    %v9997 = vmax.f32 %v9968, 0.0
    %v9998 = vmax.f32 %v9613, 0.0
    %v9999 = vmax.f32 %v9615, 0.0
    %v10000 = vmax.f32 %v9664, 0.0
    %v10001 = vmax.f32 %v9666, 0.0
    %v10002 = vmax.f32 %v9715, 0.0
    %v10003 = vmax.f32 %v9717, 0.0
    %v10004 = vmax.f32 %v9766, 0.0
    %v10005 = vmax.f32 %v9768, 0.0
    %v10006 = vmax.f32 %v9817, 0.0
    %v10007 = vmax.f32 %v9819, 0.0
    %v10008 = vmax.f32 %v9868, 0.0
    %v10009 = vmax.f32 %v9870, 0.0
    %v10010 = vmax.f32 %v9919, 0.0
    %v10011 = vmax.f32 %v9921, 0.0
    %v10012 = vmax.f32 %v9970, 0.0
    %v10013 = vmax.f32 %v9972, 0.0
    %v10014 = vmax.f32 %v9619, 0.0
    %v10015 = vmax.f32 %v9621, 0.0
    %v10016 = vmax.f32 %v9670, 0.0
    %v10017 = vmax.f32 %v9672, 0.0
    %v10018 = vmax.f32 %v9721, 0.0
    %v10019 = vmax.f32 %v9723, 0.0
    %v10020 = vmax.f32 %v9772, 0.0
    %v10021 = vmax.f32 %v9774, 0.0
    %v10022 = vmax.f32 %v9823, 0.0
    %v10023 = vmax.f32 %v9825, 0.0
    %v10024 = vmax.f32 %v9874, 0.0
    %v10025 = vmax.f32 %v9876, 0.0
    %v10026 = vmax.f32 %v9925, 0.0
    %v10027 = vmax.f32 %v9927, 0.0
    %v10028 = vmax.f32 %v9976, 0.0
    %v10029 = vmax.f32 %v9978, 0.0
    %v10030 = vpack.c.bf16 %v9998, %v9982
    %v10031 = vpack.c.bf16 %v9999, %v9983
    %v10032 = vpack.c.bf16 %v10000, %v9984
    %v10033 = vpack.c.bf16 %v10001, %v9985
    %v10034 = vpack.c.bf16 %v10002, %v9986
    %v10035 = vpack.c.bf16 %v10003, %v9987
    %v10036 = vpack.c.bf16 %v10004, %v9988
    %v10037 = vpack.c.bf16 %v10005, %v9989
    %v10038 = vpack.c.bf16 %v10006, %v9990
    %v10039 = vpack.c.bf16 %v10007, %v9991
    %v10040 = vpack.c.bf16 %v10008, %v9992
    %v10041 = vpack.c.bf16 %v10009, %v9993
    %v10042 = vpack.c.bf16 %v10010, %v9994
    %v10043 = vpack.c.bf16 %v10011, %v9995
    %v10044 = vpack.c.bf16 %v10012, %v9996
    %v10045 = vpack.c.bf16 %v10013, %v9997
    %v10046 = vpack.c.bf16 %v10014, %v10014
    %v10047 = vpack.c.bf16 %v10015, %v10015
    %v10048 = vpack.c.bf16 %v10016, %v10016
    %v10049 = vpack.c.bf16 %v10017, %v10017
    %v10050 = vpack.c.bf16 %v10018, %v10018
    %v10051 = vpack.c.bf16 %v10019, %v10019
    %v10052 = vpack.c.bf16 %v10020, %v10020
    %v10053 = vpack.c.bf16 %v10021, %v10021
    %v10054 = vpack.c.bf16 %v10022, %v10022
    %v10055 = vpack.c.bf16 %v10023, %v10023
    %v10056 = vpack.c.bf16 %v10024, %v10024
    %v10057 = vpack.c.bf16 %v10025, %v10025
    %v10058 = vpack.c.bf16 %v10026, %v10026
    %v10059 = vpack.c.bf16 %v10027, %v10027
    %v10060 = vpack.c.bf16 %v10028, %v10028
    %v10061 = vpack.c.bf16 %v10029, %v10029
    %s10062 = scalar_lea.vmem [#allocation31], 768
    %v10063 = vld [vmem:[%s10062] sm:$0xff]
    %v10064 = vld [vmem:[%s10062 + $0x8] sm:$0xff]
    %v10065 = vld [vmem:[%s10062 + $0x10] sm:$0xff]
    %v10066 = vld [vmem:[%s10062 + $0x18] sm:$0xff]
    %v10067 = vld [vmem:[%s10062 + $0x20] sm:$0xff]
    %v10068 = vld [vmem:[%s10062 + $0x28] sm:$0xff]
    %v10069 = vld [vmem:[%s10062 + $0x30] sm:$0xff]
    %v10070 = vld [vmem:[%s10062 + $0x38] sm:$0xff]
    %v10071 = vld [vmem:[%s10062 + $0x40] sm:$0xff]
    %v10072 = vld [vmem:[%s10062 + $0x48] sm:$0xff]
    %v10073 = vld [vmem:[%s10062 + $0x50] sm:$0xff]
    %v10074 = vld [vmem:[%s10062 + $0x58] sm:$0xff]
    %v10075 = vld [vmem:[%s10062 + $0x60] sm:$0xff]
    %v10076 = vld [vmem:[%s10062 + $0x68] sm:$0xff]
    %v10077 = vld [vmem:[%s10062 + $0x70] sm:$0xff]
    %v10078 = vld [vmem:[%s10062 + $0x78] sm:$0xff]
    %v10079 = vld [vmem:[%s10062 + $0x80] sm:$0xff]
    %v10080 = vld [vmem:[%s10062 + $0x88] sm:$0xff]
    %v10081 = vld [vmem:[%s10062 + $0x90] sm:$0xff]
    %v10082 = vld [vmem:[%s10062 + $0x98] sm:$0xff]
    %v10083 = vld [vmem:[%s10062 + $0xa0] sm:$0xff]
    %v10084 = vld [vmem:[%s10062 + $0xa8] sm:$0xff]
    %v10085 = vld [vmem:[%s10062 + $0xb0] sm:$0xff]
    %v10086 = vld [vmem:[%s10062 + $0xb8] sm:$0xff]
    %v10087 = vld [vmem:[%s10062 + $0xc0] sm:$0xff]
    %v10088 = vld [vmem:[%s10062 + $0xc8] sm:$0xff]
    %v10089 = vld [vmem:[%s10062 + $0xd0] sm:$0xff]
    %v10090 = vld [vmem:[%s10062 + $0xd8] sm:$0xff]
    %v10091 = vld [vmem:[%s10062 + $0xe0] sm:$0xff]
    %v10092 = vld [vmem:[%s10062 + $0xe8] sm:$0xff]
    %v10093 = vld [vmem:[%s10062 + $0xf0] sm:$0xff]
    %v10094 = vld [vmem:[%s10062 + $0xf8] sm:$0xff]
    %s10095 = scalar_lea.vmem %s57, 3
    %v10096 = vld [vmem:[%s10095] sm:$0x1]
    %v10098 = vlaneseq
    %v10099 = vshrl.u32 %v10098, 7
    %v10100 = vsub.s32 0, %v10099
    %v10101 = vrot.slane %v10096, %v10100
    %v10135 = vunpack.c.l.b16 %v10063
    %v10136 = vunpack.c.h.b16 %v10063
    %v10137 = vunpack.c.l.b16 %v10064
    %v10138 = vunpack.c.h.b16 %v10064
    %v10139 = vunpack.c.l.b16 %v10065
    %v10140 = vunpack.c.h.b16 %v10065
    %v10141 = vunpack.c.l.b16 %v10066
    %v10142 = vunpack.c.h.b16 %v10066
    %v10143 = vunpack.c.l.b16 %v10067
    %v10144 = vunpack.c.h.b16 %v10067
    %v10145 = vunpack.c.l.b16 %v10068
    %v10146 = vunpack.c.h.b16 %v10068
    %v10147 = vunpack.c.l.b16 %v10069
    %v10148 = vunpack.c.h.b16 %v10069
    %v10149 = vunpack.c.l.b16 %v10070
    %v10150 = vunpack.c.h.b16 %v10070
    %v10151 = vunpack.c.l.b16 %v10071
    %v10152 = vunpack.c.h.b16 %v10071
    %v10153 = vunpack.c.l.b16 %v10072
    %v10154 = vunpack.c.h.b16 %v10072
    %v10155 = vunpack.c.l.b16 %v10073
    %v10156 = vunpack.c.h.b16 %v10073
    %v10157 = vunpack.c.l.b16 %v10074
    %v10158 = vunpack.c.h.b16 %v10074
    %v10159 = vunpack.c.l.b16 %v10075
    %v10160 = vunpack.c.h.b16 %v10075
    %v10161 = vunpack.c.l.b16 %v10076
    %v10162 = vunpack.c.h.b16 %v10076
    %v10163 = vunpack.c.l.b16 %v10077
    %v10164 = vunpack.c.h.b16 %v10077
    %v10165 = vunpack.c.l.b16 %v10078
    %v10166 = vunpack.c.h.b16 %v10078
    %v10167 = vunpack.c.l.b16 %v10079
    %v10168 = vunpack.c.h.b16 %v10079
    %v10169 = vunpack.c.l.b16 %v10080
    %v10170 = vunpack.c.h.b16 %v10080
    %v10171 = vunpack.c.l.b16 %v10081
    %v10172 = vunpack.c.h.b16 %v10081
    %v10173 = vunpack.c.l.b16 %v10082
    %v10174 = vunpack.c.h.b16 %v10082
    %v10175 = vunpack.c.l.b16 %v10083
    %v10176 = vunpack.c.h.b16 %v10083
    %v10177 = vunpack.c.l.b16 %v10084
    %v10178 = vunpack.c.h.b16 %v10084
    %v10179 = vunpack.c.l.b16 %v10085
    %v10180 = vunpack.c.h.b16 %v10085
    %v10181 = vunpack.c.l.b16 %v10086
    %v10182 = vunpack.c.h.b16 %v10086
    %v10183 = vunpack.c.l.b16 %v10087
    %v10184 = vunpack.c.h.b16 %v10087
    %v10185 = vunpack.c.l.b16 %v10088
    %v10186 = vunpack.c.h.b16 %v10088
    %v10187 = vunpack.c.l.b16 %v10089
    %v10188 = vunpack.c.h.b16 %v10089
    %v10189 = vunpack.c.l.b16 %v10090
    %v10190 = vunpack.c.h.b16 %v10090
    %v10191 = vunpack.c.l.b16 %v10091
    %v10192 = vunpack.c.h.b16 %v10091
    %v10193 = vunpack.c.l.b16 %v10092
    %v10194 = vunpack.c.h.b16 %v10092
    %v10195 = vunpack.c.l.b16 %v10093
    %v10196 = vunpack.c.h.b16 %v10093
    %v10197 = vunpack.c.l.b16 %v10094
    %v10198 = vunpack.c.h.b16 %v10094
    %v10199 = vpack.c.b16 %v10151, %v10135
    %v10200 = vpack.c.b16 %v10152, %v10136
    %v10201 = vpack.c.b16 %v10153, %v10137
    %v10202 = vpack.c.b16 %v10154, %v10138
    %v10203 = vpack.c.b16 %v10155, %v10139
    %v10204 = vpack.c.b16 %v10156, %v10140
    %v10205 = vpack.c.b16 %v10157, %v10141
    %v10206 = vpack.c.b16 %v10158, %v10142
    %v10207 = vpack.c.b16 %v10159, %v10143
    %v10208 = vpack.c.b16 %v10160, %v10144
    %v10209 = vpack.c.b16 %v10161, %v10145
    %v10210 = vpack.c.b16 %v10162, %v10146
    %v10211 = vpack.c.b16 %v10163, %v10147
    %v10212 = vpack.c.b16 %v10164, %v10148
    %v10213 = vpack.c.b16 %v10165, %v10149
    %v10214 = vpack.c.b16 %v10166, %v10150
    %v10215 = vpack.c.b16 %v10183, %v10167
    %v10216 = vpack.c.b16 %v10184, %v10168
    %v10217 = vpack.c.b16 %v10185, %v10169
    %v10218 = vpack.c.b16 %v10186, %v10170
    %v10219 = vpack.c.b16 %v10187, %v10171
    %v10220 = vpack.c.b16 %v10188, %v10172
    %v10221 = vpack.c.b16 %v10189, %v10173
    %v10222 = vpack.c.b16 %v10190, %v10174
    %v10223 = vpack.c.b16 %v10191, %v10175
    %v10224 = vpack.c.b16 %v10192, %v10176
    %v10225 = vpack.c.b16 %v10193, %v10177
    %v10226 = vpack.c.b16 %v10194, %v10178
    %v10227 = vpack.c.b16 %v10195, %v10179
    %v10228 = vpack.c.b16 %v10196, %v10180
    %v10229 = vpack.c.b16 %v10197, %v10181
    %v10230 = vpack.c.b16 %v10198, %v10182
    %10263 = vmatprep.subr.bf16.mxu0 0
    %10264 = vmatpush1.bf16.xpose.msra.mxu0 0
    %10265 = vmatprep.subr.bf16.mxu0 0
    %10266 = vmatpush1.bf16.xpose.msra.mxu0 0
    %10267 = vmatprep.subr.bf16.mxu0 0
    %10268 = vmatpush1.bf16.xpose.msra.mxu0 0
    %10269 = vmatprep.subr.bf16.mxu0 0
    %10270 = vmatpush1.bf16.xpose.msra.mxu0 0
    %10271 = vmatprep.subr.bf16.mxu0 0
    %10272 = vmatpush1.bf16.xpose.msra.mxu0 0
    %10273 = vmatprep.subr.bf16.mxu0 0
    %10274 = vmatpush1.bf16.xpose.msra.mxu0 0
    %10275 = vmatprep.subr.bf16.mxu0 %v10216
    %10276 = vmatpush1.bf16.xpose.msra.mxu0 %v10215
    %10277 = vmatprep.subr.bf16.mxu0 %v10200
    %10278 = vmatpush1.bf16.xpose.msra.mxu0 %v10199
    %10279 = vmatprep.subr.bf16.mxu0 0
    %10280 = vmatpush2.bf16.xpose.msra.mxu0 0
    %10281 = vmatprep.subr.bf16.mxu0 0
    %10282 = vmatpush2.bf16.xpose.msra.mxu0 0
    %10283 = vmatprep.subr.bf16.mxu0 0
    %10284 = vmatpush2.bf16.xpose.msra.mxu0 0
    %10285 = vmatprep.subr.bf16.mxu0 0
    %10286 = vmatpush2.bf16.xpose.msra.mxu0 0
    %10287 = vmatprep.subr.bf16.mxu0 0
    %10288 = vmatpush2.bf16.xpose.msra.mxu0 0
    %10289 = vmatprep.subr.bf16.mxu0 0
    %10290 = vmatpush2.bf16.xpose.msra.mxu0 0
    %10291 = vmatprep.subr.bf16.mxu0 0
    %10292 = vmatpush2.bf16.xpose.msra.mxu0 0
    %10293 = vmatprep.subr.bf16.mxu0 0
    %10294 = vmatpush2.bf16.xpose.msra.mxu0 0
    %10295 = vmatprep.mubr.bf16.mxu0 %v10031
    %10296 = vmatmul.mubr.bf16.gmra.mxu0 %v10030
    %v10297 = vpop.f32.mrf.mxu0
    %v10298 = vadd.f32 %v10101, %v10297
    %v10299 = vpop.f32.mrf.mxu0
    %v10300 = vpop.f32.mrf.mxu0
    %v10301 = vadd.f32 %v10101, %v10300
    %v10302 = vpop.f32.mrf.mxu0
    %10303 = vmatprep.mubr.bf16.mxu0 %v10047
    %10304 = vmatmul.mubr.bf16.gmra.mxu0 %v10046
    %v10305 = vpop.f32.mrf.mxu0
    %v10306 = vadd.f32 %v10101, %v10305
    %v10307 = vpop.f32.mrf.mxu0
    %v10308 = vpop.f32.mrf.mxu0
    %v10309 = vpop.f32.mrf.mxu0
    %10310 = vdwg.mxu0
    %10311 = vmatprep.subr.bf16.mxu0 0
    %10312 = vmatpush1.bf16.xpose.msra.mxu0 0
    %10313 = vmatprep.subr.bf16.mxu0 0
    %10314 = vmatpush1.bf16.xpose.msra.mxu0 0
    %10315 = vmatprep.subr.bf16.mxu0 0
    %10316 = vmatpush1.bf16.xpose.msra.mxu0 0
    %10317 = vmatprep.subr.bf16.mxu0 0
    %10318 = vmatpush1.bf16.xpose.msra.mxu0 0
    %10319 = vmatprep.subr.bf16.mxu0 0
    %10320 = vmatpush1.bf16.xpose.msra.mxu0 0
    %10321 = vmatprep.subr.bf16.mxu0 0
    %10322 = vmatpush1.bf16.xpose.msra.mxu0 0
    %10323 = vmatprep.subr.bf16.mxu0 %v10218
    %10324 = vmatpush1.bf16.xpose.msra.mxu0 %v10217
    %10325 = vmatprep.subr.bf16.mxu0 %v10202
    %10326 = vmatpush1.bf16.xpose.msra.mxu0 %v10201
    %10327 = vmatprep.subr.bf16.mxu0 0
    %10328 = vmatpush2.bf16.xpose.msra.mxu0 0
    %10329 = vmatprep.subr.bf16.mxu0 0
    %10330 = vmatpush2.bf16.xpose.msra.mxu0 0
    %10331 = vmatprep.subr.bf16.mxu0 0
    %10332 = vmatpush2.bf16.xpose.msra.mxu0 0
    %10333 = vmatprep.subr.bf16.mxu0 0
    %10334 = vmatpush2.bf16.xpose.msra.mxu0 0
    %10335 = vmatprep.subr.bf16.mxu0 0
    %10336 = vmatpush2.bf16.xpose.msra.mxu0 0
    %10337 = vmatprep.subr.bf16.mxu0 0
    %10338 = vmatpush2.bf16.xpose.msra.mxu0 0
    %10339 = vmatprep.subr.bf16.mxu0 0
    %10340 = vmatpush2.bf16.xpose.msra.mxu0 0
    %10341 = vmatprep.subr.bf16.mxu0 0
    %10342 = vmatpush2.bf16.xpose.msra.mxu0 0
    %10343 = vmatprep.mubr.bf16.mxu0 %v10033
    %10344 = vmatmul.mubr.bf16.gmra.mxu0 %v10032
    %v10345 = vpop.f32.mrf.mxu0
    %v10346 = vadd.f32 %v10298, %v10345
    %v10347 = vpop.f32.mrf.mxu0
    %v10348 = vpop.f32.mrf.mxu0
    %v10349 = vadd.f32 %v10301, %v10348
    %v10350 = vpop.f32.mrf.mxu0
    %10351 = vmatprep.mubr.bf16.mxu0 %v10049
    %10352 = vmatmul.mubr.bf16.gmra.mxu0 %v10048
    %v10353 = vpop.f32.mrf.mxu0
    %v10354 = vadd.f32 %v10306, %v10353
    %v10355 = vpop.f32.mrf.mxu0
    %v10356 = vpop.f32.mrf.mxu0
    %v10357 = vpop.f32.mrf.mxu0
    %10358 = vdwg.mxu0
    %10359 = vmatprep.subr.bf16.mxu0 0
    %10360 = vmatpush1.bf16.xpose.msra.mxu0 0
    %10361 = vmatprep.subr.bf16.mxu0 0
    %10362 = vmatpush1.bf16.xpose.msra.mxu0 0
    %10363 = vmatprep.subr.bf16.mxu0 0
    %10364 = vmatpush1.bf16.xpose.msra.mxu0 0
    %10365 = vmatprep.subr.bf16.mxu0 0
    %10366 = vmatpush1.bf16.xpose.msra.mxu0 0
    %10367 = vmatprep.subr.bf16.mxu0 0
    %10368 = vmatpush1.bf16.xpose.msra.mxu0 0
    %10369 = vmatprep.subr.bf16.mxu0 0
    %10370 = vmatpush1.bf16.xpose.msra.mxu0 0
    %10371 = vmatprep.subr.bf16.mxu0 %v10220
    %10372 = vmatpush1.bf16.xpose.msra.mxu0 %v10219
    %10373 = vmatprep.subr.bf16.mxu0 %v10204
    %10374 = vmatpush1.bf16.xpose.msra.mxu0 %v10203
    %10375 = vmatprep.subr.bf16.mxu0 0
    %10376 = vmatpush2.bf16.xpose.msra.mxu0 0
    %10377 = vmatprep.subr.bf16.mxu0 0
    %10378 = vmatpush2.bf16.xpose.msra.mxu0 0
    %10379 = vmatprep.subr.bf16.mxu0 0
    %10380 = vmatpush2.bf16.xpose.msra.mxu0 0
    %10381 = vmatprep.subr.bf16.mxu0 0
    %10382 = vmatpush2.bf16.xpose.msra.mxu0 0
    %10383 = vmatprep.subr.bf16.mxu0 0
    %10384 = vmatpush2.bf16.xpose.msra.mxu0 0
    %10385 = vmatprep.subr.bf16.mxu0 0
    %10386 = vmatpush2.bf16.xpose.msra.mxu0 0
    %10387 = vmatprep.subr.bf16.mxu0 0
    %10388 = vmatpush2.bf16.xpose.msra.mxu0 0
    %10389 = vmatprep.subr.bf16.mxu0 0
    %10390 = vmatpush2.bf16.xpose.msra.mxu0 0
    %10391 = vmatprep.mubr.bf16.mxu0 %v10035
    %10392 = vmatmul.mubr.bf16.gmra.mxu0 %v10034
    %v10393 = vpop.f32.mrf.mxu0
    %v10394 = vadd.f32 %v10346, %v10393
    %v10395 = vpop.f32.mrf.mxu0
    %v10396 = vpop.f32.mrf.mxu0
    %v10397 = vadd.f32 %v10349, %v10396
    %v10398 = vpop.f32.mrf.mxu0
    %10399 = vmatprep.mubr.bf16.mxu0 %v10051
    %10400 = vmatmul.mubr.bf16.gmra.mxu0 %v10050
    %v10401 = vpop.f32.mrf.mxu0
    %v10402 = vadd.f32 %v10354, %v10401
    %v10403 = vpop.f32.mrf.mxu0
    %v10404 = vpop.f32.mrf.mxu0
    %v10405 = vpop.f32.mrf.mxu0
    %10406 = vdwg.mxu0
    %10407 = vmatprep.subr.bf16.mxu0 0
    %10408 = vmatpush1.bf16.xpose.msra.mxu0 0
    %10409 = vmatprep.subr.bf16.mxu0 0
    %10410 = vmatpush1.bf16.xpose.msra.mxu0 0
    %10411 = vmatprep.subr.bf16.mxu0 0
    %10412 = vmatpush1.bf16.xpose.msra.mxu0 0
    %10413 = vmatprep.subr.bf16.mxu0 0
    %10414 = vmatpush1.bf16.xpose.msra.mxu0 0
    %10415 = vmatprep.subr.bf16.mxu0 0
    %10416 = vmatpush1.bf16.xpose.msra.mxu0 0
    %10417 = vmatprep.subr.bf16.mxu0 0
    %10418 = vmatpush1.bf16.xpose.msra.mxu0 0
    %10419 = vmatprep.subr.bf16.mxu0 %v10222
    %10420 = vmatpush1.bf16.xpose.msra.mxu0 %v10221
    %10421 = vmatprep.subr.bf16.mxu0 %v10206
    %10422 = vmatpush1.bf16.xpose.msra.mxu0 %v10205
    %10423 = vmatprep.subr.bf16.mxu0 0
    %10424 = vmatpush2.bf16.xpose.msra.mxu0 0
    %10425 = vmatprep.subr.bf16.mxu0 0
    %10426 = vmatpush2.bf16.xpose.msra.mxu0 0
    %10427 = vmatprep.subr.bf16.mxu0 0
    %10428 = vmatpush2.bf16.xpose.msra.mxu0 0
    %10429 = vmatprep.subr.bf16.mxu0 0
    %10430 = vmatpush2.bf16.xpose.msra.mxu0 0
    %10431 = vmatprep.subr.bf16.mxu0 0
    %10432 = vmatpush2.bf16.xpose.msra.mxu0 0
    %10433 = vmatprep.subr.bf16.mxu0 0
    %10434 = vmatpush2.bf16.xpose.msra.mxu0 0
    %10435 = vmatprep.subr.bf16.mxu0 0
    %10436 = vmatpush2.bf16.xpose.msra.mxu0 0
    %10437 = vmatprep.subr.bf16.mxu0 0
    %10438 = vmatpush2.bf16.xpose.msra.mxu0 0
    %10439 = vmatprep.mubr.bf16.mxu0 %v10037
    %10440 = vmatmul.mubr.bf16.gmra.mxu0 %v10036
    %v10441 = vpop.f32.mrf.mxu0
    %v10442 = vadd.f32 %v10394, %v10441
    %v10443 = vpop.f32.mrf.mxu0
    %v10444 = vpop.f32.mrf.mxu0
    %v10445 = vadd.f32 %v10397, %v10444
    %v10446 = vpop.f32.mrf.mxu0
    %10447 = vmatprep.mubr.bf16.mxu0 %v10053
    %10448 = vmatmul.mubr.bf16.gmra.mxu0 %v10052
    %v10449 = vpop.f32.mrf.mxu0
    %v10450 = vadd.f32 %v10402, %v10449
    %v10451 = vpop.f32.mrf.mxu0
    %v10452 = vpop.f32.mrf.mxu0
    %v10453 = vpop.f32.mrf.mxu0
    %10454 = vdwg.mxu0
    %10455 = vmatprep.subr.bf16.mxu0 0
    %10456 = vmatpush1.bf16.xpose.msra.mxu0 0
    %10457 = vmatprep.subr.bf16.mxu0 0
    %10458 = vmatpush1.bf16.xpose.msra.mxu0 0
    %10459 = vmatprep.subr.bf16.mxu0 0
    %10460 = vmatpush1.bf16.xpose.msra.mxu0 0
    %10461 = vmatprep.subr.bf16.mxu0 0
    %10462 = vmatpush1.bf16.xpose.msra.mxu0 0
    %10463 = vmatprep.subr.bf16.mxu0 0
    %10464 = vmatpush1.bf16.xpose.msra.mxu0 0
    %10465 = vmatprep.subr.bf16.mxu0 0
    %10466 = vmatpush1.bf16.xpose.msra.mxu0 0
    %10467 = vmatprep.subr.bf16.mxu0 %v10224
    %10468 = vmatpush1.bf16.xpose.msra.mxu0 %v10223
    %10469 = vmatprep.subr.bf16.mxu0 %v10208
    %10470 = vmatpush1.bf16.xpose.msra.mxu0 %v10207
    %10471 = vmatprep.subr.bf16.mxu0 0
    %10472 = vmatpush2.bf16.xpose.msra.mxu0 0
    %10473 = vmatprep.subr.bf16.mxu0 0
    %10474 = vmatpush2.bf16.xpose.msra.mxu0 0
    %10475 = vmatprep.subr.bf16.mxu0 0
    %10476 = vmatpush2.bf16.xpose.msra.mxu0 0
    %10477 = vmatprep.subr.bf16.mxu0 0
    %10478 = vmatpush2.bf16.xpose.msra.mxu0 0
    %10479 = vmatprep.subr.bf16.mxu0 0
    %10480 = vmatpush2.bf16.xpose.msra.mxu0 0
    %10481 = vmatprep.subr.bf16.mxu0 0
    %10482 = vmatpush2.bf16.xpose.msra.mxu0 0
    %10483 = vmatprep.subr.bf16.mxu0 0
    %10484 = vmatpush2.bf16.xpose.msra.mxu0 0
    %10485 = vmatprep.subr.bf16.mxu0 0
    %10486 = vmatpush2.bf16.xpose.msra.mxu0 0
    %10487 = vmatprep.mubr.bf16.mxu0 %v10039
    %10488 = vmatmul.mubr.bf16.gmra.mxu0 %v10038
    %v10489 = vpop.f32.mrf.mxu0
    %v10490 = vadd.f32 %v10442, %v10489
    %v10491 = vpop.f32.mrf.mxu0
    %v10492 = vpop.f32.mrf.mxu0
    %v10493 = vadd.f32 %v10445, %v10492
    %v10494 = vpop.f32.mrf.mxu0
    %10495 = vmatprep.mubr.bf16.mxu0 %v10055
    %10496 = vmatmul.mubr.bf16.gmra.mxu0 %v10054
    %v10497 = vpop.f32.mrf.mxu0
    %v10498 = vadd.f32 %v10450, %v10497
    %v10499 = vpop.f32.mrf.mxu0
    %v10500 = vpop.f32.mrf.mxu0
    %v10501 = vpop.f32.mrf.mxu0
    %10502 = vdwg.mxu0
    %10503 = vmatprep.subr.bf16.mxu0 0
    %10504 = vmatpush1.bf16.xpose.msra.mxu0 0
    %10505 = vmatprep.subr.bf16.mxu0 0
    %10506 = vmatpush1.bf16.xpose.msra.mxu0 0
    %10507 = vmatprep.subr.bf16.mxu0 0
    %10508 = vmatpush1.bf16.xpose.msra.mxu0 0
    %10509 = vmatprep.subr.bf16.mxu0 0
    %10510 = vmatpush1.bf16.xpose.msra.mxu0 0
    %10511 = vmatprep.subr.bf16.mxu0 0
    %10512 = vmatpush1.bf16.xpose.msra.mxu0 0
    %10513 = vmatprep.subr.bf16.mxu0 0
    %10514 = vmatpush1.bf16.xpose.msra.mxu0 0
    %10515 = vmatprep.subr.bf16.mxu0 %v10226
    %10516 = vmatpush1.bf16.xpose.msra.mxu0 %v10225
    %10517 = vmatprep.subr.bf16.mxu0 %v10210
    %10518 = vmatpush1.bf16.xpose.msra.mxu0 %v10209
    %10519 = vmatprep.subr.bf16.mxu0 0
    %10520 = vmatpush2.bf16.xpose.msra.mxu0 0
    %10521 = vmatprep.subr.bf16.mxu0 0
    %10522 = vmatpush2.bf16.xpose.msra.mxu0 0
    %10523 = vmatprep.subr.bf16.mxu0 0
    %10524 = vmatpush2.bf16.xpose.msra.mxu0 0
    %10525 = vmatprep.subr.bf16.mxu0 0
    %10526 = vmatpush2.bf16.xpose.msra.mxu0 0
    %10527 = vmatprep.subr.bf16.mxu0 0
    %10528 = vmatpush2.bf16.xpose.msra.mxu0 0
    %10529 = vmatprep.subr.bf16.mxu0 0
    %10530 = vmatpush2.bf16.xpose.msra.mxu0 0
    %10531 = vmatprep.subr.bf16.mxu0 0
    %10532 = vmatpush2.bf16.xpose.msra.mxu0 0
    %10533 = vmatprep.subr.bf16.mxu0 0
    %10534 = vmatpush2.bf16.xpose.msra.mxu0 0
    %10535 = vmatprep.mubr.bf16.mxu0 %v10041
    %10536 = vmatmul.mubr.bf16.gmra.mxu0 %v10040
    %v10537 = vpop.f32.mrf.mxu0
    %v10538 = vadd.f32 %v10490, %v10537
    %v10539 = vpop.f32.mrf.mxu0
    %v10540 = vpop.f32.mrf.mxu0
    %v10541 = vadd.f32 %v10493, %v10540
    %v10542 = vpop.f32.mrf.mxu0
    %10543 = vmatprep.mubr.bf16.mxu0 %v10057
    %10544 = vmatmul.mubr.bf16.gmra.mxu0 %v10056
    %v10545 = vpop.f32.mrf.mxu0
    %v10546 = vadd.f32 %v10498, %v10545
    %v10547 = vpop.f32.mrf.mxu0
    %v10548 = vpop.f32.mrf.mxu0
    %v10549 = vpop.f32.mrf.mxu0
    %10550 = vdwg.mxu0
    %10551 = vmatprep.subr.bf16.mxu0 0
    %10552 = vmatpush1.bf16.xpose.msra.mxu0 0
    %10553 = vmatprep.subr.bf16.mxu0 0
    %10554 = vmatpush1.bf16.xpose.msra.mxu0 0
    %10555 = vmatprep.subr.bf16.mxu0 0
    %10556 = vmatpush1.bf16.xpose.msra.mxu0 0
    %10557 = vmatprep.subr.bf16.mxu0 0
    %10558 = vmatpush1.bf16.xpose.msra.mxu0 0
    %10559 = vmatprep.subr.bf16.mxu0 0
    %10560 = vmatpush1.bf16.xpose.msra.mxu0 0
    %10561 = vmatprep.subr.bf16.mxu0 0
    %10562 = vmatpush1.bf16.xpose.msra.mxu0 0
    %10563 = vmatprep.subr.bf16.mxu0 %v10228
    %10564 = vmatpush1.bf16.xpose.msra.mxu0 %v10227
    %10565 = vmatprep.subr.bf16.mxu0 %v10212
    %10566 = vmatpush1.bf16.xpose.msra.mxu0 %v10211
    %10567 = vmatprep.subr.bf16.mxu0 0
    %10568 = vmatpush2.bf16.xpose.msra.mxu0 0
    %10569 = vmatprep.subr.bf16.mxu0 0
    %10570 = vmatpush2.bf16.xpose.msra.mxu0 0
    %10571 = vmatprep.subr.bf16.mxu0 0
    %10572 = vmatpush2.bf16.xpose.msra.mxu0 0
    %10573 = vmatprep.subr.bf16.mxu0 0
    %10574 = vmatpush2.bf16.xpose.msra.mxu0 0
    %10575 = vmatprep.subr.bf16.mxu0 0
    %10576 = vmatpush2.bf16.xpose.msra.mxu0 0
    %10577 = vmatprep.subr.bf16.mxu0 0
    %10578 = vmatpush2.bf16.xpose.msra.mxu0 0
    %10579 = vmatprep.subr.bf16.mxu0 0
    %10580 = vmatpush2.bf16.xpose.msra.mxu0 0
    %10581 = vmatprep.subr.bf16.mxu0 0
    %10582 = vmatpush2.bf16.xpose.msra.mxu0 0
    %10583 = vmatprep.mubr.bf16.mxu0 %v10043
    %10584 = vmatmul.mubr.bf16.gmra.mxu0 %v10042
    %v10585 = vpop.f32.mrf.mxu0
    %v10586 = vadd.f32 %v10538, %v10585
    %v10587 = vpop.f32.mrf.mxu0
    %v10588 = vpop.f32.mrf.mxu0
    %v10589 = vadd.f32 %v10541, %v10588
    %v10590 = vpop.f32.mrf.mxu0
    %10591 = vmatprep.mubr.bf16.mxu0 %v10059
    %10592 = vmatmul.mubr.bf16.gmra.mxu0 %v10058
    %v10593 = vpop.f32.mrf.mxu0
    %v10594 = vadd.f32 %v10546, %v10593
    %v10595 = vpop.f32.mrf.mxu0
    %v10596 = vpop.f32.mrf.mxu0
    %v10597 = vpop.f32.mrf.mxu0
    %10598 = vdwg.mxu0
    %10599 = vmatprep.subr.bf16.mxu0 0
    %10600 = vmatpush1.bf16.xpose.msra.mxu0 0
    %10601 = vmatprep.subr.bf16.mxu0 0
    %10602 = vmatpush1.bf16.xpose.msra.mxu0 0
    %10603 = vmatprep.subr.bf16.mxu0 0
    %10604 = vmatpush1.bf16.xpose.msra.mxu0 0
    %10605 = vmatprep.subr.bf16.mxu0 0
    %10606 = vmatpush1.bf16.xpose.msra.mxu0 0
    %10607 = vmatprep.subr.bf16.mxu0 0
    %10608 = vmatpush1.bf16.xpose.msra.mxu0 0
    %10609 = vmatprep.subr.bf16.mxu0 0
    %10610 = vmatpush1.bf16.xpose.msra.mxu0 0
    %10611 = vmatprep.subr.bf16.mxu0 %v10230
    %10612 = vmatpush1.bf16.xpose.msra.mxu0 %v10229
    %10613 = vmatprep.subr.bf16.mxu0 %v10214
    %10614 = vmatpush1.bf16.xpose.msra.mxu0 %v10213
    %10615 = vmatprep.subr.bf16.mxu0 0
    %10616 = vmatpush2.bf16.xpose.msra.mxu0 0
    %10617 = vmatprep.subr.bf16.mxu0 0
    %10618 = vmatpush2.bf16.xpose.msra.mxu0 0
    %10619 = vmatprep.subr.bf16.mxu0 0
    %10620 = vmatpush2.bf16.xpose.msra.mxu0 0
    %10621 = vmatprep.subr.bf16.mxu0 0
    %10622 = vmatpush2.bf16.xpose.msra.mxu0 0
    %10623 = vmatprep.subr.bf16.mxu0 0
    %10624 = vmatpush2.bf16.xpose.msra.mxu0 0
    %10625 = vmatprep.subr.bf16.mxu0 0
    %10626 = vmatpush2.bf16.xpose.msra.mxu0 0
    %10627 = vmatprep.subr.bf16.mxu0 0
    %10628 = vmatpush2.bf16.xpose.msra.mxu0 0
    %10629 = vmatprep.subr.bf16.mxu0 0
    %10630 = vmatpush2.bf16.xpose.msra.mxu0 0
    %10631 = vmatprep.mubr.bf16.mxu0 %v10045
    %10632 = vmatmul.mubr.bf16.gmra.mxu0 %v10044
    %v10633 = vpop.f32.mrf.mxu0
    %v10634 = vadd.f32 %v10586, %v10633
    %v10635 = vpop.f32.mrf.mxu0
    %v10636 = vpop.f32.mrf.mxu0
    %v10637 = vadd.f32 %v10589, %v10636
    %v10638 = vpop.f32.mrf.mxu0
    %10639 = vmatprep.mubr.bf16.mxu0 %v10061
    %10640 = vmatmul.mubr.bf16.gmra.mxu0 %v10060
    %v10641 = vpop.f32.mrf.mxu0
    %v10642 = vadd.f32 %v10594, %v10641
    %v10643 = vpop.f32.mrf.mxu0
    %v10644 = vpop.f32.mrf.mxu0
    %v10645 = vpop.f32.mrf.mxu0
    %10646 = vdwg.mxu0
    %v10647 = vadd.f32 %v9285, %v10634
    %v10648 = vadd.f32 %v9286, %v10637
    %v10649 = vadd.f32 %v9287, %v10642
    %s10650 = scalar_lea.vmem %s59, 3
    %v10651 = vld [vmem:[%s10650] sm:$0x1]
    %s10652 = scalar_lea.vmem %s61, 3
    %v10653 = vld [vmem:[%s10652] sm:$0x1]
    %v10654 = vsel %vm450, %v10647, 0.0
    %10655 = vadd.xlane.f32.xlu0 %v10654
    %v10656 = vpop.xlane.xlu0 %10655
    %v10657 = vsel %vm450, %v10648, 0.0
    %10658 = vadd.xlane.f32.xlu0 %v10657
    %v10659 = vpop.xlane.xlu0 %10658
    %v10660 = vsel %vm1748, %v10649, 0.0
    %10661 = vadd.xlane.f32.xlu0 %v10660
    %v10662 = vpop.xlane.xlu0 %10661
    %v10663 = vmul.f32 %v10656, %v457
    %v10664 = vmul.f32 %v10659, %v457
    %v10665 = vmul.f32 %v10662, %v457
    %v10666 = vsub.f32 %v10647, %v10663
    %v10667 = vsub.f32 %v10648, %v10664
    %v10668 = vsub.f32 %v10649, %v10665
    %v10669 = vmul.f32 %v10666, %v10666
    %v10670 = vmul.f32 %v10667, %v10667
    %v10671 = vmul.f32 %v10668, %v10668
    %v10672 = vsel %vm450, %v10669, 0.0
    %10673 = vadd.xlane.f32.xlu0 %v10672
    %v10674 = vpop.xlane.xlu0 %10673
    %v10675 = vsel %vm450, %v10670, 0.0
    %10676 = vadd.xlane.f32.xlu0 %v10675
    %v10677 = vpop.xlane.xlu0 %10676
    %v10678 = vsel %vm1748, %v10671, 0.0
    %10679 = vadd.xlane.f32.xlu0 %v10678
    %v10680 = vpop.xlane.xlu0 %10679
    %v10681 = vmul.f32 %v10674, %v457
    %v10682 = vmul.f32 %v10677, %v457
    %v10683 = vmul.f32 %v10680, %v457
    %v10684 = vadd.f32 %v10681, 1e-05
    %v10685 = vadd.f32 %v10682, 1e-05
    %v10686 = vadd.f32 %v10683, 1e-05
    %v10687 = vrsqrt.pop %v10684
    %v10688 = vrsqrt.pop %v10685
    %v10689 = vrsqrt.pop %v10686
    %v10690 = vmul.f32 %v10666, %v10687
    %v10691 = vmul.f32 %v10667, %v10688
    %v10692 = vmul.f32 %v10668, %v10689
    %v10694 = vlaneseq
    %v10695 = vshrl.u32 %v10694, 7
    %v10696 = vsub.s32 0, %v10695
    %v10697 = vrot.slane %v10651, %v10696
    %v10699 = vmul.f32 %v10690, %v10697
    %v10700 = vmul.f32 %v10691, %v10697
    %v10701 = vmul.f32 %v10692, %v10697
    %v10703 = vlaneseq
    %v10704 = vshrl.u32 %v10703, 7
    %v10705 = vsub.s32 0, %v10704
    %v10706 = vrot.slane %v10653, %v10705
    %v10708 = vadd.f32 %v10699, %v10706
    %v10709 = vadd.f32 %v10700, %v10706
    %v10710 = vadd.f32 %v10701, %v10706
    %v10711 = vld [vmem:[%s63] sm:$0x1]
    %v10712 = vld [vmem:[#allocation4] sm:$0x1]
    %10714 = vset.pattern.permute.xlu0 0
    %10715 = vperm.xlu0 %10714, %v10712
    %v10716 = vpop.permute.xlu0 %10715
    %v10718 = vlaneseq
    %v10719 = vshrl.u32 %v10718, 7
    %v10720 = vsub.s32 0, %v10719
    %v10721 = vrot.slane %v10716, %v10720
    %v10723 = vsel %vm450, %v10711, 0
    %v10726 = vsel %vm450, %v10708, 0
    %10728 = vmatprep.subr.mxu0 0.0
    %10729 = vmatpush1.xpose.msra.mxu0 0.0
    %10730 = vmatprep.subr.mxu0 0.0
    %10731 = vmatpush1.xpose.msra.mxu0 0.0
    %10732 = vmatprep.subr.mxu0 0.0
    %10733 = vmatpush1.xpose.msra.mxu0 0.0
    %10734 = vmatprep.subr.mxu0 0.0
    %10735 = vmatpush1.xpose.msra.mxu0 0.0
    %10736 = vmatprep.subr.mxu0 0.0
    %10737 = vmatpush1.xpose.msra.mxu0 0.0
    %10738 = vmatprep.subr.mxu0 0.0
    %10739 = vmatpush1.xpose.msra.mxu0 0.0
    %10740 = vmatprep.subr.mxu0 0.0
    %10741 = vmatpush1.xpose.msra.mxu0 0.0
    %10742 = vmatprep.subr.mxu0 0.0
    %10743 = vmatpush1.xpose.msra.mxu0 0.0
    %10744 = vmatprep.subr.mxu0 0.0
    %10745 = vmatpush1.xpose.msra.mxu0 0.0
    %10746 = vmatprep.subr.mxu0 0.0
    %10747 = vmatpush1.xpose.msra.mxu0 0.0
    %10748 = vmatprep.subr.mxu0 0.0
    %10749 = vmatpush1.xpose.msra.mxu0 0.0
    %10750 = vmatprep.subr.mxu0 0.0
    %10751 = vmatpush1.xpose.msra.mxu0 0.0
    %10752 = vmatprep.subr.mxu0 0.0
    %10753 = vmatpush1.xpose.msra.mxu0 0.0
    %10754 = vmatprep.subr.mxu0 0.0
    %10755 = vmatpush1.xpose.msra.mxu0 0.0
    %10756 = vmatprep.subr.mxu0 0.0
    %10757 = vmatpush1.xpose.msra.mxu0 0.0
    %10758 = vmatprep.subr.mxu0 0.0
    %10759 = vmatpush1.xpose.msra.mxu0 %v10726
    %10760 = vmatprep.subr.mxu0 0.0
    %10761 = vmatpush2.xpose.msra.mxu0 0.0
    %10762 = vmatprep.subr.mxu0 0.0
    %10763 = vmatpush2.xpose.msra.mxu0 0.0
    %10764 = vmatprep.subr.mxu0 0.0
    %10765 = vmatpush2.xpose.msra.mxu0 0.0
    %10766 = vmatprep.subr.mxu0 0.0
    %10767 = vmatpush2.xpose.msra.mxu0 0.0
    %10768 = vmatprep.subr.mxu0 0.0
    %10769 = vmatpush2.xpose.msra.mxu0 0.0
    %10770 = vmatprep.subr.mxu0 0.0
    %10771 = vmatpush2.xpose.msra.mxu0 0.0
    %10772 = vmatprep.subr.mxu0 0.0
    %10773 = vmatpush2.xpose.msra.mxu0 0.0
    %10774 = vmatprep.subr.mxu0 0.0
    %10775 = vmatpush2.xpose.msra.mxu0 0.0
    %10776 = vmatprep.subr.mxu0 0.0
    %10777 = vmatpush2.xpose.msra.mxu0 0.0
    %10778 = vmatprep.subr.mxu0 0.0
    %10779 = vmatpush2.xpose.msra.mxu0 0.0
    %10780 = vmatprep.subr.mxu0 0.0
    %10781 = vmatpush2.xpose.msra.mxu0 0.0
    %10782 = vmatprep.subr.mxu0 0.0
    %10783 = vmatpush2.xpose.msra.mxu0 0.0
    %10784 = vmatprep.subr.mxu0 0.0
    %10785 = vmatpush2.xpose.msra.mxu0 0.0
    %10786 = vmatprep.subr.mxu0 0.0
    %10787 = vmatpush2.xpose.msra.mxu0 0.0
    %10788 = vmatprep.subr.mxu0 0.0
    %10789 = vmatpush2.xpose.msra.mxu0 0.0
    %10790 = vmatprep.subr.mxu0 0.0
    %10791 = vmatpush2.xpose.msra.mxu0 0.0
    %10792 = vmatprep.mubr.f32.mxu0 0.0
    %10793 = vmatmul.mubr.f32.gmra.mxu0 %v10723
    %v10794 = vpop.f32.mrf.mxu0
    %v10795 = vadd.f32 %v10721, %v10794
    %v10796 = vpop.f32.mrf.mxu0
    %10797 = vdwg.mxu0
    %vm10798 = vcmask 57344
    %10799 = vst.msk [vmem:[#allocation32] sm:$0x1] %vm10798, %v10795
    %v10800 = vld [vmem:[#allocation4] sm:$0x1]
    %10802 = vset.pattern.permute.xlu0 0
    %10803 = vperm.xlu0 %10802, %v10800
    %v10804 = vpop.permute.xlu0 %10803
    %v10806 = vlaneseq
    %v10807 = vshrl.u32 %v10806, 7
    %v10808 = vsub.s32 0, %v10807
    %v10809 = vrot.slane %v10804, %v10808
    %v10812 = vrot.slane %v10709, 2
    %v10813 = vrot.slane %v10710, 2
    %v10814 = vsel %vm964, %v10812, %v10813
    %v10815 = vsel %vm450, %v10814, 0
    %10817 = vmatprep.subr.mxu0 0.0
    %10818 = vmatpush1.xpose.msra.mxu0 0.0
    %10819 = vmatprep.subr.mxu0 0.0
    %10820 = vmatpush1.xpose.msra.mxu0 0.0
    %10821 = vmatprep.subr.mxu0 0.0
    %10822 = vmatpush1.xpose.msra.mxu0 0.0
    %10823 = vmatprep.subr.mxu0 0.0
    %10824 = vmatpush1.xpose.msra.mxu0 0.0
    %10825 = vmatprep.subr.mxu0 0.0
    %10826 = vmatpush1.xpose.msra.mxu0 0.0
    %10827 = vmatprep.subr.mxu0 0.0
    %10828 = vmatpush1.xpose.msra.mxu0 0.0
    %10829 = vmatprep.subr.mxu0 0.0
    %10830 = vmatpush1.xpose.msra.mxu0 0.0
    %10831 = vmatprep.subr.mxu0 0.0
    %10832 = vmatpush1.xpose.msra.mxu0 0.0
    %10833 = vmatprep.subr.mxu0 0.0
    %10834 = vmatpush1.xpose.msra.mxu0 0.0
    %10835 = vmatprep.subr.mxu0 0.0
    %10836 = vmatpush1.xpose.msra.mxu0 0.0
    %10837 = vmatprep.subr.mxu0 0.0
    %10838 = vmatpush1.xpose.msra.mxu0 0.0
    %10839 = vmatprep.subr.mxu0 0.0
    %10840 = vmatpush1.xpose.msra.mxu0 0.0
    %10841 = vmatprep.subr.mxu0 0.0
    %10842 = vmatpush1.xpose.msra.mxu0 0.0
    %10843 = vmatprep.subr.mxu0 0.0
    %10844 = vmatpush1.xpose.msra.mxu0 0.0
    %10845 = vmatprep.subr.mxu0 0.0
    %10846 = vmatpush1.xpose.msra.mxu0 0.0
    %10847 = vmatprep.subr.mxu0 0.0
    %10848 = vmatpush1.xpose.msra.mxu0 %v10815
    %10849 = vmatprep.subr.mxu0 0.0
    %10850 = vmatpush2.xpose.msra.mxu0 0.0
    %10851 = vmatprep.subr.mxu0 0.0
    %10852 = vmatpush2.xpose.msra.mxu0 0.0
    %10853 = vmatprep.subr.mxu0 0.0
    %10854 = vmatpush2.xpose.msra.mxu0 0.0
    %10855 = vmatprep.subr.mxu0 0.0
    %10856 = vmatpush2.xpose.msra.mxu0 0.0
    %10857 = vmatprep.subr.mxu0 0.0
    %10858 = vmatpush2.xpose.msra.mxu0 0.0
    %10859 = vmatprep.subr.mxu0 0.0
    %10860 = vmatpush2.xpose.msra.mxu0 0.0
    %10861 = vmatprep.subr.mxu0 0.0
    %10862 = vmatpush2.xpose.msra.mxu0 0.0
    %10863 = vmatprep.subr.mxu0 0.0
    %10864 = vmatpush2.xpose.msra.mxu0 0.0
    %10865 = vmatprep.subr.mxu0 0.0
    %10866 = vmatpush2.xpose.msra.mxu0 0.0
    %10867 = vmatprep.subr.mxu0 0.0
    %10868 = vmatpush2.xpose.msra.mxu0 0.0
    %10869 = vmatprep.subr.mxu0 0.0
    %10870 = vmatpush2.xpose.msra.mxu0 0.0
    %10871 = vmatprep.subr.mxu0 0.0
    %10872 = vmatpush2.xpose.msra.mxu0 0.0
    %10873 = vmatprep.subr.mxu0 0.0
    %10874 = vmatpush2.xpose.msra.mxu0 0.0
    %10875 = vmatprep.subr.mxu0 0.0
    %10876 = vmatpush2.xpose.msra.mxu0 0.0
    %10877 = vmatprep.subr.mxu0 0.0
    %10878 = vmatpush2.xpose.msra.mxu0 0.0
    %10879 = vmatprep.subr.mxu0 0.0
    %10880 = vmatpush2.xpose.msra.mxu0 0.0
    %10881 = vmatprep.mubr.f32.mxu0 0.0
    %10882 = vmatmul.mubr.f32.gmra.mxu0 %v10723
    %v10883 = vpop.f32.mrf.mxu0
    %v10884 = vadd.f32 %v10809, %v10883
    %v10885 = vpop.f32.mrf.mxu0
    %10886 = vdwg.mxu0
    %10887 = vst.msk [vmem:[#allocation32 + $0x1] sm:$0x1] %vm10798, %v10884
    // Predicated region
    $region202: #{tpu_custom_call.1} parent=1 // pred_check
      _
    $region203: #{tpu_custom_call.1} parent=1 // pred_check_branch
      %10889 = sbr.rel (0) target = $region205
    $region204: #{tpu_custom_call.1} parent=1 // pred_region
      %s10891 = ssub.s32 32, 32
      %10892 = vsyncadd [#allocation7], %s10891
      %s10894 = sshll.u32 [#allocation32], 4
      %s10895 = int_to_ptr.vmem [resolvable:$true] %s10894
      %10897 = dma.vmem_to_hbm [thread:$0]  %s10895, 32, %s67, [#allocation7]
    $region205: #{tpu_custom_call.1} parent=1 // pred_fallthru
      _
    // Predicated region
    $region206: #{tpu_custom_call.1} parent=1 // pred_check
      _
    $region207: #{tpu_custom_call.1} parent=1 // pred_check_branch
      %10899 = sbr.rel (0) target = $region209
    $region208: #{tpu_custom_call.1} parent=1 // pred_region
      %10900 = dma.done [#allocation7], 32
    $region209: #{tpu_custom_call.1} parent=1 // pred_fallthru
      _
    %10901 = vsyncpa [#allocation6], 1
    %10902 = vsyncpa [#allocation9], 1
    %10903 = vsyncpa [#allocation12], 1
    %10904 = vsyncpa [#allocation15], 1
    %10905 = vsyncpa [#allocation18], 1
    %10906 = vsyncpa [#allocation21], 1
    %10907 = vsyncpa [#allocation24], 1
    %10908 = vsyncpa [#allocation27], 1
    %10909 = vsyncpa [#allocation30], 1
    %10910 = vsyncpa [#allocation7], 1

</llo_original>
